<compile_context>
chip_gen: v7x
topology: tpu7x:2x2x1
jax: 0.10.0
libtpu: 0.0.40
codegen_flags: <defaults>
</compile_context>

<pallas_src>
import jax
import jax.numpy as jnp
from jax import lax
from jax.experimental import pallas as pl
from jax.experimental.pallas import tpu as pltpu

# ---------------- problem sizes (small, consistent with the module) ----------------
SRC_LEN = 8
TRG_LEN = 6
BATCH = 2
SRC_VOCAB = 32
TRG_VOCAB = 32          # decoder.output_dim
ENC_EMB = 16
DEC_EMB = 16
ENC_HID = 32
DEC_HID = 32


# =========================== fused Seq2Seq forward kernel ===========================
def seq2seq_kernel(src_ref, trg_ref, enc_emb_ref, dec_emb_ref,
                   eWihF_ref, ebihF_ref, eWihB_ref, ebihB_ref,
                   eWhh_ref, ebhh_ref, fcW_ref, fcb_ref,
                   Wae_ref, ba_ref, v_ref,
                   Wid_ref, bid_ref, Wiw_ref, Wcrit_ref, bcrit_ref,
                   Woh_ref, Wow_ref, Woe_ref, bo_ref,
                   out_ref):
    f32 = jnp.float32
    Tsrc, B = src_ref.shape
    Ttrg, _, V = out_ref.shape
    He = eWhh_ref.shape[0] // 2        # encoder hidden size (per direction)
    Hd = Wcrit_ref.shape[0]            # decoder hidden size
    H2 = 2 * He

    # ---- in-kernel embedding lookup: one-hot @ table on the MXU (tables are tiny) ----
    def embed(ids, table):
        T_, B_ = ids.shape
        Vt = table.shape[0]
        onehot = (ids[:, :, None] ==
                  lax.broadcasted_iota(jnp.int32, (T_, B_, Vt), 2)).astype(f32)
        return jnp.dot(onehot.reshape(T_ * B_, Vt), table,
                       preferred_element_type=f32)                    # [T*B, E]

    emb_src = embed(src_ref[...], enc_emb_ref[...])                   # [Tsrc*B, Ee]
    emb_trg = embed(trg_ref[...], dec_emb_ref[...])                   # [Ttrg*B, Ed]

    # ====================== encoder: merged bidirectional GRU ======================
    # hoisted, batched input projections (one matmul per direction for ALL timesteps)
    gi_f = (jnp.dot(emb_src, eWihF_ref[...], preferred_element_type=f32)
            + ebihF_ref[...]).reshape(Tsrc, B, 3 * He)
    gi_b = (jnp.dot(emb_src, eWihB_ref[...], preferred_element_type=f32)
            + ebihB_ref[...]).reshape(Tsrc, B, 3 * He)

    eWhh = eWhh_ref[...]               # [2He, 6He], block-diagonal, gate-major columns
    ebhh = ebhh_ref[...]               # [1, 6He]

    h = jnp.zeros((B, H2), f32)        # [h_fwd | h_bwd]
    fwd = [None] * Tsrc
    bwd = [None] * Tsrc
    for s in range(Tsrc):              # fully unrolled merged fwd/bwd recurrence
        sb = Tsrc - 1 - s
        gf, gb = gi_f[s], gi_b[sb]
        # gate-major merged input gates [r_f r_b | z_f z_b | n_f n_b] (off critical path)
        gi = jnp.concatenate([gf[:, 0:He], gb[:, 0:He],
                              gf[:, He:2 * He], gb[:, He:2 * He],
                              gf[:, 2 * He:], gb[:, 2 * He:]], axis=-1)
        gh = jnp.dot(h, eWhh, preferred_element_type=f32) + ebhh      # one vmatmul / step
        rz = jax.nn.sigmoid(gi[:, :4 * He] + gh[:, :4 * He])
        r, z = rz[:, :H2], rz[:, H2:]
        n = jnp.tanh(gi[:, 4 * He:] + r * gh[:, 4 * He:])
        h = (1.0 - z) * n + z * h
        fwd[s] = h[:, :He]             # forward hidden at time s
        bwd[sb] = h[:, He:]            # backward hidden at time sb

    # encoder outputs, already batch-major [B, Tsrc, 2He] (kills wrapper concat+transpose)
    enc_bt = jnp.stack([jnp.concatenate([fwd[t], bwd[t]], axis=-1) for t in range(Tsrc)],
                       axis=1)
    # decoder initial hidden = tanh(fc([h_fwd(T-1) ; h_bwd(0)])) = tanh(fc(h_final))
    hdec = jnp.tanh(jnp.dot(h, fcW_ref[...], preferred_element_type=f32) + fcb_ref[...])

    # ================ decoder: additive attention + GRU cell per step ================
    # loop-invariant encoder projection of the attention energy (attn bias folded in)
    enc_proj = (jnp.dot(enc_bt.reshape(B * Tsrc, H2), Wae_ref[...],
                        preferred_element_type=f32)
                + ba_ref[...]).reshape(B, Tsrc, Hd)
    v_row = v_ref[...]                                                 # [1, Hd]

    # hoisted, batched per-step input projections for ALL target steps
    gi_d = (jnp.dot(emb_trg, Wid_ref[...], preferred_element_type=f32)
            + bid_ref[...]).reshape(Ttrg, B, 3 * Hd)
    oe_d = jnp.dot(emb_trg, Woe_ref[...],
                   preferred_element_type=f32).reshape(Ttrg, B, V)

    Wiw, Wcrit, bcrit = Wiw_ref[...], Wcrit_ref[...], bcrit_ref[...]
    Woh, Wow, bo = Woh_ref[...], Wow_ref[...], bo_ref[...]

    preds = [jnp.zeros((B, V), f32)]   # outputs[0] stays zero, like torch.zeros(...)
    for t in range(1, Ttrg):           # fully unrolled; always teacher-forced on trg[t-1]
        # single critical-path matmul: [hid_proj | gh] = h @ [Wah | Whh_dec]  ([32, 128])
        hp_gh = jnp.dot(hdec, Wcrit, preferred_element_type=f32) + bcrit
        hid_proj, gh = hp_gh[:, :Hd], hp_gh[:, Hd:]

        # additive attention over source positions
        energy = jnp.tanh(enc_proj + hid_proj[:, None, :])             # [B, Tsrc, Hd]
        scores = jnp.sum(energy * v_row, axis=-1)                      # [B, Tsrc]
        a = jax.nn.softmax(scores, axis=-1)
        # context = bmm(a, encoder_outputs) on the MXU
        weighted = jnp.einsum('bqs,bsh->bqh', a[:, None, :], enc_bt,
                              preferred_element_type=f32)[:, 0, :]     # [B, 2He]

        # GRU cell, input = cat(embedded, weighted) via split weights (emb part hoisted)
        gi = gi_d[t - 1] + jnp.dot(weighted, Wiw, preferred_element_type=f32)
        r = jax.nn.sigmoid(gi[:, :Hd] + gh[:, :Hd])
        z = jax.nn.sigmoid(gi[:, Hd:2 * Hd] + gh[:, Hd:2 * Hd])
        n = jnp.tanh(gi[:, 2 * Hd:] + r * gh[:, 2 * Hd:])
        hdec = (1.0 - z) * n + z * hdec

        # prediction = fc_out(cat(output, weighted, embedded)) via split weights
        preds.append(jnp.dot(hdec, Woh, preferred_element_type=f32)
                     + jnp.dot(weighted, Wow, preferred_element_type=f32)
                     + oe_d[t - 1] + bo)

    out_ref[...] = jnp.stack(preds, axis=0)                            # one store [Ttrg,B,V]


# ---------------------------------- wrapper -----------------------------------------
def _vmem(n):
    return [pl.BlockSpec(memory_space=pltpu.MemorySpace.VMEM) for _ in range(n)]


def seq2seq_forward(src, trg, fp):
    Ttrg, B = trg.shape
    args = (src, trg, fp["enc_emb"], fp["dec_emb"],
            fp["eWihF"], fp["ebihF"], fp["eWihB"], fp["ebihB"],
            fp["eWhh"], fp["ebhh"], fp["fcW"], fp["fcb"],
            fp["Wae"], fp["ba"], fp["v"],
            fp["Wid"], fp["bid"], fp["Wiw"], fp["Wcrit"], fp["bcrit"],
            fp["Woh"], fp["Wow"], fp["Woe"], fp["bo"])
    return pl.pallas_call(
        seq2seq_kernel,
        out_shape=jax.ShapeDtypeStruct((Ttrg, B, TRG_VOCAB), jnp.float32),
        in_specs=_vmem(len(args)),
        out_specs=pl.BlockSpec(memory_space=pltpu.MemorySpace.VMEM),
    )(*args)


# ----------------- parameters: torch-like init + fused kernel layouts ----------------
def init_params(key):
    shapes = {
        "enc_emb": (SRC_VOCAB, ENC_EMB),
        "dec_emb": (TRG_VOCAB, DEC_EMB),
        # encoder bidirectional GRU, gate order (r, z, n) stacked on axis 0
        "Wih_f": (3, ENC_EMB, ENC_HID), "Whh_f": (3, ENC_HID, ENC_HID),
        "bih_f": (3, ENC_HID), "bhh_f": (3, ENC_HID),
        "Wih_b": (3, ENC_EMB, ENC_HID), "Whh_b": (3, ENC_HID, ENC_HID),
        "bih_b": (3, ENC_HID), "bhh_b": (3, ENC_HID),
        # encoder fc: Linear(2*ENC_HID, DEC_HID)
        "fcW": (2 * ENC_HID, DEC_HID), "fcb": (DEC_HID,),
        # attention: Linear(2*ENC_HID + DEC_HID, DEC_HID) split; v: Linear(DEC_HID, 1)
        "Wah": (DEC_HID, DEC_HID), "Wae": (2 * ENC_HID, DEC_HID), "ba": (DEC_HID,),
        "v": (DEC_HID,),
        # decoder GRU: input = cat(emb, weighted) -> split input weights
        "Wie": (3, DEC_EMB, DEC_HID), "Wiw": (3, 2 * ENC_HID, DEC_HID),
        "Whh_d": (3, DEC_HID, DEC_HID), "bih_d": (3, DEC_HID), "bhh_d": (3, DEC_HID),
        # fc_out: Linear(2*ENC_HID + DEC_HID + DEC_EMB, TRG_VOCAB) split
        "Woh": (DEC_HID, TRG_VOCAB), "Wow": (2 * ENC_HID, TRG_VOCAB),
        "Woe": (DEC_EMB, TRG_VOCAB), "bo": (TRG_VOCAB,),
    }
    keys = jax.random.split(key, len(shapes))
    return {name: (0.1 * jax.random.normal(k, shp)).astype(jnp.float32)
            for k, (name, shp) in zip(keys, sorted(shapes.items()))}


def fuse_params(p):
    """Build the gate-fused / direction-merged / critical-path-fused kernel layouts."""
    He, Hd = ENC_HID, DEC_HID
    Z = jnp.zeros((He, He), jnp.float32)

    def fuse_gates(W3):          # (3, in, H) -> (in, 3H), gate order r, z, n
        return jnp.concatenate([W3[0], W3[1], W3[2]], axis=1)

    def fuse_bias(b3):           # (3, H) -> (1, 3H)
        return jnp.concatenate([b3[0], b3[1], b3[2]], axis=0)[None, :]

    # merged bidirectional recurrent weight: rows [h_f | h_b], gate-major columns
    Wf, Wb = p["Whh_f"], p["Whh_b"]
    eWhh = jnp.concatenate([
        jnp.concatenate([Wf[0], Z, Wf[1], Z, Wf[2], Z], axis=1),
        jnp.concatenate([Z, Wb[0], Z, Wb[1], Z, Wb[2]], axis=1)], axis=0)   # [2He, 6He]
    bf, bb = p["bhh_f"], p["bhh_b"]
    ebhh = jnp.concatenate([bf[0], bb[0], bf[1], bb[1], bf[2], bb[2]], axis=0)[None, :]

    Whh_d = fuse_gates(p["Whh_d"])                        # [Hd, 3Hd]
    bhh_d = fuse_bias(p["bhh_d"])                         # [1, 3Hd]
    Wcrit = jnp.concatenate([p["Wah"], Whh_d], axis=1)    # [Hd, 4Hd] = [32, 128]
    bcrit = jnp.concatenate([jnp.zeros((1, Hd), jnp.float32), bhh_d], axis=1)

    return {
        "enc_emb": p["enc_emb"], "dec_emb": p["dec_emb"],
        "eWihF": fuse_gates(p["Wih_f"]), "ebihF": fuse_bias(p["bih_f"]),
        "eWihB": fuse_gates(p["Wih_b"]), "ebihB": fuse_bias(p["bih_b"]),
        "eWhh": eWhh, "ebhh": ebhh,
        "fcW": p["fcW"], "fcb": p["fcb"][None, :],
        "Wae": p["Wae"], "ba": p["ba"][None, :], "v": p["v"][None, :],
        "Wid": fuse_gates(p["Wie"]), "bid": fuse_bias(p["bih_d"]),
        "Wiw": fuse_gates(p["Wiw"]),
        "Wcrit": Wcrit, "bcrit": bcrit,
        "Woh": p["Woh"], "Wow": p["Wow"], "Woe": p["Woe"], "bo": p["bo"][None, :],
    }


# ------------------------ pure-JAX reference (unfused weights) -----------------------
def reference_forward(src, trg, p):
    He = ENC_HID

    def gru_step(x, h, Wih, Whh, bih, bhh):
        gi = [x @ Wih[g] + bih[g] for g in range(3)]
        gh = [h @ Whh[g] + bhh[g] for g in range(3)]
        r = jax.nn.sigmoid(gi[0] + gh[0])
        z = jax.nn.sigmoid(gi[1] + gh[1])
        n = jnp.tanh(gi[2] + r * gh[2])
        return (1.0 - z) * n + z * h

    emb_src = p["enc_emb"][src]                       # [Tsrc, B, Ee]
    Tsrc, B, _ = emb_src.shape
    h_f = jnp.zeros((B, He), jnp.float32)
    h_b = jnp.zeros((B, He), jnp.float32)
    fwd = [None] * Tsrc
    bwd = [None] * Tsrc
    for t in range(Tsrc):
        tb = Tsrc - 1 - t
        h_f = gru_step(emb_src[t], h_f, p["Wih_f"], p["Whh_f"], p["bih_f"], p["bhh_f"])
        h_b = gru_step(emb_src[tb], h_b, p["Wih_b"], p["Whh_b"], p["bih_b"], p["bhh_b"])
        fwd[t] = h_f
        bwd[tb] = h_b
    enc_bt = jnp.stack([jnp.concatenate([fwd[t], bwd[t]], axis=-1) for t in range(Tsrc)],
                       axis=1)                         # [B, Tsrc, 2He]
    hidden = jnp.tanh(jnp.concatenate([h_f, h_b], axis=-1) @ p["fcW"] + p["fcb"])

    emb_trg = p["dec_emb"][trg]                        # [Ttrg, B, Ed]
    Ttrg = trg.shape[0]
    outs = [jnp.zeros((B, TRG_VOCAB), jnp.float32)]
    for t in range(1, Ttrg):
        e = emb_trg[t - 1]
        energy = jnp.tanh(hidden[:, None, :] @ p["Wah"] + enc_bt @ p["Wae"] + p["ba"])
        scores = jnp.einsum('bsh,h->bs', energy, p["v"])
        a = jax.nn.softmax(scores, axis=1)
        weighted = jnp.einsum('bs,bsh->bh', a, enc_bt)
        gi = [e @ p["Wie"][g] + weighted @ p["Wiw"][g] + p["bih_d"][g] for g in range(3)]
        gh = [hidden @ p["Whh_d"][g] + p["bhh_d"][g] for g in range(3)]
        r = jax.nn.sigmoid(gi[0] + gh[0])
        z = jax.nn.sigmoid(gi[1] + gh[1])
        n = jnp.tanh(gi[2] + r * gh[2])
        hidden = (1.0 - z) * n + z * hidden
        outs.append(hidden @ p["Woh"] + weighted @ p["Wow"] + e @ p["Woe"] + p["bo"])
    return jnp.stack(outs, axis=0)


# ------------------------------------- main ------------------------------------------
if __name__ == "__main__":
    root = jax.random.PRNGKey(0)
    pkey, skey, tkey = jax.random.split(root, 3)
    params = init_params(pkey)
    fused = fuse_params(params)

    src = jax.random.randint(skey, (SRC_LEN, BATCH), 0, SRC_VOCAB, dtype=jnp.int32)
    trg = jax.random.randint(tkey, (TRG_LEN, BATCH), 0, TRG_VOCAB, dtype=jnp.int32)

    fwd_fn = jax.jit(seq2seq_forward)
    out = jax.block_until_ready(fwd_fn(src, trg, fused))

    assert out.shape == (TRG_LEN, BATCH, TRG_VOCAB)
    assert bool(jnp.all(jnp.isfinite(out)))
    assert bool(jnp.all(out[0] == 0.0))   # outputs[0] is never written, as in the PyTorch loop

    ref = jax.block_until_ready(jax.jit(reference_forward)(src, trg, params))
    assert bool(jnp.allclose(out, ref, atol=2e-2, rtol=2e-2)), \
        float(jnp.max(jnp.abs(out - ref)))

    print("KERNEL_OK")
</pallas_src>

<mosaic_0001>
module attributes {stable_mosaic.version = 11 : i64} {
  func.func @seq2seq_kernel(%arg0: memref<8x2xi32, #tpu.memory_space<vmem>>, %arg1: memref<6x2xi32, #tpu.memory_space<vmem>>, %arg2: memref<32x16xf32, #tpu.memory_space<vmem>>, %arg3: memref<32x16xf32, #tpu.memory_space<vmem>>, %arg4: memref<16x96xf32, #tpu.memory_space<vmem>>, %arg5: memref<1x96xf32, #tpu.memory_space<vmem>>, %arg6: memref<16x96xf32, #tpu.memory_space<vmem>>, %arg7: memref<1x96xf32, #tpu.memory_space<vmem>>, %arg8: memref<64x192xf32, #tpu.memory_space<vmem>>, %arg9: memref<1x192xf32, #tpu.memory_space<vmem>>, %arg10: memref<64x32xf32, #tpu.memory_space<vmem>>, %arg11: memref<1x32xf32, #tpu.memory_space<vmem>>, %arg12: memref<64x32xf32, #tpu.memory_space<vmem>>, %arg13: memref<1x32xf32, #tpu.memory_space<vmem>>, %arg14: memref<1x32xf32, #tpu.memory_space<vmem>>, %arg15: memref<16x96xf32, #tpu.memory_space<vmem>>, %arg16: memref<1x96xf32, #tpu.memory_space<vmem>>, %arg17: memref<64x96xf32, #tpu.memory_space<vmem>>, %arg18: memref<32x128xf32, #tpu.memory_space<vmem>>, %arg19: memref<1x128xf32, #tpu.memory_space<vmem>>, %arg20: memref<32x32xf32, #tpu.memory_space<vmem>>, %arg21: memref<64x32xf32, #tpu.memory_space<vmem>>, %arg22: memref<16x32xf32, #tpu.memory_space<vmem>>, %arg23: memref<1x32xf32, #tpu.memory_space<vmem>>, %arg24: memref<6x2x32xf32, #tpu.memory_space<vmem>>) attributes {dimension_semantics = [], scalar_prefetch = 0 : i64, scratch_operands = 0 : i64, tpu.core_type = #tpu.core_type<tc>} {
    %c0 = arith.constant 0 : index
    %c0_0 = arith.constant 0 : index
    %0 = vector.load %arg0[%c0, %c0_0] : memref<8x2xi32, #tpu.memory_space<vmem>>, vector<8x2xi32>
    %c0_1 = arith.constant 0 : index
    %c0_2 = arith.constant 0 : index
    %1 = vector.load %arg2[%c0_1, %c0_2] : memref<32x16xf32, #tpu.memory_space<vmem>>, vector<32x16xf32>
    %2 = vector.shape_cast %0 : vector<8x2xi32> to vector<8x2x1xi32>
    %3 = tpu.iota {dimensions = array<i32: 2>} : vector<8x2x32xi32>
    %4 = vector.broadcast %2 : vector<8x2x1xi32> to vector<8x2x32xi32>
    %5 = arith.cmpi eq, %4, %3 : vector<8x2x32xi32>
    %6 = arith.extui %5 : vector<8x2x32xi1> to vector<8x2x32xi32>
    %7 = arith.sitofp %6 : vector<8x2x32xi32> to vector<8x2x32xf32>
    %8 = vector.shape_cast %7 : vector<8x2x32xf32> to vector<16x32xf32>
    %cst = arith.constant dense<0.000000e+00> : vector<16x16xf32>
    %9 = tpu.matmul %8, %1, %cst {dimension_numbers = #tpu.dot_dimension_numbers<[1], [0], [0], [1], [0, 0, 1, 1], [], []>} : vector<16x32xf32>, vector<32x16xf32>, vector<16x16xf32> -> vector<16x16xf32>
    %c0_3 = arith.constant 0 : index
    %c0_4 = arith.constant 0 : index
    %10 = vector.load %arg1[%c0_3, %c0_4] : memref<6x2xi32, #tpu.memory_space<vmem>>, vector<6x2xi32>
    %c0_5 = arith.constant 0 : index
    %c0_6 = arith.constant 0 : index
    %11 = vector.load %arg3[%c0_5, %c0_6] : memref<32x16xf32, #tpu.memory_space<vmem>>, vector<32x16xf32>
    %12 = vector.shape_cast %10 : vector<6x2xi32> to vector<6x2x1xi32>
    %13 = tpu.iota {dimensions = array<i32: 2>} : vector<6x2x32xi32>
    %14 = vector.broadcast %12 : vector<6x2x1xi32> to vector<6x2x32xi32>
    %15 = arith.cmpi eq, %14, %13 : vector<6x2x32xi32>
    %16 = arith.extui %15 : vector<6x2x32xi1> to vector<6x2x32xi32>
    %17 = arith.sitofp %16 : vector<6x2x32xi32> to vector<6x2x32xf32>
    %18 = vector.shape_cast %17 : vector<6x2x32xf32> to vector<12x32xf32>
    %cst_7 = arith.constant dense<0.000000e+00> : vector<12x16xf32>
    %19 = tpu.matmul %18, %11, %cst_7 {dimension_numbers = #tpu.dot_dimension_numbers<[1], [0], [0], [1], [0, 0, 1, 1], [], []>} : vector<12x32xf32>, vector<32x16xf32>, vector<12x16xf32> -> vector<12x16xf32>
    %c0_8 = arith.constant 0 : index
    %c0_9 = arith.constant 0 : index
    %20 = vector.load %arg4[%c0_8, %c0_9] : memref<16x96xf32, #tpu.memory_space<vmem>>, vector<16x96xf32>
    %cst_10 = arith.constant dense<0.000000e+00> : vector<16x96xf32>
    %21 = tpu.matmul %9, %20, %cst_10 {dimension_numbers = #tpu.dot_dimension_numbers<[1], [0], [0], [1], [0, 0, 1, 1], [], []>} : vector<16x16xf32>, vector<16x96xf32>, vector<16x96xf32> -> vector<16x96xf32>
    %c0_11 = arith.constant 0 : index
    %c0_12 = arith.constant 0 : index
    %22 = vector.load %arg5[%c0_11, %c0_12] : memref<1x96xf32, #tpu.memory_space<vmem>>, vector<1x96xf32>
    %23 = vector.broadcast %22 : vector<1x96xf32> to vector<16x96xf32>
    %24 = arith.addf %21, %23 : vector<16x96xf32>
    %25 = vector.shape_cast %24 : vector<16x96xf32> to vector<8x2x96xf32>
    %c0_13 = arith.constant 0 : index
    %c0_14 = arith.constant 0 : index
    %26 = vector.load %arg6[%c0_13, %c0_14] : memref<16x96xf32, #tpu.memory_space<vmem>>, vector<16x96xf32>
    %cst_15 = arith.constant dense<0.000000e+00> : vector<16x96xf32>
    %27 = tpu.matmul %9, %26, %cst_15 {dimension_numbers = #tpu.dot_dimension_numbers<[1], [0], [0], [1], [0, 0, 1, 1], [], []>} : vector<16x16xf32>, vector<16x96xf32>, vector<16x96xf32> -> vector<16x96xf32>
    %c0_16 = arith.constant 0 : index
    %c0_17 = arith.constant 0 : index
    %28 = vector.load %arg7[%c0_16, %c0_17] : memref<1x96xf32, #tpu.memory_space<vmem>>, vector<1x96xf32>
    %29 = vector.broadcast %28 : vector<1x96xf32> to vector<16x96xf32>
    %30 = arith.addf %27, %29 : vector<16x96xf32>
    %31 = vector.shape_cast %30 : vector<16x96xf32> to vector<8x2x96xf32>
    %c0_18 = arith.constant 0 : index
    %c0_19 = arith.constant 0 : index
    %32 = vector.load %arg8[%c0_18, %c0_19] : memref<64x192xf32, #tpu.memory_space<vmem>>, vector<64x192xf32>
    %c0_20 = arith.constant 0 : index
    %c0_21 = arith.constant 0 : index
    %33 = vector.load %arg9[%c0_20, %c0_21] : memref<1x192xf32, #tpu.memory_space<vmem>>, vector<1x192xf32>
    %cst_22 = arith.constant 0.000000e+00 : f32
    %34 = vector.broadcast %cst_22 : f32 to vector<2x64xf32>
    %35 = vector.extract_strided_slice %25 {offsets = [0, 0, 0], sizes = [1, 2, 96], strides = [1, 1, 1]} : vector<8x2x96xf32> to vector<1x2x96xf32>
    %36 = vector.shape_cast %35 : vector<1x2x96xf32> to vector<2x96xf32>
    %37 = vector.extract_strided_slice %31 {offsets = [7, 0, 0], sizes = [1, 2, 96], strides = [1, 1, 1]} : vector<8x2x96xf32> to vector<1x2x96xf32>
    %38 = vector.shape_cast %37 : vector<1x2x96xf32> to vector<2x96xf32>
    %39 = vector.extract_strided_slice %36 {offsets = [0, 0], sizes = [2, 32], strides = [1, 1]} : vector<2x96xf32> to vector<2x32xf32>
    %40 = vector.extract_strided_slice %38 {offsets = [0, 0], sizes = [2, 32], strides = [1, 1]} : vector<2x96xf32> to vector<2x32xf32>
    %41 = vector.extract_strided_slice %36 {offsets = [0, 32], sizes = [2, 32], strides = [1, 1]} : vector<2x96xf32> to vector<2x32xf32>
    %42 = vector.extract_strided_slice %38 {offsets = [0, 32], sizes = [2, 32], strides = [1, 1]} : vector<2x96xf32> to vector<2x32xf32>
    %43 = vector.extract_strided_slice %36 {offsets = [0, 64], sizes = [2, 32], strides = [1, 1]} : vector<2x96xf32> to vector<2x32xf32>
    %44 = vector.extract_strided_slice %38 {offsets = [0, 64], sizes = [2, 32], strides = [1, 1]} : vector<2x96xf32> to vector<2x32xf32>
    %45 = tpu.concatenate %39, %40, %41, %42, %43, %44 in 1 : vector<2x32xf32>, vector<2x32xf32>, vector<2x32xf32>, vector<2x32xf32>, vector<2x32xf32>, vector<2x32xf32> -> vector<2x192xf32>
    %cst_23 = arith.constant dense<0.000000e+00> : vector<2x192xf32>
    %46 = tpu.matmul %34, %32, %cst_23 {dimension_numbers = #tpu.dot_dimension_numbers<[1], [0], [0], [1], [0, 0, 1, 1], [], []>} : vector<2x64xf32>, vector<64x192xf32>, vector<2x192xf32> -> vector<2x192xf32>
    %47 = vector.broadcast %33 : vector<1x192xf32> to vector<2x192xf32>
    %48 = arith.addf %46, %47 : vector<2x192xf32>
    %49 = vector.extract_strided_slice %45 {offsets = [0, 0], sizes = [2, 128], strides = [1, 1]} : vector<2x192xf32> to vector<2x128xf32>
    %50 = vector.extract_strided_slice %48 {offsets = [0, 0], sizes = [2, 128], strides = [1, 1]} : vector<2x192xf32> to vector<2x128xf32>
    %51 = arith.addf %49, %50 : vector<2x128xf32>
    %52 = arith.negf %51 : vector<2x128xf32>
    %53 = math.exp %52 : vector<2x128xf32>
    %cst_24 = arith.constant 1.000000e+00 : f32
    %54 = vector.broadcast %cst_24 : f32 to vector<2x128xf32>
    %55 = arith.addf %54, %53 : vector<2x128xf32>
    %56 = arith.divf %54, %55 : vector<2x128xf32>
    %57 = vector.extract_strided_slice %56 {offsets = [0, 0], sizes = [2, 64], strides = [1, 1]} : vector<2x128xf32> to vector<2x64xf32>
    %58 = vector.extract_strided_slice %56 {offsets = [0, 64], sizes = [2, 64], strides = [1, 1]} : vector<2x128xf32> to vector<2x64xf32>
    %59 = vector.extract_strided_slice %45 {offsets = [0, 128], sizes = [2, 64], strides = [1, 1]} : vector<2x192xf32> to vector<2x64xf32>
    %60 = vector.extract_strided_slice %48 {offsets = [0, 128], sizes = [2, 64], strides = [1, 1]} : vector<2x192xf32> to vector<2x64xf32>
    %61 = arith.mulf %57, %60 : vector<2x64xf32>
    %62 = arith.addf %59, %61 : vector<2x64xf32>
    %63 = math.tanh %62 : vector<2x64xf32>
    %cst_25 = arith.constant 1.000000e+00 : f32
    %64 = vector.broadcast %cst_25 : f32 to vector<2x64xf32>
    %65 = arith.subf %64, %58 : vector<2x64xf32>
    %66 = arith.mulf %65, %63 : vector<2x64xf32>
    %67 = arith.mulf %58, %34 : vector<2x64xf32>
    %68 = arith.addf %66, %67 : vector<2x64xf32>
    %69 = vector.extract_strided_slice %68 {offsets = [0, 0], sizes = [2, 32], strides = [1, 1]} : vector<2x64xf32> to vector<2x32xf32>
    %70 = vector.extract_strided_slice %68 {offsets = [0, 32], sizes = [2, 32], strides = [1, 1]} : vector<2x64xf32> to vector<2x32xf32>
    %71 = vector.extract_strided_slice %25 {offsets = [1, 0, 0], sizes = [1, 2, 96], strides = [1, 1, 1]} : vector<8x2x96xf32> to vector<1x2x96xf32>
    %72 = vector.shape_cast %71 : vector<1x2x96xf32> to vector<2x96xf32>
    %73 = vector.extract_strided_slice %31 {offsets = [6, 0, 0], sizes = [1, 2, 96], strides = [1, 1, 1]} : vector<8x2x96xf32> to vector<1x2x96xf32>
    %74 = vector.shape_cast %73 : vector<1x2x96xf32> to vector<2x96xf32>
    %75 = vector.extract_strided_slice %72 {offsets = [0, 0], sizes = [2, 32], strides = [1, 1]} : vector<2x96xf32> to vector<2x32xf32>
    %76 = vector.extract_strided_slice %74 {offsets = [0, 0], sizes = [2, 32], strides = [1, 1]} : vector<2x96xf32> to vector<2x32xf32>
    %77 = vector.extract_strided_slice %72 {offsets = [0, 32], sizes = [2, 32], strides = [1, 1]} : vector<2x96xf32> to vector<2x32xf32>
    %78 = vector.extract_strided_slice %74 {offsets = [0, 32], sizes = [2, 32], strides = [1, 1]} : vector<2x96xf32> to vector<2x32xf32>
    %79 = vector.extract_strided_slice %72 {offsets = [0, 64], sizes = [2, 32], strides = [1, 1]} : vector<2x96xf32> to vector<2x32xf32>
    %80 = vector.extract_strided_slice %74 {offsets = [0, 64], sizes = [2, 32], strides = [1, 1]} : vector<2x96xf32> to vector<2x32xf32>
    %81 = tpu.concatenate %75, %76, %77, %78, %79, %80 in 1 : vector<2x32xf32>, vector<2x32xf32>, vector<2x32xf32>, vector<2x32xf32>, vector<2x32xf32>, vector<2x32xf32> -> vector<2x192xf32>
    %cst_26 = arith.constant dense<0.000000e+00> : vector<2x192xf32>
    %82 = tpu.matmul %68, %32, %cst_26 {dimension_numbers = #tpu.dot_dimension_numbers<[1], [0], [0], [1], [0, 0, 1, 1], [], []>} : vector<2x64xf32>, vector<64x192xf32>, vector<2x192xf32> -> vector<2x192xf32>
    %83 = vector.broadcast %33 : vector<1x192xf32> to vector<2x192xf32>
    %84 = arith.addf %82, %83 : vector<2x192xf32>
    %85 = vector.extract_strided_slice %81 {offsets = [0, 0], sizes = [2, 128], strides = [1, 1]} : vector<2x192xf32> to vector<2x128xf32>
    %86 = vector.extract_strided_slice %84 {offsets = [0, 0], sizes = [2, 128], strides = [1, 1]} : vector<2x192xf32> to vector<2x128xf32>
    %87 = arith.addf %85, %86 : vector<2x128xf32>
    %88 = arith.negf %87 : vector<2x128xf32>
    %89 = math.exp %88 : vector<2x128xf32>
    %cst_27 = arith.constant 1.000000e+00 : f32
    %90 = vector.broadcast %cst_27 : f32 to vector<2x128xf32>
    %91 = arith.addf %90, %89 : vector<2x128xf32>
    %92 = arith.divf %90, %91 : vector<2x128xf32>
    %93 = vector.extract_strided_slice %92 {offsets = [0, 0], sizes = [2, 64], strides = [1, 1]} : vector<2x128xf32> to vector<2x64xf32>
    %94 = vector.extract_strided_slice %92 {offsets = [0, 64], sizes = [2, 64], strides = [1, 1]} : vector<2x128xf32> to vector<2x64xf32>
    %95 = vector.extract_strided_slice %81 {offsets = [0, 128], sizes = [2, 64], strides = [1, 1]} : vector<2x192xf32> to vector<2x64xf32>
    %96 = vector.extract_strided_slice %84 {offsets = [0, 128], sizes = [2, 64], strides = [1, 1]} : vector<2x192xf32> to vector<2x64xf32>
    %97 = arith.mulf %93, %96 : vector<2x64xf32>
    %98 = arith.addf %95, %97 : vector<2x64xf32>
    %99 = math.tanh %98 : vector<2x64xf32>
    %cst_28 = arith.constant 1.000000e+00 : f32
    %100 = vector.broadcast %cst_28 : f32 to vector<2x64xf32>
    %101 = arith.subf %100, %94 : vector<2x64xf32>
    %102 = arith.mulf %101, %99 : vector<2x64xf32>
    %103 = arith.mulf %94, %68 : vector<2x64xf32>
    %104 = arith.addf %102, %103 : vector<2x64xf32>
    %105 = vector.extract_strided_slice %104 {offsets = [0, 0], sizes = [2, 32], strides = [1, 1]} : vector<2x64xf32> to vector<2x32xf32>
    %106 = vector.extract_strided_slice %104 {offsets = [0, 32], sizes = [2, 32], strides = [1, 1]} : vector<2x64xf32> to vector<2x32xf32>
    %107 = vector.extract_strided_slice %25 {offsets = [2, 0, 0], sizes = [1, 2, 96], strides = [1, 1, 1]} : vector<8x2x96xf32> to vector<1x2x96xf32>
    %108 = vector.shape_cast %107 : vector<1x2x96xf32> to vector<2x96xf32>
    %109 = vector.extract_strided_slice %31 {offsets = [5, 0, 0], sizes = [1, 2, 96], strides = [1, 1, 1]} : vector<8x2x96xf32> to vector<1x2x96xf32>
    %110 = vector.shape_cast %109 : vector<1x2x96xf32> to vector<2x96xf32>
    %111 = vector.extract_strided_slice %108 {offsets = [0, 0], sizes = [2, 32], strides = [1, 1]} : vector<2x96xf32> to vector<2x32xf32>
    %112 = vector.extract_strided_slice %110 {offsets = [0, 0], sizes = [2, 32], strides = [1, 1]} : vector<2x96xf32> to vector<2x32xf32>
    %113 = vector.extract_strided_slice %108 {offsets = [0, 32], sizes = [2, 32], strides = [1, 1]} : vector<2x96xf32> to vector<2x32xf32>
    %114 = vector.extract_strided_slice %110 {offsets = [0, 32], sizes = [2, 32], strides = [1, 1]} : vector<2x96xf32> to vector<2x32xf32>
    %115 = vector.extract_strided_slice %108 {offsets = [0, 64], sizes = [2, 32], strides = [1, 1]} : vector<2x96xf32> to vector<2x32xf32>
    %116 = vector.extract_strided_slice %110 {offsets = [0, 64], sizes = [2, 32], strides = [1, 1]} : vector<2x96xf32> to vector<2x32xf32>
    %117 = tpu.concatenate %111, %112, %113, %114, %115, %116 in 1 : vector<2x32xf32>, vector<2x32xf32>, vector<2x32xf32>, vector<2x32xf32>, vector<2x32xf32>, vector<2x32xf32> -> vector<2x192xf32>
    %cst_29 = arith.constant dense<0.000000e+00> : vector<2x192xf32>
    %118 = tpu.matmul %104, %32, %cst_29 {dimension_numbers = #tpu.dot_dimension_numbers<[1], [0], [0], [1], [0, 0, 1, 1], [], []>} : vector<2x64xf32>, vector<64x192xf32>, vector<2x192xf32> -> vector<2x192xf32>
    %119 = vector.broadcast %33 : vector<1x192xf32> to vector<2x192xf32>
    %120 = arith.addf %118, %119 : vector<2x192xf32>
    %121 = vector.extract_strided_slice %117 {offsets = [0, 0], sizes = [2, 128], strides = [1, 1]} : vector<2x192xf32> to vector<2x128xf32>
    %122 = vector.extract_strided_slice %120 {offsets = [0, 0], sizes = [2, 128], strides = [1, 1]} : vector<2x192xf32> to vector<2x128xf32>
    %123 = arith.addf %121, %122 : vector<2x128xf32>
    %124 = arith.negf %123 : vector<2x128xf32>
    %125 = math.exp %124 : vector<2x128xf32>
    %cst_30 = arith.constant 1.000000e+00 : f32
    %126 = vector.broadcast %cst_30 : f32 to vector<2x128xf32>
    %127 = arith.addf %126, %125 : vector<2x128xf32>
    %128 = arith.divf %126, %127 : vector<2x128xf32>
    %129 = vector.extract_strided_slice %128 {offsets = [0, 0], sizes = [2, 64], strides = [1, 1]} : vector<2x128xf32> to vector<2x64xf32>
    %130 = vector.extract_strided_slice %128 {offsets = [0, 64], sizes = [2, 64], strides = [1, 1]} : vector<2x128xf32> to vector<2x64xf32>
    %131 = vector.extract_strided_slice %117 {offsets = [0, 128], sizes = [2, 64], strides = [1, 1]} : vector<2x192xf32> to vector<2x64xf32>
    %132 = vector.extract_strided_slice %120 {offsets = [0, 128], sizes = [2, 64], strides = [1, 1]} : vector<2x192xf32> to vector<2x64xf32>
    %133 = arith.mulf %129, %132 : vector<2x64xf32>
    %134 = arith.addf %131, %133 : vector<2x64xf32>
    %135 = math.tanh %134 : vector<2x64xf32>
    %cst_31 = arith.constant 1.000000e+00 : f32
    %136 = vector.broadcast %cst_31 : f32 to vector<2x64xf32>
    %137 = arith.subf %136, %130 : vector<2x64xf32>
    %138 = arith.mulf %137, %135 : vector<2x64xf32>
    %139 = arith.mulf %130, %104 : vector<2x64xf32>
    %140 = arith.addf %138, %139 : vector<2x64xf32>
    %141 = vector.extract_strided_slice %140 {offsets = [0, 0], sizes = [2, 32], strides = [1, 1]} : vector<2x64xf32> to vector<2x32xf32>
    %142 = vector.extract_strided_slice %140 {offsets = [0, 32], sizes = [2, 32], strides = [1, 1]} : vector<2x64xf32> to vector<2x32xf32>
    %143 = vector.extract_strided_slice %25 {offsets = [3, 0, 0], sizes = [1, 2, 96], strides = [1, 1, 1]} : vector<8x2x96xf32> to vector<1x2x96xf32>
    %144 = vector.shape_cast %143 : vector<1x2x96xf32> to vector<2x96xf32>
    %145 = vector.extract_strided_slice %31 {offsets = [4, 0, 0], sizes = [1, 2, 96], strides = [1, 1, 1]} : vector<8x2x96xf32> to vector<1x2x96xf32>
    %146 = vector.shape_cast %145 : vector<1x2x96xf32> to vector<2x96xf32>
    %147 = vector.extract_strided_slice %144 {offsets = [0, 0], sizes = [2, 32], strides = [1, 1]} : vector<2x96xf32> to vector<2x32xf32>
    %148 = vector.extract_strided_slice %146 {offsets = [0, 0], sizes = [2, 32], strides = [1, 1]} : vector<2x96xf32> to vector<2x32xf32>
    %149 = vector.extract_strided_slice %144 {offsets = [0, 32], sizes = [2, 32], strides = [1, 1]} : vector<2x96xf32> to vector<2x32xf32>
    %150 = vector.extract_strided_slice %146 {offsets = [0, 32], sizes = [2, 32], strides = [1, 1]} : vector<2x96xf32> to vector<2x32xf32>
    %151 = vector.extract_strided_slice %144 {offsets = [0, 64], sizes = [2, 32], strides = [1, 1]} : vector<2x96xf32> to vector<2x32xf32>
    %152 = vector.extract_strided_slice %146 {offsets = [0, 64], sizes = [2, 32], strides = [1, 1]} : vector<2x96xf32> to vector<2x32xf32>
    %153 = tpu.concatenate %147, %148, %149, %150, %151, %152 in 1 : vector<2x32xf32>, vector<2x32xf32>, vector<2x32xf32>, vector<2x32xf32>, vector<2x32xf32>, vector<2x32xf32> -> vector<2x192xf32>
    %cst_32 = arith.constant dense<0.000000e+00> : vector<2x192xf32>
    %154 = tpu.matmul %140, %32, %cst_32 {dimension_numbers = #tpu.dot_dimension_numbers<[1], [0], [0], [1], [0, 0, 1, 1], [], []>} : vector<2x64xf32>, vector<64x192xf32>, vector<2x192xf32> -> vector<2x192xf32>
    %155 = vector.broadcast %33 : vector<1x192xf32> to vector<2x192xf32>
    %156 = arith.addf %154, %155 : vector<2x192xf32>
    %157 = vector.extract_strided_slice %153 {offsets = [0, 0], sizes = [2, 128], strides = [1, 1]} : vector<2x192xf32> to vector<2x128xf32>
    %158 = vector.extract_strided_slice %156 {offsets = [0, 0], sizes = [2, 128], strides = [1, 1]} : vector<2x192xf32> to vector<2x128xf32>
    %159 = arith.addf %157, %158 : vector<2x128xf32>
    %160 = arith.negf %159 : vector<2x128xf32>
    %161 = math.exp %160 : vector<2x128xf32>
    %cst_33 = arith.constant 1.000000e+00 : f32
    %162 = vector.broadcast %cst_33 : f32 to vector<2x128xf32>
    %163 = arith.addf %162, %161 : vector<2x128xf32>
    %164 = arith.divf %162, %163 : vector<2x128xf32>
    %165 = vector.extract_strided_slice %164 {offsets = [0, 0], sizes = [2, 64], strides = [1, 1]} : vector<2x128xf32> to vector<2x64xf32>
    %166 = vector.extract_strided_slice %164 {offsets = [0, 64], sizes = [2, 64], strides = [1, 1]} : vector<2x128xf32> to vector<2x64xf32>
    %167 = vector.extract_strided_slice %153 {offsets = [0, 128], sizes = [2, 64], strides = [1, 1]} : vector<2x192xf32> to vector<2x64xf32>
    %168 = vector.extract_strided_slice %156 {offsets = [0, 128], sizes = [2, 64], strides = [1, 1]} : vector<2x192xf32> to vector<2x64xf32>
    %169 = arith.mulf %165, %168 : vector<2x64xf32>
    %170 = arith.addf %167, %169 : vector<2x64xf32>
    %171 = math.tanh %170 : vector<2x64xf32>
    %cst_34 = arith.constant 1.000000e+00 : f32
    %172 = vector.broadcast %cst_34 : f32 to vector<2x64xf32>
    %173 = arith.subf %172, %166 : vector<2x64xf32>
    %174 = arith.mulf %173, %171 : vector<2x64xf32>
    %175 = arith.mulf %166, %140 : vector<2x64xf32>
    %176 = arith.addf %174, %175 : vector<2x64xf32>
    %177 = vector.extract_strided_slice %176 {offsets = [0, 0], sizes = [2, 32], strides = [1, 1]} : vector<2x64xf32> to vector<2x32xf32>
    %178 = vector.extract_strided_slice %176 {offsets = [0, 32], sizes = [2, 32], strides = [1, 1]} : vector<2x64xf32> to vector<2x32xf32>
    %179 = vector.extract_strided_slice %25 {offsets = [4, 0, 0], sizes = [1, 2, 96], strides = [1, 1, 1]} : vector<8x2x96xf32> to vector<1x2x96xf32>
    %180 = vector.shape_cast %179 : vector<1x2x96xf32> to vector<2x96xf32>
    %181 = vector.extract_strided_slice %31 {offsets = [3, 0, 0], sizes = [1, 2, 96], strides = [1, 1, 1]} : vector<8x2x96xf32> to vector<1x2x96xf32>
    %182 = vector.shape_cast %181 : vector<1x2x96xf32> to vector<2x96xf32>
    %183 = vector.extract_strided_slice %180 {offsets = [0, 0], sizes = [2, 32], strides = [1, 1]} : vector<2x96xf32> to vector<2x32xf32>
    %184 = vector.extract_strided_slice %182 {offsets = [0, 0], sizes = [2, 32], strides = [1, 1]} : vector<2x96xf32> to vector<2x32xf32>
    %185 = vector.extract_strided_slice %180 {offsets = [0, 32], sizes = [2, 32], strides = [1, 1]} : vector<2x96xf32> to vector<2x32xf32>
    %186 = vector.extract_strided_slice %182 {offsets = [0, 32], sizes = [2, 32], strides = [1, 1]} : vector<2x96xf32> to vector<2x32xf32>
    %187 = vector.extract_strided_slice %180 {offsets = [0, 64], sizes = [2, 32], strides = [1, 1]} : vector<2x96xf32> to vector<2x32xf32>
    %188 = vector.extract_strided_slice %182 {offsets = [0, 64], sizes = [2, 32], strides = [1, 1]} : vector<2x96xf32> to vector<2x32xf32>
    %189 = tpu.concatenate %183, %184, %185, %186, %187, %188 in 1 : vector<2x32xf32>, vector<2x32xf32>, vector<2x32xf32>, vector<2x32xf32>, vector<2x32xf32>, vector<2x32xf32> -> vector<2x192xf32>
    %cst_35 = arith.constant dense<0.000000e+00> : vector<2x192xf32>
    %190 = tpu.matmul %176, %32, %cst_35 {dimension_numbers = #tpu.dot_dimension_numbers<[1], [0], [0], [1], [0, 0, 1, 1], [], []>} : vector<2x64xf32>, vector<64x192xf32>, vector<2x192xf32> -> vector<2x192xf32>
    %191 = vector.broadcast %33 : vector<1x192xf32> to vector<2x192xf32>
    %192 = arith.addf %190, %191 : vector<2x192xf32>
    %193 = vector.extract_strided_slice %189 {offsets = [0, 0], sizes = [2, 128], strides = [1, 1]} : vector<2x192xf32> to vector<2x128xf32>
    %194 = vector.extract_strided_slice %192 {offsets = [0, 0], sizes = [2, 128], strides = [1, 1]} : vector<2x192xf32> to vector<2x128xf32>
    %195 = arith.addf %193, %194 : vector<2x128xf32>
    %196 = arith.negf %195 : vector<2x128xf32>
    %197 = math.exp %196 : vector<2x128xf32>
    %cst_36 = arith.constant 1.000000e+00 : f32
    %198 = vector.broadcast %cst_36 : f32 to vector<2x128xf32>
    %199 = arith.addf %198, %197 : vector<2x128xf32>
    %200 = arith.divf %198, %199 : vector<2x128xf32>
    %201 = vector.extract_strided_slice %200 {offsets = [0, 0], sizes = [2, 64], strides = [1, 1]} : vector<2x128xf32> to vector<2x64xf32>
    %202 = vector.extract_strided_slice %200 {offsets = [0, 64], sizes = [2, 64], strides = [1, 1]} : vector<2x128xf32> to vector<2x64xf32>
    %203 = vector.extract_strided_slice %189 {offsets = [0, 128], sizes = [2, 64], strides = [1, 1]} : vector<2x192xf32> to vector<2x64xf32>
    %204 = vector.extract_strided_slice %192 {offsets = [0, 128], sizes = [2, 64], strides = [1, 1]} : vector<2x192xf32> to vector<2x64xf32>
    %205 = arith.mulf %201, %204 : vector<2x64xf32>
    %206 = arith.addf %203, %205 : vector<2x64xf32>
    %207 = math.tanh %206 : vector<2x64xf32>
    %cst_37 = arith.constant 1.000000e+00 : f32
    %208 = vector.broadcast %cst_37 : f32 to vector<2x64xf32>
    %209 = arith.subf %208, %202 : vector<2x64xf32>
    %210 = arith.mulf %209, %207 : vector<2x64xf32>
    %211 = arith.mulf %202, %176 : vector<2x64xf32>
    %212 = arith.addf %210, %211 : vector<2x64xf32>
    %213 = vector.extract_strided_slice %212 {offsets = [0, 0], sizes = [2, 32], strides = [1, 1]} : vector<2x64xf32> to vector<2x32xf32>
    %214 = vector.extract_strided_slice %212 {offsets = [0, 32], sizes = [2, 32], strides = [1, 1]} : vector<2x64xf32> to vector<2x32xf32>
    %215 = vector.extract_strided_slice %25 {offsets = [5, 0, 0], sizes = [1, 2, 96], strides = [1, 1, 1]} : vector<8x2x96xf32> to vector<1x2x96xf32>
    %216 = vector.shape_cast %215 : vector<1x2x96xf32> to vector<2x96xf32>
    %217 = vector.extract_strided_slice %31 {offsets = [2, 0, 0], sizes = [1, 2, 96], strides = [1, 1, 1]} : vector<8x2x96xf32> to vector<1x2x96xf32>
    %218 = vector.shape_cast %217 : vector<1x2x96xf32> to vector<2x96xf32>
    %219 = vector.extract_strided_slice %216 {offsets = [0, 0], sizes = [2, 32], strides = [1, 1]} : vector<2x96xf32> to vector<2x32xf32>
    %220 = vector.extract_strided_slice %218 {offsets = [0, 0], sizes = [2, 32], strides = [1, 1]} : vector<2x96xf32> to vector<2x32xf32>
    %221 = vector.extract_strided_slice %216 {offsets = [0, 32], sizes = [2, 32], strides = [1, 1]} : vector<2x96xf32> to vector<2x32xf32>
    %222 = vector.extract_strided_slice %218 {offsets = [0, 32], sizes = [2, 32], strides = [1, 1]} : vector<2x96xf32> to vector<2x32xf32>
    %223 = vector.extract_strided_slice %216 {offsets = [0, 64], sizes = [2, 32], strides = [1, 1]} : vector<2x96xf32> to vector<2x32xf32>
    %224 = vector.extract_strided_slice %218 {offsets = [0, 64], sizes = [2, 32], strides = [1, 1]} : vector<2x96xf32> to vector<2x32xf32>
    %225 = tpu.concatenate %219, %220, %221, %222, %223, %224 in 1 : vector<2x32xf32>, vector<2x32xf32>, vector<2x32xf32>, vector<2x32xf32>, vector<2x32xf32>, vector<2x32xf32> -> vector<2x192xf32>
    %cst_38 = arith.constant dense<0.000000e+00> : vector<2x192xf32>
    %226 = tpu.matmul %212, %32, %cst_38 {dimension_numbers = #tpu.dot_dimension_numbers<[1], [0], [0], [1], [0, 0, 1, 1], [], []>} : vector<2x64xf32>, vector<64x192xf32>, vector<2x192xf32> -> vector<2x192xf32>
    %227 = vector.broadcast %33 : vector<1x192xf32> to vector<2x192xf32>
    %228 = arith.addf %226, %227 : vector<2x192xf32>
    %229 = vector.extract_strided_slice %225 {offsets = [0, 0], sizes = [2, 128], strides = [1, 1]} : vector<2x192xf32> to vector<2x128xf32>
    %230 = vector.extract_strided_slice %228 {offsets = [0, 0], sizes = [2, 128], strides = [1, 1]} : vector<2x192xf32> to vector<2x128xf32>
    %231 = arith.addf %229, %230 : vector<2x128xf32>
    %232 = arith.negf %231 : vector<2x128xf32>
    %233 = math.exp %232 : vector<2x128xf32>
    %cst_39 = arith.constant 1.000000e+00 : f32
    %234 = vector.broadcast %cst_39 : f32 to vector<2x128xf32>
    %235 = arith.addf %234, %233 : vector<2x128xf32>
    %236 = arith.divf %234, %235 : vector<2x128xf32>
    %237 = vector.extract_strided_slice %236 {offsets = [0, 0], sizes = [2, 64], strides = [1, 1]} : vector<2x128xf32> to vector<2x64xf32>
    %238 = vector.extract_strided_slice %236 {offsets = [0, 64], sizes = [2, 64], strides = [1, 1]} : vector<2x128xf32> to vector<2x64xf32>
    %239 = vector.extract_strided_slice %225 {offsets = [0, 128], sizes = [2, 64], strides = [1, 1]} : vector<2x192xf32> to vector<2x64xf32>
    %240 = vector.extract_strided_slice %228 {offsets = [0, 128], sizes = [2, 64], strides = [1, 1]} : vector<2x192xf32> to vector<2x64xf32>
    %241 = arith.mulf %237, %240 : vector<2x64xf32>
    %242 = arith.addf %239, %241 : vector<2x64xf32>
    %243 = math.tanh %242 : vector<2x64xf32>
    %cst_40 = arith.constant 1.000000e+00 : f32
    %244 = vector.broadcast %cst_40 : f32 to vector<2x64xf32>
    %245 = arith.subf %244, %238 : vector<2x64xf32>
    %246 = arith.mulf %245, %243 : vector<2x64xf32>
    %247 = arith.mulf %238, %212 : vector<2x64xf32>
    %248 = arith.addf %246, %247 : vector<2x64xf32>
    %249 = vector.extract_strided_slice %248 {offsets = [0, 0], sizes = [2, 32], strides = [1, 1]} : vector<2x64xf32> to vector<2x32xf32>
    %250 = vector.extract_strided_slice %248 {offsets = [0, 32], sizes = [2, 32], strides = [1, 1]} : vector<2x64xf32> to vector<2x32xf32>
    %251 = vector.extract_strided_slice %25 {offsets = [6, 0, 0], sizes = [1, 2, 96], strides = [1, 1, 1]} : vector<8x2x96xf32> to vector<1x2x96xf32>
    %252 = vector.shape_cast %251 : vector<1x2x96xf32> to vector<2x96xf32>
    %253 = vector.extract_strided_slice %31 {offsets = [1, 0, 0], sizes = [1, 2, 96], strides = [1, 1, 1]} : vector<8x2x96xf32> to vector<1x2x96xf32>
    %254 = vector.shape_cast %253 : vector<1x2x96xf32> to vector<2x96xf32>
    %255 = vector.extract_strided_slice %252 {offsets = [0, 0], sizes = [2, 32], strides = [1, 1]} : vector<2x96xf32> to vector<2x32xf32>
    %256 = vector.extract_strided_slice %254 {offsets = [0, 0], sizes = [2, 32], strides = [1, 1]} : vector<2x96xf32> to vector<2x32xf32>
    %257 = vector.extract_strided_slice %252 {offsets = [0, 32], sizes = [2, 32], strides = [1, 1]} : vector<2x96xf32> to vector<2x32xf32>
    %258 = vector.extract_strided_slice %254 {offsets = [0, 32], sizes = [2, 32], strides = [1, 1]} : vector<2x96xf32> to vector<2x32xf32>
    %259 = vector.extract_strided_slice %252 {offsets = [0, 64], sizes = [2, 32], strides = [1, 1]} : vector<2x96xf32> to vector<2x32xf32>
    %260 = vector.extract_strided_slice %254 {offsets = [0, 64], sizes = [2, 32], strides = [1, 1]} : vector<2x96xf32> to vector<2x32xf32>
    %261 = tpu.concatenate %255, %256, %257, %258, %259, %260 in 1 : vector<2x32xf32>, vector<2x32xf32>, vector<2x32xf32>, vector<2x32xf32>, vector<2x32xf32>, vector<2x32xf32> -> vector<2x192xf32>
    %cst_41 = arith.constant dense<0.000000e+00> : vector<2x192xf32>
    %262 = tpu.matmul %248, %32, %cst_41 {dimension_numbers = #tpu.dot_dimension_numbers<[1], [0], [0], [1], [0, 0, 1, 1], [], []>} : vector<2x64xf32>, vector<64x192xf32>, vector<2x192xf32> -> vector<2x192xf32>
    %263 = vector.broadcast %33 : vector<1x192xf32> to vector<2x192xf32>
    %264 = arith.addf %262, %263 : vector<2x192xf32>
    %265 = vector.extract_strided_slice %261 {offsets = [0, 0], sizes = [2, 128], strides = [1, 1]} : vector<2x192xf32> to vector<2x128xf32>
    %266 = vector.extract_strided_slice %264 {offsets = [0, 0], sizes = [2, 128], strides = [1, 1]} : vector<2x192xf32> to vector<2x128xf32>
    %267 = arith.addf %265, %266 : vector<2x128xf32>
    %268 = arith.negf %267 : vector<2x128xf32>
    %269 = math.exp %268 : vector<2x128xf32>
    %cst_42 = arith.constant 1.000000e+00 : f32
    %270 = vector.broadcast %cst_42 : f32 to vector<2x128xf32>
    %271 = arith.addf %270, %269 : vector<2x128xf32>
    %272 = arith.divf %270, %271 : vector<2x128xf32>
    %273 = vector.extract_strided_slice %272 {offsets = [0, 0], sizes = [2, 64], strides = [1, 1]} : vector<2x128xf32> to vector<2x64xf32>
    %274 = vector.extract_strided_slice %272 {offsets = [0, 64], sizes = [2, 64], strides = [1, 1]} : vector<2x128xf32> to vector<2x64xf32>
    %275 = vector.extract_strided_slice %261 {offsets = [0, 128], sizes = [2, 64], strides = [1, 1]} : vector<2x192xf32> to vector<2x64xf32>
    %276 = vector.extract_strided_slice %264 {offsets = [0, 128], sizes = [2, 64], strides = [1, 1]} : vector<2x192xf32> to vector<2x64xf32>
    %277 = arith.mulf %273, %276 : vector<2x64xf32>
    %278 = arith.addf %275, %277 : vector<2x64xf32>
    %279 = math.tanh %278 : vector<2x64xf32>
    %cst_43 = arith.constant 1.000000e+00 : f32
    %280 = vector.broadcast %cst_43 : f32 to vector<2x64xf32>
    %281 = arith.subf %280, %274 : vector<2x64xf32>
    %282 = arith.mulf %281, %279 : vector<2x64xf32>
    %283 = arith.mulf %274, %248 : vector<2x64xf32>
    %284 = arith.addf %282, %283 : vector<2x64xf32>
    %285 = vector.extract_strided_slice %284 {offsets = [0, 0], sizes = [2, 32], strides = [1, 1]} : vector<2x64xf32> to vector<2x32xf32>
    %286 = vector.extract_strided_slice %284 {offsets = [0, 32], sizes = [2, 32], strides = [1, 1]} : vector<2x64xf32> to vector<2x32xf32>
    %287 = vector.extract_strided_slice %25 {offsets = [7, 0, 0], sizes = [1, 2, 96], strides = [1, 1, 1]} : vector<8x2x96xf32> to vector<1x2x96xf32>
    %288 = vector.shape_cast %287 : vector<1x2x96xf32> to vector<2x96xf32>
    %289 = vector.extract_strided_slice %31 {offsets = [0, 0, 0], sizes = [1, 2, 96], strides = [1, 1, 1]} : vector<8x2x96xf32> to vector<1x2x96xf32>
    %290 = vector.shape_cast %289 : vector<1x2x96xf32> to vector<2x96xf32>
    %291 = vector.extract_strided_slice %288 {offsets = [0, 0], sizes = [2, 32], strides = [1, 1]} : vector<2x96xf32> to vector<2x32xf32>
    %292 = vector.extract_strided_slice %290 {offsets = [0, 0], sizes = [2, 32], strides = [1, 1]} : vector<2x96xf32> to vector<2x32xf32>
    %293 = vector.extract_strided_slice %288 {offsets = [0, 32], sizes = [2, 32], strides = [1, 1]} : vector<2x96xf32> to vector<2x32xf32>
    %294 = vector.extract_strided_slice %290 {offsets = [0, 32], sizes = [2, 32], strides = [1, 1]} : vector<2x96xf32> to vector<2x32xf32>
    %295 = vector.extract_strided_slice %288 {offsets = [0, 64], sizes = [2, 32], strides = [1, 1]} : vector<2x96xf32> to vector<2x32xf32>
    %296 = vector.extract_strided_slice %290 {offsets = [0, 64], sizes = [2, 32], strides = [1, 1]} : vector<2x96xf32> to vector<2x32xf32>
    %297 = tpu.concatenate %291, %292, %293, %294, %295, %296 in 1 : vector<2x32xf32>, vector<2x32xf32>, vector<2x32xf32>, vector<2x32xf32>, vector<2x32xf32>, vector<2x32xf32> -> vector<2x192xf32>
    %cst_44 = arith.constant dense<0.000000e+00> : vector<2x192xf32>
    %298 = tpu.matmul %284, %32, %cst_44 {dimension_numbers = #tpu.dot_dimension_numbers<[1], [0], [0], [1], [0, 0, 1, 1], [], []>} : vector<2x64xf32>, vector<64x192xf32>, vector<2x192xf32> -> vector<2x192xf32>
    %299 = vector.broadcast %33 : vector<1x192xf32> to vector<2x192xf32>
    %300 = arith.addf %298, %299 : vector<2x192xf32>
    %301 = vector.extract_strided_slice %297 {offsets = [0, 0], sizes = [2, 128], strides = [1, 1]} : vector<2x192xf32> to vector<2x128xf32>
    %302 = vector.extract_strided_slice %300 {offsets = [0, 0], sizes = [2, 128], strides = [1, 1]} : vector<2x192xf32> to vector<2x128xf32>
    %303 = arith.addf %301, %302 : vector<2x128xf32>
    %304 = arith.negf %303 : vector<2x128xf32>
    %305 = math.exp %304 : vector<2x128xf32>
    %cst_45 = arith.constant 1.000000e+00 : f32
    %306 = vector.broadcast %cst_45 : f32 to vector<2x128xf32>
    %307 = arith.addf %306, %305 : vector<2x128xf32>
    %308 = arith.divf %306, %307 : vector<2x128xf32>
    %309 = vector.extract_strided_slice %308 {offsets = [0, 0], sizes = [2, 64], strides = [1, 1]} : vector<2x128xf32> to vector<2x64xf32>
    %310 = vector.extract_strided_slice %308 {offsets = [0, 64], sizes = [2, 64], strides = [1, 1]} : vector<2x128xf32> to vector<2x64xf32>
    %311 = vector.extract_strided_slice %297 {offsets = [0, 128], sizes = [2, 64], strides = [1, 1]} : vector<2x192xf32> to vector<2x64xf32>
    %312 = vector.extract_strided_slice %300 {offsets = [0, 128], sizes = [2, 64], strides = [1, 1]} : vector<2x192xf32> to vector<2x64xf32>
    %313 = arith.mulf %309, %312 : vector<2x64xf32>
    %314 = arith.addf %311, %313 : vector<2x64xf32>
    %315 = math.tanh %314 : vector<2x64xf32>
    %cst_46 = arith.constant 1.000000e+00 : f32
    %316 = vector.broadcast %cst_46 : f32 to vector<2x64xf32>
    %317 = arith.subf %316, %310 : vector<2x64xf32>
    %318 = arith.mulf %317, %315 : vector<2x64xf32>
    %319 = arith.mulf %310, %284 : vector<2x64xf32>
    %320 = arith.addf %318, %319 : vector<2x64xf32>
    %321 = vector.extract_strided_slice %320 {offsets = [0, 0], sizes = [2, 32], strides = [1, 1]} : vector<2x64xf32> to vector<2x32xf32>
    %322 = vector.extract_strided_slice %320 {offsets = [0, 32], sizes = [2, 32], strides = [1, 1]} : vector<2x64xf32> to vector<2x32xf32>
    %323 = tpu.concatenate %69, %322 in 1 : vector<2x32xf32>, vector<2x32xf32> -> vector<2x64xf32>
    %324 = tpu.concatenate %105, %286 in 1 : vector<2x32xf32>, vector<2x32xf32> -> vector<2x64xf32>
    %325 = tpu.concatenate %141, %250 in 1 : vector<2x32xf32>, vector<2x32xf32> -> vector<2x64xf32>
    %326 = tpu.concatenate %177, %214 in 1 : vector<2x32xf32>, vector<2x32xf32> -> vector<2x64xf32>
    %327 = tpu.concatenate %213, %178 in 1 : vector<2x32xf32>, vector<2x32xf32> -> vector<2x64xf32>
    %328 = tpu.concatenate %249, %142 in 1 : vector<2x32xf32>, vector<2x32xf32> -> vector<2x64xf32>
    %329 = tpu.concatenate %285, %106 in 1 : vector<2x32xf32>, vector<2x32xf32> -> vector<2x64xf32>
    %330 = tpu.concatenate %321, %70 in 1 : vector<2x32xf32>, vector<2x32xf32> -> vector<2x64xf32>
    %331 = vector.shape_cast %323 : vector<2x64xf32> to vector<2x1x64xf32>
    %332 = vector.shape_cast %324 : vector<2x64xf32> to vector<2x1x64xf32>
    %333 = vector.shape_cast %325 : vector<2x64xf32> to vector<2x1x64xf32>
    %334 = vector.shape_cast %326 : vector<2x64xf32> to vector<2x1x64xf32>
    %335 = vector.shape_cast %327 : vector<2x64xf32> to vector<2x1x64xf32>
    %336 = vector.shape_cast %328 : vector<2x64xf32> to vector<2x1x64xf32>
    %337 = vector.shape_cast %329 : vector<2x64xf32> to vector<2x1x64xf32>
    %338 = vector.shape_cast %330 : vector<2x64xf32> to vector<2x1x64xf32>
    %339 = tpu.concatenate %331, %332, %333, %334, %335, %336, %337, %338 in 1 : vector<2x1x64xf32>, vector<2x1x64xf32>, vector<2x1x64xf32>, vector<2x1x64xf32>, vector<2x1x64xf32>, vector<2x1x64xf32>, vector<2x1x64xf32>, vector<2x1x64xf32> -> vector<2x8x64xf32>
    %c0_47 = arith.constant 0 : index
    %c0_48 = arith.constant 0 : index
    %340 = vector.load %arg10[%c0_47, %c0_48] : memref<64x32xf32, #tpu.memory_space<vmem>>, vector<64x32xf32>
    %cst_49 = arith.constant dense<0.000000e+00> : vector<2x32xf32>
    %341 = tpu.matmul %320, %340, %cst_49 {dimension_numbers = #tpu.dot_dimension_numbers<[1], [0], [0], [1], [0, 0, 1, 1], [], []>} : vector<2x64xf32>, vector<64x32xf32>, vector<2x32xf32> -> vector<2x32xf32>
    %c0_50 = arith.constant 0 : index
    %c0_51 = arith.constant 0 : index
    %342 = vector.load %arg11[%c0_50, %c0_51] : memref<1x32xf32, #tpu.memory_space<vmem>>, vector<1x32xf32>
    %343 = vector.broadcast %342 : vector<1x32xf32> to vector<2x32xf32>
    %344 = arith.addf %341, %343 : vector<2x32xf32>
    %345 = math.tanh %344 : vector<2x32xf32>
    %346 = vector.shape_cast %339 : vector<2x8x64xf32> to vector<16x64xf32>
    %c0_52 = arith.constant 0 : index
    %c0_53 = arith.constant 0 : index
    %347 = vector.load %arg12[%c0_52, %c0_53] : memref<64x32xf32, #tpu.memory_space<vmem>>, vector<64x32xf32>
    %cst_54 = arith.constant dense<0.000000e+00> : vector<16x32xf32>
    %348 = tpu.matmul %346, %347, %cst_54 {dimension_numbers = #tpu.dot_dimension_numbers<[1], [0], [0], [1], [0, 0, 1, 1], [], []>} : vector<16x64xf32>, vector<64x32xf32>, vector<16x32xf32> -> vector<16x32xf32>
    %c0_55 = arith.constant 0 : index
    %c0_56 = arith.constant 0 : index
    %349 = vector.load %arg13[%c0_55, %c0_56] : memref<1x32xf32, #tpu.memory_space<vmem>>, vector<1x32xf32>
    %350 = vector.broadcast %349 : vector<1x32xf32> to vector<16x32xf32>
    %351 = arith.addf %348, %350 : vector<16x32xf32>
    %352 = vector.shape_cast %351 : vector<16x32xf32> to vector<2x8x32xf32>
    %c0_57 = arith.constant 0 : index
    %c0_58 = arith.constant 0 : index
    %353 = vector.load %arg14[%c0_57, %c0_58] : memref<1x32xf32, #tpu.memory_space<vmem>>, vector<1x32xf32>
    %c0_59 = arith.constant 0 : index
    %c0_60 = arith.constant 0 : index
    %354 = vector.load %arg15[%c0_59, %c0_60] : memref<16x96xf32, #tpu.memory_space<vmem>>, vector<16x96xf32>
    %cst_61 = arith.constant dense<0.000000e+00> : vector<12x96xf32>
    %355 = tpu.matmul %19, %354, %cst_61 {dimension_numbers = #tpu.dot_dimension_numbers<[1], [0], [0], [1], [0, 0, 1, 1], [], []>} : vector<12x16xf32>, vector<16x96xf32>, vector<12x96xf32> -> vector<12x96xf32>
    %c0_62 = arith.constant 0 : index
    %c0_63 = arith.constant 0 : index
    %356 = vector.load %arg16[%c0_62, %c0_63] : memref<1x96xf32, #tpu.memory_space<vmem>>, vector<1x96xf32>
    %357 = vector.broadcast %356 : vector<1x96xf32> to vector<12x96xf32>
    %358 = arith.addf %355, %357 : vector<12x96xf32>
    %359 = vector.shape_cast %358 : vector<12x96xf32> to vector<6x2x96xf32>
    %c0_64 = arith.constant 0 : index
    %c0_65 = arith.constant 0 : index
    %360 = vector.load %arg22[%c0_64, %c0_65] : memref<16x32xf32, #tpu.memory_space<vmem>>, vector<16x32xf32>
    %cst_66 = arith.constant dense<0.000000e+00> : vector<12x32xf32>
    %361 = tpu.matmul %19, %360, %cst_66 {dimension_numbers = #tpu.dot_dimension_numbers<[1], [0], [0], [1], [0, 0, 1, 1], [], []>} : vector<12x16xf32>, vector<16x32xf32>, vector<12x32xf32> -> vector<12x32xf32>
    %362 = vector.shape_cast %361 : vector<12x32xf32> to vector<6x2x32xf32>
    %c0_67 = arith.constant 0 : index
    %c0_68 = arith.constant 0 : index
    %363 = vector.load %arg17[%c0_67, %c0_68] : memref<64x96xf32, #tpu.memory_space<vmem>>, vector<64x96xf32>
    %c0_69 = arith.constant 0 : index
    %c0_70 = arith.constant 0 : index
    %364 = vector.load %arg18[%c0_69, %c0_70] : memref<32x128xf32, #tpu.memory_space<vmem>>, vector<32x128xf32>
    %c0_71 = arith.constant 0 : index
    %c0_72 = arith.constant 0 : index
    %365 = vector.load %arg19[%c0_71, %c0_72] : memref<1x128xf32, #tpu.memory_space<vmem>>, vector<1x128xf32>
    %c0_73 = arith.constant 0 : index
    %c0_74 = arith.constant 0 : index
    %366 = vector.load %arg20[%c0_73, %c0_74] : memref<32x32xf32, #tpu.memory_space<vmem>>, vector<32x32xf32>
    %c0_75 = arith.constant 0 : index
    %c0_76 = arith.constant 0 : index
    %367 = vector.load %arg21[%c0_75, %c0_76] : memref<64x32xf32, #tpu.memory_space<vmem>>, vector<64x32xf32>
    %c0_77 = arith.constant 0 : index
    %c0_78 = arith.constant 0 : index
    %368 = vector.load %arg23[%c0_77, %c0_78] : memref<1x32xf32, #tpu.memory_space<vmem>>, vector<1x32xf32>
    %cst_79 = arith.constant 0.000000e+00 : f32
    %369 = vector.broadcast %cst_79 : f32 to vector<2x32xf32>
    %cst_80 = arith.constant dense<0.000000e+00> : vector<2x128xf32>
    %370 = tpu.matmul %345, %364, %cst_80 {dimension_numbers = #tpu.dot_dimension_numbers<[1], [0], [0], [1], [0, 0, 1, 1], [], []>} : vector<2x32xf32>, vector<32x128xf32>, vector<2x128xf32> -> vector<2x128xf32>
    %371 = vector.broadcast %365 : vector<1x128xf32> to vector<2x128xf32>
    %372 = arith.addf %370, %371 : vector<2x128xf32>
    %373 = vector.extract_strided_slice %372 {offsets = [0, 0], sizes = [2, 32], strides = [1, 1]} : vector<2x128xf32> to vector<2x32xf32>
    %374 = vector.extract_strided_slice %372 {offsets = [0, 32], sizes = [2, 96], strides = [1, 1]} : vector<2x128xf32> to vector<2x96xf32>
    %375 = vector.shape_cast %373 : vector<2x32xf32> to vector<2x1x32xf32>
    %376 = vector.broadcast %375 : vector<2x1x32xf32> to vector<2x8x32xf32>
    %377 = arith.addf %352, %376 : vector<2x8x32xf32>
    %378 = math.tanh %377 : vector<2x8x32xf32>
    %379 = vector.shape_cast %353 : vector<1x32xf32> to vector<1x1x32xf32>
    %380 = vector.broadcast %379 : vector<1x1x32xf32> to vector<2x8x32xf32>
    %381 = arith.mulf %378, %380 : vector<2x8x32xf32>
    %cst_81 = arith.constant dense<0.000000e+00> : vector<2x8xf32>
    %382 = vector.multi_reduction <add>, %381, %cst_81 [2] : vector<2x8x32xf32> to vector<2x8xf32>
    %cst_82 = arith.constant dense<0xFF800000> : vector<2xf32>
    %383 = vector.multi_reduction <maximumf>, %382, %cst_82 [1] : vector<2x8xf32> to vector<2xf32>
    %cst_83 = arith.constant 0xFF800000 : f32
    %384 = vector.broadcast %cst_83 : f32 to vector<2xf32>
    %385 = arith.maximumf %384, %383 : vector<2xf32>
    %386 = vector.shape_cast %385 : vector<2xf32> to vector<2x1xf32>
    %387 = vector.broadcast %386 : vector<2x1xf32> to vector<2x8xf32>
    %388 = arith.subf %382, %387 : vector<2x8xf32>
    %389 = math.exp %388 : vector<2x8xf32>
    %cst_84 = arith.constant dense<0.000000e+00> : vector<2xf32>
    %390 = vector.multi_reduction <add>, %389, %cst_84 [1] : vector<2x8xf32> to vector<2xf32>
    %391 = vector.shape_cast %390 : vector<2xf32> to vector<2x1xf32>
    %392 = vector.broadcast %391 : vector<2x1xf32> to vector<2x8xf32>
    %393 = arith.divf %389, %392 : vector<2x8xf32>
    %394 = vector.shape_cast %393 : vector<2x8xf32> to vector<2x1x8xf32>
    "tpu.trace_start"() <{level = 10 : i32, message = "bqs,bsh->bqh"}> : () -> ()
    %cst_85 = arith.constant dense<0.000000e+00> : vector<2x1x64xf32>
    %395 = tpu.matmul %394, %339, %cst_85 {dimension_numbers = #tpu.dot_dimension_numbers<[2], [1], [1], [2], [0, 0, 0, 1, 1, 2], [0], [0]>} : vector<2x1x8xf32>, vector<2x8x64xf32>, vector<2x1x64xf32> -> vector<2x1x64xf32>
    "tpu.trace_stop"() : () -> ()
    %396 = vector.shape_cast %395 : vector<2x1x64xf32> to vector<2x64xf32>
    %397 = vector.extract_strided_slice %359 {offsets = [0, 0, 0], sizes = [1, 2, 96], strides = [1, 1, 1]} : vector<6x2x96xf32> to vector<1x2x96xf32>
    %398 = vector.shape_cast %397 : vector<1x2x96xf32> to vector<2x96xf32>
    %cst_86 = arith.constant dense<0.000000e+00> : vector<2x96xf32>
    %399 = tpu.matmul %396, %363, %cst_86 {dimension_numbers = #tpu.dot_dimension_numbers<[1], [0], [0], [1], [0, 0, 1, 1], [], []>} : vector<2x64xf32>, vector<64x96xf32>, vector<2x96xf32> -> vector<2x96xf32>
    %400 = arith.addf %398, %399 : vector<2x96xf32>
    %401 = vector.extract_strided_slice %400 {offsets = [0, 0], sizes = [2, 32], strides = [1, 1]} : vector<2x96xf32> to vector<2x32xf32>
    %402 = vector.extract_strided_slice %374 {offsets = [0, 0], sizes = [2, 32], strides = [1, 1]} : vector<2x96xf32> to vector<2x32xf32>
    %403 = arith.addf %401, %402 : vector<2x32xf32>
    %404 = arith.negf %403 : vector<2x32xf32>
    %405 = math.exp %404 : vector<2x32xf32>
    %cst_87 = arith.constant 1.000000e+00 : f32
    %406 = vector.broadcast %cst_87 : f32 to vector<2x32xf32>
    %407 = arith.addf %406, %405 : vector<2x32xf32>
    %408 = arith.divf %406, %407 : vector<2x32xf32>
    %409 = vector.extract_strided_slice %400 {offsets = [0, 32], sizes = [2, 32], strides = [1, 1]} : vector<2x96xf32> to vector<2x32xf32>
    %410 = vector.extract_strided_slice %374 {offsets = [0, 32], sizes = [2, 32], strides = [1, 1]} : vector<2x96xf32> to vector<2x32xf32>
    %411 = arith.addf %409, %410 : vector<2x32xf32>
    %412 = arith.negf %411 : vector<2x32xf32>
    %413 = math.exp %412 : vector<2x32xf32>
    %cst_88 = arith.constant 1.000000e+00 : f32
    %414 = vector.broadcast %cst_88 : f32 to vector<2x32xf32>
    %415 = arith.addf %414, %413 : vector<2x32xf32>
    %416 = arith.divf %414, %415 : vector<2x32xf32>
    %417 = vector.extract_strided_slice %400 {offsets = [0, 64], sizes = [2, 32], strides = [1, 1]} : vector<2x96xf32> to vector<2x32xf32>
    %418 = vector.extract_strided_slice %374 {offsets = [0, 64], sizes = [2, 32], strides = [1, 1]} : vector<2x96xf32> to vector<2x32xf32>
    %419 = arith.mulf %408, %418 : vector<2x32xf32>
    %420 = arith.addf %417, %419 : vector<2x32xf32>
    %421 = math.tanh %420 : vector<2x32xf32>
    %cst_89 = arith.constant 1.000000e+00 : f32
    %422 = vector.broadcast %cst_89 : f32 to vector<2x32xf32>
    %423 = arith.subf %422, %416 : vector<2x32xf32>
    %424 = arith.mulf %423, %421 : vector<2x32xf32>
    %425 = arith.mulf %416, %345 : vector<2x32xf32>
    %426 = arith.addf %424, %425 : vector<2x32xf32>
    %cst_90 = arith.constant dense<0.000000e+00> : vector<2x32xf32>
    %427 = tpu.matmul %426, %366, %cst_90 {dimension_numbers = #tpu.dot_dimension_numbers<[1], [0], [0], [1], [0, 0, 1, 1], [], []>} : vector<2x32xf32>, vector<32x32xf32>, vector<2x32xf32> -> vector<2x32xf32>
    %cst_91 = arith.constant dense<0.000000e+00> : vector<2x32xf32>
    %428 = tpu.matmul %396, %367, %cst_91 {dimension_numbers = #tpu.dot_dimension_numbers<[1], [0], [0], [1], [0, 0, 1, 1], [], []>} : vector<2x64xf32>, vector<64x32xf32>, vector<2x32xf32> -> vector<2x32xf32>
    %429 = arith.addf %427, %428 : vector<2x32xf32>
    %430 = vector.extract_strided_slice %362 {offsets = [0, 0, 0], sizes = [1, 2, 32], strides = [1, 1, 1]} : vector<6x2x32xf32> to vector<1x2x32xf32>
    %431 = vector.shape_cast %430 : vector<1x2x32xf32> to vector<2x32xf32>
    %432 = arith.addf %429, %431 : vector<2x32xf32>
    %433 = vector.broadcast %368 : vector<1x32xf32> to vector<2x32xf32>
    %434 = arith.addf %432, %433 : vector<2x32xf32>
    %cst_92 = arith.constant dense<0.000000e+00> : vector<2x128xf32>
    %435 = tpu.matmul %426, %364, %cst_92 {dimension_numbers = #tpu.dot_dimension_numbers<[1], [0], [0], [1], [0, 0, 1, 1], [], []>} : vector<2x32xf32>, vector<32x128xf32>, vector<2x128xf32> -> vector<2x128xf32>
    %436 = vector.broadcast %365 : vector<1x128xf32> to vector<2x128xf32>
    %437 = arith.addf %435, %436 : vector<2x128xf32>
    %438 = vector.extract_strided_slice %437 {offsets = [0, 0], sizes = [2, 32], strides = [1, 1]} : vector<2x128xf32> to vector<2x32xf32>
    %439 = vector.extract_strided_slice %437 {offsets = [0, 32], sizes = [2, 96], strides = [1, 1]} : vector<2x128xf32> to vector<2x96xf32>
    %440 = vector.shape_cast %438 : vector<2x32xf32> to vector<2x1x32xf32>
    %441 = vector.broadcast %440 : vector<2x1x32xf32> to vector<2x8x32xf32>
    %442 = arith.addf %352, %441 : vector<2x8x32xf32>
    %443 = math.tanh %442 : vector<2x8x32xf32>
    %444 = vector.shape_cast %353 : vector<1x32xf32> to vector<1x1x32xf32>
    %445 = vector.broadcast %444 : vector<1x1x32xf32> to vector<2x8x32xf32>
    %446 = arith.mulf %443, %445 : vector<2x8x32xf32>
    %cst_93 = arith.constant dense<0.000000e+00> : vector<2x8xf32>
    %447 = vector.multi_reduction <add>, %446, %cst_93 [2] : vector<2x8x32xf32> to vector<2x8xf32>
    %cst_94 = arith.constant dense<0xFF800000> : vector<2xf32>
    %448 = vector.multi_reduction <maximumf>, %447, %cst_94 [1] : vector<2x8xf32> to vector<2xf32>
    %cst_95 = arith.constant 0xFF800000 : f32
    %449 = vector.broadcast %cst_95 : f32 to vector<2xf32>
    %450 = arith.maximumf %449, %448 : vector<2xf32>
    %451 = vector.shape_cast %450 : vector<2xf32> to vector<2x1xf32>
    %452 = vector.broadcast %451 : vector<2x1xf32> to vector<2x8xf32>
    %453 = arith.subf %447, %452 : vector<2x8xf32>
    %454 = math.exp %453 : vector<2x8xf32>
    %cst_96 = arith.constant dense<0.000000e+00> : vector<2xf32>
    %455 = vector.multi_reduction <add>, %454, %cst_96 [1] : vector<2x8xf32> to vector<2xf32>
    %456 = vector.shape_cast %455 : vector<2xf32> to vector<2x1xf32>
    %457 = vector.broadcast %456 : vector<2x1xf32> to vector<2x8xf32>
    %458 = arith.divf %454, %457 : vector<2x8xf32>
    %459 = vector.shape_cast %458 : vector<2x8xf32> to vector<2x1x8xf32>
    "tpu.trace_start"() <{level = 10 : i32, message = "bqs,bsh->bqh"}> : () -> ()
    %cst_97 = arith.constant dense<0.000000e+00> : vector<2x1x64xf32>
    %460 = tpu.matmul %459, %339, %cst_97 {dimension_numbers = #tpu.dot_dimension_numbers<[2], [1], [1], [2], [0, 0, 0, 1, 1, 2], [0], [0]>} : vector<2x1x8xf32>, vector<2x8x64xf32>, vector<2x1x64xf32> -> vector<2x1x64xf32>
    "tpu.trace_stop"() : () -> ()
    %461 = vector.shape_cast %460 : vector<2x1x64xf32> to vector<2x64xf32>
    %462 = vector.extract_strided_slice %359 {offsets = [1, 0, 0], sizes = [1, 2, 96], strides = [1, 1, 1]} : vector<6x2x96xf32> to vector<1x2x96xf32>
    %463 = vector.shape_cast %462 : vector<1x2x96xf32> to vector<2x96xf32>
    %cst_98 = arith.constant dense<0.000000e+00> : vector<2x96xf32>
    %464 = tpu.matmul %461, %363, %cst_98 {dimension_numbers = #tpu.dot_dimension_numbers<[1], [0], [0], [1], [0, 0, 1, 1], [], []>} : vector<2x64xf32>, vector<64x96xf32>, vector<2x96xf32> -> vector<2x96xf32>
    %465 = arith.addf %463, %464 : vector<2x96xf32>
    %466 = vector.extract_strided_slice %465 {offsets = [0, 0], sizes = [2, 32], strides = [1, 1]} : vector<2x96xf32> to vector<2x32xf32>
    %467 = vector.extract_strided_slice %439 {offsets = [0, 0], sizes = [2, 32], strides = [1, 1]} : vector<2x96xf32> to vector<2x32xf32>
    %468 = arith.addf %466, %467 : vector<2x32xf32>
    %469 = arith.negf %468 : vector<2x32xf32>
    %470 = math.exp %469 : vector<2x32xf32>
    %cst_99 = arith.constant 1.000000e+00 : f32
    %471 = vector.broadcast %cst_99 : f32 to vector<2x32xf32>
    %472 = arith.addf %471, %470 : vector<2x32xf32>
    %473 = arith.divf %471, %472 : vector<2x32xf32>
    %474 = vector.extract_strided_slice %465 {offsets = [0, 32], sizes = [2, 32], strides = [1, 1]} : vector<2x96xf32> to vector<2x32xf32>
    %475 = vector.extract_strided_slice %439 {offsets = [0, 32], sizes = [2, 32], strides = [1, 1]} : vector<2x96xf32> to vector<2x32xf32>
    %476 = arith.addf %474, %475 : vector<2x32xf32>
    %477 = arith.negf %476 : vector<2x32xf32>
    %478 = math.exp %477 : vector<2x32xf32>
    %cst_100 = arith.constant 1.000000e+00 : f32
    %479 = vector.broadcast %cst_100 : f32 to vector<2x32xf32>
    %480 = arith.addf %479, %478 : vector<2x32xf32>
    %481 = arith.divf %479, %480 : vector<2x32xf32>
    %482 = vector.extract_strided_slice %465 {offsets = [0, 64], sizes = [2, 32], strides = [1, 1]} : vector<2x96xf32> to vector<2x32xf32>
    %483 = vector.extract_strided_slice %439 {offsets = [0, 64], sizes = [2, 32], strides = [1, 1]} : vector<2x96xf32> to vector<2x32xf32>
    %484 = arith.mulf %473, %483 : vector<2x32xf32>
    %485 = arith.addf %482, %484 : vector<2x32xf32>
    %486 = math.tanh %485 : vector<2x32xf32>
    %cst_101 = arith.constant 1.000000e+00 : f32
    %487 = vector.broadcast %cst_101 : f32 to vector<2x32xf32>
    %488 = arith.subf %487, %481 : vector<2x32xf32>
    %489 = arith.mulf %488, %486 : vector<2x32xf32>
    %490 = arith.mulf %481, %426 : vector<2x32xf32>
    %491 = arith.addf %489, %490 : vector<2x32xf32>
    %cst_102 = arith.constant dense<0.000000e+00> : vector<2x32xf32>
    %492 = tpu.matmul %491, %366, %cst_102 {dimension_numbers = #tpu.dot_dimension_numbers<[1], [0], [0], [1], [0, 0, 1, 1], [], []>} : vector<2x32xf32>, vector<32x32xf32>, vector<2x32xf32> -> vector<2x32xf32>
    %cst_103 = arith.constant dense<0.000000e+00> : vector<2x32xf32>
    %493 = tpu.matmul %461, %367, %cst_103 {dimension_numbers = #tpu.dot_dimension_numbers<[1], [0], [0], [1], [0, 0, 1, 1], [], []>} : vector<2x64xf32>, vector<64x32xf32>, vector<2x32xf32> -> vector<2x32xf32>
    %494 = arith.addf %492, %493 : vector<2x32xf32>
    %495 = vector.extract_strided_slice %362 {offsets = [1, 0, 0], sizes = [1, 2, 32], strides = [1, 1, 1]} : vector<6x2x32xf32> to vector<1x2x32xf32>
    %496 = vector.shape_cast %495 : vector<1x2x32xf32> to vector<2x32xf32>
    %497 = arith.addf %494, %496 : vector<2x32xf32>
    %498 = vector.broadcast %368 : vector<1x32xf32> to vector<2x32xf32>
    %499 = arith.addf %497, %498 : vector<2x32xf32>
    %cst_104 = arith.constant dense<0.000000e+00> : vector<2x128xf32>
    %500 = tpu.matmul %491, %364, %cst_104 {dimension_numbers = #tpu.dot_dimension_numbers<[1], [0], [0], [1], [0, 0, 1, 1], [], []>} : vector<2x32xf32>, vector<32x128xf32>, vector<2x128xf32> -> vector<2x128xf32>
    %501 = vector.broadcast %365 : vector<1x128xf32> to vector<2x128xf32>
    %502 = arith.addf %500, %501 : vector<2x128xf32>
    %503 = vector.extract_strided_slice %502 {offsets = [0, 0], sizes = [2, 32], strides = [1, 1]} : vector<2x128xf32> to vector<2x32xf32>
    %504 = vector.extract_strided_slice %502 {offsets = [0, 32], sizes = [2, 96], strides = [1, 1]} : vector<2x128xf32> to vector<2x96xf32>
    %505 = vector.shape_cast %503 : vector<2x32xf32> to vector<2x1x32xf32>
    %506 = vector.broadcast %505 : vector<2x1x32xf32> to vector<2x8x32xf32>
    %507 = arith.addf %352, %506 : vector<2x8x32xf32>
    %508 = math.tanh %507 : vector<2x8x32xf32>
    %509 = vector.shape_cast %353 : vector<1x32xf32> to vector<1x1x32xf32>
    %510 = vector.broadcast %509 : vector<1x1x32xf32> to vector<2x8x32xf32>
    %511 = arith.mulf %508, %510 : vector<2x8x32xf32>
    %cst_105 = arith.constant dense<0.000000e+00> : vector<2x8xf32>
    %512 = vector.multi_reduction <add>, %511, %cst_105 [2] : vector<2x8x32xf32> to vector<2x8xf32>
    %cst_106 = arith.constant dense<0xFF800000> : vector<2xf32>
    %513 = vector.multi_reduction <maximumf>, %512, %cst_106 [1] : vector<2x8xf32> to vector<2xf32>
    %cst_107 = arith.constant 0xFF800000 : f32
    %514 = vector.broadcast %cst_107 : f32 to vector<2xf32>
    %515 = arith.maximumf %514, %513 : vector<2xf32>
    %516 = vector.shape_cast %515 : vector<2xf32> to vector<2x1xf32>
    %517 = vector.broadcast %516 : vector<2x1xf32> to vector<2x8xf32>
    %518 = arith.subf %512, %517 : vector<2x8xf32>
    %519 = math.exp %518 : vector<2x8xf32>
    %cst_108 = arith.constant dense<0.000000e+00> : vector<2xf32>
    %520 = vector.multi_reduction <add>, %519, %cst_108 [1] : vector<2x8xf32> to vector<2xf32>
    %521 = vector.shape_cast %520 : vector<2xf32> to vector<2x1xf32>
    %522 = vector.broadcast %521 : vector<2x1xf32> to vector<2x8xf32>
    %523 = arith.divf %519, %522 : vector<2x8xf32>
    %524 = vector.shape_cast %523 : vector<2x8xf32> to vector<2x1x8xf32>
    "tpu.trace_start"() <{level = 10 : i32, message = "bqs,bsh->bqh"}> : () -> ()
    %cst_109 = arith.constant dense<0.000000e+00> : vector<2x1x64xf32>
    %525 = tpu.matmul %524, %339, %cst_109 {dimension_numbers = #tpu.dot_dimension_numbers<[2], [1], [1], [2], [0, 0, 0, 1, 1, 2], [0], [0]>} : vector<2x1x8xf32>, vector<2x8x64xf32>, vector<2x1x64xf32> -> vector<2x1x64xf32>
    "tpu.trace_stop"() : () -> ()
    %526 = vector.shape_cast %525 : vector<2x1x64xf32> to vector<2x64xf32>
    %527 = vector.extract_strided_slice %359 {offsets = [2, 0, 0], sizes = [1, 2, 96], strides = [1, 1, 1]} : vector<6x2x96xf32> to vector<1x2x96xf32>
    %528 = vector.shape_cast %527 : vector<1x2x96xf32> to vector<2x96xf32>
    %cst_110 = arith.constant dense<0.000000e+00> : vector<2x96xf32>
    %529 = tpu.matmul %526, %363, %cst_110 {dimension_numbers = #tpu.dot_dimension_numbers<[1], [0], [0], [1], [0, 0, 1, 1], [], []>} : vector<2x64xf32>, vector<64x96xf32>, vector<2x96xf32> -> vector<2x96xf32>
    %530 = arith.addf %528, %529 : vector<2x96xf32>
    %531 = vector.extract_strided_slice %530 {offsets = [0, 0], sizes = [2, 32], strides = [1, 1]} : vector<2x96xf32> to vector<2x32xf32>
    %532 = vector.extract_strided_slice %504 {offsets = [0, 0], sizes = [2, 32], strides = [1, 1]} : vector<2x96xf32> to vector<2x32xf32>
    %533 = arith.addf %531, %532 : vector<2x32xf32>
    %534 = arith.negf %533 : vector<2x32xf32>
    %535 = math.exp %534 : vector<2x32xf32>
    %cst_111 = arith.constant 1.000000e+00 : f32
    %536 = vector.broadcast %cst_111 : f32 to vector<2x32xf32>
    %537 = arith.addf %536, %535 : vector<2x32xf32>
    %538 = arith.divf %536, %537 : vector<2x32xf32>
    %539 = vector.extract_strided_slice %530 {offsets = [0, 32], sizes = [2, 32], strides = [1, 1]} : vector<2x96xf32> to vector<2x32xf32>
    %540 = vector.extract_strided_slice %504 {offsets = [0, 32], sizes = [2, 32], strides = [1, 1]} : vector<2x96xf32> to vector<2x32xf32>
    %541 = arith.addf %539, %540 : vector<2x32xf32>
    %542 = arith.negf %541 : vector<2x32xf32>
    %543 = math.exp %542 : vector<2x32xf32>
    %cst_112 = arith.constant 1.000000e+00 : f32
    %544 = vector.broadcast %cst_112 : f32 to vector<2x32xf32>
    %545 = arith.addf %544, %543 : vector<2x32xf32>
    %546 = arith.divf %544, %545 : vector<2x32xf32>
    %547 = vector.extract_strided_slice %530 {offsets = [0, 64], sizes = [2, 32], strides = [1, 1]} : vector<2x96xf32> to vector<2x32xf32>
    %548 = vector.extract_strided_slice %504 {offsets = [0, 64], sizes = [2, 32], strides = [1, 1]} : vector<2x96xf32> to vector<2x32xf32>
    %549 = arith.mulf %538, %548 : vector<2x32xf32>
    %550 = arith.addf %547, %549 : vector<2x32xf32>
    %551 = math.tanh %550 : vector<2x32xf32>
    %cst_113 = arith.constant 1.000000e+00 : f32
    %552 = vector.broadcast %cst_113 : f32 to vector<2x32xf32>
    %553 = arith.subf %552, %546 : vector<2x32xf32>
    %554 = arith.mulf %553, %551 : vector<2x32xf32>
    %555 = arith.mulf %546, %491 : vector<2x32xf32>
    %556 = arith.addf %554, %555 : vector<2x32xf32>
    %cst_114 = arith.constant dense<0.000000e+00> : vector<2x32xf32>
    %557 = tpu.matmul %556, %366, %cst_114 {dimension_numbers = #tpu.dot_dimension_numbers<[1], [0], [0], [1], [0, 0, 1, 1], [], []>} : vector<2x32xf32>, vector<32x32xf32>, vector<2x32xf32> -> vector<2x32xf32>
    %cst_115 = arith.constant dense<0.000000e+00> : vector<2x32xf32>
    %558 = tpu.matmul %526, %367, %cst_115 {dimension_numbers = #tpu.dot_dimension_numbers<[1], [0], [0], [1], [0, 0, 1, 1], [], []>} : vector<2x64xf32>, vector<64x32xf32>, vector<2x32xf32> -> vector<2x32xf32>
    %559 = arith.addf %557, %558 : vector<2x32xf32>
    %560 = vector.extract_strided_slice %362 {offsets = [2, 0, 0], sizes = [1, 2, 32], strides = [1, 1, 1]} : vector<6x2x32xf32> to vector<1x2x32xf32>
    %561 = vector.shape_cast %560 : vector<1x2x32xf32> to vector<2x32xf32>
    %562 = arith.addf %559, %561 : vector<2x32xf32>
    %563 = vector.broadcast %368 : vector<1x32xf32> to vector<2x32xf32>
    %564 = arith.addf %562, %563 : vector<2x32xf32>
    %cst_116 = arith.constant dense<0.000000e+00> : vector<2x128xf32>
    %565 = tpu.matmul %556, %364, %cst_116 {dimension_numbers = #tpu.dot_dimension_numbers<[1], [0], [0], [1], [0, 0, 1, 1], [], []>} : vector<2x32xf32>, vector<32x128xf32>, vector<2x128xf32> -> vector<2x128xf32>
    %566 = vector.broadcast %365 : vector<1x128xf32> to vector<2x128xf32>
    %567 = arith.addf %565, %566 : vector<2x128xf32>
    %568 = vector.extract_strided_slice %567 {offsets = [0, 0], sizes = [2, 32], strides = [1, 1]} : vector<2x128xf32> to vector<2x32xf32>
    %569 = vector.extract_strided_slice %567 {offsets = [0, 32], sizes = [2, 96], strides = [1, 1]} : vector<2x128xf32> to vector<2x96xf32>
    %570 = vector.shape_cast %568 : vector<2x32xf32> to vector<2x1x32xf32>
    %571 = vector.broadcast %570 : vector<2x1x32xf32> to vector<2x8x32xf32>
    %572 = arith.addf %352, %571 : vector<2x8x32xf32>
    %573 = math.tanh %572 : vector<2x8x32xf32>
    %574 = vector.shape_cast %353 : vector<1x32xf32> to vector<1x1x32xf32>
    %575 = vector.broadcast %574 : vector<1x1x32xf32> to vector<2x8x32xf32>
    %576 = arith.mulf %573, %575 : vector<2x8x32xf32>
    %cst_117 = arith.constant dense<0.000000e+00> : vector<2x8xf32>
    %577 = vector.multi_reduction <add>, %576, %cst_117 [2] : vector<2x8x32xf32> to vector<2x8xf32>
    %cst_118 = arith.constant dense<0xFF800000> : vector<2xf32>
    %578 = vector.multi_reduction <maximumf>, %577, %cst_118 [1] : vector<2x8xf32> to vector<2xf32>
    %cst_119 = arith.constant 0xFF800000 : f32
    %579 = vector.broadcast %cst_119 : f32 to vector<2xf32>
    %580 = arith.maximumf %579, %578 : vector<2xf32>
    %581 = vector.shape_cast %580 : vector<2xf32> to vector<2x1xf32>
    %582 = vector.broadcast %581 : vector<2x1xf32> to vector<2x8xf32>
    %583 = arith.subf %577, %582 : vector<2x8xf32>
    %584 = math.exp %583 : vector<2x8xf32>
    %cst_120 = arith.constant dense<0.000000e+00> : vector<2xf32>
    %585 = vector.multi_reduction <add>, %584, %cst_120 [1] : vector<2x8xf32> to vector<2xf32>
    %586 = vector.shape_cast %585 : vector<2xf32> to vector<2x1xf32>
    %587 = vector.broadcast %586 : vector<2x1xf32> to vector<2x8xf32>
    %588 = arith.divf %584, %587 : vector<2x8xf32>
    %589 = vector.shape_cast %588 : vector<2x8xf32> to vector<2x1x8xf32>
    "tpu.trace_start"() <{level = 10 : i32, message = "bqs,bsh->bqh"}> : () -> ()
    %cst_121 = arith.constant dense<0.000000e+00> : vector<2x1x64xf32>
    %590 = tpu.matmul %589, %339, %cst_121 {dimension_numbers = #tpu.dot_dimension_numbers<[2], [1], [1], [2], [0, 0, 0, 1, 1, 2], [0], [0]>} : vector<2x1x8xf32>, vector<2x8x64xf32>, vector<2x1x64xf32> -> vector<2x1x64xf32>
    "tpu.trace_stop"() : () -> ()
    %591 = vector.shape_cast %590 : vector<2x1x64xf32> to vector<2x64xf32>
    %592 = vector.extract_strided_slice %359 {offsets = [3, 0, 0], sizes = [1, 2, 96], strides = [1, 1, 1]} : vector<6x2x96xf32> to vector<1x2x96xf32>
    %593 = vector.shape_cast %592 : vector<1x2x96xf32> to vector<2x96xf32>
    %cst_122 = arith.constant dense<0.000000e+00> : vector<2x96xf32>
    %594 = tpu.matmul %591, %363, %cst_122 {dimension_numbers = #tpu.dot_dimension_numbers<[1], [0], [0], [1], [0, 0, 1, 1], [], []>} : vector<2x64xf32>, vector<64x96xf32>, vector<2x96xf32> -> vector<2x96xf32>
    %595 = arith.addf %593, %594 : vector<2x96xf32>
    %596 = vector.extract_strided_slice %595 {offsets = [0, 0], sizes = [2, 32], strides = [1, 1]} : vector<2x96xf32> to vector<2x32xf32>
    %597 = vector.extract_strided_slice %569 {offsets = [0, 0], sizes = [2, 32], strides = [1, 1]} : vector<2x96xf32> to vector<2x32xf32>
    %598 = arith.addf %596, %597 : vector<2x32xf32>
    %599 = arith.negf %598 : vector<2x32xf32>
    %600 = math.exp %599 : vector<2x32xf32>
    %cst_123 = arith.constant 1.000000e+00 : f32
    %601 = vector.broadcast %cst_123 : f32 to vector<2x32xf32>
    %602 = arith.addf %601, %600 : vector<2x32xf32>
    %603 = arith.divf %601, %602 : vector<2x32xf32>
    %604 = vector.extract_strided_slice %595 {offsets = [0, 32], sizes = [2, 32], strides = [1, 1]} : vector<2x96xf32> to vector<2x32xf32>
    %605 = vector.extract_strided_slice %569 {offsets = [0, 32], sizes = [2, 32], strides = [1, 1]} : vector<2x96xf32> to vector<2x32xf32>
    %606 = arith.addf %604, %605 : vector<2x32xf32>
    %607 = arith.negf %606 : vector<2x32xf32>
    %608 = math.exp %607 : vector<2x32xf32>
    %cst_124 = arith.constant 1.000000e+00 : f32
    %609 = vector.broadcast %cst_124 : f32 to vector<2x32xf32>
    %610 = arith.addf %609, %608 : vector<2x32xf32>
    %611 = arith.divf %609, %610 : vector<2x32xf32>
    %612 = vector.extract_strided_slice %595 {offsets = [0, 64], sizes = [2, 32], strides = [1, 1]} : vector<2x96xf32> to vector<2x32xf32>
    %613 = vector.extract_strided_slice %569 {offsets = [0, 64], sizes = [2, 32], strides = [1, 1]} : vector<2x96xf32> to vector<2x32xf32>
    %614 = arith.mulf %603, %613 : vector<2x32xf32>
    %615 = arith.addf %612, %614 : vector<2x32xf32>
    %616 = math.tanh %615 : vector<2x32xf32>
    %cst_125 = arith.constant 1.000000e+00 : f32
    %617 = vector.broadcast %cst_125 : f32 to vector<2x32xf32>
    %618 = arith.subf %617, %611 : vector<2x32xf32>
    %619 = arith.mulf %618, %616 : vector<2x32xf32>
    %620 = arith.mulf %611, %556 : vector<2x32xf32>
    %621 = arith.addf %619, %620 : vector<2x32xf32>
    %cst_126 = arith.constant dense<0.000000e+00> : vector<2x32xf32>
    %622 = tpu.matmul %621, %366, %cst_126 {dimension_numbers = #tpu.dot_dimension_numbers<[1], [0], [0], [1], [0, 0, 1, 1], [], []>} : vector<2x32xf32>, vector<32x32xf32>, vector<2x32xf32> -> vector<2x32xf32>
    %cst_127 = arith.constant dense<0.000000e+00> : vector<2x32xf32>
    %623 = tpu.matmul %591, %367, %cst_127 {dimension_numbers = #tpu.dot_dimension_numbers<[1], [0], [0], [1], [0, 0, 1, 1], [], []>} : vector<2x64xf32>, vector<64x32xf32>, vector<2x32xf32> -> vector<2x32xf32>
    %624 = arith.addf %622, %623 : vector<2x32xf32>
    %625 = vector.extract_strided_slice %362 {offsets = [3, 0, 0], sizes = [1, 2, 32], strides = [1, 1, 1]} : vector<6x2x32xf32> to vector<1x2x32xf32>
    %626 = vector.shape_cast %625 : vector<1x2x32xf32> to vector<2x32xf32>
    %627 = arith.addf %624, %626 : vector<2x32xf32>
    %628 = vector.broadcast %368 : vector<1x32xf32> to vector<2x32xf32>
    %629 = arith.addf %627, %628 : vector<2x32xf32>
    %cst_128 = arith.constant dense<0.000000e+00> : vector<2x128xf32>
    %630 = tpu.matmul %621, %364, %cst_128 {dimension_numbers = #tpu.dot_dimension_numbers<[1], [0], [0], [1], [0, 0, 1, 1], [], []>} : vector<2x32xf32>, vector<32x128xf32>, vector<2x128xf32> -> vector<2x128xf32>
    %631 = vector.broadcast %365 : vector<1x128xf32> to vector<2x128xf32>
    %632 = arith.addf %630, %631 : vector<2x128xf32>
    %633 = vector.extract_strided_slice %632 {offsets = [0, 0], sizes = [2, 32], strides = [1, 1]} : vector<2x128xf32> to vector<2x32xf32>
    %634 = vector.extract_strided_slice %632 {offsets = [0, 32], sizes = [2, 96], strides = [1, 1]} : vector<2x128xf32> to vector<2x96xf32>
    %635 = vector.shape_cast %633 : vector<2x32xf32> to vector<2x1x32xf32>
    %636 = vector.broadcast %635 : vector<2x1x32xf32> to vector<2x8x32xf32>
    %637 = arith.addf %352, %636 : vector<2x8x32xf32>
    %638 = math.tanh %637 : vector<2x8x32xf32>
    %639 = vector.shape_cast %353 : vector<1x32xf32> to vector<1x1x32xf32>
    %640 = vector.broadcast %639 : vector<1x1x32xf32> to vector<2x8x32xf32>
    %641 = arith.mulf %638, %640 : vector<2x8x32xf32>
    %cst_129 = arith.constant dense<0.000000e+00> : vector<2x8xf32>
    %642 = vector.multi_reduction <add>, %641, %cst_129 [2] : vector<2x8x32xf32> to vector<2x8xf32>
    %cst_130 = arith.constant dense<0xFF800000> : vector<2xf32>
    %643 = vector.multi_reduction <maximumf>, %642, %cst_130 [1] : vector<2x8xf32> to vector<2xf32>
    %cst_131 = arith.constant 0xFF800000 : f32
    %644 = vector.broadcast %cst_131 : f32 to vector<2xf32>
    %645 = arith.maximumf %644, %643 : vector<2xf32>
    %646 = vector.shape_cast %645 : vector<2xf32> to vector<2x1xf32>
    %647 = vector.broadcast %646 : vector<2x1xf32> to vector<2x8xf32>
    %648 = arith.subf %642, %647 : vector<2x8xf32>
    %649 = math.exp %648 : vector<2x8xf32>
    %cst_132 = arith.constant dense<0.000000e+00> : vector<2xf32>
    %650 = vector.multi_reduction <add>, %649, %cst_132 [1] : vector<2x8xf32> to vector<2xf32>
    %651 = vector.shape_cast %650 : vector<2xf32> to vector<2x1xf32>
    %652 = vector.broadcast %651 : vector<2x1xf32> to vector<2x8xf32>
    %653 = arith.divf %649, %652 : vector<2x8xf32>
    %654 = vector.shape_cast %653 : vector<2x8xf32> to vector<2x1x8xf32>
    "tpu.trace_start"() <{level = 10 : i32, message = "bqs,bsh->bqh"}> : () -> ()
    %cst_133 = arith.constant dense<0.000000e+00> : vector<2x1x64xf32>
    %655 = tpu.matmul %654, %339, %cst_133 {dimension_numbers = #tpu.dot_dimension_numbers<[2], [1], [1], [2], [0, 0, 0, 1, 1, 2], [0], [0]>} : vector<2x1x8xf32>, vector<2x8x64xf32>, vector<2x1x64xf32> -> vector<2x1x64xf32>
    "tpu.trace_stop"() : () -> ()
    %656 = vector.shape_cast %655 : vector<2x1x64xf32> to vector<2x64xf32>
    %657 = vector.extract_strided_slice %359 {offsets = [4, 0, 0], sizes = [1, 2, 96], strides = [1, 1, 1]} : vector<6x2x96xf32> to vector<1x2x96xf32>
    %658 = vector.shape_cast %657 : vector<1x2x96xf32> to vector<2x96xf32>
    %cst_134 = arith.constant dense<0.000000e+00> : vector<2x96xf32>
    %659 = tpu.matmul %656, %363, %cst_134 {dimension_numbers = #tpu.dot_dimension_numbers<[1], [0], [0], [1], [0, 0, 1, 1], [], []>} : vector<2x64xf32>, vector<64x96xf32>, vector<2x96xf32> -> vector<2x96xf32>
    %660 = arith.addf %658, %659 : vector<2x96xf32>
    %661 = vector.extract_strided_slice %660 {offsets = [0, 0], sizes = [2, 32], strides = [1, 1]} : vector<2x96xf32> to vector<2x32xf32>
    %662 = vector.extract_strided_slice %634 {offsets = [0, 0], sizes = [2, 32], strides = [1, 1]} : vector<2x96xf32> to vector<2x32xf32>
    %663 = arith.addf %661, %662 : vector<2x32xf32>
    %664 = arith.negf %663 : vector<2x32xf32>
    %665 = math.exp %664 : vector<2x32xf32>
    %cst_135 = arith.constant 1.000000e+00 : f32
    %666 = vector.broadcast %cst_135 : f32 to vector<2x32xf32>
    %667 = arith.addf %666, %665 : vector<2x32xf32>
    %668 = arith.divf %666, %667 : vector<2x32xf32>
    %669 = vector.extract_strided_slice %660 {offsets = [0, 32], sizes = [2, 32], strides = [1, 1]} : vector<2x96xf32> to vector<2x32xf32>
    %670 = vector.extract_strided_slice %634 {offsets = [0, 32], sizes = [2, 32], strides = [1, 1]} : vector<2x96xf32> to vector<2x32xf32>
    %671 = arith.addf %669, %670 : vector<2x32xf32>
    %672 = arith.negf %671 : vector<2x32xf32>
    %673 = math.exp %672 : vector<2x32xf32>
    %cst_136 = arith.constant 1.000000e+00 : f32
    %674 = vector.broadcast %cst_136 : f32 to vector<2x32xf32>
    %675 = arith.addf %674, %673 : vector<2x32xf32>
    %676 = arith.divf %674, %675 : vector<2x32xf32>
    %677 = vector.extract_strided_slice %660 {offsets = [0, 64], sizes = [2, 32], strides = [1, 1]} : vector<2x96xf32> to vector<2x32xf32>
    %678 = vector.extract_strided_slice %634 {offsets = [0, 64], sizes = [2, 32], strides = [1, 1]} : vector<2x96xf32> to vector<2x32xf32>
    %679 = arith.mulf %668, %678 : vector<2x32xf32>
    %680 = arith.addf %677, %679 : vector<2x32xf32>
    %681 = math.tanh %680 : vector<2x32xf32>
    %cst_137 = arith.constant 1.000000e+00 : f32
    %682 = vector.broadcast %cst_137 : f32 to vector<2x32xf32>
    %683 = arith.subf %682, %676 : vector<2x32xf32>
    %684 = arith.mulf %683, %681 : vector<2x32xf32>
    %685 = arith.mulf %676, %621 : vector<2x32xf32>
    %686 = arith.addf %684, %685 : vector<2x32xf32>
    %cst_138 = arith.constant dense<0.000000e+00> : vector<2x32xf32>
    %687 = tpu.matmul %686, %366, %cst_138 {dimension_numbers = #tpu.dot_dimension_numbers<[1], [0], [0], [1], [0, 0, 1, 1], [], []>} : vector<2x32xf32>, vector<32x32xf32>, vector<2x32xf32> -> vector<2x32xf32>
    %cst_139 = arith.constant dense<0.000000e+00> : vector<2x32xf32>
    %688 = tpu.matmul %656, %367, %cst_139 {dimension_numbers = #tpu.dot_dimension_numbers<[1], [0], [0], [1], [0, 0, 1, 1], [], []>} : vector<2x64xf32>, vector<64x32xf32>, vector<2x32xf32> -> vector<2x32xf32>
    %689 = arith.addf %687, %688 : vector<2x32xf32>
    %690 = vector.extract_strided_slice %362 {offsets = [4, 0, 0], sizes = [1, 2, 32], strides = [1, 1, 1]} : vector<6x2x32xf32> to vector<1x2x32xf32>
    %691 = vector.shape_cast %690 : vector<1x2x32xf32> to vector<2x32xf32>
    %692 = arith.addf %689, %691 : vector<2x32xf32>
    %693 = vector.broadcast %368 : vector<1x32xf32> to vector<2x32xf32>
    %694 = arith.addf %692, %693 : vector<2x32xf32>
    %695 = vector.shape_cast %369 : vector<2x32xf32> to vector<1x2x32xf32>
    %696 = vector.shape_cast %434 : vector<2x32xf32> to vector<1x2x32xf32>
    %697 = vector.shape_cast %499 : vector<2x32xf32> to vector<1x2x32xf32>
    %698 = vector.shape_cast %564 : vector<2x32xf32> to vector<1x2x32xf32>
    %699 = vector.shape_cast %629 : vector<2x32xf32> to vector<1x2x32xf32>
    %700 = vector.shape_cast %694 : vector<2x32xf32> to vector<1x2x32xf32>
    %701 = tpu.concatenate %695, %696, %697, %698, %699, %700 in 0 : vector<1x2x32xf32>, vector<1x2x32xf32>, vector<1x2x32xf32>, vector<1x2x32xf32>, vector<1x2x32xf32>, vector<1x2x32xf32> -> vector<6x2x32xf32>
    %c0_140 = arith.constant 0 : index
    %c0_141 = arith.constant 0 : index
    %c0_142 = arith.constant 0 : index
    %702 = vector.load %arg24[%c0_140, %c0_141, %c0_142] : memref<6x2x32xf32, #tpu.memory_space<vmem>>, vector<6x2x32xf32>
    tpu.vector_store %arg24[%c0_140, %c0_141, %c0_142], %701 {strides = array<i32>} : memref<6x2x32xf32, #tpu.memory_space<vmem>>, vector<6x2x32xf32>,
    return
  }
}

</mosaic_0001>

<llo_original>
// kernel: seq2seq_forward.1
$region0: #{seq2seq_forward.1}
  #allocation0 [shape = 'u32[]', space=smem, size = 0x4, offset = 0x4, fixed_abs, tag = 'smem constant byte address 0x4 - core index']
  #allocation1 [shape = 'u32[144,128]{1,0:T(1,128)}', space=vmem, size = 0x12000, scoped, tag = 'internal scratch']
  %s0 = inlined_call_operand.vmem [shape: s32[8,2], index: 0, kind: input, shape index: {}]
  %s1 = inlined_call_operand.vmem [shape: s32[6,2], index: 1, kind: input, shape index: {}]
  %s2 = inlined_call_operand.vmem [shape: f32[32,16], index: 2, kind: input, shape index: {}]
  %s3 = inlined_call_operand.vmem [shape: f32[32,16], index: 3, kind: input, shape index: {}]
  %s4 = inlined_call_operand.vmem [shape: f32[16,96], index: 4, kind: input, shape index: {}]
  %s5 = inlined_call_operand.vmem [shape: f32[1,96], index: 5, kind: input, shape index: {}]
  %s6 = inlined_call_operand.vmem [shape: f32[16,96], index: 6, kind: input, shape index: {}]
  %s7 = inlined_call_operand.vmem [shape: f32[1,96], index: 7, kind: input, shape index: {}]
  %s8 = inlined_call_operand.vmem [shape: f32[64,192], index: 8, kind: input, shape index: {}]
  %s9 = inlined_call_operand.vmem [shape: f32[1,192], index: 9, kind: input, shape index: {}]
  %s10 = inlined_call_operand.vmem [shape: f32[64,32], index: 10, kind: input, shape index: {}]
  %s11 = inlined_call_operand.vmem [shape: f32[1,32], index: 11, kind: input, shape index: {}]
  %s12 = inlined_call_operand.vmem [shape: f32[64,32], index: 12, kind: input, shape index: {}]
  %s13 = inlined_call_operand.vmem [shape: f32[1,32], index: 13, kind: input, shape index: {}]
  %s14 = inlined_call_operand.vmem [shape: f32[1,32], index: 14, kind: input, shape index: {}]
  %s15 = inlined_call_operand.hbm [shape: f32[16,96], index: 15, kind: input, shape index: {}]
  %s16 = inlined_call_operand.vmem [shape: f32[1,96], index: 16, kind: input, shape index: {}]
  %s17 = inlined_call_operand.vmem [shape: f32[64,96], index: 17, kind: input, shape index: {}]
  %s18 = inlined_call_operand.vmem [shape: f32[32,128], index: 18, kind: input, shape index: {}]
  %s19 = inlined_call_operand.vmem [shape: f32[1,128], index: 19, kind: input, shape index: {}]
  %s20 = inlined_call_operand.vmem [shape: f32[32,32], index: 20, kind: input, shape index: {}]
  %s21 = inlined_call_operand.vmem [shape: f32[64,32], index: 21, kind: input, shape index: {}]
  %s22 = inlined_call_operand.hbm [shape: f32[16,32], index: 22, kind: input, shape index: {}]
  %s23 = inlined_call_operand.vmem [shape: f32[1,32], index: 23, kind: input, shape index: {}]
  %s24 = inlined_call_operand.hbm [shape: f32[6,2,32], index: 24, kind: output, shape index: {}]
  %s25 = sld [smem:[#allocation0]]
  $region114: #{seq2seq_forward.1} parent=0
    _
  %s27 = ssub.s32 1, %s25
  %s28 = scalar_select 0, %s27, %s25
  $region1: #{seq2seq_forward.1} parent=0
    #allocation2 [shape = 'u8[8192]{0}', space=vmem, size = 0x2000, scoped, tag = 'input window, operand 15, single buffered']
    #allocation3 [shape = 's32[1]{0}', space=sflag, size = 0x4, scoped, tag = 'scoped memory for seq2seq_forward.1']
    #allocation4 [shape = 's32[1]{0}', space=sflag, size = 0x4, scoped, tag = 'scoped memory for seq2seq_forward.1']
    #allocation5 [shape = 'u8[8192]{0}', space=vmem, size = 0x2000, scoped, tag = 'input window, operand 22, single buffered']
    #allocation6 [shape = 's32[1]{0}', space=sflag, size = 0x4, scoped, tag = 'scoped memory for seq2seq_forward.1']
    #allocation7 [shape = 'u8[6144]{0}', space=vmem, size = 0x1800, scoped, tag = 'output window, operand 0, single buffered']
    %29 = vsyncpa [#allocation3], 0
    %30 = vsyncpa [#allocation6], 0
    %31 = vsyncpa [#allocation4], 0
    // Predicated region
    $region2: #{seq2seq_forward.1} parent=1 // pred_check
      _
    $region3: #{seq2seq_forward.1} parent=1 // pred_check_branch
      %33 = sbr.rel (0) target = $region5
    $region4: #{seq2seq_forward.1} parent=1 // pred_region
      _
    $region5: #{seq2seq_forward.1} parent=1 // pred_fallthru
      _
    // Predicated region
    $region6: #{seq2seq_forward.1} parent=1 // pred_check
      _
    $region7: #{seq2seq_forward.1} parent=1 // pred_check_branch
      %35 = sbr.rel (0) target = $region9
    $region8: #{seq2seq_forward.1} parent=1 // pred_region
      _
    $region9: #{seq2seq_forward.1} parent=1 // pred_fallthru
      _
    // Predicated region
    $region10: #{seq2seq_forward.1} parent=1 // pred_check
      _
    $region11: #{seq2seq_forward.1} parent=1 // pred_check_branch
      %37 = sbr.rel (0) target = $region13
    $region12: #{seq2seq_forward.1} parent=1 // pred_region
      _
    $region13: #{seq2seq_forward.1} parent=1 // pred_fallthru
      _
    // Predicated region
    $region14: #{seq2seq_forward.1} parent=1 // pred_check
      _
    $region15: #{seq2seq_forward.1} parent=1 // pred_check_branch
      %39 = sbr.rel (0) target = $region17
    $region16: #{seq2seq_forward.1} parent=1 // pred_region
      _
    $region17: #{seq2seq_forward.1} parent=1 // pred_fallthru
      _
    // Predicated region
    $region18: #{seq2seq_forward.1} parent=1 // pred_check
      _
    $region19: #{seq2seq_forward.1} parent=1 // pred_check_branch
      %41 = sbr.rel (0) target = $region21
    $region20: #{seq2seq_forward.1} parent=1 // pred_region
      _
    $region21: #{seq2seq_forward.1} parent=1 // pred_fallthru
      _
    // Predicated region
    $region22: #{seq2seq_forward.1} parent=1 // pred_check
      _
    $region23: #{seq2seq_forward.1} parent=1 // pred_check_branch
      %43 = sbr.rel (0) target = $region25
    $region24: #{seq2seq_forward.1} parent=1 // pred_region
      _
    $region25: #{seq2seq_forward.1} parent=1 // pred_fallthru
      _
    // Predicated region
    $region26: #{seq2seq_forward.1} parent=1 // pred_check
      _
    $region27: #{seq2seq_forward.1} parent=1 // pred_check_branch
      %45 = sbr.rel (0) target = $region29
    $region28: #{seq2seq_forward.1} parent=1 // pred_region
      _
    $region29: #{seq2seq_forward.1} parent=1 // pred_fallthru
      _
    // Predicated region
    $region30: #{seq2seq_forward.1} parent=1 // pred_check
      _
    $region31: #{seq2seq_forward.1} parent=1 // pred_check_branch
      %47 = sbr.rel (0) target = $region33
    $region32: #{seq2seq_forward.1} parent=1 // pred_region
      _
    $region33: #{seq2seq_forward.1} parent=1 // pred_fallthru
      _
    // Predicated region
    $region34: #{seq2seq_forward.1} parent=1 // pred_check
      _
    $region35: #{seq2seq_forward.1} parent=1 // pred_check_branch
      %49 = sbr.rel (0) target = $region37
    $region36: #{seq2seq_forward.1} parent=1 // pred_region
      _
    $region37: #{seq2seq_forward.1} parent=1 // pred_fallthru
      _
    // Predicated region
    $region38: #{seq2seq_forward.1} parent=1 // pred_check
      _
    $region39: #{seq2seq_forward.1} parent=1 // pred_check_branch
      %51 = sbr.rel (0) target = $region41
    $region40: #{seq2seq_forward.1} parent=1 // pred_region
      _
    $region41: #{seq2seq_forward.1} parent=1 // pred_fallthru
      _
    // Predicated region
    $region42: #{seq2seq_forward.1} parent=1 // pred_check
      _
    $region43: #{seq2seq_forward.1} parent=1 // pred_check_branch
      %53 = sbr.rel (0) target = $region45
    $region44: #{seq2seq_forward.1} parent=1 // pred_region
      _
    $region45: #{seq2seq_forward.1} parent=1 // pred_fallthru
      _
    // Predicated region
    $region46: #{seq2seq_forward.1} parent=1 // pred_check
      _
    $region47: #{seq2seq_forward.1} parent=1 // pred_check_branch
      %55 = sbr.rel (0) target = $region49
    $region48: #{seq2seq_forward.1} parent=1 // pred_region
      _
    $region49: #{seq2seq_forward.1} parent=1 // pred_fallthru
      _
    // Predicated region
    $region50: #{seq2seq_forward.1} parent=1 // pred_check
      _
    $region51: #{seq2seq_forward.1} parent=1 // pred_check_branch
      %57 = sbr.rel (0) target = $region53
    $region52: #{seq2seq_forward.1} parent=1 // pred_region
      _
    $region53: #{seq2seq_forward.1} parent=1 // pred_fallthru
      _
    // Predicated region
    $region54: #{seq2seq_forward.1} parent=1 // pred_check
      _
    $region55: #{seq2seq_forward.1} parent=1 // pred_check_branch
      %59 = sbr.rel (0) target = $region57
    $region56: #{seq2seq_forward.1} parent=1 // pred_region
      _
    $region57: #{seq2seq_forward.1} parent=1 // pred_fallthru
      _
    // Predicated region
    $region58: #{seq2seq_forward.1} parent=1 // pred_check
      _
    $region59: #{seq2seq_forward.1} parent=1 // pred_check_branch
      %61 = sbr.rel (0) target = $region61
    $region60: #{seq2seq_forward.1} parent=1 // pred_region
      _
    $region61: #{seq2seq_forward.1} parent=1 // pred_fallthru
      _
    // Predicated region
    $region62: #{seq2seq_forward.1} parent=1 // pred_check
      _
    $region63: #{seq2seq_forward.1} parent=1 // pred_check_branch
      %63 = sbr.rel (0) target = $region65
    $region64: #{seq2seq_forward.1} parent=1 // pred_region
      %s65 = ssub.s32 256, 256
      %66 = vsyncadd [#allocation3], %s65
      %s67 = sshll.u32 [#allocation2], 4
      %s68 = int_to_ptr.vmem [resolvable:$true] %s67
      %73 = dma.hbm_to_vmem [thread:$0]  %s15, 256, %s68, [#allocation3], 128, 128, 8
    $region65: #{seq2seq_forward.1} parent=1 // pred_fallthru
      _
    // Predicated region
    $region66: #{seq2seq_forward.1} parent=1 // pred_check
      _
    $region67: #{seq2seq_forward.1} parent=1 // pred_check_branch
      %75 = sbr.rel (0) target = $region69
    $region68: #{seq2seq_forward.1} parent=1 // pred_region
      _
    $region69: #{seq2seq_forward.1} parent=1 // pred_fallthru
      _
    // Predicated region
    $region70: #{seq2seq_forward.1} parent=1 // pred_check
      _
    $region71: #{seq2seq_forward.1} parent=1 // pred_check_branch
      %77 = sbr.rel (0) target = $region73
    $region72: #{seq2seq_forward.1} parent=1 // pred_region
      _
    $region73: #{seq2seq_forward.1} parent=1 // pred_fallthru
      _
    // Predicated region
    $region74: #{seq2seq_forward.1} parent=1 // pred_check
      _
    $region75: #{seq2seq_forward.1} parent=1 // pred_check_branch
      %79 = sbr.rel (0) target = $region77
    $region76: #{seq2seq_forward.1} parent=1 // pred_region
      _
    $region77: #{seq2seq_forward.1} parent=1 // pred_fallthru
      _
    // Predicated region
    $region78: #{seq2seq_forward.1} parent=1 // pred_check
      _
    $region79: #{seq2seq_forward.1} parent=1 // pred_check_branch
      %81 = sbr.rel (0) target = $region81
    $region80: #{seq2seq_forward.1} parent=1 // pred_region
      _
    $region81: #{seq2seq_forward.1} parent=1 // pred_fallthru
      _
    // Predicated region
    $region82: #{seq2seq_forward.1} parent=1 // pred_check
      _
    $region83: #{seq2seq_forward.1} parent=1 // pred_check_branch
      %83 = sbr.rel (0) target = $region85
    $region84: #{seq2seq_forward.1} parent=1 // pred_region
      _
    $region85: #{seq2seq_forward.1} parent=1 // pred_fallthru
      _
    // Predicated region
    $region86: #{seq2seq_forward.1} parent=1 // pred_check
      _
    $region87: #{seq2seq_forward.1} parent=1 // pred_check_branch
      %85 = sbr.rel (0) target = $region89
    $region88: #{seq2seq_forward.1} parent=1 // pred_region
      _
    $region89: #{seq2seq_forward.1} parent=1 // pred_fallthru
      _
    // Predicated region
    $region90: #{seq2seq_forward.1} parent=1 // pred_check
      _
    $region91: #{seq2seq_forward.1} parent=1 // pred_check_branch
      %87 = sbr.rel (0) target = $region93
    $region92: #{seq2seq_forward.1} parent=1 // pred_region
      %s89 = ssub.s32 256, 256
      %90 = vsyncadd [#allocation6], %s89
      %s91 = sshll.u32 [#allocation5], 4
      %s92 = int_to_ptr.vmem [resolvable:$true] %s91
      %97 = dma.hbm_to_vmem [thread:$0]  %s22, 256, %s92, [#allocation6], 128, 128, 8
    $region93: #{seq2seq_forward.1} parent=1 // pred_fallthru
      _
    // Predicated region
    $region94: #{seq2seq_forward.1} parent=1 // pred_check
      _
    $region95: #{seq2seq_forward.1} parent=1 // pred_check_branch
      %99 = sbr.rel (0) target = $region97
    $region96: #{seq2seq_forward.1} parent=1 // pred_region
      _
    $region97: #{seq2seq_forward.1} parent=1 // pred_fallthru
      _
    // Predicated region
    $region98: #{seq2seq_forward.1} parent=1 // pred_check
      _
    $region99: #{seq2seq_forward.1} parent=1 // pred_check_branch
      %101 = sbr.rel (0) target = $region101
    $region100: #{seq2seq_forward.1} parent=1 // pred_region
      %102 = dma.done [#allocation3], 256
    $region101: #{seq2seq_forward.1} parent=1 // pred_fallthru
      _
    // Predicated region
    $region102: #{seq2seq_forward.1} parent=1 // pred_check
      _
    $region103: #{seq2seq_forward.1} parent=1 // pred_check_branch
      %104 = sbr.rel (0) target = $region105
    $region104: #{seq2seq_forward.1} parent=1 // pred_region
      %105 = dma.done [#allocation6], 256
    $region105: #{seq2seq_forward.1} parent=1 // pred_fallthru
      _
    %v106 = vld [vmem:[%s0] sm:$0xff]
    %v107 = vld [vmem:[%s2] sm:$0xff]
    %v108 = vld [vmem:[%s2 + $0x8] sm:$0xff]
    %v109 = vld [vmem:[%s2 + $0x10] sm:$0xff]
    %v110 = vld [vmem:[%s2 + $0x18] sm:$0xff]
    %v111 = vlaneseq
    %v112 = vshrl.u32 %v111, 7
    %v113 = vsub.s32 0, %v112
    %v114 = vrot.slane %v106, %v113
    %116 = vbcast.lane.b32.xlu0 %v114, 256
    %v117 = vpop.permute.xlu0 %116
    %v118 = vlaneseq
    %v119 = vshrl.u32 %v118, 7
    %v120 = vsub.s32 1, %v119
    %v121 = vrot.slane %v106, %v120
    %123 = vbcast.lane.b32.xlu0 %v121, 256
    %v124 = vpop.permute.xlu0 %123
    %v125 = vlaneseq
    %v126 = vshrl.u32 %v125, 7
    %v127 = vsub.s32 2, %v126
    %v128 = vrot.slane %v106, %v127
    %130 = vbcast.lane.b32.xlu0 %v128, 256
    %v131 = vpop.permute.xlu0 %130
    %v132 = vlaneseq
    %v133 = vshrl.u32 %v132, 7
    %v134 = vsub.s32 3, %v133
    %v135 = vrot.slane %v106, %v134
    %137 = vbcast.lane.b32.xlu0 %v135, 256
    %v138 = vpop.permute.xlu0 %137
    %v139 = vlaneseq
    %v140 = vshrl.u32 %v139, 7
    %v141 = vsub.s32 4, %v140
    %v142 = vrot.slane %v106, %v141
    %144 = vbcast.lane.b32.xlu0 %v142, 256
    %v145 = vpop.permute.xlu0 %144
    %v146 = vlaneseq
    %v147 = vshrl.u32 %v146, 7
    %v148 = vsub.s32 5, %v147
    %v149 = vrot.slane %v106, %v148
    %151 = vbcast.lane.b32.xlu0 %v149, 256
    %v152 = vpop.permute.xlu0 %151
    %v153 = vlaneseq
    %v154 = vshrl.u32 %v153, 7
    %v155 = vsub.s32 6, %v154
    %v156 = vrot.slane %v106, %v155
    %158 = vbcast.lane.b32.xlu0 %v156, 256
    %v159 = vpop.permute.xlu0 %158
    %v160 = vlaneseq
    %v161 = vshrl.u32 %v160, 7
    %v162 = vsub.s32 7, %v161
    %v163 = vrot.slane %v106, %v162
    %165 = vbcast.lane.b32.xlu0 %v163, 256
    %v166 = vpop.permute.xlu0 %165
    %v167 = vlaneseq
    %v168 = vand.u32 %v167, 127
    %vm169 = vcmp.eq.s32.totalorder %v117, %v168
    %vm170 = vcmp.eq.s32.totalorder %v124, %v168
    %vm171 = vcmp.eq.s32.totalorder %v131, %v168
    %vm172 = vcmp.eq.s32.totalorder %v138, %v168
    %vm173 = vcmp.eq.s32.totalorder %v145, %v168
    %vm174 = vcmp.eq.s32.totalorder %v152, %v168
    %vm175 = vcmp.eq.s32.totalorder %v159, %v168
    %vm176 = vcmp.eq.s32.totalorder %v166, %v168
    %v177 = vsel %vm169, 1, 0
    %v178 = vsel %vm170, 1, 0
    %v179 = vsel %vm171, 1, 0
    %v180 = vsel %vm172, 1, 0
    %v181 = vsel %vm173, 1, 0
    %v182 = vsel %vm174, 1, 0
    %v183 = vsel %vm175, 1, 0
    %v184 = vsel %vm176, 1, 0
    %v185 = vcvt.s32.f32 %v177
    %v186 = vcvt.s32.f32 %v178
    %v187 = vcvt.s32.f32 %v179
    %v188 = vcvt.s32.f32 %v180
    %v189 = vcvt.s32.f32 %v181
    %v190 = vcvt.s32.f32 %v182
    %v191 = vcvt.s32.f32 %v183
    %v192 = vcvt.s32.f32 %v184
    %v201 = vcombine.low %v185, %v186
    %v202 = vcombine.low %v187, %v188
    %v204 = vunpack.c.l.s4 1983009808
    %v205 = vunpack.c.0.s8 %v204
    %v206 = vlaneseq
    %v207 = vshrl.u32 %v206, 7
    %v208 = vsub.s32 %v205, %v207
    %v209 = vrot.slane %v201, %v208
    %v211 = vunpack.c.l.s4 1983009808
    %v212 = vunpack.c.0.s8 %v211
    %v213 = vlaneseq
    %v214 = vshrl.u32 %v213, 7
    %v215 = vsub.s32 %v212, %v214
    %v216 = vrot.slane %v202, %v215
    %v217 = vcombine.low %v209, %v216
    %v218 = vcombine.low %v189, %v190
    %v219 = vcombine.low %v191, %v192
    %v221 = vunpack.c.l.s4 1983009808
    %v222 = vunpack.c.0.s8 %v221
    %v223 = vlaneseq
    %v224 = vshrl.u32 %v223, 7
    %v225 = vsub.s32 %v222, %v224
    %v226 = vrot.slane %v218, %v225
    %v228 = vunpack.c.l.s4 1983009808
    %v229 = vunpack.c.0.s8 %v228
    %v230 = vlaneseq
    %v231 = vshrl.u32 %v230, 7
    %v232 = vsub.s32 %v229, %v231
    %v233 = vrot.slane %v219, %v232
    %v234 = vcombine.low %v226, %v233
    %vm235 = vcmask 261120
    %v236 = vsel %vm235, %v217, 0
    %v238 = vsel %vm235, %v234, 0
    %240 = vmatprep.subr.mxu0 0.0
    %241 = vmatpush1.msra.mxu0 %v107
    %242 = vmatprep.subr.mxu0 0.0
    %243 = vmatpush1.msra.mxu0 %v108
    %244 = vmatprep.subr.mxu0 0.0
    %245 = vmatpush1.msra.mxu0 %v109
    %246 = vmatprep.subr.mxu0 0.0
    %247 = vmatpush1.msra.mxu0 %v110
    %248 = vmatprep.subr.mxu0 0.0
    %249 = vmatpush1.msra.mxu0 0.0
    %250 = vmatprep.subr.mxu0 0.0
    %251 = vmatpush1.msra.mxu0 0.0
    %252 = vmatprep.subr.mxu0 0.0
    %253 = vmatpush1.msra.mxu0 0.0
    %254 = vmatprep.subr.mxu0 0.0
    %255 = vmatpush1.msra.mxu0 0.0
    %256 = vmatprep.subr.mxu0 0.0
    %257 = vmatpush1.msra.mxu0 0.0
    %258 = vmatprep.subr.mxu0 0.0
    %259 = vmatpush1.msra.mxu0 0.0
    %260 = vmatprep.subr.mxu0 0.0
    %261 = vmatpush1.msra.mxu0 0.0
    %262 = vmatprep.subr.mxu0 0.0
    %263 = vmatpush1.msra.mxu0 0.0
    %264 = vmatprep.subr.mxu0 0.0
    %265 = vmatpush1.msra.mxu0 0.0
    %266 = vmatprep.subr.mxu0 0.0
    %267 = vmatpush1.msra.mxu0 0.0
    %268 = vmatprep.subr.mxu0 0.0
    %269 = vmatpush1.msra.mxu0 0.0
    %270 = vmatprep.subr.mxu0 0.0
    %271 = vmatpush1.msra.mxu0 0.0
    %272 = vmatprep.subr.mxu0 0.0
    %273 = vmatpush1.msra.mxu0 0.0
    %274 = vmatprep.subr.mxu0 0.0
    %275 = vmatpush1.msra.mxu0 0.0
    %276 = vmatprep.subr.mxu0 0.0
    %277 = vmatpush1.msra.mxu0 0.0
    %278 = vmatprep.subr.mxu0 0.0
    %279 = vmatpush1.msra.mxu0 0.0
    %280 = vmatprep.subr.mxu0 0.0
    %281 = vmatpush1.msra.mxu0 0.0
    %282 = vmatprep.subr.mxu0 0.0
    %283 = vmatpush1.msra.mxu0 0.0
    %284 = vmatprep.subr.mxu0 0.0
    %285 = vmatpush1.msra.mxu0 0.0
    %286 = vmatprep.subr.mxu0 0.0
    %287 = vmatpush1.msra.mxu0 0.0
    %288 = vmatprep.subr.mxu0 0.0
    %289 = vmatpush1.msra.mxu0 0.0
    %290 = vmatprep.subr.mxu0 0.0
    %291 = vmatpush1.msra.mxu0 0.0
    %292 = vmatprep.subr.mxu0 0.0
    %293 = vmatpush1.msra.mxu0 0.0
    %294 = vmatprep.subr.mxu0 0.0
    %295 = vmatpush1.msra.mxu0 0.0
    %296 = vmatprep.subr.mxu0 0.0
    %297 = vmatpush1.msra.mxu0 0.0
    %298 = vmatprep.subr.mxu0 0.0
    %299 = vmatpush1.msra.mxu0 0.0
    %300 = vmatprep.subr.mxu0 0.0
    %301 = vmatpush1.msra.mxu0 0.0
    %302 = vmatprep.subr.mxu0 0.0
    %303 = vmatpush1.msra.mxu0 0.0
    %304 = vmatprep.mubr.f32.mxu0 0.0
    %305 = vmatmul.mubr.f32.gmra.mrb[0].mxu0 %v236
    %v306 = vpop.f32.mrb[0].mxu0
    %v307 = vadd.f32 0.0, %v306
    %v308 = vpop.f32.mrb[0].mxu0
    %309 = vmatprep.mubr.f32.mxu0 0.0
    %310 = vmatmul.mubr.f32.gmra.mrb[0].mxu0 %v238
    %v311 = vpop.f32.mrb[0].mxu0
    %v312 = vadd.f32 0.0, %v311
    %v313 = vpop.f32.mrb[0].mxu0
    %314 = vdwg.mxu0
    %v315 = vld [vmem:[%s1] sm:$0x3f]
    %v316 = vld [vmem:[%s3] sm:$0xff]
    %v317 = vld [vmem:[%s3 + $0x8] sm:$0xff]
    %v318 = vld [vmem:[%s3 + $0x10] sm:$0xff]
    %v319 = vld [vmem:[%s3 + $0x18] sm:$0xff]
    %v320 = vlaneseq
    %v321 = vshrl.u32 %v320, 7
    %v322 = vsub.s32 0, %v321
    %v323 = vrot.slane %v315, %v322
    %325 = vbcast.lane.b32.xlu0 %v323, 256
    %v326 = vpop.permute.xlu0 %325
    %v327 = vlaneseq
    %v328 = vshrl.u32 %v327, 7
    %v329 = vsub.s32 1, %v328
    %v330 = vrot.slane %v315, %v329
    %332 = vbcast.lane.b32.xlu0 %v330, 256
    %v333 = vpop.permute.xlu0 %332
    %v334 = vlaneseq
    %v335 = vshrl.u32 %v334, 7
    %v336 = vsub.s32 2, %v335
    %v337 = vrot.slane %v315, %v336
    %339 = vbcast.lane.b32.xlu0 %v337, 256
    %v340 = vpop.permute.xlu0 %339
    %v341 = vlaneseq
    %v342 = vshrl.u32 %v341, 7
    %v343 = vsub.s32 3, %v342
    %v344 = vrot.slane %v315, %v343
    %346 = vbcast.lane.b32.xlu0 %v344, 256
    %v347 = vpop.permute.xlu0 %346
    %v348 = vlaneseq
    %v349 = vshrl.u32 %v348, 7
    %v350 = vsub.s32 4, %v349
    %v351 = vrot.slane %v315, %v350
    %353 = vbcast.lane.b32.xlu0 %v351, 256
    %v354 = vpop.permute.xlu0 %353
    %v355 = vlaneseq
    %v356 = vshrl.u32 %v355, 7
    %v357 = vsub.s32 5, %v356
    %v358 = vrot.slane %v315, %v357
    %360 = vbcast.lane.b32.xlu0 %v358, 256
    %v361 = vpop.permute.xlu0 %360
    %vm362 = vcmp.eq.s32.totalorder %v326, %v168
    %vm363 = vcmp.eq.s32.totalorder %v333, %v168
    %vm364 = vcmp.eq.s32.totalorder %v340, %v168
    %vm365 = vcmp.eq.s32.totalorder %v347, %v168
    %vm366 = vcmp.eq.s32.totalorder %v354, %v168
    %vm367 = vcmp.eq.s32.totalorder %v361, %v168
    %v368 = vsel %vm362, 1, 0
    %v369 = vsel %vm363, 1, 0
    %v370 = vsel %vm364, 1, 0
    %v371 = vsel %vm365, 1, 0
    %v372 = vsel %vm366, 1, 0
    %v373 = vsel %vm367, 1, 0
    %v374 = vcvt.s32.f32 %v368
    %v375 = vcvt.s32.f32 %v369
    %v376 = vcvt.s32.f32 %v370
    %v377 = vcvt.s32.f32 %v371
    %v378 = vcvt.s32.f32 %v372
    %v379 = vcvt.s32.f32 %v373
    %v386 = vcombine.low %v374, %v375
    %v387 = vcombine.low %v376, %v377
    %v389 = vunpack.c.l.s4 1983009808
    %v390 = vunpack.c.0.s8 %v389
    %v391 = vlaneseq
    %v392 = vshrl.u32 %v391, 7
    %v393 = vsub.s32 %v390, %v392
    %v394 = vrot.slane %v386, %v393
    %v396 = vunpack.c.l.s4 1983009808
    %v397 = vunpack.c.0.s8 %v396
    %v398 = vlaneseq
    %v399 = vshrl.u32 %v398, 7
    %v400 = vsub.s32 %v397, %v399
    %v401 = vrot.slane %v387, %v400
    %v402 = vcombine.low %v394, %v401
    %v403 = vcombine.low %v378, %v379
    %v405 = vunpack.c.l.s4 1983009808
    %v406 = vunpack.c.0.s8 %v405
    %v407 = vlaneseq
    %v408 = vshrl.u32 %v407, 7
    %v409 = vsub.s32 %v406, %v408
    %v410 = vrot.slane %v403, %v409
    %v411 = vsel %vm235, %v402, 0
    %v413 = vsel %vm235, %v410, 0
    %415 = vmatprep.subr.mxu0 0.0
    %416 = vmatpush1.msra.mxu0 %v316
    %417 = vmatprep.subr.mxu0 0.0
    %418 = vmatpush1.msra.mxu0 %v317
    %419 = vmatprep.subr.mxu0 0.0
    %420 = vmatpush1.msra.mxu0 %v318
    %421 = vmatprep.subr.mxu0 0.0
    %422 = vmatpush1.msra.mxu0 %v319
    %423 = vmatprep.subr.mxu0 0.0
    %424 = vmatpush1.msra.mxu0 0.0
    %425 = vmatprep.subr.mxu0 0.0
    %426 = vmatpush1.msra.mxu0 0.0
    %427 = vmatprep.subr.mxu0 0.0
    %428 = vmatpush1.msra.mxu0 0.0
    %429 = vmatprep.subr.mxu0 0.0
    %430 = vmatpush1.msra.mxu0 0.0
    %431 = vmatprep.subr.mxu0 0.0
    %432 = vmatpush1.msra.mxu0 0.0
    %433 = vmatprep.subr.mxu0 0.0
    %434 = vmatpush1.msra.mxu0 0.0
    %435 = vmatprep.subr.mxu0 0.0
    %436 = vmatpush1.msra.mxu0 0.0
    %437 = vmatprep.subr.mxu0 0.0
    %438 = vmatpush1.msra.mxu0 0.0
    %439 = vmatprep.subr.mxu0 0.0
    %440 = vmatpush1.msra.mxu0 0.0
    %441 = vmatprep.subr.mxu0 0.0
    %442 = vmatpush1.msra.mxu0 0.0
    %443 = vmatprep.subr.mxu0 0.0
    %444 = vmatpush1.msra.mxu0 0.0
    %445 = vmatprep.subr.mxu0 0.0
    %446 = vmatpush1.msra.mxu0 0.0
    %447 = vmatprep.subr.mxu0 0.0
    %448 = vmatpush1.msra.mxu0 0.0
    %449 = vmatprep.subr.mxu0 0.0
    %450 = vmatpush1.msra.mxu0 0.0
    %451 = vmatprep.subr.mxu0 0.0
    %452 = vmatpush1.msra.mxu0 0.0
    %453 = vmatprep.subr.mxu0 0.0
    %454 = vmatpush1.msra.mxu0 0.0
    %455 = vmatprep.subr.mxu0 0.0
    %456 = vmatpush1.msra.mxu0 0.0
    %457 = vmatprep.subr.mxu0 0.0
    %458 = vmatpush1.msra.mxu0 0.0
    %459 = vmatprep.subr.mxu0 0.0
    %460 = vmatpush1.msra.mxu0 0.0
    %461 = vmatprep.subr.mxu0 0.0
    %462 = vmatpush1.msra.mxu0 0.0
    %463 = vmatprep.subr.mxu0 0.0
    %464 = vmatpush1.msra.mxu0 0.0
    %465 = vmatprep.subr.mxu0 0.0
    %466 = vmatpush1.msra.mxu0 0.0
    %467 = vmatprep.subr.mxu0 0.0
    %468 = vmatpush1.msra.mxu0 0.0
    %469 = vmatprep.subr.mxu0 0.0
    %470 = vmatpush1.msra.mxu0 0.0
    %471 = vmatprep.subr.mxu0 0.0
    %472 = vmatpush1.msra.mxu0 0.0
    %473 = vmatprep.subr.mxu0 0.0
    %474 = vmatpush1.msra.mxu0 0.0
    %475 = vmatprep.subr.mxu0 0.0
    %476 = vmatpush1.msra.mxu0 0.0
    %477 = vmatprep.subr.mxu0 0.0
    %478 = vmatpush1.msra.mxu0 0.0
    %479 = vmatprep.mubr.f32.mxu0 0.0
    %480 = vmatmul.mubr.f32.gmra.mrb[0].mxu0 %v411
    %v481 = vpop.f32.mrb[0].mxu0
    %v482 = vadd.f32 0.0, %v481
    %v483 = vpop.f32.mrb[0].mxu0
    %484 = vmatprep.mubr.f32.mxu0 0.0
    %485 = vmatmul.mubr.f32.gmra.mrb[0].mxu0 %v413
    %v486 = vpop.f32.mrb[0].mxu0
    %v487 = vadd.f32 0.0, %v486
    %v488 = vpop.f32.mrb[0].mxu0
    %489 = vdwg.mxu0
    %v490 = vld [vmem:[%s4] sm:$0xff]
    %v491 = vld [vmem:[%s4 + $0x8] sm:$0xff]
    %v492 = vld [vmem:[%s5] sm:$0x1]
    %v494 = vlaneseq
    %v495 = vshrl.u32 %v494, 7
    %v496 = vsub.s32 0, %v495
    %v497 = vrot.slane %v492, %v496
    %vm499 = vcmask 130048
    %v501 = vsel %vm499, %v307, 0
    %v504 = vsel %vm499, %v312, 0
    %506 = vmatprep.subr.mxu0 0.0
    %507 = vmatpush1.msra.mxu0 %v490
    %508 = vmatprep.subr.mxu0 0.0
    %509 = vmatpush1.msra.mxu0 %v491
    %510 = vmatprep.subr.mxu0 0.0
    %511 = vmatpush1.msra.mxu0 0.0
    %512 = vmatprep.subr.mxu0 0.0
    %513 = vmatpush1.msra.mxu0 0.0
    %514 = vmatprep.subr.mxu0 0.0
    %515 = vmatpush1.msra.mxu0 0.0
    %516 = vmatprep.subr.mxu0 0.0
    %517 = vmatpush1.msra.mxu0 0.0
    %518 = vmatprep.subr.mxu0 0.0
    %519 = vmatpush1.msra.mxu0 0.0
    %520 = vmatprep.subr.mxu0 0.0
    %521 = vmatpush1.msra.mxu0 0.0
    %522 = vmatprep.subr.mxu0 0.0
    %523 = vmatpush1.msra.mxu0 0.0
    %524 = vmatprep.subr.mxu0 0.0
    %525 = vmatpush1.msra.mxu0 0.0
    %526 = vmatprep.subr.mxu0 0.0
    %527 = vmatpush1.msra.mxu0 0.0
    %528 = vmatprep.subr.mxu0 0.0
    %529 = vmatpush1.msra.mxu0 0.0
    %530 = vmatprep.subr.mxu0 0.0
    %531 = vmatpush1.msra.mxu0 0.0
    %532 = vmatprep.subr.mxu0 0.0
    %533 = vmatpush1.msra.mxu0 0.0
    %534 = vmatprep.subr.mxu0 0.0
    %535 = vmatpush1.msra.mxu0 0.0
    %536 = vmatprep.subr.mxu0 0.0
    %537 = vmatpush1.msra.mxu0 0.0
    %538 = vmatprep.subr.mxu0 0.0
    %539 = vmatpush1.msra.mxu0 0.0
    %540 = vmatprep.subr.mxu0 0.0
    %541 = vmatpush1.msra.mxu0 0.0
    %542 = vmatprep.subr.mxu0 0.0
    %543 = vmatpush1.msra.mxu0 0.0
    %544 = vmatprep.subr.mxu0 0.0
    %545 = vmatpush1.msra.mxu0 0.0
    %546 = vmatprep.subr.mxu0 0.0
    %547 = vmatpush1.msra.mxu0 0.0
    %548 = vmatprep.subr.mxu0 0.0
    %549 = vmatpush1.msra.mxu0 0.0
    %550 = vmatprep.subr.mxu0 0.0
    %551 = vmatpush1.msra.mxu0 0.0
    %552 = vmatprep.subr.mxu0 0.0
    %553 = vmatpush1.msra.mxu0 0.0
    %554 = vmatprep.subr.mxu0 0.0
    %555 = vmatpush1.msra.mxu0 0.0
    %556 = vmatprep.subr.mxu0 0.0
    %557 = vmatpush1.msra.mxu0 0.0
    %558 = vmatprep.subr.mxu0 0.0
    %559 = vmatpush1.msra.mxu0 0.0
    %560 = vmatprep.subr.mxu0 0.0
    %561 = vmatpush1.msra.mxu0 0.0
    %562 = vmatprep.subr.mxu0 0.0
    %563 = vmatpush1.msra.mxu0 0.0
    %564 = vmatprep.subr.mxu0 0.0
    %565 = vmatpush1.msra.mxu0 0.0
    %566 = vmatprep.subr.mxu0 0.0
    %567 = vmatpush1.msra.mxu0 0.0
    %568 = vmatprep.subr.mxu0 0.0
    %569 = vmatpush1.msra.mxu0 0.0
    %570 = vmatprep.mubr.f32.mxu0 0.0
    %571 = vmatmul.mubr.f32.gmra.mrb[0].mxu0 %v501
    %v572 = vpop.f32.mrb[0].mxu0
    %v573 = vadd.f32 %v497, %v572
    %v574 = vpop.f32.mrb[0].mxu0
    %575 = vmatprep.mubr.f32.mxu0 0.0
    %576 = vmatmul.mubr.f32.gmra.mrb[0].mxu0 %v504
    %v577 = vpop.f32.mrb[0].mxu0
    %v578 = vadd.f32 %v497, %v577
    %v579 = vpop.f32.mrb[0].mxu0
    %580 = vdwg.mxu0
    %v583 = vcombine.high %v573, %v573
    %v585 = vunpack.c.l.s4 1983009808
    %v586 = vunpack.c.0.s8 %v585
    %v587 = vlaneseq
    %v588 = vshrl.u32 %v587, 7
    %v589 = vsub.s32 %v586, %v588
    %v590 = vrot.slane %v573, %v589
    %v592 = vunpack.c.l.s4 1983009808
    %v593 = vunpack.c.0.s8 %v592
    %v594 = vlaneseq
    %v595 = vshrl.u32 %v594, 7
    %v596 = vsub.s32 %v593, %v595
    %v597 = vrot.slane %v583, %v596
    %v598 = vcombine.high %v590, %v590
    %v599 = vcombine.high %v597, %v597
    %v600 = vcombine.high %v578, %v578
    %v602 = vunpack.c.l.s4 1983009808
    %v603 = vunpack.c.0.s8 %v602
    %v604 = vlaneseq
    %v605 = vshrl.u32 %v604, 7
    %v606 = vsub.s32 %v603, %v605
    %v607 = vrot.slane %v578, %v606
    %v609 = vunpack.c.l.s4 1983009808
    %v610 = vunpack.c.0.s8 %v609
    %v611 = vlaneseq
    %v612 = vshrl.u32 %v611, 7
    %v613 = vsub.s32 %v610, %v612
    %v614 = vrot.slane %v600, %v613
    %v615 = vcombine.high %v607, %v607
    %v616 = vcombine.high %v614, %v614
    %v625 = vld [vmem:[%s6] sm:$0xff]
    %v626 = vld [vmem:[%s6 + $0x8] sm:$0xff]
    %v627 = vld [vmem:[%s7] sm:$0x1]
    %v629 = vlaneseq
    %v630 = vshrl.u32 %v629, 7
    %v631 = vsub.s32 0, %v630
    %v632 = vrot.slane %v627, %v631
    %634 = vmatprep.subr.mxu0 0.0
    %635 = vmatpush1.msra.mxu0 %v625
    %636 = vmatprep.subr.mxu0 0.0
    %637 = vmatpush1.msra.mxu0 %v626
    %638 = vmatprep.subr.mxu0 0.0
    %639 = vmatpush1.msra.mxu0 0.0
    %640 = vmatprep.subr.mxu0 0.0
    %641 = vmatpush1.msra.mxu0 0.0
    %642 = vmatprep.subr.mxu0 0.0
    %643 = vmatpush1.msra.mxu0 0.0
    %644 = vmatprep.subr.mxu0 0.0
    %645 = vmatpush1.msra.mxu0 0.0
    %646 = vmatprep.subr.mxu0 0.0
    %647 = vmatpush1.msra.mxu0 0.0
    %648 = vmatprep.subr.mxu0 0.0
    %649 = vmatpush1.msra.mxu0 0.0
    %650 = vmatprep.subr.mxu0 0.0
    %651 = vmatpush1.msra.mxu0 0.0
    %652 = vmatprep.subr.mxu0 0.0
    %653 = vmatpush1.msra.mxu0 0.0
    %654 = vmatprep.subr.mxu0 0.0
    %655 = vmatpush1.msra.mxu0 0.0
    %656 = vmatprep.subr.mxu0 0.0
    %657 = vmatpush1.msra.mxu0 0.0
    %658 = vmatprep.subr.mxu0 0.0
    %659 = vmatpush1.msra.mxu0 0.0
    %660 = vmatprep.subr.mxu0 0.0
    %661 = vmatpush1.msra.mxu0 0.0
    %662 = vmatprep.subr.mxu0 0.0
    %663 = vmatpush1.msra.mxu0 0.0
    %664 = vmatprep.subr.mxu0 0.0
    %665 = vmatpush1.msra.mxu0 0.0
    %666 = vmatprep.subr.mxu0 0.0
    %667 = vmatpush1.msra.mxu0 0.0
    %668 = vmatprep.subr.mxu0 0.0
    %669 = vmatpush1.msra.mxu0 0.0
    %670 = vmatprep.subr.mxu0 0.0
    %671 = vmatpush1.msra.mxu0 0.0
    %672 = vmatprep.subr.mxu0 0.0
    %673 = vmatpush1.msra.mxu0 0.0
    %674 = vmatprep.subr.mxu0 0.0
    %675 = vmatpush1.msra.mxu0 0.0
    %676 = vmatprep.subr.mxu0 0.0
    %677 = vmatpush1.msra.mxu0 0.0
    %678 = vmatprep.subr.mxu0 0.0
    %679 = vmatpush1.msra.mxu0 0.0
    %680 = vmatprep.subr.mxu0 0.0
    %681 = vmatpush1.msra.mxu0 0.0
    %682 = vmatprep.subr.mxu0 0.0
    %683 = vmatpush1.msra.mxu0 0.0
    %684 = vmatprep.subr.mxu0 0.0
    %685 = vmatpush1.msra.mxu0 0.0
    %686 = vmatprep.subr.mxu0 0.0
    %687 = vmatpush1.msra.mxu0 0.0
    %688 = vmatprep.subr.mxu0 0.0
    %689 = vmatpush1.msra.mxu0 0.0
    %690 = vmatprep.subr.mxu0 0.0
    %691 = vmatpush1.msra.mxu0 0.0
    %692 = vmatprep.subr.mxu0 0.0
    %693 = vmatpush1.msra.mxu0 0.0
    %694 = vmatprep.subr.mxu0 0.0
    %695 = vmatpush1.msra.mxu0 0.0
    %696 = vmatprep.subr.mxu0 0.0
    %697 = vmatpush1.msra.mxu0 0.0
    %698 = vmatprep.mubr.f32.mxu0 0.0
    %699 = vmatmul.mubr.f32.gmra.mrb[0].mxu0 %v501
    %v700 = vpop.f32.mrb[0].mxu0
    %v701 = vadd.f32 %v632, %v700
    %v702 = vpop.f32.mrb[0].mxu0
    %703 = vmatprep.mubr.f32.mxu0 0.0
    %704 = vmatmul.mubr.f32.gmra.mrb[0].mxu0 %v504
    %v705 = vpop.f32.mrb[0].mxu0
    %v706 = vadd.f32 %v632, %v705
    %v707 = vpop.f32.mrb[0].mxu0
    %708 = vdwg.mxu0
    %v711 = vcombine.high %v701, %v701
    %v713 = vunpack.c.l.s4 1983009808
    %v714 = vunpack.c.0.s8 %v713
    %v715 = vlaneseq
    %v716 = vshrl.u32 %v715, 7
    %v717 = vsub.s32 %v714, %v716
    %v718 = vrot.slane %v701, %v717
    %v720 = vunpack.c.l.s4 1983009808
    %v721 = vunpack.c.0.s8 %v720
    %v722 = vlaneseq
    %v723 = vshrl.u32 %v722, 7
    %v724 = vsub.s32 %v721, %v723
    %v725 = vrot.slane %v711, %v724
    %v726 = vcombine.high %v718, %v718
    %v727 = vcombine.high %v725, %v725
    %v728 = vcombine.high %v706, %v706
    %v730 = vunpack.c.l.s4 1983009808
    %v731 = vunpack.c.0.s8 %v730
    %v732 = vlaneseq
    %v733 = vshrl.u32 %v732, 7
    %v734 = vsub.s32 %v731, %v733
    %v735 = vrot.slane %v706, %v734
    %v737 = vunpack.c.l.s4 1983009808
    %v738 = vunpack.c.0.s8 %v737
    %v739 = vlaneseq
    %v740 = vshrl.u32 %v739, 7
    %v741 = vsub.s32 %v738, %v740
    %v742 = vrot.slane %v728, %v741
    %v743 = vcombine.high %v735, %v735
    %v744 = vcombine.high %v742, %v742
    %v745 = vld [vmem:[%s8] sm:$0xff]
    %v746 = vld [vmem:[%s8 + $0x8] sm:$0xff]
    %v747 = vld [vmem:[%s8 + $0x10] sm:$0xff]
    %v748 = vld [vmem:[%s8 + $0x18] sm:$0xff]
    %v749 = vld [vmem:[%s8 + $0x20] sm:$0xff]
    %v750 = vld [vmem:[%s8 + $0x28] sm:$0xff]
    %v751 = vld [vmem:[%s8 + $0x30] sm:$0xff]
    %v752 = vld [vmem:[%s8 + $0x38] sm:$0xff]
    %v753 = vld [vmem:[%s8 + $0x40] sm:$0xff]
    %v754 = vld [vmem:[%s8 + $0x48] sm:$0xff]
    %v755 = vld [vmem:[%s8 + $0x50] sm:$0xff]
    %v756 = vld [vmem:[%s8 + $0x58] sm:$0xff]
    %v757 = vld [vmem:[%s8 + $0x60] sm:$0xff]
    %v758 = vld [vmem:[%s8 + $0x68] sm:$0xff]
    %v759 = vld [vmem:[%s8 + $0x70] sm:$0xff]
    %v760 = vld [vmem:[%s8 + $0x78] sm:$0xff]
    %v761 = vld [vmem:[%s9] sm:$0x3]
    %v763 = vunpack.c.l.s4 1983009808
    %v764 = vunpack.c.0.s8 %v763
    %v765 = vlaneseq
    %v766 = vshrl.u32 %v765, 7
    %v767 = vsub.s32 %v764, %v766
    %v768 = vrot.slane %v744, %v767
    %769 = vrot.lane.b32.xlu0 %v768, 32
    %v770 = vpop.permute.xlu0 %769
    %v773 = vunpack.c.l.s4 1983009808
    %v774 = vunpack.c.0.s8 %v773
    %v775 = vlaneseq
    %v776 = vshrl.u32 %v775, 7
    %v777 = vsub.s32 %v774, %v776
    %v778 = vrot.slane %v590, %v777
    %779 = vrot.lane.b32.xlu0 %v778, 32
    %v780 = vpop.permute.xlu0 %779
    %782 = vrot.lane.b32.xlu0 %v768, 64
    %v783 = vpop.permute.xlu0 %782
    %785 = vrot.lane.b32.xlu0 %v778, 64
    %v786 = vpop.permute.xlu0 %785
    %788 = vrot.lane.b32.xlu0 %v768, 96
    %v789 = vpop.permute.xlu0 %788
    %v791 = vsel %vm235, %v590, %v770
    %vm792 = vcmask 523264
    %v793 = vsel %vm792, %v791, %v780
    %vm794 = vcmask 785408
    %v795 = vsel %vm794, %v793, %v783
    %v796 = vsel %vm235, %v786, %v789
    %v798 = vlaneseq
    %v799 = vshrl.u32 %v798, 7
    %v800 = vsub.s32 0, %v799
    %v801 = vrot.slane %v761, %v800
    %v802 = vlaneseq
    %v803 = vshrl.u32 %v802, 7
    %v804 = vsub.s32 1, %v803
    %v805 = vrot.slane %v761, %v804
    %v809 = vsel %vm792, 0.0, 0
    %811 = vmatprep.subr.mxu0 %v746
    %812 = vmatpush1.msra.mxu0 %v745
    %813 = vmatprep.subr.mxu0 %v748
    %814 = vmatpush1.msra.mxu0 %v747
    %815 = vmatprep.subr.mxu0 %v750
    %816 = vmatpush1.msra.mxu0 %v749
    %817 = vmatprep.subr.mxu0 %v752
    %818 = vmatpush1.msra.mxu0 %v751
    %819 = vmatprep.subr.mxu0 %v754
    %820 = vmatpush1.msra.mxu0 %v753
    %821 = vmatprep.subr.mxu0 %v756
    %822 = vmatpush1.msra.mxu0 %v755
    %823 = vmatprep.subr.mxu0 %v758
    %824 = vmatpush1.msra.mxu0 %v757
    %825 = vmatprep.subr.mxu0 %v760
    %826 = vmatpush1.msra.mxu0 %v759
    %827 = vmatprep.subr.mxu0 0.0
    %828 = vmatpush1.msra.mxu0 0.0
    %829 = vmatprep.subr.mxu0 0.0
    %830 = vmatpush1.msra.mxu0 0.0
    %831 = vmatprep.subr.mxu0 0.0
    %832 = vmatpush1.msra.mxu0 0.0
    %833 = vmatprep.subr.mxu0 0.0
    %834 = vmatpush1.msra.mxu0 0.0
    %835 = vmatprep.subr.mxu0 0.0
    %836 = vmatpush1.msra.mxu0 0.0
    %837 = vmatprep.subr.mxu0 0.0
    %838 = vmatpush1.msra.mxu0 0.0
    %839 = vmatprep.subr.mxu0 0.0
    %840 = vmatpush1.msra.mxu0 0.0
    %841 = vmatprep.subr.mxu0 0.0
    %842 = vmatpush1.msra.mxu0 0.0
    %843 = vmatprep.subr.mxu0 0.0
    %844 = vmatpush1.msra.mxu0 0.0
    %845 = vmatprep.subr.mxu0 0.0
    %846 = vmatpush1.msra.mxu0 0.0
    %847 = vmatprep.subr.mxu0 0.0
    %848 = vmatpush1.msra.mxu0 0.0
    %849 = vmatprep.subr.mxu0 0.0
    %850 = vmatpush1.msra.mxu0 0.0
    %851 = vmatprep.subr.mxu0 0.0
    %852 = vmatpush1.msra.mxu0 0.0
    %853 = vmatprep.subr.mxu0 0.0
    %854 = vmatpush1.msra.mxu0 0.0
    %855 = vmatprep.subr.mxu0 0.0
    %856 = vmatpush1.msra.mxu0 0.0
    %857 = vmatprep.subr.mxu0 0.0
    %858 = vmatpush1.msra.mxu0 0.0
    %859 = vmatprep.subr.mxu0 0.0
    %860 = vmatpush1.msra.mxu0 0.0
    %861 = vmatprep.subr.mxu0 0.0
    %862 = vmatpush1.msra.mxu0 0.0
    %863 = vmatprep.subr.mxu0 0.0
    %864 = vmatpush1.msra.mxu0 0.0
    %865 = vmatprep.subr.mxu0 0.0
    %866 = vmatpush1.msra.mxu0 0.0
    %867 = vmatprep.subr.mxu0 0.0
    %868 = vmatpush1.msra.mxu0 0.0
    %869 = vmatprep.subr.mxu0 0.0
    %870 = vmatpush1.msra.mxu0 0.0
    %871 = vmatprep.subr.mxu0 0.0
    %872 = vmatpush1.msra.mxu0 0.0
    %873 = vmatprep.subr.mxu0 0.0
    %874 = vmatpush1.msra.mxu0 0.0
    %875 = vmatprep.mubr.f32.mxu0 0.0
    %876 = vmatmul.mubr.f32.gmra.mrb[0].mxu0 %v809
    %v877 = vpop.f32.mrb[0].mxu0
    %v878 = vadd.f32 %v801, %v877
    %v879 = vpop.f32.mrb[0].mxu0
    %v880 = vadd.f32 %v805, %v879
    %881 = vdwg.mxu0
    %v882 = vadd.f32 %v795, %v878
    %v883 = vxor.u32 %v882, 2147483648
    %v884 = vmul.f32 %v883, 1.442695
    %v885 = vpow.pop %v884
    %v886 = vadd.f32 %v885, 1.0
    %v887 = vrcp.pop %v886
    %v888 = vmul.f32 1.0, %v887
    %v889 = vmul.f32 %v888, %v880
    %v890 = vadd.f32 %v796, %v889
    %v891 = vtanh.pop %v890
    %v892 = vsub.f32 1.0, %v888
    %894 = vrot.lane.b32.xlu0 %v891, 64
    %v895 = vpop.permute.xlu0 %894
    %v897 = vmul.f32 %v892, %v895
    %v898 = vmul.f32 %v888, 0.0
    %v899 = vadd.f32 %v897, %v898
    %v901 = vunpack.c.l.s4 1983009808
    %v902 = vunpack.c.0.s8 %v901
    %v903 = vlaneseq
    %v904 = vshrl.u32 %v903, 7
    %v905 = vsub.s32 %v902, %v904
    %v906 = vrot.slane %v742, %v905
    %907 = vrot.lane.b32.xlu0 %v906, 32
    %v908 = vpop.permute.xlu0 %907
    %v911 = vunpack.c.l.s4 1983009808
    %v912 = vunpack.c.0.s8 %v911
    %v913 = vlaneseq
    %v914 = vshrl.u32 %v913, 7
    %v915 = vsub.s32 %v912, %v914
    %v916 = vrot.slane %v598, %v915
    %917 = vrot.lane.b32.xlu0 %v916, 32
    %v918 = vpop.permute.xlu0 %917
    %920 = vrot.lane.b32.xlu0 %v906, 64
    %v921 = vpop.permute.xlu0 %920
    %923 = vrot.lane.b32.xlu0 %v916, 64
    %v924 = vpop.permute.xlu0 %923
    %926 = vrot.lane.b32.xlu0 %v906, 96
    %v927 = vpop.permute.xlu0 %926
    %v929 = vsel %vm235, %v598, %v908
    %v930 = vsel %vm792, %v929, %v918
    %v931 = vsel %vm794, %v930, %v921
    %v932 = vsel %vm235, %v924, %v927
    %934 = vrot.lane.b32.xlu0 %v899, 64
    %v935 = vpop.permute.xlu0 %934
    %v936 = vsel %vm792, %v935, 0
    %938 = vmatprep.subr.mxu0 %v746
    %939 = vmatpush1.msra.mxu0 %v745
    %940 = vmatprep.subr.mxu0 %v748
    %941 = vmatpush1.msra.mxu0 %v747
    %942 = vmatprep.subr.mxu0 %v750
    %943 = vmatpush1.msra.mxu0 %v749
    %944 = vmatprep.subr.mxu0 %v752
    %945 = vmatpush1.msra.mxu0 %v751
    %946 = vmatprep.subr.mxu0 %v754
    %947 = vmatpush1.msra.mxu0 %v753
    %948 = vmatprep.subr.mxu0 %v756
    %949 = vmatpush1.msra.mxu0 %v755
    %950 = vmatprep.subr.mxu0 %v758
    %951 = vmatpush1.msra.mxu0 %v757
    %952 = vmatprep.subr.mxu0 %v760
    %953 = vmatpush1.msra.mxu0 %v759
    %954 = vmatprep.subr.mxu0 0.0
    %955 = vmatpush1.msra.mxu0 0.0
    %956 = vmatprep.subr.mxu0 0.0
    %957 = vmatpush1.msra.mxu0 0.0
    %958 = vmatprep.subr.mxu0 0.0
    %959 = vmatpush1.msra.mxu0 0.0
    %960 = vmatprep.subr.mxu0 0.0
    %961 = vmatpush1.msra.mxu0 0.0
    %962 = vmatprep.subr.mxu0 0.0
    %963 = vmatpush1.msra.mxu0 0.0
    %964 = vmatprep.subr.mxu0 0.0
    %965 = vmatpush1.msra.mxu0 0.0
    %966 = vmatprep.subr.mxu0 0.0
    %967 = vmatpush1.msra.mxu0 0.0
    %968 = vmatprep.subr.mxu0 0.0
    %969 = vmatpush1.msra.mxu0 0.0
    %970 = vmatprep.subr.mxu0 0.0
    %971 = vmatpush1.msra.mxu0 0.0
    %972 = vmatprep.subr.mxu0 0.0
    %973 = vmatpush1.msra.mxu0 0.0
    %974 = vmatprep.subr.mxu0 0.0
    %975 = vmatpush1.msra.mxu0 0.0
    %976 = vmatprep.subr.mxu0 0.0
    %977 = vmatpush1.msra.mxu0 0.0
    %978 = vmatprep.subr.mxu0 0.0
    %979 = vmatpush1.msra.mxu0 0.0
    %980 = vmatprep.subr.mxu0 0.0
    %981 = vmatpush1.msra.mxu0 0.0
    %982 = vmatprep.subr.mxu0 0.0
    %983 = vmatpush1.msra.mxu0 0.0
    %984 = vmatprep.subr.mxu0 0.0
    %985 = vmatpush1.msra.mxu0 0.0
    %986 = vmatprep.subr.mxu0 0.0
    %987 = vmatpush1.msra.mxu0 0.0
    %988 = vmatprep.subr.mxu0 0.0
    %989 = vmatpush1.msra.mxu0 0.0
    %990 = vmatprep.subr.mxu0 0.0
    %991 = vmatpush1.msra.mxu0 0.0
    %992 = vmatprep.subr.mxu0 0.0
    %993 = vmatpush1.msra.mxu0 0.0
    %994 = vmatprep.subr.mxu0 0.0
    %995 = vmatpush1.msra.mxu0 0.0
    %996 = vmatprep.subr.mxu0 0.0
    %997 = vmatpush1.msra.mxu0 0.0
    %998 = vmatprep.subr.mxu0 0.0
    %999 = vmatpush1.msra.mxu0 0.0
    %1000 = vmatprep.subr.mxu0 0.0
    %1001 = vmatpush1.msra.mxu0 0.0
    %1002 = vmatprep.mubr.f32.mxu0 0.0
    %1003 = vmatmul.mubr.f32.gmra.mrb[0].mxu0 %v936
    %v1004 = vpop.f32.mrb[0].mxu0
    %v1005 = vadd.f32 %v801, %v1004
    %v1006 = vpop.f32.mrb[0].mxu0
    %v1007 = vadd.f32 %v805, %v1006
    %1008 = vdwg.mxu0
    %v1009 = vadd.f32 %v931, %v1005
    %v1010 = vxor.u32 %v1009, 2147483648
    %v1011 = vmul.f32 %v1010, 1.442695
    %v1012 = vpow.pop %v1011
    %v1013 = vadd.f32 %v1012, 1.0
    %v1014 = vrcp.pop %v1013
    %v1015 = vmul.f32 1.0, %v1014
    %v1016 = vmul.f32 %v1015, %v1007
    %v1017 = vadd.f32 %v932, %v1016
    %v1018 = vtanh.pop %v1017
    %v1019 = vsub.f32 1.0, %v1015
    %1021 = vrot.lane.b32.xlu0 %v1018, 64
    %v1022 = vpop.permute.xlu0 %1021
    %v1024 = vmul.f32 %v1019, %v1022
    %v1025 = vmul.f32 %v1015, %v899
    %v1026 = vadd.f32 %v1024, %v1025
    %v1028 = vunpack.c.l.s4 1983009808
    %v1029 = vunpack.c.0.s8 %v1028
    %v1030 = vlaneseq
    %v1031 = vshrl.u32 %v1030, 7
    %v1032 = vsub.s32 %v1029, %v1031
    %v1033 = vrot.slane %v743, %v1032
    %1034 = vrot.lane.b32.xlu0 %v1033, 32
    %v1035 = vpop.permute.xlu0 %1034
    %v1038 = vunpack.c.l.s4 1983009808
    %v1039 = vunpack.c.0.s8 %v1038
    %v1040 = vlaneseq
    %v1041 = vshrl.u32 %v1040, 7
    %v1042 = vsub.s32 %v1039, %v1041
    %v1043 = vrot.slane %v597, %v1042
    %1044 = vrot.lane.b32.xlu0 %v1043, 32
    %v1045 = vpop.permute.xlu0 %1044
    %1047 = vrot.lane.b32.xlu0 %v1033, 64
    %v1048 = vpop.permute.xlu0 %1047
    %1050 = vrot.lane.b32.xlu0 %v1043, 64
    %v1051 = vpop.permute.xlu0 %1050
    %1053 = vrot.lane.b32.xlu0 %v1033, 96
    %v1054 = vpop.permute.xlu0 %1053
    %v1056 = vsel %vm235, %v597, %v1035
    %v1057 = vsel %vm792, %v1056, %v1045
    %v1058 = vsel %vm794, %v1057, %v1048
    %v1059 = vsel %vm235, %v1051, %v1054
    %1061 = vrot.lane.b32.xlu0 %v1026, 64
    %v1062 = vpop.permute.xlu0 %1061
    %v1063 = vsel %vm792, %v1062, 0
    %1065 = vmatprep.subr.mxu0 %v746
    %1066 = vmatpush1.msra.mxu0 %v745
    %1067 = vmatprep.subr.mxu0 %v748
    %1068 = vmatpush1.msra.mxu0 %v747
    %1069 = vmatprep.subr.mxu0 %v750
    %1070 = vmatpush1.msra.mxu0 %v749
    %1071 = vmatprep.subr.mxu0 %v752
    %1072 = vmatpush1.msra.mxu0 %v751
    %1073 = vmatprep.subr.mxu0 %v754
    %1074 = vmatpush1.msra.mxu0 %v753
    %1075 = vmatprep.subr.mxu0 %v756
    %1076 = vmatpush1.msra.mxu0 %v755
    %1077 = vmatprep.subr.mxu0 %v758
    %1078 = vmatpush1.msra.mxu0 %v757
    %1079 = vmatprep.subr.mxu0 %v760
    %1080 = vmatpush1.msra.mxu0 %v759
    %1081 = vmatprep.subr.mxu0 0.0
    %1082 = vmatpush1.msra.mxu0 0.0
    %1083 = vmatprep.subr.mxu0 0.0
    %1084 = vmatpush1.msra.mxu0 0.0
    %1085 = vmatprep.subr.mxu0 0.0
    %1086 = vmatpush1.msra.mxu0 0.0
    %1087 = vmatprep.subr.mxu0 0.0
    %1088 = vmatpush1.msra.mxu0 0.0
    %1089 = vmatprep.subr.mxu0 0.0
    %1090 = vmatpush1.msra.mxu0 0.0
    %1091 = vmatprep.subr.mxu0 0.0
    %1092 = vmatpush1.msra.mxu0 0.0
    %1093 = vmatprep.subr.mxu0 0.0
    %1094 = vmatpush1.msra.mxu0 0.0
    %1095 = vmatprep.subr.mxu0 0.0
    %1096 = vmatpush1.msra.mxu0 0.0
    %1097 = vmatprep.subr.mxu0 0.0
    %1098 = vmatpush1.msra.mxu0 0.0
    %1099 = vmatprep.subr.mxu0 0.0
    %1100 = vmatpush1.msra.mxu0 0.0
    %1101 = vmatprep.subr.mxu0 0.0
    %1102 = vmatpush1.msra.mxu0 0.0
    %1103 = vmatprep.subr.mxu0 0.0
    %1104 = vmatpush1.msra.mxu0 0.0
    %1105 = vmatprep.subr.mxu0 0.0
    %1106 = vmatpush1.msra.mxu0 0.0
    %1107 = vmatprep.subr.mxu0 0.0
    %1108 = vmatpush1.msra.mxu0 0.0
    %1109 = vmatprep.subr.mxu0 0.0
    %1110 = vmatpush1.msra.mxu0 0.0
    %1111 = vmatprep.subr.mxu0 0.0
    %1112 = vmatpush1.msra.mxu0 0.0
    %1113 = vmatprep.subr.mxu0 0.0
    %1114 = vmatpush1.msra.mxu0 0.0
    %1115 = vmatprep.subr.mxu0 0.0
    %1116 = vmatpush1.msra.mxu0 0.0
    %1117 = vmatprep.subr.mxu0 0.0
    %1118 = vmatpush1.msra.mxu0 0.0
    %1119 = vmatprep.subr.mxu0 0.0
    %1120 = vmatpush1.msra.mxu0 0.0
    %1121 = vmatprep.subr.mxu0 0.0
    %1122 = vmatpush1.msra.mxu0 0.0
    %1123 = vmatprep.subr.mxu0 0.0
    %1124 = vmatpush1.msra.mxu0 0.0
    %1125 = vmatprep.subr.mxu0 0.0
    %1126 = vmatpush1.msra.mxu0 0.0
    %1127 = vmatprep.subr.mxu0 0.0
    %1128 = vmatpush1.msra.mxu0 0.0
    %1129 = vmatprep.mubr.f32.mxu0 0.0
    %1130 = vmatmul.mubr.f32.gmra.mrb[0].mxu0 %v1063
    %v1131 = vpop.f32.mrb[0].mxu0
    %v1132 = vadd.f32 %v801, %v1131
    %v1133 = vpop.f32.mrb[0].mxu0
    %v1134 = vadd.f32 %v805, %v1133
    %1135 = vdwg.mxu0
    %v1136 = vadd.f32 %v1058, %v1132
    %v1137 = vxor.u32 %v1136, 2147483648
    %v1138 = vmul.f32 %v1137, 1.442695
    %v1139 = vpow.pop %v1138
    %v1140 = vadd.f32 %v1139, 1.0
    %v1141 = vrcp.pop %v1140
    %v1142 = vmul.f32 1.0, %v1141
    %v1143 = vmul.f32 %v1142, %v1134
    %v1144 = vadd.f32 %v1059, %v1143
    %v1145 = vtanh.pop %v1144
    %v1146 = vsub.f32 1.0, %v1142
    %1148 = vrot.lane.b32.xlu0 %v1145, 64
    %v1149 = vpop.permute.xlu0 %1148
    %v1151 = vmul.f32 %v1146, %v1149
    %v1152 = vmul.f32 %v1142, %v1026
    %v1153 = vadd.f32 %v1151, %v1152
    %v1155 = vunpack.c.l.s4 1983009808
    %v1156 = vunpack.c.0.s8 %v1155
    %v1157 = vlaneseq
    %v1158 = vshrl.u32 %v1157, 7
    %v1159 = vsub.s32 %v1156, %v1158
    %v1160 = vrot.slane %v735, %v1159
    %1161 = vrot.lane.b32.xlu0 %v1160, 32
    %v1162 = vpop.permute.xlu0 %1161
    %v1165 = vunpack.c.l.s4 1983009808
    %v1166 = vunpack.c.0.s8 %v1165
    %v1167 = vlaneseq
    %v1168 = vshrl.u32 %v1167, 7
    %v1169 = vsub.s32 %v1166, %v1168
    %v1170 = vrot.slane %v599, %v1169
    %1171 = vrot.lane.b32.xlu0 %v1170, 32
    %v1172 = vpop.permute.xlu0 %1171
    %1174 = vrot.lane.b32.xlu0 %v1160, 64
    %v1175 = vpop.permute.xlu0 %1174
    %1177 = vrot.lane.b32.xlu0 %v1170, 64
    %v1178 = vpop.permute.xlu0 %1177
    %1180 = vrot.lane.b32.xlu0 %v1160, 96
    %v1181 = vpop.permute.xlu0 %1180
    %v1183 = vsel %vm235, %v599, %v1162
    %v1184 = vsel %vm792, %v1183, %v1172
    %v1185 = vsel %vm794, %v1184, %v1175
    %v1186 = vsel %vm235, %v1178, %v1181
    %1188 = vrot.lane.b32.xlu0 %v1153, 64
    %v1189 = vpop.permute.xlu0 %1188
    %v1190 = vsel %vm792, %v1189, 0
    %1192 = vmatprep.subr.mxu0 %v746
    %1193 = vmatpush1.msra.mxu0 %v745
    %1194 = vmatprep.subr.mxu0 %v748
    %1195 = vmatpush1.msra.mxu0 %v747
    %1196 = vmatprep.subr.mxu0 %v750
    %1197 = vmatpush1.msra.mxu0 %v749
    %1198 = vmatprep.subr.mxu0 %v752
    %1199 = vmatpush1.msra.mxu0 %v751
    %1200 = vmatprep.subr.mxu0 %v754
    %1201 = vmatpush1.msra.mxu0 %v753
    %1202 = vmatprep.subr.mxu0 %v756
    %1203 = vmatpush1.msra.mxu0 %v755
    %1204 = vmatprep.subr.mxu0 %v758
    %1205 = vmatpush1.msra.mxu0 %v757
    %1206 = vmatprep.subr.mxu0 %v760
    %1207 = vmatpush1.msra.mxu0 %v759
    %1208 = vmatprep.subr.mxu0 0.0
    %1209 = vmatpush1.msra.mxu0 0.0
    %1210 = vmatprep.subr.mxu0 0.0
    %1211 = vmatpush1.msra.mxu0 0.0
    %1212 = vmatprep.subr.mxu0 0.0
    %1213 = vmatpush1.msra.mxu0 0.0
    %1214 = vmatprep.subr.mxu0 0.0
    %1215 = vmatpush1.msra.mxu0 0.0
    %1216 = vmatprep.subr.mxu0 0.0
    %1217 = vmatpush1.msra.mxu0 0.0
    %1218 = vmatprep.subr.mxu0 0.0
    %1219 = vmatpush1.msra.mxu0 0.0
    %1220 = vmatprep.subr.mxu0 0.0
    %1221 = vmatpush1.msra.mxu0 0.0
    %1222 = vmatprep.subr.mxu0 0.0
    %1223 = vmatpush1.msra.mxu0 0.0
    %1224 = vmatprep.subr.mxu0 0.0
    %1225 = vmatpush1.msra.mxu0 0.0
    %1226 = vmatprep.subr.mxu0 0.0
    %1227 = vmatpush1.msra.mxu0 0.0
    %1228 = vmatprep.subr.mxu0 0.0
    %1229 = vmatpush1.msra.mxu0 0.0
    %1230 = vmatprep.subr.mxu0 0.0
    %1231 = vmatpush1.msra.mxu0 0.0
    %1232 = vmatprep.subr.mxu0 0.0
    %1233 = vmatpush1.msra.mxu0 0.0
    %1234 = vmatprep.subr.mxu0 0.0
    %1235 = vmatpush1.msra.mxu0 0.0
    %1236 = vmatprep.subr.mxu0 0.0
    %1237 = vmatpush1.msra.mxu0 0.0
    %1238 = vmatprep.subr.mxu0 0.0
    %1239 = vmatpush1.msra.mxu0 0.0
    %1240 = vmatprep.subr.mxu0 0.0
    %1241 = vmatpush1.msra.mxu0 0.0
    %1242 = vmatprep.subr.mxu0 0.0
    %1243 = vmatpush1.msra.mxu0 0.0
    %1244 = vmatprep.subr.mxu0 0.0
    %1245 = vmatpush1.msra.mxu0 0.0
    %1246 = vmatprep.subr.mxu0 0.0
    %1247 = vmatpush1.msra.mxu0 0.0
    %1248 = vmatprep.subr.mxu0 0.0
    %1249 = vmatpush1.msra.mxu0 0.0
    %1250 = vmatprep.subr.mxu0 0.0
    %1251 = vmatpush1.msra.mxu0 0.0
    %1252 = vmatprep.subr.mxu0 0.0
    %1253 = vmatpush1.msra.mxu0 0.0
    %1254 = vmatprep.subr.mxu0 0.0
    %1255 = vmatpush1.msra.mxu0 0.0
    %1256 = vmatprep.mubr.f32.mxu0 0.0
    %1257 = vmatmul.mubr.f32.gmra.mrb[0].mxu0 %v1190
    %v1258 = vpop.f32.mrb[0].mxu0
    %v1259 = vadd.f32 %v801, %v1258
    %v1260 = vpop.f32.mrb[0].mxu0
    %v1261 = vadd.f32 %v805, %v1260
    %1262 = vdwg.mxu0
    %v1263 = vadd.f32 %v1185, %v1259
    %v1264 = vxor.u32 %v1263, 2147483648
    %v1265 = vmul.f32 %v1264, 1.442695
    %v1266 = vpow.pop %v1265
    %v1267 = vadd.f32 %v1266, 1.0
    %v1268 = vrcp.pop %v1267
    %v1269 = vmul.f32 1.0, %v1268
    %v1270 = vmul.f32 %v1269, %v1261
    %v1271 = vadd.f32 %v1186, %v1270
    %v1272 = vtanh.pop %v1271
    %v1273 = vsub.f32 1.0, %v1269
    %1275 = vrot.lane.b32.xlu0 %v1272, 64
    %v1276 = vpop.permute.xlu0 %1275
    %v1278 = vmul.f32 %v1273, %v1276
    %v1279 = vmul.f32 %v1269, %v1153
    %v1280 = vadd.f32 %v1278, %v1279
    %v1282 = vunpack.c.l.s4 1983009808
    %v1283 = vunpack.c.0.s8 %v1282
    %v1284 = vlaneseq
    %v1285 = vshrl.u32 %v1284, 7
    %v1286 = vsub.s32 %v1283, %v1285
    %v1287 = vrot.slane %v727, %v1286
    %1288 = vrot.lane.b32.xlu0 %v1287, 32
    %v1289 = vpop.permute.xlu0 %1288
    %v1292 = vunpack.c.l.s4 1983009808
    %v1293 = vunpack.c.0.s8 %v1292
    %v1294 = vlaneseq
    %v1295 = vshrl.u32 %v1294, 7
    %v1296 = vsub.s32 %v1293, %v1295
    %v1297 = vrot.slane %v607, %v1296
    %1298 = vrot.lane.b32.xlu0 %v1297, 32
    %v1299 = vpop.permute.xlu0 %1298
    %1301 = vrot.lane.b32.xlu0 %v1287, 64
    %v1302 = vpop.permute.xlu0 %1301
    %1304 = vrot.lane.b32.xlu0 %v1297, 64
    %v1305 = vpop.permute.xlu0 %1304
    %1307 = vrot.lane.b32.xlu0 %v1287, 96
    %v1308 = vpop.permute.xlu0 %1307
    %v1310 = vsel %vm235, %v607, %v1289
    %v1311 = vsel %vm792, %v1310, %v1299
    %v1312 = vsel %vm794, %v1311, %v1302
    %v1313 = vsel %vm235, %v1305, %v1308
    %1315 = vrot.lane.b32.xlu0 %v1280, 64
    %v1316 = vpop.permute.xlu0 %1315
    %v1317 = vsel %vm792, %v1316, 0
    %1319 = vmatprep.subr.mxu0 %v746
    %1320 = vmatpush1.msra.mxu0 %v745
    %1321 = vmatprep.subr.mxu0 %v748
    %1322 = vmatpush1.msra.mxu0 %v747
    %1323 = vmatprep.subr.mxu0 %v750
    %1324 = vmatpush1.msra.mxu0 %v749
    %1325 = vmatprep.subr.mxu0 %v752
    %1326 = vmatpush1.msra.mxu0 %v751
    %1327 = vmatprep.subr.mxu0 %v754
    %1328 = vmatpush1.msra.mxu0 %v753
    %1329 = vmatprep.subr.mxu0 %v756
    %1330 = vmatpush1.msra.mxu0 %v755
    %1331 = vmatprep.subr.mxu0 %v758
    %1332 = vmatpush1.msra.mxu0 %v757
    %1333 = vmatprep.subr.mxu0 %v760
    %1334 = vmatpush1.msra.mxu0 %v759
    %1335 = vmatprep.subr.mxu0 0.0
    %1336 = vmatpush1.msra.mxu0 0.0
    %1337 = vmatprep.subr.mxu0 0.0
    %1338 = vmatpush1.msra.mxu0 0.0
    %1339 = vmatprep.subr.mxu0 0.0
    %1340 = vmatpush1.msra.mxu0 0.0
    %1341 = vmatprep.subr.mxu0 0.0
    %1342 = vmatpush1.msra.mxu0 0.0
    %1343 = vmatprep.subr.mxu0 0.0
    %1344 = vmatpush1.msra.mxu0 0.0
    %1345 = vmatprep.subr.mxu0 0.0
    %1346 = vmatpush1.msra.mxu0 0.0
    %1347 = vmatprep.subr.mxu0 0.0
    %1348 = vmatpush1.msra.mxu0 0.0
    %1349 = vmatprep.subr.mxu0 0.0
    %1350 = vmatpush1.msra.mxu0 0.0
    %1351 = vmatprep.subr.mxu0 0.0
    %1352 = vmatpush1.msra.mxu0 0.0
    %1353 = vmatprep.subr.mxu0 0.0
    %1354 = vmatpush1.msra.mxu0 0.0
    %1355 = vmatprep.subr.mxu0 0.0
    %1356 = vmatpush1.msra.mxu0 0.0
    %1357 = vmatprep.subr.mxu0 0.0
    %1358 = vmatpush1.msra.mxu0 0.0
    %1359 = vmatprep.subr.mxu0 0.0
    %1360 = vmatpush1.msra.mxu0 0.0
    %1361 = vmatprep.subr.mxu0 0.0
    %1362 = vmatpush1.msra.mxu0 0.0
    %1363 = vmatprep.subr.mxu0 0.0
    %1364 = vmatpush1.msra.mxu0 0.0
    %1365 = vmatprep.subr.mxu0 0.0
    %1366 = vmatpush1.msra.mxu0 0.0
    %1367 = vmatprep.subr.mxu0 0.0
    %1368 = vmatpush1.msra.mxu0 0.0
    %1369 = vmatprep.subr.mxu0 0.0
    %1370 = vmatpush1.msra.mxu0 0.0
    %1371 = vmatprep.subr.mxu0 0.0
    %1372 = vmatpush1.msra.mxu0 0.0
    %1373 = vmatprep.subr.mxu0 0.0
    %1374 = vmatpush1.msra.mxu0 0.0
    %1375 = vmatprep.subr.mxu0 0.0
    %1376 = vmatpush1.msra.mxu0 0.0
    %1377 = vmatprep.subr.mxu0 0.0
    %1378 = vmatpush1.msra.mxu0 0.0
    %1379 = vmatprep.subr.mxu0 0.0
    %1380 = vmatpush1.msra.mxu0 0.0
    %1381 = vmatprep.subr.mxu0 0.0
    %1382 = vmatpush1.msra.mxu0 0.0
    %1383 = vmatprep.mubr.f32.mxu0 0.0
    %1384 = vmatmul.mubr.f32.gmra.mrb[0].mxu0 %v1317
    %v1385 = vpop.f32.mrb[0].mxu0
    %v1386 = vadd.f32 %v801, %v1385
    %v1387 = vpop.f32.mrb[0].mxu0
    %v1388 = vadd.f32 %v805, %v1387
    %1389 = vdwg.mxu0
    %v1390 = vadd.f32 %v1312, %v1386
    %v1391 = vxor.u32 %v1390, 2147483648
    %v1392 = vmul.f32 %v1391, 1.442695
    %v1393 = vpow.pop %v1392
    %v1394 = vadd.f32 %v1393, 1.0
    %v1395 = vrcp.pop %v1394
    %v1396 = vmul.f32 1.0, %v1395
    %v1397 = vmul.f32 %v1396, %v1388
    %v1398 = vadd.f32 %v1313, %v1397
    %v1399 = vtanh.pop %v1398
    %v1400 = vsub.f32 1.0, %v1396
    %1402 = vrot.lane.b32.xlu0 %v1399, 64
    %v1403 = vpop.permute.xlu0 %1402
    %v1405 = vmul.f32 %v1400, %v1403
    %v1406 = vmul.f32 %v1396, %v1280
    %v1407 = vadd.f32 %v1405, %v1406
    %v1409 = vunpack.c.l.s4 1983009808
    %v1410 = vunpack.c.0.s8 %v1409
    %v1411 = vlaneseq
    %v1412 = vshrl.u32 %v1411, 7
    %v1413 = vsub.s32 %v1410, %v1412
    %v1414 = vrot.slane %v725, %v1413
    %1415 = vrot.lane.b32.xlu0 %v1414, 32
    %v1416 = vpop.permute.xlu0 %1415
    %v1419 = vunpack.c.l.s4 1983009808
    %v1420 = vunpack.c.0.s8 %v1419
    %v1421 = vlaneseq
    %v1422 = vshrl.u32 %v1421, 7
    %v1423 = vsub.s32 %v1420, %v1422
    %v1424 = vrot.slane %v615, %v1423
    %1425 = vrot.lane.b32.xlu0 %v1424, 32
    %v1426 = vpop.permute.xlu0 %1425
    %1428 = vrot.lane.b32.xlu0 %v1414, 64
    %v1429 = vpop.permute.xlu0 %1428
    %1431 = vrot.lane.b32.xlu0 %v1424, 64
    %v1432 = vpop.permute.xlu0 %1431
    %1434 = vrot.lane.b32.xlu0 %v1414, 96
    %v1435 = vpop.permute.xlu0 %1434
    %v1437 = vsel %vm235, %v615, %v1416
    %v1438 = vsel %vm792, %v1437, %v1426
    %v1439 = vsel %vm794, %v1438, %v1429
    %v1440 = vsel %vm235, %v1432, %v1435
    %1442 = vrot.lane.b32.xlu0 %v1407, 64
    %v1443 = vpop.permute.xlu0 %1442
    %v1444 = vsel %vm792, %v1443, 0
    %1446 = vmatprep.subr.mxu0 %v746
    %1447 = vmatpush1.msra.mxu0 %v745
    %1448 = vmatprep.subr.mxu0 %v748
    %1449 = vmatpush1.msra.mxu0 %v747
    %1450 = vmatprep.subr.mxu0 %v750
    %1451 = vmatpush1.msra.mxu0 %v749
    %1452 = vmatprep.subr.mxu0 %v752
    %1453 = vmatpush1.msra.mxu0 %v751
    %1454 = vmatprep.subr.mxu0 %v754
    %1455 = vmatpush1.msra.mxu0 %v753
    %1456 = vmatprep.subr.mxu0 %v756
    %1457 = vmatpush1.msra.mxu0 %v755
    %1458 = vmatprep.subr.mxu0 %v758
    %1459 = vmatpush1.msra.mxu0 %v757
    %1460 = vmatprep.subr.mxu0 %v760
    %1461 = vmatpush1.msra.mxu0 %v759
    %1462 = vmatprep.subr.mxu0 0.0
    %1463 = vmatpush1.msra.mxu0 0.0
    %1464 = vmatprep.subr.mxu0 0.0
    %1465 = vmatpush1.msra.mxu0 0.0
    %1466 = vmatprep.subr.mxu0 0.0
    %1467 = vmatpush1.msra.mxu0 0.0
    %1468 = vmatprep.subr.mxu0 0.0
    %1469 = vmatpush1.msra.mxu0 0.0
    %1470 = vmatprep.subr.mxu0 0.0
    %1471 = vmatpush1.msra.mxu0 0.0
    %1472 = vmatprep.subr.mxu0 0.0
    %1473 = vmatpush1.msra.mxu0 0.0
    %1474 = vmatprep.subr.mxu0 0.0
    %1475 = vmatpush1.msra.mxu0 0.0
    %1476 = vmatprep.subr.mxu0 0.0
    %1477 = vmatpush1.msra.mxu0 0.0
    %1478 = vmatprep.subr.mxu0 0.0
    %1479 = vmatpush1.msra.mxu0 0.0
    %1480 = vmatprep.subr.mxu0 0.0
    %1481 = vmatpush1.msra.mxu0 0.0
    %1482 = vmatprep.subr.mxu0 0.0
    %1483 = vmatpush1.msra.mxu0 0.0
    %1484 = vmatprep.subr.mxu0 0.0
    %1485 = vmatpush1.msra.mxu0 0.0
    %1486 = vmatprep.subr.mxu0 0.0
    %1487 = vmatpush1.msra.mxu0 0.0
    %1488 = vmatprep.subr.mxu0 0.0
    %1489 = vmatpush1.msra.mxu0 0.0
    %1490 = vmatprep.subr.mxu0 0.0
    %1491 = vmatpush1.msra.mxu0 0.0
    %1492 = vmatprep.subr.mxu0 0.0
    %1493 = vmatpush1.msra.mxu0 0.0
    %1494 = vmatprep.subr.mxu0 0.0
    %1495 = vmatpush1.msra.mxu0 0.0
    %1496 = vmatprep.subr.mxu0 0.0
    %1497 = vmatpush1.msra.mxu0 0.0
    %1498 = vmatprep.subr.mxu0 0.0
    %1499 = vmatpush1.msra.mxu0 0.0
    %1500 = vmatprep.subr.mxu0 0.0
    %1501 = vmatpush1.msra.mxu0 0.0
    %1502 = vmatprep.subr.mxu0 0.0
    %1503 = vmatpush1.msra.mxu0 0.0
    %1504 = vmatprep.subr.mxu0 0.0
    %1505 = vmatpush1.msra.mxu0 0.0
    %1506 = vmatprep.subr.mxu0 0.0
    %1507 = vmatpush1.msra.mxu0 0.0
    %1508 = vmatprep.subr.mxu0 0.0
    %1509 = vmatpush1.msra.mxu0 0.0
    %1510 = vmatprep.mubr.f32.mxu0 0.0
    %1511 = vmatmul.mubr.f32.gmra.mrb[0].mxu0 %v1444
    %v1512 = vpop.f32.mrb[0].mxu0
    %v1513 = vadd.f32 %v801, %v1512
    %v1514 = vpop.f32.mrb[0].mxu0
    %v1515 = vadd.f32 %v805, %v1514
    %1516 = vdwg.mxu0
    %v1517 = vadd.f32 %v1439, %v1513
    %v1518 = vxor.u32 %v1517, 2147483648
    %v1519 = vmul.f32 %v1518, 1.442695
    %v1520 = vpow.pop %v1519
    %v1521 = vadd.f32 %v1520, 1.0
    %v1522 = vrcp.pop %v1521
    %v1523 = vmul.f32 1.0, %v1522
    %v1524 = vmul.f32 %v1523, %v1515
    %v1525 = vadd.f32 %v1440, %v1524
    %v1526 = vtanh.pop %v1525
    %v1527 = vsub.f32 1.0, %v1523
    %1529 = vrot.lane.b32.xlu0 %v1526, 64
    %v1530 = vpop.permute.xlu0 %1529
    %v1532 = vmul.f32 %v1527, %v1530
    %v1533 = vmul.f32 %v1523, %v1407
    %v1534 = vadd.f32 %v1532, %v1533
    %v1536 = vunpack.c.l.s4 1983009808
    %v1537 = vunpack.c.0.s8 %v1536
    %v1538 = vlaneseq
    %v1539 = vshrl.u32 %v1538, 7
    %v1540 = vsub.s32 %v1537, %v1539
    %v1541 = vrot.slane %v726, %v1540
    %1542 = vrot.lane.b32.xlu0 %v1541, 32
    %v1543 = vpop.permute.xlu0 %1542
    %v1546 = vunpack.c.l.s4 1983009808
    %v1547 = vunpack.c.0.s8 %v1546
    %v1548 = vlaneseq
    %v1549 = vshrl.u32 %v1548, 7
    %v1550 = vsub.s32 %v1547, %v1549
    %v1551 = vrot.slane %v614, %v1550
    %1552 = vrot.lane.b32.xlu0 %v1551, 32
    %v1553 = vpop.permute.xlu0 %1552
    %1555 = vrot.lane.b32.xlu0 %v1541, 64
    %v1556 = vpop.permute.xlu0 %1555
    %1558 = vrot.lane.b32.xlu0 %v1551, 64
    %v1559 = vpop.permute.xlu0 %1558
    %1561 = vrot.lane.b32.xlu0 %v1541, 96
    %v1562 = vpop.permute.xlu0 %1561
    %v1564 = vsel %vm235, %v614, %v1543
    %v1565 = vsel %vm792, %v1564, %v1553
    %v1566 = vsel %vm794, %v1565, %v1556
    %v1567 = vsel %vm235, %v1559, %v1562
    %1569 = vrot.lane.b32.xlu0 %v1534, 64
    %v1570 = vpop.permute.xlu0 %1569
    %v1571 = vsel %vm792, %v1570, 0
    %1573 = vmatprep.subr.mxu0 %v746
    %1574 = vmatpush1.msra.mxu0 %v745
    %1575 = vmatprep.subr.mxu0 %v748
    %1576 = vmatpush1.msra.mxu0 %v747
    %1577 = vmatprep.subr.mxu0 %v750
    %1578 = vmatpush1.msra.mxu0 %v749
    %1579 = vmatprep.subr.mxu0 %v752
    %1580 = vmatpush1.msra.mxu0 %v751
    %1581 = vmatprep.subr.mxu0 %v754
    %1582 = vmatpush1.msra.mxu0 %v753
    %1583 = vmatprep.subr.mxu0 %v756
    %1584 = vmatpush1.msra.mxu0 %v755
    %1585 = vmatprep.subr.mxu0 %v758
    %1586 = vmatpush1.msra.mxu0 %v757
    %1587 = vmatprep.subr.mxu0 %v760
    %1588 = vmatpush1.msra.mxu0 %v759
    %1589 = vmatprep.subr.mxu0 0.0
    %1590 = vmatpush1.msra.mxu0 0.0
    %1591 = vmatprep.subr.mxu0 0.0
    %1592 = vmatpush1.msra.mxu0 0.0
    %1593 = vmatprep.subr.mxu0 0.0
    %1594 = vmatpush1.msra.mxu0 0.0
    %1595 = vmatprep.subr.mxu0 0.0
    %1596 = vmatpush1.msra.mxu0 0.0
    %1597 = vmatprep.subr.mxu0 0.0
    %1598 = vmatpush1.msra.mxu0 0.0
    %1599 = vmatprep.subr.mxu0 0.0
    %1600 = vmatpush1.msra.mxu0 0.0
    %1601 = vmatprep.subr.mxu0 0.0
    %1602 = vmatpush1.msra.mxu0 0.0
    %1603 = vmatprep.subr.mxu0 0.0
    %1604 = vmatpush1.msra.mxu0 0.0
    %1605 = vmatprep.subr.mxu0 0.0
    %1606 = vmatpush1.msra.mxu0 0.0
    %1607 = vmatprep.subr.mxu0 0.0
    %1608 = vmatpush1.msra.mxu0 0.0
    %1609 = vmatprep.subr.mxu0 0.0
    %1610 = vmatpush1.msra.mxu0 0.0
    %1611 = vmatprep.subr.mxu0 0.0
    %1612 = vmatpush1.msra.mxu0 0.0
    %1613 = vmatprep.subr.mxu0 0.0
    %1614 = vmatpush1.msra.mxu0 0.0
    %1615 = vmatprep.subr.mxu0 0.0
    %1616 = vmatpush1.msra.mxu0 0.0
    %1617 = vmatprep.subr.mxu0 0.0
    %1618 = vmatpush1.msra.mxu0 0.0
    %1619 = vmatprep.subr.mxu0 0.0
    %1620 = vmatpush1.msra.mxu0 0.0
    %1621 = vmatprep.subr.mxu0 0.0
    %1622 = vmatpush1.msra.mxu0 0.0
    %1623 = vmatprep.subr.mxu0 0.0
    %1624 = vmatpush1.msra.mxu0 0.0
    %1625 = vmatprep.subr.mxu0 0.0
    %1626 = vmatpush1.msra.mxu0 0.0
    %1627 = vmatprep.subr.mxu0 0.0
    %1628 = vmatpush1.msra.mxu0 0.0
    %1629 = vmatprep.subr.mxu0 0.0
    %1630 = vmatpush1.msra.mxu0 0.0
    %1631 = vmatprep.subr.mxu0 0.0
    %1632 = vmatpush1.msra.mxu0 0.0
    %1633 = vmatprep.subr.mxu0 0.0
    %1634 = vmatpush1.msra.mxu0 0.0
    %1635 = vmatprep.subr.mxu0 0.0
    %1636 = vmatpush1.msra.mxu0 0.0
    %1637 = vmatprep.mubr.f32.mxu0 0.0
    %1638 = vmatmul.mubr.f32.gmra.mrb[0].mxu0 %v1571
    %v1639 = vpop.f32.mrb[0].mxu0
    %v1640 = vadd.f32 %v801, %v1639
    %v1641 = vpop.f32.mrb[0].mxu0
    %v1642 = vadd.f32 %v805, %v1641
    %1643 = vdwg.mxu0
    %v1644 = vadd.f32 %v1566, %v1640
    %v1645 = vxor.u32 %v1644, 2147483648
    %v1646 = vmul.f32 %v1645, 1.442695
    %v1647 = vpow.pop %v1646
    %v1648 = vadd.f32 %v1647, 1.0
    %v1649 = vrcp.pop %v1648
    %v1650 = vmul.f32 1.0, %v1649
    %v1651 = vmul.f32 %v1650, %v1642
    %v1652 = vadd.f32 %v1567, %v1651
    %v1653 = vtanh.pop %v1652
    %v1654 = vsub.f32 1.0, %v1650
    %1656 = vrot.lane.b32.xlu0 %v1653, 64
    %v1657 = vpop.permute.xlu0 %1656
    %v1659 = vmul.f32 %v1654, %v1657
    %v1660 = vmul.f32 %v1650, %v1534
    %v1661 = vadd.f32 %v1659, %v1660
    %v1663 = vunpack.c.l.s4 1983009808
    %v1664 = vunpack.c.0.s8 %v1663
    %v1665 = vlaneseq
    %v1666 = vshrl.u32 %v1665, 7
    %v1667 = vsub.s32 %v1664, %v1666
    %v1668 = vrot.slane %v718, %v1667
    %1669 = vrot.lane.b32.xlu0 %v1668, 32
    %v1670 = vpop.permute.xlu0 %1669
    %v1673 = vunpack.c.l.s4 1983009808
    %v1674 = vunpack.c.0.s8 %v1673
    %v1675 = vlaneseq
    %v1676 = vshrl.u32 %v1675, 7
    %v1677 = vsub.s32 %v1674, %v1676
    %v1678 = vrot.slane %v616, %v1677
    %1679 = vrot.lane.b32.xlu0 %v1678, 32
    %v1680 = vpop.permute.xlu0 %1679
    %1682 = vrot.lane.b32.xlu0 %v1668, 64
    %v1683 = vpop.permute.xlu0 %1682
    %1685 = vrot.lane.b32.xlu0 %v1678, 64
    %v1686 = vpop.permute.xlu0 %1685
    %1688 = vrot.lane.b32.xlu0 %v1668, 96
    %v1689 = vpop.permute.xlu0 %1688
    %v1691 = vsel %vm235, %v616, %v1670
    %v1692 = vsel %vm792, %v1691, %v1680
    %v1693 = vsel %vm794, %v1692, %v1683
    %v1694 = vsel %vm235, %v1686, %v1689
    %1696 = vrot.lane.b32.xlu0 %v1661, 64
    %v1697 = vpop.permute.xlu0 %1696
    %v1698 = vsel %vm792, %v1697, 0
    %1700 = vmatprep.subr.mxu0 %v746
    %1701 = vmatpush1.msra.mxu0 %v745
    %1702 = vmatprep.subr.mxu0 %v748
    %1703 = vmatpush1.msra.mxu0 %v747
    %1704 = vmatprep.subr.mxu0 %v750
    %1705 = vmatpush1.msra.mxu0 %v749
    %1706 = vmatprep.subr.mxu0 %v752
    %1707 = vmatpush1.msra.mxu0 %v751
    %1708 = vmatprep.subr.mxu0 %v754
    %1709 = vmatpush1.msra.mxu0 %v753
    %1710 = vmatprep.subr.mxu0 %v756
    %1711 = vmatpush1.msra.mxu0 %v755
    %1712 = vmatprep.subr.mxu0 %v758
    %1713 = vmatpush1.msra.mxu0 %v757
    %1714 = vmatprep.subr.mxu0 %v760
    %1715 = vmatpush1.msra.mxu0 %v759
    %1716 = vmatprep.subr.mxu0 0.0
    %1717 = vmatpush1.msra.mxu0 0.0
    %1718 = vmatprep.subr.mxu0 0.0
    %1719 = vmatpush1.msra.mxu0 0.0
    %1720 = vmatprep.subr.mxu0 0.0
    %1721 = vmatpush1.msra.mxu0 0.0
    %1722 = vmatprep.subr.mxu0 0.0
    %1723 = vmatpush1.msra.mxu0 0.0
    %1724 = vmatprep.subr.mxu0 0.0
    %1725 = vmatpush1.msra.mxu0 0.0
    %1726 = vmatprep.subr.mxu0 0.0
    %1727 = vmatpush1.msra.mxu0 0.0
    %1728 = vmatprep.subr.mxu0 0.0
    %1729 = vmatpush1.msra.mxu0 0.0
    %1730 = vmatprep.subr.mxu0 0.0
    %1731 = vmatpush1.msra.mxu0 0.0
    %1732 = vmatprep.subr.mxu0 0.0
    %1733 = vmatpush1.msra.mxu0 0.0
    %1734 = vmatprep.subr.mxu0 0.0
    %1735 = vmatpush1.msra.mxu0 0.0
    %1736 = vmatprep.subr.mxu0 0.0
    %1737 = vmatpush1.msra.mxu0 0.0
    %1738 = vmatprep.subr.mxu0 0.0
    %1739 = vmatpush1.msra.mxu0 0.0
    %1740 = vmatprep.subr.mxu0 0.0
    %1741 = vmatpush1.msra.mxu0 0.0
    %1742 = vmatprep.subr.mxu0 0.0
    %1743 = vmatpush1.msra.mxu0 0.0
    %1744 = vmatprep.subr.mxu0 0.0
    %1745 = vmatpush1.msra.mxu0 0.0
    %1746 = vmatprep.subr.mxu0 0.0
    %1747 = vmatpush1.msra.mxu0 0.0
    %1748 = vmatprep.subr.mxu0 0.0
    %1749 = vmatpush1.msra.mxu0 0.0
    %1750 = vmatprep.subr.mxu0 0.0
    %1751 = vmatpush1.msra.mxu0 0.0
    %1752 = vmatprep.subr.mxu0 0.0
    %1753 = vmatpush1.msra.mxu0 0.0
    %1754 = vmatprep.subr.mxu0 0.0
    %1755 = vmatpush1.msra.mxu0 0.0
    %1756 = vmatprep.subr.mxu0 0.0
    %1757 = vmatpush1.msra.mxu0 0.0
    %1758 = vmatprep.subr.mxu0 0.0
    %1759 = vmatpush1.msra.mxu0 0.0
    %1760 = vmatprep.subr.mxu0 0.0
    %1761 = vmatpush1.msra.mxu0 0.0
    %1762 = vmatprep.subr.mxu0 0.0
    %1763 = vmatpush1.msra.mxu0 0.0
    %1764 = vmatprep.mubr.f32.mxu0 0.0
    %1765 = vmatmul.mubr.f32.gmra.mrb[0].mxu0 %v1698
    %v1766 = vpop.f32.mrb[0].mxu0
    %v1767 = vadd.f32 %v801, %v1766
    %v1768 = vpop.f32.mrb[0].mxu0
    %v1769 = vadd.f32 %v805, %v1768
    %1770 = vdwg.mxu0
    %v1771 = vadd.f32 %v1693, %v1767
    %v1772 = vxor.u32 %v1771, 2147483648
    %v1773 = vmul.f32 %v1772, 1.442695
    %v1774 = vpow.pop %v1773
    %v1775 = vadd.f32 %v1774, 1.0
    %v1776 = vrcp.pop %v1775
    %v1777 = vmul.f32 1.0, %v1776
    %v1778 = vmul.f32 %v1777, %v1769
    %v1779 = vadd.f32 %v1694, %v1778
    %v1780 = vtanh.pop %v1779
    %v1781 = vsub.f32 1.0, %v1777
    %1783 = vrot.lane.b32.xlu0 %v1780, 64
    %v1784 = vpop.permute.xlu0 %1783
    %v1786 = vmul.f32 %v1781, %v1784
    %v1787 = vmul.f32 %v1777, %v1661
    %v1788 = vadd.f32 %v1786, %v1787
    %1791 = vrot.lane.b32.xlu0 %v1788, 64
    %v1792 = vpop.permute.xlu0 %1791
    %v1794 = vsel %vm235, %v935, %v1792
    %v1797 = vsel %vm235, %v1062, %v1697
    %v1800 = vsel %vm235, %v1189, %v1570
    %v1803 = vsel %vm235, %v1316, %v1443
    %v1804 = vsel %vm235, %v1443, %v1316
    %v1805 = vsel %vm235, %v1570, %v1189
    %v1806 = vsel %vm235, %v1697, %v1062
    %v1807 = vsel %vm235, %v1792, %v935
    %v1810 = vunpack.c.l.s4 1966171168
    %v1811 = vunpack.c.0.s8 %v1810
    %v1812 = vlaneseq
    %v1813 = vshrl.u32 %v1812, 7
    %v1814 = vsub.s32 %v1811, %v1813
    %v1815 = vrot.slane %v1794, %v1814
    %v1816 = vcombine.high %v1815, %v1815
    %v1818 = vunpack.c.l.s4 1966171168
    %v1819 = vunpack.c.0.s8 %v1818
    %v1820 = vlaneseq
    %v1821 = vshrl.u32 %v1820, 7
    %v1822 = vsub.s32 %v1819, %v1821
    %v1823 = vrot.slane %v1815, %v1822
    %v1825 = vunpack.c.l.s4 1966171168
    %v1826 = vunpack.c.0.s8 %v1825
    %v1827 = vlaneseq
    %v1828 = vshrl.u32 %v1827, 7
    %v1829 = vsub.s32 %v1826, %v1828
    %v1830 = vrot.slane %v1816, %v1829
    %v1835 = vunpack.c.l.s4 1966171168
    %v1836 = vunpack.c.0.s8 %v1835
    %v1837 = vlaneseq
    %v1838 = vshrl.u32 %v1837, 7
    %v1839 = vsub.s32 %v1836, %v1838
    %v1840 = vrot.slane %v1797, %v1839
    %v1841 = vcombine.high %v1840, %v1840
    %v1843 = vunpack.c.l.s4 1966171168
    %v1844 = vunpack.c.0.s8 %v1843
    %v1845 = vlaneseq
    %v1846 = vshrl.u32 %v1845, 7
    %v1847 = vsub.s32 %v1844, %v1846
    %v1848 = vrot.slane %v1840, %v1847
    %v1850 = vunpack.c.l.s4 1966171168
    %v1851 = vunpack.c.0.s8 %v1850
    %v1852 = vlaneseq
    %v1853 = vshrl.u32 %v1852, 7
    %v1854 = vsub.s32 %v1851, %v1853
    %v1855 = vrot.slane %v1841, %v1854
    %v1858 = vunpack.c.l.s4 1966171168
    %v1859 = vunpack.c.0.s8 %v1858
    %v1860 = vlaneseq
    %v1861 = vshrl.u32 %v1860, 7
    %v1862 = vsub.s32 %v1859, %v1861
    %v1863 = vrot.slane %v1800, %v1862
    %v1864 = vcombine.high %v1863, %v1863
    %v1866 = vunpack.c.l.s4 1966171168
    %v1867 = vunpack.c.0.s8 %v1866
    %v1868 = vlaneseq
    %v1869 = vshrl.u32 %v1868, 7
    %v1870 = vsub.s32 %v1867, %v1869
    %v1871 = vrot.slane %v1863, %v1870
    %v1873 = vunpack.c.l.s4 1966171168
    %v1874 = vunpack.c.0.s8 %v1873
    %v1875 = vlaneseq
    %v1876 = vshrl.u32 %v1875, 7
    %v1877 = vsub.s32 %v1874, %v1876
    %v1878 = vrot.slane %v1864, %v1877
    %v1881 = vunpack.c.l.s4 1966171168
    %v1882 = vunpack.c.0.s8 %v1881
    %v1883 = vlaneseq
    %v1884 = vshrl.u32 %v1883, 7
    %v1885 = vsub.s32 %v1882, %v1884
    %v1886 = vrot.slane %v1803, %v1885
    %v1887 = vcombine.high %v1886, %v1886
    %v1889 = vunpack.c.l.s4 1966171168
    %v1890 = vunpack.c.0.s8 %v1889
    %v1891 = vlaneseq
    %v1892 = vshrl.u32 %v1891, 7
    %v1893 = vsub.s32 %v1890, %v1892
    %v1894 = vrot.slane %v1886, %v1893
    %v1896 = vunpack.c.l.s4 1966171168
    %v1897 = vunpack.c.0.s8 %v1896
    %v1898 = vlaneseq
    %v1899 = vshrl.u32 %v1898, 7
    %v1900 = vsub.s32 %v1897, %v1899
    %v1901 = vrot.slane %v1887, %v1900
    %v1904 = vunpack.c.l.s4 1966171168
    %v1905 = vunpack.c.0.s8 %v1904
    %v1906 = vlaneseq
    %v1907 = vshrl.u32 %v1906, 7
    %v1908 = vsub.s32 %v1905, %v1907
    %v1909 = vrot.slane %v1804, %v1908
    %v1910 = vcombine.high %v1909, %v1909
    %v1912 = vunpack.c.l.s4 1966171168
    %v1913 = vunpack.c.0.s8 %v1912
    %v1914 = vlaneseq
    %v1915 = vshrl.u32 %v1914, 7
    %v1916 = vsub.s32 %v1913, %v1915
    %v1917 = vrot.slane %v1909, %v1916
    %v1919 = vunpack.c.l.s4 1966171168
    %v1920 = vunpack.c.0.s8 %v1919
    %v1921 = vlaneseq
    %v1922 = vshrl.u32 %v1921, 7
    %v1923 = vsub.s32 %v1920, %v1922
    %v1924 = vrot.slane %v1910, %v1923
    %v1927 = vunpack.c.l.s4 1966171168
    %v1928 = vunpack.c.0.s8 %v1927
    %v1929 = vlaneseq
    %v1930 = vshrl.u32 %v1929, 7
    %v1931 = vsub.s32 %v1928, %v1930
    %v1932 = vrot.slane %v1805, %v1931
    %v1933 = vcombine.high %v1932, %v1932
    %v1935 = vunpack.c.l.s4 1966171168
    %v1936 = vunpack.c.0.s8 %v1935
    %v1937 = vlaneseq
    %v1938 = vshrl.u32 %v1937, 7
    %v1939 = vsub.s32 %v1936, %v1938
    %v1940 = vrot.slane %v1932, %v1939
    %v1942 = vunpack.c.l.s4 1966171168
    %v1943 = vunpack.c.0.s8 %v1942
    %v1944 = vlaneseq
    %v1945 = vshrl.u32 %v1944, 7
    %v1946 = vsub.s32 %v1943, %v1945
    %v1947 = vrot.slane %v1933, %v1946
    %v1950 = vunpack.c.l.s4 1966171168
    %v1951 = vunpack.c.0.s8 %v1950
    %v1952 = vlaneseq
    %v1953 = vshrl.u32 %v1952, 7
    %v1954 = vsub.s32 %v1951, %v1953
    %v1955 = vrot.slane %v1806, %v1954
    %v1956 = vcombine.high %v1955, %v1955
    %v1958 = vunpack.c.l.s4 1966171168
    %v1959 = vunpack.c.0.s8 %v1958
    %v1960 = vlaneseq
    %v1961 = vshrl.u32 %v1960, 7
    %v1962 = vsub.s32 %v1959, %v1961
    %v1963 = vrot.slane %v1955, %v1962
    %v1965 = vunpack.c.l.s4 1966171168
    %v1966 = vunpack.c.0.s8 %v1965
    %v1967 = vlaneseq
    %v1968 = vshrl.u32 %v1967, 7
    %v1969 = vsub.s32 %v1966, %v1968
    %v1970 = vrot.slane %v1956, %v1969
    %v1973 = vunpack.c.l.s4 1966171168
    %v1974 = vunpack.c.0.s8 %v1973
    %v1975 = vlaneseq
    %v1976 = vshrl.u32 %v1975, 7
    %v1977 = vsub.s32 %v1974, %v1976
    %v1978 = vrot.slane %v1807, %v1977
    %v1979 = vcombine.high %v1978, %v1978
    %v1981 = vunpack.c.l.s4 1966171168
    %v1982 = vunpack.c.0.s8 %v1981
    %v1983 = vlaneseq
    %v1984 = vshrl.u32 %v1983, 7
    %v1985 = vsub.s32 %v1982, %v1984
    %v1986 = vrot.slane %v1978, %v1985
    %v1988 = vunpack.c.l.s4 1966171168
    %v1989 = vunpack.c.0.s8 %v1988
    %v1990 = vlaneseq
    %v1991 = vshrl.u32 %v1990, 7
    %v1992 = vsub.s32 %v1989, %v1991
    %v1993 = vrot.slane %v1979, %v1992
    %v1994 = vlaneseq
    %v1995 = vshrl.u32 %v1994, 7
    %v1996 = vsub.s32 0, %v1995
    %v1997 = vrot.slane %v1848, %v1996
    %v1998 = vlaneseq
    %v1999 = vshrl.u32 %v1998, 7
    %v2000 = vsub.s32 0, %v1999
    %v2001 = vrot.slane %v1855, %v2000
    %v2004 = vlaneseq
    %v2005 = vshrl.u32 %v2004, 7
    %v2006 = vsub.s32 0, %v2005
    %v2007 = vrot.slane %v1871, %v2006
    %v2008 = vlaneseq
    %v2009 = vshrl.u32 %v2008, 7
    %v2010 = vsub.s32 0, %v2009
    %v2011 = vrot.slane %v1878, %v2010
    %v2014 = vlaneseq
    %v2015 = vshrl.u32 %v2014, 7
    %v2016 = vsub.s32 0, %v2015
    %v2017 = vrot.slane %v1894, %v2016
    %v2018 = vlaneseq
    %v2019 = vshrl.u32 %v2018, 7
    %v2020 = vsub.s32 0, %v2019
    %v2021 = vrot.slane %v1901, %v2020
    %v2024 = vlaneseq
    %v2025 = vshrl.u32 %v2024, 7
    %v2026 = vsub.s32 0, %v2025
    %v2027 = vrot.slane %v1917, %v2026
    %v2028 = vlaneseq
    %v2029 = vshrl.u32 %v2028, 7
    %v2030 = vsub.s32 0, %v2029
    %v2031 = vrot.slane %v1924, %v2030
    %v2034 = vlaneseq
    %v2035 = vshrl.u32 %v2034, 7
    %v2036 = vsub.s32 0, %v2035
    %v2037 = vrot.slane %v1940, %v2036
    %v2038 = vlaneseq
    %v2039 = vshrl.u32 %v2038, 7
    %v2040 = vsub.s32 0, %v2039
    %v2041 = vrot.slane %v1947, %v2040
    %v2044 = vlaneseq
    %v2045 = vshrl.u32 %v2044, 7
    %v2046 = vsub.s32 0, %v2045
    %v2047 = vrot.slane %v1963, %v2046
    %v2048 = vlaneseq
    %v2049 = vshrl.u32 %v2048, 7
    %v2050 = vsub.s32 0, %v2049
    %v2051 = vrot.slane %v1970, %v2050
    %v2054 = vlaneseq
    %v2055 = vshrl.u32 %v2054, 7
    %v2056 = vsub.s32 0, %v2055
    %v2057 = vrot.slane %v1986, %v2056
    %v2058 = vlaneseq
    %v2059 = vshrl.u32 %v2058, 7
    %v2060 = vsub.s32 0, %v2059
    %v2061 = vrot.slane %v1993, %v2060
    %vm2064 = vcmask 1040384
    %v2065 = vsel %vm2064, %v1823, %v1997
    %v2066 = vsel %vm2064, %v1830, %v2001
    %vm2067 = vcmask 1041408
    %v2068 = vsel %vm2067, %v2065, %v2007
    %v2069 = vsel %vm2067, %v2066, %v2011
    %vm2070 = vcmask 1042432
    %v2071 = vsel %vm2070, %v2068, %v2017
    %v2072 = vsel %vm2070, %v2069, %v2021
    %vm2073 = vcmask 1043456
    %v2074 = vsel %vm2073, %v2071, %v2027
    %v2075 = vsel %vm2073, %v2072, %v2031
    %vm2076 = vcmask 1044480
    %v2077 = vsel %vm2076, %v2074, %v2037
    %v2078 = vsel %vm2076, %v2075, %v2041
    %vm2079 = vcmask 1045504
    %v2080 = vsel %vm2079, %v2077, %v2047
    %v2081 = vsel %vm2079, %v2078, %v2051
    %vm2082 = vcmask 1046528
    %v2083 = vsel %vm2082, %v2080, %v2057
    %v2084 = vsel %vm2082, %v2081, %v2061
    %v2085 = vld [vmem:[%s10] sm:$0xff]
    %v2086 = vld [vmem:[%s10 + $0x8] sm:$0xff]
    %v2087 = vld [vmem:[%s10 + $0x10] sm:$0xff]
    %v2088 = vld [vmem:[%s10 + $0x18] sm:$0xff]
    %v2089 = vld [vmem:[%s10 + $0x20] sm:$0xff]
    %v2090 = vld [vmem:[%s10 + $0x28] sm:$0xff]
    %v2091 = vld [vmem:[%s10 + $0x30] sm:$0xff]
    %v2092 = vld [vmem:[%s10 + $0x38] sm:$0xff]
    %v2093 = vld [vmem:[%s11] sm:$0x1]
    %v2095 = vlaneseq
    %v2096 = vshrl.u32 %v2095, 7
    %v2097 = vsub.s32 0, %v2096
    %v2098 = vrot.slane %v2093, %v2097
    %v2100 = vsel %vm792, %v1792, 0
    %2102 = vmatprep.subr.mxu0 0.0
    %2103 = vmatpush1.msra.mxu0 %v2085
    %2104 = vmatprep.subr.mxu0 0.0
    %2105 = vmatpush1.msra.mxu0 %v2086
    %2106 = vmatprep.subr.mxu0 0.0
    %2107 = vmatpush1.msra.mxu0 %v2087
    %2108 = vmatprep.subr.mxu0 0.0
    %2109 = vmatpush1.msra.mxu0 %v2088
    %2110 = vmatprep.subr.mxu0 0.0
    %2111 = vmatpush1.msra.mxu0 %v2089
    %2112 = vmatprep.subr.mxu0 0.0
    %2113 = vmatpush1.msra.mxu0 %v2090
    %2114 = vmatprep.subr.mxu0 0.0
    %2115 = vmatpush1.msra.mxu0 %v2091
    %2116 = vmatprep.subr.mxu0 0.0
    %2117 = vmatpush1.msra.mxu0 %v2092
    %2118 = vmatprep.subr.mxu0 0.0
    %2119 = vmatpush1.msra.mxu0 0.0
    %2120 = vmatprep.subr.mxu0 0.0
    %2121 = vmatpush1.msra.mxu0 0.0
    %2122 = vmatprep.subr.mxu0 0.0
    %2123 = vmatpush1.msra.mxu0 0.0
    %2124 = vmatprep.subr.mxu0 0.0
    %2125 = vmatpush1.msra.mxu0 0.0
    %2126 = vmatprep.subr.mxu0 0.0
    %2127 = vmatpush1.msra.mxu0 0.0
    %2128 = vmatprep.subr.mxu0 0.0
    %2129 = vmatpush1.msra.mxu0 0.0
    %2130 = vmatprep.subr.mxu0 0.0
    %2131 = vmatpush1.msra.mxu0 0.0
    %2132 = vmatprep.subr.mxu0 0.0
    %2133 = vmatpush1.msra.mxu0 0.0
    %2134 = vmatprep.subr.mxu0 0.0
    %2135 = vmatpush1.msra.mxu0 0.0
    %2136 = vmatprep.subr.mxu0 0.0
    %2137 = vmatpush1.msra.mxu0 0.0
    %2138 = vmatprep.subr.mxu0 0.0
    %2139 = vmatpush1.msra.mxu0 0.0
    %2140 = vmatprep.subr.mxu0 0.0
    %2141 = vmatpush1.msra.mxu0 0.0
    %2142 = vmatprep.subr.mxu0 0.0
    %2143 = vmatpush1.msra.mxu0 0.0
    %2144 = vmatprep.subr.mxu0 0.0
    %2145 = vmatpush1.msra.mxu0 0.0
    %2146 = vmatprep.subr.mxu0 0.0
    %2147 = vmatpush1.msra.mxu0 0.0
    %2148 = vmatprep.subr.mxu0 0.0
    %2149 = vmatpush1.msra.mxu0 0.0
    %2150 = vmatprep.subr.mxu0 0.0
    %2151 = vmatpush1.msra.mxu0 0.0
    %2152 = vmatprep.subr.mxu0 0.0
    %2153 = vmatpush1.msra.mxu0 0.0
    %2154 = vmatprep.subr.mxu0 0.0
    %2155 = vmatpush1.msra.mxu0 0.0
    %2156 = vmatprep.subr.mxu0 0.0
    %2157 = vmatpush1.msra.mxu0 0.0
    %2158 = vmatprep.subr.mxu0 0.0
    %2159 = vmatpush1.msra.mxu0 0.0
    %2160 = vmatprep.subr.mxu0 0.0
    %2161 = vmatpush1.msra.mxu0 0.0
    %2162 = vmatprep.subr.mxu0 0.0
    %2163 = vmatpush1.msra.mxu0 0.0
    %2164 = vmatprep.subr.mxu0 0.0
    %2165 = vmatpush1.msra.mxu0 0.0
    %2166 = vmatprep.mubr.f32.mxu0 0.0
    %2167 = vmatmul.mubr.f32.gmra.mrb[0].mxu0 %v2100
    %v2168 = vpop.f32.mrb[0].mxu0
    %v2169 = vadd.f32 %v2098, %v2168
    %v2170 = vpop.f32.mrb[0].mxu0
    %2171 = vdwg.mxu0
    %v2172 = vtanh.pop %v2169
    %v2173 = vld [vmem:[%s12] sm:$0xff]
    %v2174 = vld [vmem:[%s12 + $0x8] sm:$0xff]
    %v2175 = vld [vmem:[%s12 + $0x10] sm:$0xff]
    %v2176 = vld [vmem:[%s12 + $0x18] sm:$0xff]
    %v2177 = vld [vmem:[%s12 + $0x20] sm:$0xff]
    %v2178 = vld [vmem:[%s12 + $0x28] sm:$0xff]
    %v2179 = vld [vmem:[%s12 + $0x30] sm:$0xff]
    %v2180 = vld [vmem:[%s12 + $0x38] sm:$0xff]
    %v2181 = vld [vmem:[%s13] sm:$0x1]
    %v2183 = vlaneseq
    %v2184 = vshrl.u32 %v2183, 7
    %v2185 = vsub.s32 0, %v2184
    %v2186 = vrot.slane %v2181, %v2185
    %v2189 = vsel %vm792, %v2083, 0
    %v2192 = vsel %vm792, %v2084, 0
    %2194 = vmatprep.subr.mxu0 0.0
    %2195 = vmatpush1.msra.mxu0 %v2173
    %2196 = vmatprep.subr.mxu0 0.0
    %2197 = vmatpush1.msra.mxu0 %v2174
    %2198 = vmatprep.subr.mxu0 0.0
    %2199 = vmatpush1.msra.mxu0 %v2175
    %2200 = vmatprep.subr.mxu0 0.0
    %2201 = vmatpush1.msra.mxu0 %v2176
    %2202 = vmatprep.subr.mxu0 0.0
    %2203 = vmatpush1.msra.mxu0 %v2177
    %2204 = vmatprep.subr.mxu0 0.0
    %2205 = vmatpush1.msra.mxu0 %v2178
    %2206 = vmatprep.subr.mxu0 0.0
    %2207 = vmatpush1.msra.mxu0 %v2179
    %2208 = vmatprep.subr.mxu0 0.0
    %2209 = vmatpush1.msra.mxu0 %v2180
    %2210 = vmatprep.subr.mxu0 0.0
    %2211 = vmatpush1.msra.mxu0 0.0
    %2212 = vmatprep.subr.mxu0 0.0
    %2213 = vmatpush1.msra.mxu0 0.0
    %2214 = vmatprep.subr.mxu0 0.0
    %2215 = vmatpush1.msra.mxu0 0.0
    %2216 = vmatprep.subr.mxu0 0.0
    %2217 = vmatpush1.msra.mxu0 0.0
    %2218 = vmatprep.subr.mxu0 0.0
    %2219 = vmatpush1.msra.mxu0 0.0
    %2220 = vmatprep.subr.mxu0 0.0
    %2221 = vmatpush1.msra.mxu0 0.0
    %2222 = vmatprep.subr.mxu0 0.0
    %2223 = vmatpush1.msra.mxu0 0.0
    %2224 = vmatprep.subr.mxu0 0.0
    %2225 = vmatpush1.msra.mxu0 0.0
    %2226 = vmatprep.subr.mxu0 0.0
    %2227 = vmatpush1.msra.mxu0 0.0
    %2228 = vmatprep.subr.mxu0 0.0
    %2229 = vmatpush1.msra.mxu0 0.0
    %2230 = vmatprep.subr.mxu0 0.0
    %2231 = vmatpush1.msra.mxu0 0.0
    %2232 = vmatprep.subr.mxu0 0.0
    %2233 = vmatpush1.msra.mxu0 0.0
    %2234 = vmatprep.subr.mxu0 0.0
    %2235 = vmatpush1.msra.mxu0 0.0
    %2236 = vmatprep.subr.mxu0 0.0
    %2237 = vmatpush1.msra.mxu0 0.0
    %2238 = vmatprep.subr.mxu0 0.0
    %2239 = vmatpush1.msra.mxu0 0.0
    %2240 = vmatprep.subr.mxu0 0.0
    %2241 = vmatpush1.msra.mxu0 0.0
    %2242 = vmatprep.subr.mxu0 0.0
    %2243 = vmatpush1.msra.mxu0 0.0
    %2244 = vmatprep.subr.mxu0 0.0
    %2245 = vmatpush1.msra.mxu0 0.0
    %2246 = vmatprep.subr.mxu0 0.0
    %2247 = vmatpush1.msra.mxu0 0.0
    %2248 = vmatprep.subr.mxu0 0.0
    %2249 = vmatpush1.msra.mxu0 0.0
    %2250 = vmatprep.subr.mxu0 0.0
    %2251 = vmatpush1.msra.mxu0 0.0
    %2252 = vmatprep.subr.mxu0 0.0
    %2253 = vmatpush1.msra.mxu0 0.0
    %2254 = vmatprep.subr.mxu0 0.0
    %2255 = vmatpush1.msra.mxu0 0.0
    %2256 = vmatprep.subr.mxu0 0.0
    %2257 = vmatpush1.msra.mxu0 0.0
    %2258 = vmatprep.mubr.f32.mxu0 0.0
    %2259 = vmatmul.mubr.f32.gmra.mrb[0].mxu0 %v2189
    %v2260 = vpop.f32.mrb[0].mxu0
    %v2261 = vadd.f32 %v2186, %v2260
    %v2262 = vpop.f32.mrb[0].mxu0
    %2263 = vmatprep.mubr.f32.mxu0 0.0
    %2264 = vmatmul.mubr.f32.gmra.mrb[0].mxu0 %v2192
    %v2265 = vpop.f32.mrb[0].mxu0
    %v2266 = vadd.f32 %v2186, %v2265
    %v2267 = vpop.f32.mrb[0].mxu0
    %2268 = vdwg.mxu0
    %v2269 = vld [vmem:[%s14] sm:$0x1]
    %v2270 = vld [vmem:[#allocation2] sm:$0xff]
    %v2271 = vld [vmem:[#allocation2 + $0x8] sm:$0xff]
    %v2272 = vld [vmem:[%s16] sm:$0x1]
    %v2274 = vlaneseq
    %v2275 = vshrl.u32 %v2274, 7
    %v2276 = vsub.s32 0, %v2275
    %v2277 = vrot.slane %v2272, %v2276
    %v2280 = vsel %vm499, %v482, 0
    %v2283 = vsel %vm499, %v487, 0
    %2285 = vmatprep.subr.mxu0 0.0
    %2286 = vmatpush1.msra.mxu0 %v2270
    %2287 = vmatprep.subr.mxu0 0.0
    %2288 = vmatpush1.msra.mxu0 %v2271
    %2289 = vmatprep.subr.mxu0 0.0
    %2290 = vmatpush1.msra.mxu0 0.0
    %2291 = vmatprep.subr.mxu0 0.0
    %2292 = vmatpush1.msra.mxu0 0.0
    %2293 = vmatprep.subr.mxu0 0.0
    %2294 = vmatpush1.msra.mxu0 0.0
    %2295 = vmatprep.subr.mxu0 0.0
    %2296 = vmatpush1.msra.mxu0 0.0
    %2297 = vmatprep.subr.mxu0 0.0
    %2298 = vmatpush1.msra.mxu0 0.0
    %2299 = vmatprep.subr.mxu0 0.0
    %2300 = vmatpush1.msra.mxu0 0.0
    %2301 = vmatprep.subr.mxu0 0.0
    %2302 = vmatpush1.msra.mxu0 0.0
    %2303 = vmatprep.subr.mxu0 0.0
    %2304 = vmatpush1.msra.mxu0 0.0
    %2305 = vmatprep.subr.mxu0 0.0
    %2306 = vmatpush1.msra.mxu0 0.0
    %2307 = vmatprep.subr.mxu0 0.0
    %2308 = vmatpush1.msra.mxu0 0.0
    %2309 = vmatprep.subr.mxu0 0.0
    %2310 = vmatpush1.msra.mxu0 0.0
    %2311 = vmatprep.subr.mxu0 0.0
    %2312 = vmatpush1.msra.mxu0 0.0
    %2313 = vmatprep.subr.mxu0 0.0
    %2314 = vmatpush1.msra.mxu0 0.0
    %2315 = vmatprep.subr.mxu0 0.0
    %2316 = vmatpush1.msra.mxu0 0.0
    %2317 = vmatprep.subr.mxu0 0.0
    %2318 = vmatpush1.msra.mxu0 0.0
    %2319 = vmatprep.subr.mxu0 0.0
    %2320 = vmatpush1.msra.mxu0 0.0
    %2321 = vmatprep.subr.mxu0 0.0
    %2322 = vmatpush1.msra.mxu0 0.0
    %2323 = vmatprep.subr.mxu0 0.0
    %2324 = vmatpush1.msra.mxu0 0.0
    %2325 = vmatprep.subr.mxu0 0.0
    %2326 = vmatpush1.msra.mxu0 0.0
    %2327 = vmatprep.subr.mxu0 0.0
    %2328 = vmatpush1.msra.mxu0 0.0
    %2329 = vmatprep.subr.mxu0 0.0
    %2330 = vmatpush1.msra.mxu0 0.0
    %2331 = vmatprep.subr.mxu0 0.0
    %2332 = vmatpush1.msra.mxu0 0.0
    %2333 = vmatprep.subr.mxu0 0.0
    %2334 = vmatpush1.msra.mxu0 0.0
    %2335 = vmatprep.subr.mxu0 0.0
    %2336 = vmatpush1.msra.mxu0 0.0
    %2337 = vmatprep.subr.mxu0 0.0
    %2338 = vmatpush1.msra.mxu0 0.0
    %2339 = vmatprep.subr.mxu0 0.0
    %2340 = vmatpush1.msra.mxu0 0.0
    %2341 = vmatprep.subr.mxu0 0.0
    %2342 = vmatpush1.msra.mxu0 0.0
    %2343 = vmatprep.subr.mxu0 0.0
    %2344 = vmatpush1.msra.mxu0 0.0
    %2345 = vmatprep.subr.mxu0 0.0
    %2346 = vmatpush1.msra.mxu0 0.0
    %2347 = vmatprep.subr.mxu0 0.0
    %2348 = vmatpush1.msra.mxu0 0.0
    %2349 = vmatprep.mubr.f32.mxu0 0.0
    %2350 = vmatmul.mubr.f32.gmra.mrb[0].mxu0 %v2280
    %v2351 = vpop.f32.mrb[0].mxu0
    %v2352 = vadd.f32 %v2277, %v2351
    %v2353 = vpop.f32.mrb[0].mxu0
    %2354 = vmatprep.mubr.f32.mxu0 0.0
    %2355 = vmatmul.mubr.f32.gmra.mrb[0].mxu0 %v2283
    %v2356 = vpop.f32.mrb[0].mxu0
    %v2357 = vadd.f32 %v2277, %v2356
    %v2358 = vpop.f32.mrb[0].mxu0
    %2359 = vdwg.mxu0
    %v2362 = vcombine.high %v2352, %v2352
    %v2364 = vunpack.c.l.s4 1983009808
    %v2365 = vunpack.c.0.s8 %v2364
    %v2366 = vlaneseq
    %v2367 = vshrl.u32 %v2366, 7
    %v2368 = vsub.s32 %v2365, %v2367
    %v2369 = vrot.slane %v2352, %v2368
    %v2371 = vunpack.c.l.s4 1983009808
    %v2372 = vunpack.c.0.s8 %v2371
    %v2373 = vlaneseq
    %v2374 = vshrl.u32 %v2373, 7
    %v2375 = vsub.s32 %v2372, %v2374
    %v2376 = vrot.slane %v2362, %v2375
    %v2377 = vcombine.high %v2369, %v2369
    %v2378 = vcombine.high %v2376, %v2376
    %v2380 = vunpack.c.l.s4 1983009808
    %v2381 = vunpack.c.0.s8 %v2380
    %v2382 = vlaneseq
    %v2383 = vshrl.u32 %v2382, 7
    %v2384 = vsub.s32 %v2381, %v2383
    %v2385 = vrot.slane %v2357, %v2384
    %v2391 = vld [vmem:[#allocation5] sm:$0xff]
    %v2392 = vld [vmem:[#allocation5 + $0x8] sm:$0xff]
    %2393 = vmatprep.subr.mxu0 0.0
    %2394 = vmatpush1.msra.mxu0 %v2391
    %2395 = vmatprep.subr.mxu0 0.0
    %2396 = vmatpush1.msra.mxu0 %v2392
    %2397 = vmatprep.subr.mxu0 0.0
    %2398 = vmatpush1.msra.mxu0 0.0
    %2399 = vmatprep.subr.mxu0 0.0
    %2400 = vmatpush1.msra.mxu0 0.0
    %2401 = vmatprep.subr.mxu0 0.0
    %2402 = vmatpush1.msra.mxu0 0.0
    %2403 = vmatprep.subr.mxu0 0.0
    %2404 = vmatpush1.msra.mxu0 0.0
    %2405 = vmatprep.subr.mxu0 0.0
    %2406 = vmatpush1.msra.mxu0 0.0
    %2407 = vmatprep.subr.mxu0 0.0
    %2408 = vmatpush1.msra.mxu0 0.0
    %2409 = vmatprep.subr.mxu0 0.0
    %2410 = vmatpush1.msra.mxu0 0.0
    %2411 = vmatprep.subr.mxu0 0.0
    %2412 = vmatpush1.msra.mxu0 0.0
    %2413 = vmatprep.subr.mxu0 0.0
    %2414 = vmatpush1.msra.mxu0 0.0
    %2415 = vmatprep.subr.mxu0 0.0
    %2416 = vmatpush1.msra.mxu0 0.0
    %2417 = vmatprep.subr.mxu0 0.0
    %2418 = vmatpush1.msra.mxu0 0.0
    %2419 = vmatprep.subr.mxu0 0.0
    %2420 = vmatpush1.msra.mxu0 0.0
    %2421 = vmatprep.subr.mxu0 0.0
    %2422 = vmatpush1.msra.mxu0 0.0
    %2423 = vmatprep.subr.mxu0 0.0
    %2424 = vmatpush1.msra.mxu0 0.0
    %2425 = vmatprep.subr.mxu0 0.0
    %2426 = vmatpush1.msra.mxu0 0.0
    %2427 = vmatprep.subr.mxu0 0.0
    %2428 = vmatpush1.msra.mxu0 0.0
    %2429 = vmatprep.subr.mxu0 0.0
    %2430 = vmatpush1.msra.mxu0 0.0
    %2431 = vmatprep.subr.mxu0 0.0
    %2432 = vmatpush1.msra.mxu0 0.0
    %2433 = vmatprep.subr.mxu0 0.0
    %2434 = vmatpush1.msra.mxu0 0.0
    %2435 = vmatprep.subr.mxu0 0.0
    %2436 = vmatpush1.msra.mxu0 0.0
    %2437 = vmatprep.subr.mxu0 0.0
    %2438 = vmatpush1.msra.mxu0 0.0
    %2439 = vmatprep.subr.mxu0 0.0
    %2440 = vmatpush1.msra.mxu0 0.0
    %2441 = vmatprep.subr.mxu0 0.0
    %2442 = vmatpush1.msra.mxu0 0.0
    %2443 = vmatprep.subr.mxu0 0.0
    %2444 = vmatpush1.msra.mxu0 0.0
    %2445 = vmatprep.subr.mxu0 0.0
    %2446 = vmatpush1.msra.mxu0 0.0
    %2447 = vmatprep.subr.mxu0 0.0
    %2448 = vmatpush1.msra.mxu0 0.0
    %2449 = vmatprep.subr.mxu0 0.0
    %2450 = vmatpush1.msra.mxu0 0.0
    %2451 = vmatprep.subr.mxu0 0.0
    %2452 = vmatpush1.msra.mxu0 0.0
    %2453 = vmatprep.subr.mxu0 0.0
    %2454 = vmatpush1.msra.mxu0 0.0
    %2455 = vmatprep.subr.mxu0 0.0
    %2456 = vmatpush1.msra.mxu0 0.0
    %2457 = vmatprep.mubr.f32.mxu0 0.0
    %2458 = vmatmul.mubr.f32.gmra.mrb[0].mxu0 %v2280
    %v2459 = vpop.f32.mrb[0].mxu0
    %v2460 = vadd.f32 0.0, %v2459
    %v2461 = vpop.f32.mrb[0].mxu0
    %2462 = vmatprep.mubr.f32.mxu0 0.0
    %2463 = vmatmul.mubr.f32.gmra.mrb[0].mxu0 %v2283
    %v2464 = vpop.f32.mrb[0].mxu0
    %v2465 = vadd.f32 0.0, %v2464
    %v2466 = vpop.f32.mrb[0].mxu0
    %2467 = vdwg.mxu0
    %v2470 = vcombine.high %v2460, %v2460
    %v2472 = vunpack.c.l.s4 1983009808
    %v2473 = vunpack.c.0.s8 %v2472
    %v2474 = vlaneseq
    %v2475 = vshrl.u32 %v2474, 7
    %v2476 = vsub.s32 %v2473, %v2475
    %v2477 = vrot.slane %v2460, %v2476
    %v2479 = vunpack.c.l.s4 1983009808
    %v2480 = vunpack.c.0.s8 %v2479
    %v2481 = vlaneseq
    %v2482 = vshrl.u32 %v2481, 7
    %v2483 = vsub.s32 %v2480, %v2482
    %v2484 = vrot.slane %v2470, %v2483
    %v2485 = vcombine.high %v2477, %v2477
    %v2486 = vcombine.high %v2484, %v2484
    %v2488 = vunpack.c.l.s4 1983009808
    %v2489 = vunpack.c.0.s8 %v2488
    %v2490 = vlaneseq
    %v2491 = vshrl.u32 %v2490, 7
    %v2492 = vsub.s32 %v2489, %v2491
    %v2493 = vrot.slane %v2465, %v2492
    %v2499 = vld [vmem:[%s17] sm:$0xff]
    %v2500 = vld [vmem:[%s17 + $0x8] sm:$0xff]
    %v2501 = vld [vmem:[%s17 + $0x10] sm:$0xff]
    %v2502 = vld [vmem:[%s17 + $0x18] sm:$0xff]
    %v2503 = vld [vmem:[%s17 + $0x20] sm:$0xff]
    %v2504 = vld [vmem:[%s17 + $0x28] sm:$0xff]
    %v2505 = vld [vmem:[%s17 + $0x30] sm:$0xff]
    %v2506 = vld [vmem:[%s17 + $0x38] sm:$0xff]
    %v2507 = vld [vmem:[%s18] sm:$0xff]
    %v2508 = vld [vmem:[%s18 + $0x8] sm:$0xff]
    %v2509 = vld [vmem:[%s18 + $0x10] sm:$0xff]
    %v2510 = vld [vmem:[%s18 + $0x18] sm:$0xff]
    %v2511 = vld [vmem:[%s19] sm:$0x1]
    %v2512 = vld [vmem:[%s20] sm:$0xff]
    %v2513 = vld [vmem:[%s20 + $0x8] sm:$0xff]
    %v2514 = vld [vmem:[%s20 + $0x10] sm:$0xff]
    %v2515 = vld [vmem:[%s20 + $0x18] sm:$0xff]
    %v2516 = vld [vmem:[%s21] sm:$0xff]
    %v2517 = vld [vmem:[%s21 + $0x8] sm:$0xff]
    %v2518 = vld [vmem:[%s21 + $0x10] sm:$0xff]
    %v2519 = vld [vmem:[%s21 + $0x18] sm:$0xff]
    %v2520 = vld [vmem:[%s21 + $0x20] sm:$0xff]
    %v2521 = vld [vmem:[%s21 + $0x28] sm:$0xff]
    %v2522 = vld [vmem:[%s21 + $0x30] sm:$0xff]
    %v2523 = vld [vmem:[%s21 + $0x38] sm:$0xff]
    %v2524 = vld [vmem:[%s23] sm:$0x1]
    %v2526 = vlaneseq
    %v2527 = vshrl.u32 %v2526, 7
    %v2528 = vsub.s32 0, %v2527
    %v2529 = vrot.slane %v2511, %v2528
    %v2532 = vsel %vm235, %v2172, 0
    %2534 = vmatprep.subr.mxu0 0.0
    %2535 = vmatpush1.msra.mxu0 %v2507
    %2536 = vmatprep.subr.mxu0 0.0
    %2537 = vmatpush1.msra.mxu0 %v2508
    %2538 = vmatprep.subr.mxu0 0.0
    %2539 = vmatpush1.msra.mxu0 %v2509
    %2540 = vmatprep.subr.mxu0 0.0
    %2541 = vmatpush1.msra.mxu0 %v2510
    %2542 = vmatprep.subr.mxu0 0.0
    %2543 = vmatpush1.msra.mxu0 0.0
    %2544 = vmatprep.subr.mxu0 0.0
    %2545 = vmatpush1.msra.mxu0 0.0
    %2546 = vmatprep.subr.mxu0 0.0
    %2547 = vmatpush1.msra.mxu0 0.0
    %2548 = vmatprep.subr.mxu0 0.0
    %2549 = vmatpush1.msra.mxu0 0.0
    %2550 = vmatprep.subr.mxu0 0.0
    %2551 = vmatpush1.msra.mxu0 0.0
    %2552 = vmatprep.subr.mxu0 0.0
    %2553 = vmatpush1.msra.mxu0 0.0
    %2554 = vmatprep.subr.mxu0 0.0
    %2555 = vmatpush1.msra.mxu0 0.0
    %2556 = vmatprep.subr.mxu0 0.0
    %2557 = vmatpush1.msra.mxu0 0.0
    %2558 = vmatprep.subr.mxu0 0.0
    %2559 = vmatpush1.msra.mxu0 0.0
    %2560 = vmatprep.subr.mxu0 0.0
    %2561 = vmatpush1.msra.mxu0 0.0
    %2562 = vmatprep.subr.mxu0 0.0
    %2563 = vmatpush1.msra.mxu0 0.0
    %2564 = vmatprep.subr.mxu0 0.0
    %2565 = vmatpush1.msra.mxu0 0.0
    %2566 = vmatprep.subr.mxu0 0.0
    %2567 = vmatpush1.msra.mxu0 0.0
    %2568 = vmatprep.subr.mxu0 0.0
    %2569 = vmatpush1.msra.mxu0 0.0
    %2570 = vmatprep.subr.mxu0 0.0
    %2571 = vmatpush1.msra.mxu0 0.0
    %2572 = vmatprep.subr.mxu0 0.0
    %2573 = vmatpush1.msra.mxu0 0.0
    %2574 = vmatprep.subr.mxu0 0.0
    %2575 = vmatpush1.msra.mxu0 0.0
    %2576 = vmatprep.subr.mxu0 0.0
    %2577 = vmatpush1.msra.mxu0 0.0
    %2578 = vmatprep.subr.mxu0 0.0
    %2579 = vmatpush1.msra.mxu0 0.0
    %2580 = vmatprep.subr.mxu0 0.0
    %2581 = vmatpush1.msra.mxu0 0.0
    %2582 = vmatprep.subr.mxu0 0.0
    %2583 = vmatpush1.msra.mxu0 0.0
    %2584 = vmatprep.subr.mxu0 0.0
    %2585 = vmatpush1.msra.mxu0 0.0
    %2586 = vmatprep.subr.mxu0 0.0
    %2587 = vmatpush1.msra.mxu0 0.0
    %2588 = vmatprep.subr.mxu0 0.0
    %2589 = vmatpush1.msra.mxu0 0.0
    %2590 = vmatprep.subr.mxu0 0.0
    %2591 = vmatpush1.msra.mxu0 0.0
    %2592 = vmatprep.subr.mxu0 0.0
    %2593 = vmatpush1.msra.mxu0 0.0
    %2594 = vmatprep.subr.mxu0 0.0
    %2595 = vmatpush1.msra.mxu0 0.0
    %2596 = vmatprep.subr.mxu0 0.0
    %2597 = vmatpush1.msra.mxu0 0.0
    %2598 = vmatprep.mubr.f32.mxu0 0.0
    %2599 = vmatmul.mubr.f32.gmra.mrb[0].mxu0 %v2532
    %v2600 = vpop.f32.mrb[0].mxu0
    %v2601 = vadd.f32 %v2529, %v2600
    %v2602 = vpop.f32.mrb[0].mxu0
    %2603 = vdwg.mxu0
    %v2606 = vunpack.c.l.s4 1966171168
    %v2607 = vunpack.c.0.s8 %v2606
    %v2608 = vlaneseq
    %v2609 = vshrl.u32 %v2608, 7
    %v2610 = vsub.s32 %v2607, %v2609
    %v2611 = vrot.slane %v2601, %v2610
    %v2612 = vcombine.high %v2611, %v2611
    %v2614 = vunpack.c.l.s4 1966171168
    %v2615 = vunpack.c.0.s8 %v2614
    %v2616 = vlaneseq
    %v2617 = vshrl.u32 %v2616, 7
    %v2618 = vsub.s32 %v2615, %v2617
    %v2619 = vrot.slane %v2611, %v2618
    %v2621 = vunpack.c.l.s4 1966171168
    %v2622 = vunpack.c.0.s8 %v2621
    %v2623 = vlaneseq
    %v2624 = vshrl.u32 %v2623, 7
    %v2625 = vsub.s32 %v2622, %v2624
    %v2626 = vrot.slane %v2612, %v2625
    %v2627 = vlaneseq
    %v2628 = vshrl.u32 %v2627, 7
    %v2629 = vsub.s32 0, %v2628
    %v2630 = vrot.slane %v2619, %v2629
    %v2631 = vlaneseq
    %v2632 = vshrl.u32 %v2631, 7
    %v2633 = vsub.s32 0, %v2632
    %v2634 = vrot.slane %v2626, %v2633
    %v2637 = vadd.f32 %v2261, %v2630
    %v2638 = vadd.f32 %v2266, %v2634
    %v2639 = vtanh.pop %v2637
    %v2640 = vtanh.pop %v2638
    %v2642 = vlaneseq
    %v2643 = vshrl.u32 %v2642, 7
    %v2644 = vsub.s32 0, %v2643
    %v2645 = vrot.slane %v2269, %v2644
    %v2647 = vmul.f32 %v2639, %v2645
    %v2648 = vmul.f32 %v2640, %v2645
    %v2649 = vsel %vm235, %v2647, 0.0
    %2650 = vadd.xlane.f32.xlu0 %v2649
    %v2651 = vpop.xlane.xlu0 %2650
    %v2652 = vsel %vm235, %v2648, 0.0
    %2653 = vadd.xlane.f32.xlu0 %v2652
    %v2654 = vpop.xlane.xlu0 %2653
    %v2657 = vlaneseq
    %v2658 = vshrl.u32 %v2657, 7
    %v2659 = vsub.s32 %v168, %v2658
    %v2660 = vrot.slane %v2651, %v2659
    %v2661 = vlaneseq
    %v2662 = vshrl.u32 %v2661, 7
    %v2663 = vsub.s32 %v168, %v2662
    %v2664 = vrot.slane %v2654, %v2663
    %vm2665 = vcmask 1041409
    %v2666 = vsel %vm2665, %v2664, %v2660
    %vm2668 = vcmask 58368
    %v2669 = vsel %vm2668, %v2666, -inf
    %2670 = vmax.xlane.f32.xlu0 %v2669
    %v2671 = vpop.xlane.xlu0 %2670
    %v2673 = vlaneseq
    %v2674 = vshrl.u32 %v2673, 7
    %v2675 = vsub.s32 0, %v2674
    %v2676 = vrot.slane %v2671, %v2675
    %v2677 = vlaneseq
    %v2678 = vshrl.u32 %v2677, 7
    %v2679 = vsub.s32 1, %v2678
    %v2680 = vrot.slane %v2671, %v2679
    %v2683 = vsub.f32 %v2651, %v2676
    %v2684 = vsub.f32 %v2654, %v2680
    %v2685 = vmul.f32 %v2683, 1.442695
    %v2686 = vpow.pop %v2685
    %v2687 = vmul.f32 %v2684, 1.442695
    %v2688 = vpow.pop %v2687
    %2691 = vset.pattern.permute.xlu0 0
    %2692 = vperm.xlu0 %2691, %v2686
    %v2693 = vpop.permute.xlu0 %2692
    %2694 = vset.pattern.permute.xlu0 0
    %2695 = vperm.xlu0 %2694, %v2688
    %v2696 = vpop.permute.xlu0 %2695
    %v2697 = vlaneseq
    %v2698 = vshrl.u32 %v2697, 7
    %v2699 = vsub.s32 %v168, %v2698
    %v2700 = vrot.slane %v2693, %v2699
    %v2701 = vlaneseq
    %v2702 = vshrl.u32 %v2701, 7
    %v2703 = vsub.s32 %v168, %v2702
    %v2704 = vrot.slane %v2696, %v2703
    %v2705 = vsel %vm2665, %v2704, %v2700
    %v2707 = vsel %vm2668, %v2705, 0.0
    %2708 = vadd.xlane.f32.xlu0 %v2707
    %v2709 = vpop.xlane.xlu0 %2708
    %v2711 = vlaneseq
    %v2712 = vshrl.u32 %v2711, 7
    %v2713 = vsub.s32 0, %v2712
    %v2714 = vrot.slane %v2709, %v2713
    %v2715 = vlaneseq
    %v2716 = vshrl.u32 %v2715, 7
    %v2717 = vsub.s32 1, %v2716
    %v2718 = vrot.slane %v2709, %v2717
    %v2721 = vrcp.pop %v2714
    %v2722 = vmul.f32 %v2686, %v2721
    %v2723 = vrcp.pop %v2718
    %v2724 = vmul.f32 %v2688, %v2723
    %2726 = vset.pattern.permute.xlu0 0
    %2727 = vperm.xlu0 %2726, %v2722
    %v2728 = vpop.permute.xlu0 %2727
    %v2729 = vlaneseq
    %v2730 = vshrl.u32 %v2729, 7
    %v2731 = vsub.s32 %v168, %v2730
    %v2732 = vrot.slane %v2728, %v2731
    %vm2733 = vcmask 64512
    %v2734 = vsel %vm2733, %v2732, 0
    %2736 = vmatprep.subr.mxu0 0.0
    %2737 = vmatpush1.msra.mxu0 %v2083
    %2738 = vmatprep.subr.mxu0 0.0
    %2739 = vmatpush1.msra.mxu0 0.0
    %2740 = vmatprep.subr.mxu0 0.0
    %2741 = vmatpush1.msra.mxu0 0.0
    %2742 = vmatprep.subr.mxu0 0.0
    %2743 = vmatpush1.msra.mxu0 0.0
    %2744 = vmatprep.subr.mxu0 0.0
    %2745 = vmatpush1.msra.mxu0 0.0
    %2746 = vmatprep.subr.mxu0 0.0
    %2747 = vmatpush1.msra.mxu0 0.0
    %2748 = vmatprep.subr.mxu0 0.0
    %2749 = vmatpush1.msra.mxu0 0.0
    %2750 = vmatprep.subr.mxu0 0.0
    %2751 = vmatpush1.msra.mxu0 0.0
    %2752 = vmatprep.subr.mxu0 0.0
    %2753 = vmatpush1.msra.mxu0 0.0
    %2754 = vmatprep.subr.mxu0 0.0
    %2755 = vmatpush1.msra.mxu0 0.0
    %2756 = vmatprep.subr.mxu0 0.0
    %2757 = vmatpush1.msra.mxu0 0.0
    %2758 = vmatprep.subr.mxu0 0.0
    %2759 = vmatpush1.msra.mxu0 0.0
    %2760 = vmatprep.subr.mxu0 0.0
    %2761 = vmatpush1.msra.mxu0 0.0
    %2762 = vmatprep.subr.mxu0 0.0
    %2763 = vmatpush1.msra.mxu0 0.0
    %2764 = vmatprep.subr.mxu0 0.0
    %2765 = vmatpush1.msra.mxu0 0.0
    %2766 = vmatprep.subr.mxu0 0.0
    %2767 = vmatpush1.msra.mxu0 0.0
    %2768 = vmatprep.subr.mxu0 0.0
    %2769 = vmatpush1.msra.mxu0 0.0
    %2770 = vmatprep.subr.mxu0 0.0
    %2771 = vmatpush1.msra.mxu0 0.0
    %2772 = vmatprep.subr.mxu0 0.0
    %2773 = vmatpush1.msra.mxu0 0.0
    %2774 = vmatprep.subr.mxu0 0.0
    %2775 = vmatpush1.msra.mxu0 0.0
    %2776 = vmatprep.subr.mxu0 0.0
    %2777 = vmatpush1.msra.mxu0 0.0
    %2778 = vmatprep.subr.mxu0 0.0
    %2779 = vmatpush1.msra.mxu0 0.0
    %2780 = vmatprep.subr.mxu0 0.0
    %2781 = vmatpush1.msra.mxu0 0.0
    %2782 = vmatprep.subr.mxu0 0.0
    %2783 = vmatpush1.msra.mxu0 0.0
    %2784 = vmatprep.subr.mxu0 0.0
    %2785 = vmatpush1.msra.mxu0 0.0
    %2786 = vmatprep.subr.mxu0 0.0
    %2787 = vmatpush1.msra.mxu0 0.0
    %2788 = vmatprep.subr.mxu0 0.0
    %2789 = vmatpush1.msra.mxu0 0.0
    %2790 = vmatprep.subr.mxu0 0.0
    %2791 = vmatpush1.msra.mxu0 0.0
    %2792 = vmatprep.subr.mxu0 0.0
    %2793 = vmatpush1.msra.mxu0 0.0
    %2794 = vmatprep.subr.mxu0 0.0
    %2795 = vmatpush1.msra.mxu0 0.0
    %2796 = vmatprep.subr.mxu0 0.0
    %2797 = vmatpush1.msra.mxu0 0.0
    %2798 = vmatprep.subr.mxu0 0.0
    %2799 = vmatpush1.msra.mxu0 0.0
    %2800 = vmatprep.mubr.f32.mxu0 0.0
    %2801 = vmatmul.mubr.f32.gmra.mrb[0].mxu0 %v2734
    %v2802 = vpop.f32.mrb[0].mxu0
    %v2803 = vadd.f32 0.0, %v2802
    %v2804 = vpop.f32.mrb[0].mxu0
    %2805 = vdwg.mxu0
    %2807 = vset.pattern.permute.xlu0 0
    %2808 = vperm.xlu0 %2807, %v2724
    %v2809 = vpop.permute.xlu0 %2808
    %v2810 = vlaneseq
    %v2811 = vshrl.u32 %v2810, 7
    %v2812 = vsub.s32 %v168, %v2811
    %v2813 = vrot.slane %v2809, %v2812
    %v2814 = vsel %vm2733, %v2813, 0
    %2816 = vmatprep.subr.mxu0 0.0
    %2817 = vmatpush1.msra.mxu0 %v2084
    %2818 = vmatprep.subr.mxu0 0.0
    %2819 = vmatpush1.msra.mxu0 0.0
    %2820 = vmatprep.subr.mxu0 0.0
    %2821 = vmatpush1.msra.mxu0 0.0
    %2822 = vmatprep.subr.mxu0 0.0
    %2823 = vmatpush1.msra.mxu0 0.0
    %2824 = vmatprep.subr.mxu0 0.0
    %2825 = vmatpush1.msra.mxu0 0.0
    %2826 = vmatprep.subr.mxu0 0.0
    %2827 = vmatpush1.msra.mxu0 0.0
    %2828 = vmatprep.subr.mxu0 0.0
    %2829 = vmatpush1.msra.mxu0 0.0
    %2830 = vmatprep.subr.mxu0 0.0
    %2831 = vmatpush1.msra.mxu0 0.0
    %2832 = vmatprep.subr.mxu0 0.0
    %2833 = vmatpush1.msra.mxu0 0.0
    %2834 = vmatprep.subr.mxu0 0.0
    %2835 = vmatpush1.msra.mxu0 0.0
    %2836 = vmatprep.subr.mxu0 0.0
    %2837 = vmatpush1.msra.mxu0 0.0
    %2838 = vmatprep.subr.mxu0 0.0
    %2839 = vmatpush1.msra.mxu0 0.0
    %2840 = vmatprep.subr.mxu0 0.0
    %2841 = vmatpush1.msra.mxu0 0.0
    %2842 = vmatprep.subr.mxu0 0.0
    %2843 = vmatpush1.msra.mxu0 0.0
    %2844 = vmatprep.subr.mxu0 0.0
    %2845 = vmatpush1.msra.mxu0 0.0
    %2846 = vmatprep.subr.mxu0 0.0
    %2847 = vmatpush1.msra.mxu0 0.0
    %2848 = vmatprep.subr.mxu0 0.0
    %2849 = vmatpush1.msra.mxu0 0.0
    %2850 = vmatprep.subr.mxu0 0.0
    %2851 = vmatpush1.msra.mxu0 0.0
    %2852 = vmatprep.subr.mxu0 0.0
    %2853 = vmatpush1.msra.mxu0 0.0
    %2854 = vmatprep.subr.mxu0 0.0
    %2855 = vmatpush1.msra.mxu0 0.0
    %2856 = vmatprep.subr.mxu0 0.0
    %2857 = vmatpush1.msra.mxu0 0.0
    %2858 = vmatprep.subr.mxu0 0.0
    %2859 = vmatpush1.msra.mxu0 0.0
    %2860 = vmatprep.subr.mxu0 0.0
    %2861 = vmatpush1.msra.mxu0 0.0
    %2862 = vmatprep.subr.mxu0 0.0
    %2863 = vmatpush1.msra.mxu0 0.0
    %2864 = vmatprep.subr.mxu0 0.0
    %2865 = vmatpush1.msra.mxu0 0.0
    %2866 = vmatprep.subr.mxu0 0.0
    %2867 = vmatpush1.msra.mxu0 0.0
    %2868 = vmatprep.subr.mxu0 0.0
    %2869 = vmatpush1.msra.mxu0 0.0
    %2870 = vmatprep.subr.mxu0 0.0
    %2871 = vmatpush1.msra.mxu0 0.0
    %2872 = vmatprep.subr.mxu0 0.0
    %2873 = vmatpush1.msra.mxu0 0.0
    %2874 = vmatprep.subr.mxu0 0.0
    %2875 = vmatpush1.msra.mxu0 0.0
    %2876 = vmatprep.subr.mxu0 0.0
    %2877 = vmatpush1.msra.mxu0 0.0
    %2878 = vmatprep.subr.mxu0 0.0
    %2879 = vmatpush1.msra.mxu0 0.0
    %2880 = vmatprep.mubr.f32.mxu0 0.0
    %2881 = vmatmul.mubr.f32.gmra.mrb[0].mxu0 %v2814
    %v2882 = vpop.f32.mrb[0].mxu0
    %v2883 = vadd.f32 0.0, %v2882
    %v2884 = vpop.f32.mrb[0].mxu0
    %2885 = vdwg.mxu0
    %v2888 = vrot.slane %v2883, 7
    %v2889 = vsel %vm2665, %v2888, %v2803
    %v2890 = vsel %vm792, %v2889, 0
    %2892 = vmatprep.subr.mxu0 0.0
    %2893 = vmatpush1.msra.mxu0 %v2499
    %2894 = vmatprep.subr.mxu0 0.0
    %2895 = vmatpush1.msra.mxu0 %v2500
    %2896 = vmatprep.subr.mxu0 0.0
    %2897 = vmatpush1.msra.mxu0 %v2501
    %2898 = vmatprep.subr.mxu0 0.0
    %2899 = vmatpush1.msra.mxu0 %v2502
    %2900 = vmatprep.subr.mxu0 0.0
    %2901 = vmatpush1.msra.mxu0 %v2503
    %2902 = vmatprep.subr.mxu0 0.0
    %2903 = vmatpush1.msra.mxu0 %v2504
    %2904 = vmatprep.subr.mxu0 0.0
    %2905 = vmatpush1.msra.mxu0 %v2505
    %2906 = vmatprep.subr.mxu0 0.0
    %2907 = vmatpush1.msra.mxu0 %v2506
    %2908 = vmatprep.subr.mxu0 0.0
    %2909 = vmatpush1.msra.mxu0 0.0
    %2910 = vmatprep.subr.mxu0 0.0
    %2911 = vmatpush1.msra.mxu0 0.0
    %2912 = vmatprep.subr.mxu0 0.0
    %2913 = vmatpush1.msra.mxu0 0.0
    %2914 = vmatprep.subr.mxu0 0.0
    %2915 = vmatpush1.msra.mxu0 0.0
    %2916 = vmatprep.subr.mxu0 0.0
    %2917 = vmatpush1.msra.mxu0 0.0
    %2918 = vmatprep.subr.mxu0 0.0
    %2919 = vmatpush1.msra.mxu0 0.0
    %2920 = vmatprep.subr.mxu0 0.0
    %2921 = vmatpush1.msra.mxu0 0.0
    %2922 = vmatprep.subr.mxu0 0.0
    %2923 = vmatpush1.msra.mxu0 0.0
    %2924 = vmatprep.subr.mxu0 0.0
    %2925 = vmatpush1.msra.mxu0 0.0
    %2926 = vmatprep.subr.mxu0 0.0
    %2927 = vmatpush1.msra.mxu0 0.0
    %2928 = vmatprep.subr.mxu0 0.0
    %2929 = vmatpush1.msra.mxu0 0.0
    %2930 = vmatprep.subr.mxu0 0.0
    %2931 = vmatpush1.msra.mxu0 0.0
    %2932 = vmatprep.subr.mxu0 0.0
    %2933 = vmatpush1.msra.mxu0 0.0
    %2934 = vmatprep.subr.mxu0 0.0
    %2935 = vmatpush1.msra.mxu0 0.0
    %2936 = vmatprep.subr.mxu0 0.0
    %2937 = vmatpush1.msra.mxu0 0.0
    %2938 = vmatprep.subr.mxu0 0.0
    %2939 = vmatpush1.msra.mxu0 0.0
    %2940 = vmatprep.subr.mxu0 0.0
    %2941 = vmatpush1.msra.mxu0 0.0
    %2942 = vmatprep.subr.mxu0 0.0
    %2943 = vmatpush1.msra.mxu0 0.0
    %2944 = vmatprep.subr.mxu0 0.0
    %2945 = vmatpush1.msra.mxu0 0.0
    %2946 = vmatprep.subr.mxu0 0.0
    %2947 = vmatpush1.msra.mxu0 0.0
    %2948 = vmatprep.subr.mxu0 0.0
    %2949 = vmatpush1.msra.mxu0 0.0
    %2950 = vmatprep.subr.mxu0 0.0
    %2951 = vmatpush1.msra.mxu0 0.0
    %2952 = vmatprep.subr.mxu0 0.0
    %2953 = vmatpush1.msra.mxu0 0.0
    %2954 = vmatprep.subr.mxu0 0.0
    %2955 = vmatpush1.msra.mxu0 0.0
    %2956 = vmatprep.mubr.f32.mxu0 0.0
    %2957 = vmatmul.mubr.f32.gmra.mrb[0].mxu0 %v2890
    %v2958 = vpop.f32.mrb[0].mxu0
    %v2959 = vadd.f32 0.0, %v2958
    %v2960 = vpop.f32.mrb[0].mxu0
    %2961 = vdwg.mxu0
    %v2962 = vadd.f32 %v2369, %v2959
    %v2964 = vunpack.c.l.s4 1983009808
    %v2965 = vunpack.c.0.s8 %v2964
    %v2966 = vlaneseq
    %v2967 = vshrl.u32 %v2966, 7
    %v2968 = vsub.s32 %v2965, %v2967
    %v2969 = vrot.slane %v2601, %v2968
    %2970 = vrot.lane.b32.xlu0 %v2969, 96
    %v2971 = vpop.permute.xlu0 %2970
    %v2973 = vadd.f32 %v2962, %v2971
    %v2974 = vxor.u32 %v2973, 2147483648
    %v2975 = vmul.f32 %v2974, 1.442695
    %v2976 = vpow.pop %v2975
    %v2977 = vadd.f32 %v2976, 1.0
    %v2978 = vrcp.pop %v2977
    %v2979 = vmul.f32 1.0, %v2978
    %2980 = vrot.lane.b32.xlu0 %v2969, 32
    %v2981 = vpop.permute.xlu0 %2980
    %v2983 = vmul.f32 %v2979, %v2981
    %2985 = vrot.lane.b32.xlu0 %v2983, 64
    %v2986 = vpop.permute.xlu0 %2985
    %v2988 = vadd.f32 %v2962, %v2986
    %v2989 = vtanh.pop %v2988
    %v2990 = vsub.f32 1.0, %v2979
    %2992 = vrot.lane.b32.xlu0 %v2989, 96
    %v2993 = vpop.permute.xlu0 %2992
    %v2995 = vmul.f32 %v2990, %v2993
    %v2997 = vunpack.c.l.s4 1983009808
    %v2998 = vunpack.c.0.s8 %v2997
    %v2999 = vlaneseq
    %v3000 = vshrl.u32 %v2999, 7
    %v3001 = vsub.s32 %v2998, %v3000
    %v3002 = vrot.slane %v2172, %v3001
    %3003 = vrot.lane.b32.xlu0 %v3002, 32
    %v3004 = vpop.permute.xlu0 %3003
    %v3006 = vmul.f32 %v2979, %v3004
    %v3007 = vadd.f32 %v2995, %v3006
    %3008 = vmatprep.subr.mxu0 0.0
    %3009 = vmatpush1.msra.mxu0 %v2516
    %3010 = vmatprep.subr.mxu0 0.0
    %3011 = vmatpush1.msra.mxu0 %v2517
    %3012 = vmatprep.subr.mxu0 0.0
    %3013 = vmatpush1.msra.mxu0 %v2518
    %3014 = vmatprep.subr.mxu0 0.0
    %3015 = vmatpush1.msra.mxu0 %v2519
    %3016 = vmatprep.subr.mxu0 0.0
    %3017 = vmatpush1.msra.mxu0 %v2520
    %3018 = vmatprep.subr.mxu0 0.0
    %3019 = vmatpush1.msra.mxu0 %v2521
    %3020 = vmatprep.subr.mxu0 0.0
    %3021 = vmatpush1.msra.mxu0 %v2522
    %3022 = vmatprep.subr.mxu0 0.0
    %3023 = vmatpush1.msra.mxu0 %v2523
    %3024 = vmatprep.subr.mxu0 0.0
    %3025 = vmatpush1.msra.mxu0 0.0
    %3026 = vmatprep.subr.mxu0 0.0
    %3027 = vmatpush1.msra.mxu0 0.0
    %3028 = vmatprep.subr.mxu0 0.0
    %3029 = vmatpush1.msra.mxu0 0.0
    %3030 = vmatprep.subr.mxu0 0.0
    %3031 = vmatpush1.msra.mxu0 0.0
    %3032 = vmatprep.subr.mxu0 0.0
    %3033 = vmatpush1.msra.mxu0 0.0
    %3034 = vmatprep.subr.mxu0 0.0
    %3035 = vmatpush1.msra.mxu0 0.0
    %3036 = vmatprep.subr.mxu0 0.0
    %3037 = vmatpush1.msra.mxu0 0.0
    %3038 = vmatprep.subr.mxu0 0.0
    %3039 = vmatpush1.msra.mxu0 0.0
    %3040 = vmatprep.subr.mxu0 0.0
    %3041 = vmatpush1.msra.mxu0 0.0
    %3042 = vmatprep.subr.mxu0 0.0
    %3043 = vmatpush1.msra.mxu0 0.0
    %3044 = vmatprep.subr.mxu0 0.0
    %3045 = vmatpush1.msra.mxu0 0.0
    %3046 = vmatprep.subr.mxu0 0.0
    %3047 = vmatpush1.msra.mxu0 0.0
    %3048 = vmatprep.subr.mxu0 0.0
    %3049 = vmatpush1.msra.mxu0 0.0
    %3050 = vmatprep.subr.mxu0 0.0
    %3051 = vmatpush1.msra.mxu0 0.0
    %3052 = vmatprep.subr.mxu0 0.0
    %3053 = vmatpush1.msra.mxu0 0.0
    %3054 = vmatprep.subr.mxu0 0.0
    %3055 = vmatpush1.msra.mxu0 0.0
    %3056 = vmatprep.subr.mxu0 0.0
    %3057 = vmatpush1.msra.mxu0 0.0
    %3058 = vmatprep.subr.mxu0 0.0
    %3059 = vmatpush1.msra.mxu0 0.0
    %3060 = vmatprep.subr.mxu0 0.0
    %3061 = vmatpush1.msra.mxu0 0.0
    %3062 = vmatprep.subr.mxu0 0.0
    %3063 = vmatpush1.msra.mxu0 0.0
    %3064 = vmatprep.subr.mxu0 0.0
    %3065 = vmatpush1.msra.mxu0 0.0
    %3066 = vmatprep.subr.mxu0 0.0
    %3067 = vmatpush1.msra.mxu0 0.0
    %3068 = vmatprep.subr.mxu0 0.0
    %3069 = vmatpush1.msra.mxu0 0.0
    %3070 = vmatprep.subr.mxu0 0.0
    %3071 = vmatpush1.msra.mxu0 0.0
    %3072 = vmatprep.mubr.f32.mxu0 0.0
    %3073 = vmatmul.mubr.f32.gmra.mrb[0].mxu0 %v2890
    %v3074 = vpop.f32.mrb[0].mxu0
    %v3075 = vadd.f32 0.0, %v3074
    %v3076 = vpop.f32.mrb[0].mxu0
    %3077 = vdwg.mxu0
    %v3080 = vunpack.c.l.s4 1983009808
    %v3081 = vunpack.c.0.s8 %v3080
    %v3082 = vlaneseq
    %v3083 = vshrl.u32 %v3082, 7
    %v3084 = vsub.s32 %v3081, %v3083
    %v3085 = vrot.slane %v3007, %v3084
    %3086 = vrot.lane.b32.xlu0 %v3085, 96
    %v3087 = vpop.permute.xlu0 %3086
    %v3088 = vsel %vm235, %v3087, 0
    %3090 = vmatprep.subr.mxu0 0.0
    %3091 = vmatpush1.msra.mxu0 %v2512
    %3092 = vmatprep.subr.mxu0 0.0
    %3093 = vmatpush1.msra.mxu0 %v2513
    %3094 = vmatprep.subr.mxu0 0.0
    %3095 = vmatpush1.msra.mxu0 %v2514
    %3096 = vmatprep.subr.mxu0 0.0
    %3097 = vmatpush1.msra.mxu0 %v2515
    %3098 = vmatprep.subr.mxu0 0.0
    %3099 = vmatpush1.msra.mxu0 0.0
    %3100 = vmatprep.subr.mxu0 0.0
    %3101 = vmatpush1.msra.mxu0 0.0
    %3102 = vmatprep.subr.mxu0 0.0
    %3103 = vmatpush1.msra.mxu0 0.0
    %3104 = vmatprep.subr.mxu0 0.0
    %3105 = vmatpush1.msra.mxu0 0.0
    %3106 = vmatprep.subr.mxu0 0.0
    %3107 = vmatpush1.msra.mxu0 0.0
    %3108 = vmatprep.subr.mxu0 0.0
    %3109 = vmatpush1.msra.mxu0 0.0
    %3110 = vmatprep.subr.mxu0 0.0
    %3111 = vmatpush1.msra.mxu0 0.0
    %3112 = vmatprep.subr.mxu0 0.0
    %3113 = vmatpush1.msra.mxu0 0.0
    %3114 = vmatprep.subr.mxu0 0.0
    %3115 = vmatpush1.msra.mxu0 0.0
    %3116 = vmatprep.subr.mxu0 0.0
    %3117 = vmatpush1.msra.mxu0 0.0
    %3118 = vmatprep.subr.mxu0 0.0
    %3119 = vmatpush1.msra.mxu0 0.0
    %3120 = vmatprep.subr.mxu0 0.0
    %3121 = vmatpush1.msra.mxu0 0.0
    %3122 = vmatprep.subr.mxu0 0.0
    %3123 = vmatpush1.msra.mxu0 0.0
    %3124 = vmatprep.subr.mxu0 0.0
    %3125 = vmatpush1.msra.mxu0 0.0
    %3126 = vmatprep.subr.mxu0 0.0
    %3127 = vmatpush1.msra.mxu0 0.0
    %3128 = vmatprep.subr.mxu0 0.0
    %3129 = vmatpush1.msra.mxu0 0.0
    %3130 = vmatprep.subr.mxu0 0.0
    %3131 = vmatpush1.msra.mxu0 0.0
    %3132 = vmatprep.subr.mxu0 0.0
    %3133 = vmatpush1.msra.mxu0 0.0
    %3134 = vmatprep.subr.mxu0 0.0
    %3135 = vmatpush1.msra.mxu0 0.0
    %3136 = vmatprep.subr.mxu0 0.0
    %3137 = vmatpush1.msra.mxu0 0.0
    %3138 = vmatprep.subr.mxu0 0.0
    %3139 = vmatpush1.msra.mxu0 0.0
    %3140 = vmatprep.subr.mxu0 0.0
    %3141 = vmatpush1.msra.mxu0 0.0
    %3142 = vmatprep.subr.mxu0 0.0
    %3143 = vmatpush1.msra.mxu0 0.0
    %3144 = vmatprep.subr.mxu0 0.0
    %3145 = vmatpush1.msra.mxu0 0.0
    %3146 = vmatprep.subr.mxu0 0.0
    %3147 = vmatpush1.msra.mxu0 0.0
    %3148 = vmatprep.subr.mxu0 0.0
    %3149 = vmatpush1.msra.mxu0 0.0
    %3150 = vmatprep.subr.mxu0 0.0
    %3151 = vmatpush1.msra.mxu0 0.0
    %3152 = vmatprep.subr.mxu0 0.0
    %3153 = vmatpush1.msra.mxu0 0.0
    %3154 = vmatprep.mubr.f32.mxu0 0.0
    %3155 = vmatmul.mubr.f32.gmra.mrb[0].mxu0 %v3088
    %v3156 = vpop.f32.mrb[0].mxu0
    %v3157 = vadd.f32 %v3075, %v3156
    %v3158 = vpop.f32.mrb[0].mxu0
    %3159 = vdwg.mxu0
    %v3160 = vadd.f32 %v3157, %v2477
    %v3162 = vlaneseq
    %v3163 = vshrl.u32 %v3162, 7
    %v3164 = vsub.s32 0, %v3163
    %v3165 = vrot.slane %v2524, %v3164
    %v3167 = vadd.f32 %v3160, %v3165
    %3168 = vmatprep.subr.mxu0 0.0
    %3169 = vmatpush1.msra.mxu0 %v2507
    %3170 = vmatprep.subr.mxu0 0.0
    %3171 = vmatpush1.msra.mxu0 %v2508
    %3172 = vmatprep.subr.mxu0 0.0
    %3173 = vmatpush1.msra.mxu0 %v2509
    %3174 = vmatprep.subr.mxu0 0.0
    %3175 = vmatpush1.msra.mxu0 %v2510
    %3176 = vmatprep.subr.mxu0 0.0
    %3177 = vmatpush1.msra.mxu0 0.0
    %3178 = vmatprep.subr.mxu0 0.0
    %3179 = vmatpush1.msra.mxu0 0.0
    %3180 = vmatprep.subr.mxu0 0.0
    %3181 = vmatpush1.msra.mxu0 0.0
    %3182 = vmatprep.subr.mxu0 0.0
    %3183 = vmatpush1.msra.mxu0 0.0
    %3184 = vmatprep.subr.mxu0 0.0
    %3185 = vmatpush1.msra.mxu0 0.0
    %3186 = vmatprep.subr.mxu0 0.0
    %3187 = vmatpush1.msra.mxu0 0.0
    %3188 = vmatprep.subr.mxu0 0.0
    %3189 = vmatpush1.msra.mxu0 0.0
    %3190 = vmatprep.subr.mxu0 0.0
    %3191 = vmatpush1.msra.mxu0 0.0
    %3192 = vmatprep.subr.mxu0 0.0
    %3193 = vmatpush1.msra.mxu0 0.0
    %3194 = vmatprep.subr.mxu0 0.0
    %3195 = vmatpush1.msra.mxu0 0.0
    %3196 = vmatprep.subr.mxu0 0.0
    %3197 = vmatpush1.msra.mxu0 0.0
    %3198 = vmatprep.subr.mxu0 0.0
    %3199 = vmatpush1.msra.mxu0 0.0
    %3200 = vmatprep.subr.mxu0 0.0
    %3201 = vmatpush1.msra.mxu0 0.0
    %3202 = vmatprep.subr.mxu0 0.0
    %3203 = vmatpush1.msra.mxu0 0.0
    %3204 = vmatprep.subr.mxu0 0.0
    %3205 = vmatpush1.msra.mxu0 0.0
    %3206 = vmatprep.subr.mxu0 0.0
    %3207 = vmatpush1.msra.mxu0 0.0
    %3208 = vmatprep.subr.mxu0 0.0
    %3209 = vmatpush1.msra.mxu0 0.0
    %3210 = vmatprep.subr.mxu0 0.0
    %3211 = vmatpush1.msra.mxu0 0.0
    %3212 = vmatprep.subr.mxu0 0.0
    %3213 = vmatpush1.msra.mxu0 0.0
    %3214 = vmatprep.subr.mxu0 0.0
    %3215 = vmatpush1.msra.mxu0 0.0
    %3216 = vmatprep.subr.mxu0 0.0
    %3217 = vmatpush1.msra.mxu0 0.0
    %3218 = vmatprep.subr.mxu0 0.0
    %3219 = vmatpush1.msra.mxu0 0.0
    %3220 = vmatprep.subr.mxu0 0.0
    %3221 = vmatpush1.msra.mxu0 0.0
    %3222 = vmatprep.subr.mxu0 0.0
    %3223 = vmatpush1.msra.mxu0 0.0
    %3224 = vmatprep.subr.mxu0 0.0
    %3225 = vmatpush1.msra.mxu0 0.0
    %3226 = vmatprep.subr.mxu0 0.0
    %3227 = vmatpush1.msra.mxu0 0.0
    %3228 = vmatprep.subr.mxu0 0.0
    %3229 = vmatpush1.msra.mxu0 0.0
    %3230 = vmatprep.subr.mxu0 0.0
    %3231 = vmatpush1.msra.mxu0 0.0
    %3232 = vmatprep.mubr.f32.mxu0 0.0
    %3233 = vmatmul.mubr.f32.gmra.mrb[0].mxu0 %v3088
    %v3234 = vpop.f32.mrb[0].mxu0
    %v3235 = vadd.f32 %v2529, %v3234
    %v3236 = vpop.f32.mrb[0].mxu0
    %3237 = vdwg.mxu0
    %v3240 = vunpack.c.l.s4 1966171168
    %v3241 = vunpack.c.0.s8 %v3240
    %v3242 = vlaneseq
    %v3243 = vshrl.u32 %v3242, 7
    %v3244 = vsub.s32 %v3241, %v3243
    %v3245 = vrot.slane %v3235, %v3244
    %v3246 = vcombine.high %v3245, %v3245
    %v3248 = vunpack.c.l.s4 1966171168
    %v3249 = vunpack.c.0.s8 %v3248
    %v3250 = vlaneseq
    %v3251 = vshrl.u32 %v3250, 7
    %v3252 = vsub.s32 %v3249, %v3251
    %v3253 = vrot.slane %v3245, %v3252
    %v3255 = vunpack.c.l.s4 1966171168
    %v3256 = vunpack.c.0.s8 %v3255
    %v3257 = vlaneseq
    %v3258 = vshrl.u32 %v3257, 7
    %v3259 = vsub.s32 %v3256, %v3258
    %v3260 = vrot.slane %v3246, %v3259
    %v3261 = vlaneseq
    %v3262 = vshrl.u32 %v3261, 7
    %v3263 = vsub.s32 0, %v3262
    %v3264 = vrot.slane %v3253, %v3263
    %v3265 = vlaneseq
    %v3266 = vshrl.u32 %v3265, 7
    %v3267 = vsub.s32 0, %v3266
    %v3268 = vrot.slane %v3260, %v3267
    %v3271 = vadd.f32 %v2261, %v3264
    %v3272 = vadd.f32 %v2266, %v3268
    %v3273 = vtanh.pop %v3271
    %v3274 = vtanh.pop %v3272
    %v3275 = vmul.f32 %v3273, %v2645
    %v3276 = vmul.f32 %v3274, %v2645
    %v3277 = vsel %vm235, %v3275, 0.0
    %3278 = vadd.xlane.f32.xlu0 %v3277
    %v3279 = vpop.xlane.xlu0 %3278
    %v3280 = vsel %vm235, %v3276, 0.0
    %3281 = vadd.xlane.f32.xlu0 %v3280
    %v3282 = vpop.xlane.xlu0 %3281
    %v3285 = vlaneseq
    %v3286 = vshrl.u32 %v3285, 7
    %v3287 = vsub.s32 %v168, %v3286
    %v3288 = vrot.slane %v3279, %v3287
    %v3289 = vlaneseq
    %v3290 = vshrl.u32 %v3289, 7
    %v3291 = vsub.s32 %v168, %v3290
    %v3292 = vrot.slane %v3282, %v3291
    %v3293 = vsel %vm2665, %v3292, %v3288
    %v3295 = vsel %vm2668, %v3293, -inf
    %3296 = vmax.xlane.f32.xlu0 %v3295
    %v3297 = vpop.xlane.xlu0 %3296
    %v3299 = vlaneseq
    %v3300 = vshrl.u32 %v3299, 7
    %v3301 = vsub.s32 0, %v3300
    %v3302 = vrot.slane %v3297, %v3301
    %v3303 = vlaneseq
    %v3304 = vshrl.u32 %v3303, 7
    %v3305 = vsub.s32 1, %v3304
    %v3306 = vrot.slane %v3297, %v3305
    %v3309 = vsub.f32 %v3279, %v3302
    %v3310 = vsub.f32 %v3282, %v3306
    %v3311 = vmul.f32 %v3309, 1.442695
    %v3312 = vpow.pop %v3311
    %v3313 = vmul.f32 %v3310, 1.442695
    %v3314 = vpow.pop %v3313
    %3317 = vset.pattern.permute.xlu0 0
    %3318 = vperm.xlu0 %3317, %v3312
    %v3319 = vpop.permute.xlu0 %3318
    %3320 = vset.pattern.permute.xlu0 0
    %3321 = vperm.xlu0 %3320, %v3314
    %v3322 = vpop.permute.xlu0 %3321
    %v3323 = vlaneseq
    %v3324 = vshrl.u32 %v3323, 7
    %v3325 = vsub.s32 %v168, %v3324
    %v3326 = vrot.slane %v3319, %v3325
    %v3327 = vlaneseq
    %v3328 = vshrl.u32 %v3327, 7
    %v3329 = vsub.s32 %v168, %v3328
    %v3330 = vrot.slane %v3322, %v3329
    %v3331 = vsel %vm2665, %v3330, %v3326
    %v3333 = vsel %vm2668, %v3331, 0.0
    %3334 = vadd.xlane.f32.xlu0 %v3333
    %v3335 = vpop.xlane.xlu0 %3334
    %v3337 = vlaneseq
    %v3338 = vshrl.u32 %v3337, 7
    %v3339 = vsub.s32 0, %v3338
    %v3340 = vrot.slane %v3335, %v3339
    %v3341 = vlaneseq
    %v3342 = vshrl.u32 %v3341, 7
    %v3343 = vsub.s32 1, %v3342
    %v3344 = vrot.slane %v3335, %v3343
    %v3347 = vrcp.pop %v3340
    %v3348 = vmul.f32 %v3312, %v3347
    %v3349 = vrcp.pop %v3344
    %v3350 = vmul.f32 %v3314, %v3349
    %3352 = vset.pattern.permute.xlu0 0
    %3353 = vperm.xlu0 %3352, %v3348
    %v3354 = vpop.permute.xlu0 %3353
    %v3355 = vlaneseq
    %v3356 = vshrl.u32 %v3355, 7
    %v3357 = vsub.s32 %v168, %v3356
    %v3358 = vrot.slane %v3354, %v3357
    %v3359 = vsel %vm2733, %v3358, 0
    %3361 = vmatprep.subr.mxu0 0.0
    %3362 = vmatpush1.msra.mxu0 %v2083
    %3363 = vmatprep.subr.mxu0 0.0
    %3364 = vmatpush1.msra.mxu0 0.0
    %3365 = vmatprep.subr.mxu0 0.0
    %3366 = vmatpush1.msra.mxu0 0.0
    %3367 = vmatprep.subr.mxu0 0.0
    %3368 = vmatpush1.msra.mxu0 0.0
    %3369 = vmatprep.subr.mxu0 0.0
    %3370 = vmatpush1.msra.mxu0 0.0
    %3371 = vmatprep.subr.mxu0 0.0
    %3372 = vmatpush1.msra.mxu0 0.0
    %3373 = vmatprep.subr.mxu0 0.0
    %3374 = vmatpush1.msra.mxu0 0.0
    %3375 = vmatprep.subr.mxu0 0.0
    %3376 = vmatpush1.msra.mxu0 0.0
    %3377 = vmatprep.subr.mxu0 0.0
    %3378 = vmatpush1.msra.mxu0 0.0
    %3379 = vmatprep.subr.mxu0 0.0
    %3380 = vmatpush1.msra.mxu0 0.0
    %3381 = vmatprep.subr.mxu0 0.0
    %3382 = vmatpush1.msra.mxu0 0.0
    %3383 = vmatprep.subr.mxu0 0.0
    %3384 = vmatpush1.msra.mxu0 0.0
    %3385 = vmatprep.subr.mxu0 0.0
    %3386 = vmatpush1.msra.mxu0 0.0
    %3387 = vmatprep.subr.mxu0 0.0
    %3388 = vmatpush1.msra.mxu0 0.0
    %3389 = vmatprep.subr.mxu0 0.0
    %3390 = vmatpush1.msra.mxu0 0.0
    %3391 = vmatprep.subr.mxu0 0.0
    %3392 = vmatpush1.msra.mxu0 0.0
    %3393 = vmatprep.subr.mxu0 0.0
    %3394 = vmatpush1.msra.mxu0 0.0
    %3395 = vmatprep.subr.mxu0 0.0
    %3396 = vmatpush1.msra.mxu0 0.0
    %3397 = vmatprep.subr.mxu0 0.0
    %3398 = vmatpush1.msra.mxu0 0.0
    %3399 = vmatprep.subr.mxu0 0.0
    %3400 = vmatpush1.msra.mxu0 0.0
    %3401 = vmatprep.subr.mxu0 0.0
    %3402 = vmatpush1.msra.mxu0 0.0
    %3403 = vmatprep.subr.mxu0 0.0
    %3404 = vmatpush1.msra.mxu0 0.0
    %3405 = vmatprep.subr.mxu0 0.0
    %3406 = vmatpush1.msra.mxu0 0.0
    %3407 = vmatprep.subr.mxu0 0.0
    %3408 = vmatpush1.msra.mxu0 0.0
    %3409 = vmatprep.subr.mxu0 0.0
    %3410 = vmatpush1.msra.mxu0 0.0
    %3411 = vmatprep.subr.mxu0 0.0
    %3412 = vmatpush1.msra.mxu0 0.0
    %3413 = vmatprep.subr.mxu0 0.0
    %3414 = vmatpush1.msra.mxu0 0.0
    %3415 = vmatprep.subr.mxu0 0.0
    %3416 = vmatpush1.msra.mxu0 0.0
    %3417 = vmatprep.subr.mxu0 0.0
    %3418 = vmatpush1.msra.mxu0 0.0
    %3419 = vmatprep.subr.mxu0 0.0
    %3420 = vmatpush1.msra.mxu0 0.0
    %3421 = vmatprep.subr.mxu0 0.0
    %3422 = vmatpush1.msra.mxu0 0.0
    %3423 = vmatprep.subr.mxu0 0.0
    %3424 = vmatpush1.msra.mxu0 0.0
    %3425 = vmatprep.mubr.f32.mxu0 0.0
    %3426 = vmatmul.mubr.f32.gmra.mrb[0].mxu0 %v3359
    %v3427 = vpop.f32.mrb[0].mxu0
    %v3428 = vadd.f32 0.0, %v3427
    %v3429 = vpop.f32.mrb[0].mxu0
    %3430 = vdwg.mxu0
    %3432 = vset.pattern.permute.xlu0 0
    %3433 = vperm.xlu0 %3432, %v3350
    %v3434 = vpop.permute.xlu0 %3433
    %v3435 = vlaneseq
    %v3436 = vshrl.u32 %v3435, 7
    %v3437 = vsub.s32 %v168, %v3436
    %v3438 = vrot.slane %v3434, %v3437
    %v3439 = vsel %vm2733, %v3438, 0
    %3441 = vmatprep.subr.mxu0 0.0
    %3442 = vmatpush1.msra.mxu0 %v2084
    %3443 = vmatprep.subr.mxu0 0.0
    %3444 = vmatpush1.msra.mxu0 0.0
    %3445 = vmatprep.subr.mxu0 0.0
    %3446 = vmatpush1.msra.mxu0 0.0
    %3447 = vmatprep.subr.mxu0 0.0
    %3448 = vmatpush1.msra.mxu0 0.0
    %3449 = vmatprep.subr.mxu0 0.0
    %3450 = vmatpush1.msra.mxu0 0.0
    %3451 = vmatprep.subr.mxu0 0.0
    %3452 = vmatpush1.msra.mxu0 0.0
    %3453 = vmatprep.subr.mxu0 0.0
    %3454 = vmatpush1.msra.mxu0 0.0
    %3455 = vmatprep.subr.mxu0 0.0
    %3456 = vmatpush1.msra.mxu0 0.0
    %3457 = vmatprep.subr.mxu0 0.0
    %3458 = vmatpush1.msra.mxu0 0.0
    %3459 = vmatprep.subr.mxu0 0.0
    %3460 = vmatpush1.msra.mxu0 0.0
    %3461 = vmatprep.subr.mxu0 0.0
    %3462 = vmatpush1.msra.mxu0 0.0
    %3463 = vmatprep.subr.mxu0 0.0
    %3464 = vmatpush1.msra.mxu0 0.0
    %3465 = vmatprep.subr.mxu0 0.0
    %3466 = vmatpush1.msra.mxu0 0.0
    %3467 = vmatprep.subr.mxu0 0.0
    %3468 = vmatpush1.msra.mxu0 0.0
    %3469 = vmatprep.subr.mxu0 0.0
    %3470 = vmatpush1.msra.mxu0 0.0
    %3471 = vmatprep.subr.mxu0 0.0
    %3472 = vmatpush1.msra.mxu0 0.0
    %3473 = vmatprep.subr.mxu0 0.0
    %3474 = vmatpush1.msra.mxu0 0.0
    %3475 = vmatprep.subr.mxu0 0.0
    %3476 = vmatpush1.msra.mxu0 0.0
    %3477 = vmatprep.subr.mxu0 0.0
    %3478 = vmatpush1.msra.mxu0 0.0
    %3479 = vmatprep.subr.mxu0 0.0
    %3480 = vmatpush1.msra.mxu0 0.0
    %3481 = vmatprep.subr.mxu0 0.0
    %3482 = vmatpush1.msra.mxu0 0.0
    %3483 = vmatprep.subr.mxu0 0.0
    %3484 = vmatpush1.msra.mxu0 0.0
    %3485 = vmatprep.subr.mxu0 0.0
    %3486 = vmatpush1.msra.mxu0 0.0
    %3487 = vmatprep.subr.mxu0 0.0
    %3488 = vmatpush1.msra.mxu0 0.0
    %3489 = vmatprep.subr.mxu0 0.0
    %3490 = vmatpush1.msra.mxu0 0.0
    %3491 = vmatprep.subr.mxu0 0.0
    %3492 = vmatpush1.msra.mxu0 0.0
    %3493 = vmatprep.subr.mxu0 0.0
    %3494 = vmatpush1.msra.mxu0 0.0
    %3495 = vmatprep.subr.mxu0 0.0
    %3496 = vmatpush1.msra.mxu0 0.0
    %3497 = vmatprep.subr.mxu0 0.0
    %3498 = vmatpush1.msra.mxu0 0.0
    %3499 = vmatprep.subr.mxu0 0.0
    %3500 = vmatpush1.msra.mxu0 0.0
    %3501 = vmatprep.subr.mxu0 0.0
    %3502 = vmatpush1.msra.mxu0 0.0
    %3503 = vmatprep.subr.mxu0 0.0
    %3504 = vmatpush1.msra.mxu0 0.0
    %3505 = vmatprep.mubr.f32.mxu0 0.0
    %3506 = vmatmul.mubr.f32.gmra.mrb[0].mxu0 %v3439
    %v3507 = vpop.f32.mrb[0].mxu0
    %v3508 = vadd.f32 0.0, %v3507
    %v3509 = vpop.f32.mrb[0].mxu0
    %3510 = vdwg.mxu0
    %v3513 = vrot.slane %v3508, 7
    %v3514 = vsel %vm2665, %v3513, %v3428
    %v3515 = vsel %vm792, %v3514, 0
    %3517 = vmatprep.subr.mxu0 0.0
    %3518 = vmatpush1.msra.mxu0 %v2499
    %3519 = vmatprep.subr.mxu0 0.0
    %3520 = vmatpush1.msra.mxu0 %v2500
    %3521 = vmatprep.subr.mxu0 0.0
    %3522 = vmatpush1.msra.mxu0 %v2501
    %3523 = vmatprep.subr.mxu0 0.0
    %3524 = vmatpush1.msra.mxu0 %v2502
    %3525 = vmatprep.subr.mxu0 0.0
    %3526 = vmatpush1.msra.mxu0 %v2503
    %3527 = vmatprep.subr.mxu0 0.0
    %3528 = vmatpush1.msra.mxu0 %v2504
    %3529 = vmatprep.subr.mxu0 0.0
    %3530 = vmatpush1.msra.mxu0 %v2505
    %3531 = vmatprep.subr.mxu0 0.0
    %3532 = vmatpush1.msra.mxu0 %v2506
    %3533 = vmatprep.subr.mxu0 0.0
    %3534 = vmatpush1.msra.mxu0 0.0
    %3535 = vmatprep.subr.mxu0 0.0
    %3536 = vmatpush1.msra.mxu0 0.0
    %3537 = vmatprep.subr.mxu0 0.0
    %3538 = vmatpush1.msra.mxu0 0.0
    %3539 = vmatprep.subr.mxu0 0.0
    %3540 = vmatpush1.msra.mxu0 0.0
    %3541 = vmatprep.subr.mxu0 0.0
    %3542 = vmatpush1.msra.mxu0 0.0
    %3543 = vmatprep.subr.mxu0 0.0
    %3544 = vmatpush1.msra.mxu0 0.0
    %3545 = vmatprep.subr.mxu0 0.0
    %3546 = vmatpush1.msra.mxu0 0.0
    %3547 = vmatprep.subr.mxu0 0.0
    %3548 = vmatpush1.msra.mxu0 0.0
    %3549 = vmatprep.subr.mxu0 0.0
    %3550 = vmatpush1.msra.mxu0 0.0
    %3551 = vmatprep.subr.mxu0 0.0
    %3552 = vmatpush1.msra.mxu0 0.0
    %3553 = vmatprep.subr.mxu0 0.0
    %3554 = vmatpush1.msra.mxu0 0.0
    %3555 = vmatprep.subr.mxu0 0.0
    %3556 = vmatpush1.msra.mxu0 0.0
    %3557 = vmatprep.subr.mxu0 0.0
    %3558 = vmatpush1.msra.mxu0 0.0
    %3559 = vmatprep.subr.mxu0 0.0
    %3560 = vmatpush1.msra.mxu0 0.0
    %3561 = vmatprep.subr.mxu0 0.0
    %3562 = vmatpush1.msra.mxu0 0.0
    %3563 = vmatprep.subr.mxu0 0.0
    %3564 = vmatpush1.msra.mxu0 0.0
    %3565 = vmatprep.subr.mxu0 0.0
    %3566 = vmatpush1.msra.mxu0 0.0
    %3567 = vmatprep.subr.mxu0 0.0
    %3568 = vmatpush1.msra.mxu0 0.0
    %3569 = vmatprep.subr.mxu0 0.0
    %3570 = vmatpush1.msra.mxu0 0.0
    %3571 = vmatprep.subr.mxu0 0.0
    %3572 = vmatpush1.msra.mxu0 0.0
    %3573 = vmatprep.subr.mxu0 0.0
    %3574 = vmatpush1.msra.mxu0 0.0
    %3575 = vmatprep.subr.mxu0 0.0
    %3576 = vmatpush1.msra.mxu0 0.0
    %3577 = vmatprep.subr.mxu0 0.0
    %3578 = vmatpush1.msra.mxu0 0.0
    %3579 = vmatprep.subr.mxu0 0.0
    %3580 = vmatpush1.msra.mxu0 0.0
    %3581 = vmatprep.mubr.f32.mxu0 0.0
    %3582 = vmatmul.mubr.f32.gmra.mrb[0].mxu0 %v3515
    %v3583 = vpop.f32.mrb[0].mxu0
    %v3584 = vadd.f32 0.0, %v3583
    %v3585 = vpop.f32.mrb[0].mxu0
    %3586 = vdwg.mxu0
    %v3587 = vadd.f32 %v2377, %v3584
    %v3589 = vunpack.c.l.s4 1983009808
    %v3590 = vunpack.c.0.s8 %v3589
    %v3591 = vlaneseq
    %v3592 = vshrl.u32 %v3591, 7
    %v3593 = vsub.s32 %v3590, %v3592
    %v3594 = vrot.slane %v3235, %v3593
    %3595 = vrot.lane.b32.xlu0 %v3594, 96
    %v3596 = vpop.permute.xlu0 %3595
    %v3598 = vadd.f32 %v3587, %v3596
    %v3599 = vxor.u32 %v3598, 2147483648
    %v3600 = vmul.f32 %v3599, 1.442695
    %v3601 = vpow.pop %v3600
    %v3602 = vadd.f32 %v3601, 1.0
    %v3603 = vrcp.pop %v3602
    %v3604 = vmul.f32 1.0, %v3603
    %3605 = vrot.lane.b32.xlu0 %v3594, 32
    %v3606 = vpop.permute.xlu0 %3605
    %v3608 = vmul.f32 %v3604, %v3606
    %3610 = vrot.lane.b32.xlu0 %v3608, 64
    %v3611 = vpop.permute.xlu0 %3610
    %v3613 = vadd.f32 %v3587, %v3611
    %v3614 = vtanh.pop %v3613
    %v3615 = vsub.f32 1.0, %v3604
    %3617 = vrot.lane.b32.xlu0 %v3614, 96
    %v3618 = vpop.permute.xlu0 %3617
    %v3620 = vmul.f32 %v3615, %v3618
    %v3621 = vmul.f32 %v3604, %v3007
    %v3622 = vadd.f32 %v3620, %v3621
    %3623 = vmatprep.subr.mxu0 0.0
    %3624 = vmatpush1.msra.mxu0 %v2516
    %3625 = vmatprep.subr.mxu0 0.0
    %3626 = vmatpush1.msra.mxu0 %v2517
    %3627 = vmatprep.subr.mxu0 0.0
    %3628 = vmatpush1.msra.mxu0 %v2518
    %3629 = vmatprep.subr.mxu0 0.0
    %3630 = vmatpush1.msra.mxu0 %v2519
    %3631 = vmatprep.subr.mxu0 0.0
    %3632 = vmatpush1.msra.mxu0 %v2520
    %3633 = vmatprep.subr.mxu0 0.0
    %3634 = vmatpush1.msra.mxu0 %v2521
    %3635 = vmatprep.subr.mxu0 0.0
    %3636 = vmatpush1.msra.mxu0 %v2522
    %3637 = vmatprep.subr.mxu0 0.0
    %3638 = vmatpush1.msra.mxu0 %v2523
    %3639 = vmatprep.subr.mxu0 0.0
    %3640 = vmatpush1.msra.mxu0 0.0
    %3641 = vmatprep.subr.mxu0 0.0
    %3642 = vmatpush1.msra.mxu0 0.0
    %3643 = vmatprep.subr.mxu0 0.0
    %3644 = vmatpush1.msra.mxu0 0.0
    %3645 = vmatprep.subr.mxu0 0.0
    %3646 = vmatpush1.msra.mxu0 0.0
    %3647 = vmatprep.subr.mxu0 0.0
    %3648 = vmatpush1.msra.mxu0 0.0
    %3649 = vmatprep.subr.mxu0 0.0
    %3650 = vmatpush1.msra.mxu0 0.0
    %3651 = vmatprep.subr.mxu0 0.0
    %3652 = vmatpush1.msra.mxu0 0.0
    %3653 = vmatprep.subr.mxu0 0.0
    %3654 = vmatpush1.msra.mxu0 0.0
    %3655 = vmatprep.subr.mxu0 0.0
    %3656 = vmatpush1.msra.mxu0 0.0
    %3657 = vmatprep.subr.mxu0 0.0
    %3658 = vmatpush1.msra.mxu0 0.0
    %3659 = vmatprep.subr.mxu0 0.0
    %3660 = vmatpush1.msra.mxu0 0.0
    %3661 = vmatprep.subr.mxu0 0.0
    %3662 = vmatpush1.msra.mxu0 0.0
    %3663 = vmatprep.subr.mxu0 0.0
    %3664 = vmatpush1.msra.mxu0 0.0
    %3665 = vmatprep.subr.mxu0 0.0
    %3666 = vmatpush1.msra.mxu0 0.0
    %3667 = vmatprep.subr.mxu0 0.0
    %3668 = vmatpush1.msra.mxu0 0.0
    %3669 = vmatprep.subr.mxu0 0.0
    %3670 = vmatpush1.msra.mxu0 0.0
    %3671 = vmatprep.subr.mxu0 0.0
    %3672 = vmatpush1.msra.mxu0 0.0
    %3673 = vmatprep.subr.mxu0 0.0
    %3674 = vmatpush1.msra.mxu0 0.0
    %3675 = vmatprep.subr.mxu0 0.0
    %3676 = vmatpush1.msra.mxu0 0.0
    %3677 = vmatprep.subr.mxu0 0.0
    %3678 = vmatpush1.msra.mxu0 0.0
    %3679 = vmatprep.subr.mxu0 0.0
    %3680 = vmatpush1.msra.mxu0 0.0
    %3681 = vmatprep.subr.mxu0 0.0
    %3682 = vmatpush1.msra.mxu0 0.0
    %3683 = vmatprep.subr.mxu0 0.0
    %3684 = vmatpush1.msra.mxu0 0.0
    %3685 = vmatprep.subr.mxu0 0.0
    %3686 = vmatpush1.msra.mxu0 0.0
    %3687 = vmatprep.mubr.f32.mxu0 0.0
    %3688 = vmatmul.mubr.f32.gmra.mrb[0].mxu0 %v3515
    %v3689 = vpop.f32.mrb[0].mxu0
    %v3690 = vadd.f32 0.0, %v3689
    %v3691 = vpop.f32.mrb[0].mxu0
    %3692 = vdwg.mxu0
    %v3695 = vunpack.c.l.s4 1983009808
    %v3696 = vunpack.c.0.s8 %v3695
    %v3697 = vlaneseq
    %v3698 = vshrl.u32 %v3697, 7
    %v3699 = vsub.s32 %v3696, %v3698
    %v3700 = vrot.slane %v3622, %v3699
    %3701 = vrot.lane.b32.xlu0 %v3700, 96
    %v3702 = vpop.permute.xlu0 %3701
    %v3703 = vsel %vm235, %v3702, 0
    %3705 = vmatprep.subr.mxu0 0.0
    %3706 = vmatpush1.msra.mxu0 %v2512
    %3707 = vmatprep.subr.mxu0 0.0
    %3708 = vmatpush1.msra.mxu0 %v2513
    %3709 = vmatprep.subr.mxu0 0.0
    %3710 = vmatpush1.msra.mxu0 %v2514
    %3711 = vmatprep.subr.mxu0 0.0
    %3712 = vmatpush1.msra.mxu0 %v2515
    %3713 = vmatprep.subr.mxu0 0.0
    %3714 = vmatpush1.msra.mxu0 0.0
    %3715 = vmatprep.subr.mxu0 0.0
    %3716 = vmatpush1.msra.mxu0 0.0
    %3717 = vmatprep.subr.mxu0 0.0
    %3718 = vmatpush1.msra.mxu0 0.0
    %3719 = vmatprep.subr.mxu0 0.0
    %3720 = vmatpush1.msra.mxu0 0.0
    %3721 = vmatprep.subr.mxu0 0.0
    %3722 = vmatpush1.msra.mxu0 0.0
    %3723 = vmatprep.subr.mxu0 0.0
    %3724 = vmatpush1.msra.mxu0 0.0
    %3725 = vmatprep.subr.mxu0 0.0
    %3726 = vmatpush1.msra.mxu0 0.0
    %3727 = vmatprep.subr.mxu0 0.0
    %3728 = vmatpush1.msra.mxu0 0.0
    %3729 = vmatprep.subr.mxu0 0.0
    %3730 = vmatpush1.msra.mxu0 0.0
    %3731 = vmatprep.subr.mxu0 0.0
    %3732 = vmatpush1.msra.mxu0 0.0
    %3733 = vmatprep.subr.mxu0 0.0
    %3734 = vmatpush1.msra.mxu0 0.0
    %3735 = vmatprep.subr.mxu0 0.0
    %3736 = vmatpush1.msra.mxu0 0.0
    %3737 = vmatprep.subr.mxu0 0.0
    %3738 = vmatpush1.msra.mxu0 0.0
    %3739 = vmatprep.subr.mxu0 0.0
    %3740 = vmatpush1.msra.mxu0 0.0
    %3741 = vmatprep.subr.mxu0 0.0
    %3742 = vmatpush1.msra.mxu0 0.0
    %3743 = vmatprep.subr.mxu0 0.0
    %3744 = vmatpush1.msra.mxu0 0.0
    %3745 = vmatprep.subr.mxu0 0.0
    %3746 = vmatpush1.msra.mxu0 0.0
    %3747 = vmatprep.subr.mxu0 0.0
    %3748 = vmatpush1.msra.mxu0 0.0
    %3749 = vmatprep.subr.mxu0 0.0
    %3750 = vmatpush1.msra.mxu0 0.0
    %3751 = vmatprep.subr.mxu0 0.0
    %3752 = vmatpush1.msra.mxu0 0.0
    %3753 = vmatprep.subr.mxu0 0.0
    %3754 = vmatpush1.msra.mxu0 0.0
    %3755 = vmatprep.subr.mxu0 0.0
    %3756 = vmatpush1.msra.mxu0 0.0
    %3757 = vmatprep.subr.mxu0 0.0
    %3758 = vmatpush1.msra.mxu0 0.0
    %3759 = vmatprep.subr.mxu0 0.0
    %3760 = vmatpush1.msra.mxu0 0.0
    %3761 = vmatprep.subr.mxu0 0.0
    %3762 = vmatpush1.msra.mxu0 0.0
    %3763 = vmatprep.subr.mxu0 0.0
    %3764 = vmatpush1.msra.mxu0 0.0
    %3765 = vmatprep.subr.mxu0 0.0
    %3766 = vmatpush1.msra.mxu0 0.0
    %3767 = vmatprep.subr.mxu0 0.0
    %3768 = vmatpush1.msra.mxu0 0.0
    %3769 = vmatprep.mubr.f32.mxu0 0.0
    %3770 = vmatmul.mubr.f32.gmra.mrb[0].mxu0 %v3703
    %v3771 = vpop.f32.mrb[0].mxu0
    %v3772 = vadd.f32 %v3690, %v3771
    %v3773 = vpop.f32.mrb[0].mxu0
    %3774 = vdwg.mxu0
    %v3775 = vadd.f32 %v3772, %v2485
    %v3776 = vadd.f32 %v3775, %v3165
    %3777 = vmatprep.subr.mxu0 0.0
    %3778 = vmatpush1.msra.mxu0 %v2507
    %3779 = vmatprep.subr.mxu0 0.0
    %3780 = vmatpush1.msra.mxu0 %v2508
    %3781 = vmatprep.subr.mxu0 0.0
    %3782 = vmatpush1.msra.mxu0 %v2509
    %3783 = vmatprep.subr.mxu0 0.0
    %3784 = vmatpush1.msra.mxu0 %v2510
    %3785 = vmatprep.subr.mxu0 0.0
    %3786 = vmatpush1.msra.mxu0 0.0
    %3787 = vmatprep.subr.mxu0 0.0
    %3788 = vmatpush1.msra.mxu0 0.0
    %3789 = vmatprep.subr.mxu0 0.0
    %3790 = vmatpush1.msra.mxu0 0.0
    %3791 = vmatprep.subr.mxu0 0.0
    %3792 = vmatpush1.msra.mxu0 0.0
    %3793 = vmatprep.subr.mxu0 0.0
    %3794 = vmatpush1.msra.mxu0 0.0
    %3795 = vmatprep.subr.mxu0 0.0
    %3796 = vmatpush1.msra.mxu0 0.0
    %3797 = vmatprep.subr.mxu0 0.0
    %3798 = vmatpush1.msra.mxu0 0.0
    %3799 = vmatprep.subr.mxu0 0.0
    %3800 = vmatpush1.msra.mxu0 0.0
    %3801 = vmatprep.subr.mxu0 0.0
    %3802 = vmatpush1.msra.mxu0 0.0
    %3803 = vmatprep.subr.mxu0 0.0
    %3804 = vmatpush1.msra.mxu0 0.0
    %3805 = vmatprep.subr.mxu0 0.0
    %3806 = vmatpush1.msra.mxu0 0.0
    %3807 = vmatprep.subr.mxu0 0.0
    %3808 = vmatpush1.msra.mxu0 0.0
    %3809 = vmatprep.subr.mxu0 0.0
    %3810 = vmatpush1.msra.mxu0 0.0
    %3811 = vmatprep.subr.mxu0 0.0
    %3812 = vmatpush1.msra.mxu0 0.0
    %3813 = vmatprep.subr.mxu0 0.0
    %3814 = vmatpush1.msra.mxu0 0.0
    %3815 = vmatprep.subr.mxu0 0.0
    %3816 = vmatpush1.msra.mxu0 0.0
    %3817 = vmatprep.subr.mxu0 0.0
    %3818 = vmatpush1.msra.mxu0 0.0
    %3819 = vmatprep.subr.mxu0 0.0
    %3820 = vmatpush1.msra.mxu0 0.0
    %3821 = vmatprep.subr.mxu0 0.0
    %3822 = vmatpush1.msra.mxu0 0.0
    %3823 = vmatprep.subr.mxu0 0.0
    %3824 = vmatpush1.msra.mxu0 0.0
    %3825 = vmatprep.subr.mxu0 0.0
    %3826 = vmatpush1.msra.mxu0 0.0
    %3827 = vmatprep.subr.mxu0 0.0
    %3828 = vmatpush1.msra.mxu0 0.0
    %3829 = vmatprep.subr.mxu0 0.0
    %3830 = vmatpush1.msra.mxu0 0.0
    %3831 = vmatprep.subr.mxu0 0.0
    %3832 = vmatpush1.msra.mxu0 0.0
    %3833 = vmatprep.subr.mxu0 0.0
    %3834 = vmatpush1.msra.mxu0 0.0
    %3835 = vmatprep.subr.mxu0 0.0
    %3836 = vmatpush1.msra.mxu0 0.0
    %3837 = vmatprep.subr.mxu0 0.0
    %3838 = vmatpush1.msra.mxu0 0.0
    %3839 = vmatprep.subr.mxu0 0.0
    %3840 = vmatpush1.msra.mxu0 0.0
    %3841 = vmatprep.mubr.f32.mxu0 0.0
    %3842 = vmatmul.mubr.f32.gmra.mrb[0].mxu0 %v3703
    %v3843 = vpop.f32.mrb[0].mxu0
    %v3844 = vadd.f32 %v2529, %v3843
    %v3845 = vpop.f32.mrb[0].mxu0
    %3846 = vdwg.mxu0
    %v3849 = vunpack.c.l.s4 1966171168
    %v3850 = vunpack.c.0.s8 %v3849
    %v3851 = vlaneseq
    %v3852 = vshrl.u32 %v3851, 7
    %v3853 = vsub.s32 %v3850, %v3852
    %v3854 = vrot.slane %v3844, %v3853
    %v3855 = vcombine.high %v3854, %v3854
    %v3857 = vunpack.c.l.s4 1966171168
    %v3858 = vunpack.c.0.s8 %v3857
    %v3859 = vlaneseq
    %v3860 = vshrl.u32 %v3859, 7
    %v3861 = vsub.s32 %v3858, %v3860
    %v3862 = vrot.slane %v3854, %v3861
    %v3864 = vunpack.c.l.s4 1966171168
    %v3865 = vunpack.c.0.s8 %v3864
    %v3866 = vlaneseq
    %v3867 = vshrl.u32 %v3866, 7
    %v3868 = vsub.s32 %v3865, %v3867
    %v3869 = vrot.slane %v3855, %v3868
    %v3870 = vlaneseq
    %v3871 = vshrl.u32 %v3870, 7
    %v3872 = vsub.s32 0, %v3871
    %v3873 = vrot.slane %v3862, %v3872
    %v3874 = vlaneseq
    %v3875 = vshrl.u32 %v3874, 7
    %v3876 = vsub.s32 0, %v3875
    %v3877 = vrot.slane %v3869, %v3876
    %v3880 = vadd.f32 %v2261, %v3873
    %v3881 = vadd.f32 %v2266, %v3877
    %v3882 = vtanh.pop %v3880
    %v3883 = vtanh.pop %v3881
    %v3884 = vmul.f32 %v3882, %v2645
    %v3885 = vmul.f32 %v3883, %v2645
    %v3886 = vsel %vm235, %v3884, 0.0
    %3887 = vadd.xlane.f32.xlu0 %v3886
    %v3888 = vpop.xlane.xlu0 %3887
    %v3889 = vsel %vm235, %v3885, 0.0
    %3890 = vadd.xlane.f32.xlu0 %v3889
    %v3891 = vpop.xlane.xlu0 %3890
    %v3894 = vlaneseq
    %v3895 = vshrl.u32 %v3894, 7
    %v3896 = vsub.s32 %v168, %v3895
    %v3897 = vrot.slane %v3888, %v3896
    %v3898 = vlaneseq
    %v3899 = vshrl.u32 %v3898, 7
    %v3900 = vsub.s32 %v168, %v3899
    %v3901 = vrot.slane %v3891, %v3900
    %v3902 = vsel %vm2665, %v3901, %v3897
    %v3904 = vsel %vm2668, %v3902, -inf
    %3905 = vmax.xlane.f32.xlu0 %v3904
    %v3906 = vpop.xlane.xlu0 %3905
    %v3908 = vlaneseq
    %v3909 = vshrl.u32 %v3908, 7
    %v3910 = vsub.s32 0, %v3909
    %v3911 = vrot.slane %v3906, %v3910
    %v3912 = vlaneseq
    %v3913 = vshrl.u32 %v3912, 7
    %v3914 = vsub.s32 1, %v3913
    %v3915 = vrot.slane %v3906, %v3914
    %v3918 = vsub.f32 %v3888, %v3911
    %v3919 = vsub.f32 %v3891, %v3915
    %v3920 = vmul.f32 %v3918, 1.442695
    %v3921 = vpow.pop %v3920
    %v3922 = vmul.f32 %v3919, 1.442695
    %v3923 = vpow.pop %v3922
    %3926 = vset.pattern.permute.xlu0 0
    %3927 = vperm.xlu0 %3926, %v3921
    %v3928 = vpop.permute.xlu0 %3927
    %3929 = vset.pattern.permute.xlu0 0
    %3930 = vperm.xlu0 %3929, %v3923
    %v3931 = vpop.permute.xlu0 %3930
    %v3932 = vlaneseq
    %v3933 = vshrl.u32 %v3932, 7
    %v3934 = vsub.s32 %v168, %v3933
    %v3935 = vrot.slane %v3928, %v3934
    %v3936 = vlaneseq
    %v3937 = vshrl.u32 %v3936, 7
    %v3938 = vsub.s32 %v168, %v3937
    %v3939 = vrot.slane %v3931, %v3938
    %v3940 = vsel %vm2665, %v3939, %v3935
    %v3942 = vsel %vm2668, %v3940, 0.0
    %3943 = vadd.xlane.f32.xlu0 %v3942
    %v3944 = vpop.xlane.xlu0 %3943
    %v3946 = vlaneseq
    %v3947 = vshrl.u32 %v3946, 7
    %v3948 = vsub.s32 0, %v3947
    %v3949 = vrot.slane %v3944, %v3948
    %v3950 = vlaneseq
    %v3951 = vshrl.u32 %v3950, 7
    %v3952 = vsub.s32 1, %v3951
    %v3953 = vrot.slane %v3944, %v3952
    %v3956 = vrcp.pop %v3949
    %v3957 = vmul.f32 %v3921, %v3956
    %v3958 = vrcp.pop %v3953
    %v3959 = vmul.f32 %v3923, %v3958
    %3961 = vset.pattern.permute.xlu0 0
    %3962 = vperm.xlu0 %3961, %v3957
    %v3963 = vpop.permute.xlu0 %3962
    %v3964 = vlaneseq
    %v3965 = vshrl.u32 %v3964, 7
    %v3966 = vsub.s32 %v168, %v3965
    %v3967 = vrot.slane %v3963, %v3966
    %v3968 = vsel %vm2733, %v3967, 0
    %3970 = vmatprep.subr.mxu0 0.0
    %3971 = vmatpush1.msra.mxu0 %v2083
    %3972 = vmatprep.subr.mxu0 0.0
    %3973 = vmatpush1.msra.mxu0 0.0
    %3974 = vmatprep.subr.mxu0 0.0
    %3975 = vmatpush1.msra.mxu0 0.0
    %3976 = vmatprep.subr.mxu0 0.0
    %3977 = vmatpush1.msra.mxu0 0.0
    %3978 = vmatprep.subr.mxu0 0.0
    %3979 = vmatpush1.msra.mxu0 0.0
    %3980 = vmatprep.subr.mxu0 0.0
    %3981 = vmatpush1.msra.mxu0 0.0
    %3982 = vmatprep.subr.mxu0 0.0
    %3983 = vmatpush1.msra.mxu0 0.0
    %3984 = vmatprep.subr.mxu0 0.0
    %3985 = vmatpush1.msra.mxu0 0.0
    %3986 = vmatprep.subr.mxu0 0.0
    %3987 = vmatpush1.msra.mxu0 0.0
    %3988 = vmatprep.subr.mxu0 0.0
    %3989 = vmatpush1.msra.mxu0 0.0
    %3990 = vmatprep.subr.mxu0 0.0
    %3991 = vmatpush1.msra.mxu0 0.0
    %3992 = vmatprep.subr.mxu0 0.0
    %3993 = vmatpush1.msra.mxu0 0.0
    %3994 = vmatprep.subr.mxu0 0.0
    %3995 = vmatpush1.msra.mxu0 0.0
    %3996 = vmatprep.subr.mxu0 0.0
    %3997 = vmatpush1.msra.mxu0 0.0
    %3998 = vmatprep.subr.mxu0 0.0
    %3999 = vmatpush1.msra.mxu0 0.0
    %4000 = vmatprep.subr.mxu0 0.0
    %4001 = vmatpush1.msra.mxu0 0.0
    %4002 = vmatprep.subr.mxu0 0.0
    %4003 = vmatpush1.msra.mxu0 0.0
    %4004 = vmatprep.subr.mxu0 0.0
    %4005 = vmatpush1.msra.mxu0 0.0
    %4006 = vmatprep.subr.mxu0 0.0
    %4007 = vmatpush1.msra.mxu0 0.0
    %4008 = vmatprep.subr.mxu0 0.0
    %4009 = vmatpush1.msra.mxu0 0.0
    %4010 = vmatprep.subr.mxu0 0.0
    %4011 = vmatpush1.msra.mxu0 0.0
    %4012 = vmatprep.subr.mxu0 0.0
    %4013 = vmatpush1.msra.mxu0 0.0
    %4014 = vmatprep.subr.mxu0 0.0
    %4015 = vmatpush1.msra.mxu0 0.0
    %4016 = vmatprep.subr.mxu0 0.0
    %4017 = vmatpush1.msra.mxu0 0.0
    %4018 = vmatprep.subr.mxu0 0.0
    %4019 = vmatpush1.msra.mxu0 0.0
    %4020 = vmatprep.subr.mxu0 0.0
    %4021 = vmatpush1.msra.mxu0 0.0
    %4022 = vmatprep.subr.mxu0 0.0
    %4023 = vmatpush1.msra.mxu0 0.0
    %4024 = vmatprep.subr.mxu0 0.0
    %4025 = vmatpush1.msra.mxu0 0.0
    %4026 = vmatprep.subr.mxu0 0.0
    %4027 = vmatpush1.msra.mxu0 0.0
    %4028 = vmatprep.subr.mxu0 0.0
    %4029 = vmatpush1.msra.mxu0 0.0
    %4030 = vmatprep.subr.mxu0 0.0
    %4031 = vmatpush1.msra.mxu0 0.0
    %4032 = vmatprep.subr.mxu0 0.0
    %4033 = vmatpush1.msra.mxu0 0.0
    %4034 = vmatprep.mubr.f32.mxu0 0.0
    %4035 = vmatmul.mubr.f32.gmra.mrb[0].mxu0 %v3968
    %v4036 = vpop.f32.mrb[0].mxu0
    %v4037 = vadd.f32 0.0, %v4036
    %v4038 = vpop.f32.mrb[0].mxu0
    %4039 = vdwg.mxu0
    %4041 = vset.pattern.permute.xlu0 0
    %4042 = vperm.xlu0 %4041, %v3959
    %v4043 = vpop.permute.xlu0 %4042
    %v4044 = vlaneseq
    %v4045 = vshrl.u32 %v4044, 7
    %v4046 = vsub.s32 %v168, %v4045
    %v4047 = vrot.slane %v4043, %v4046
    %v4048 = vsel %vm2733, %v4047, 0
    %4050 = vmatprep.subr.mxu0 0.0
    %4051 = vmatpush1.msra.mxu0 %v2084
    %4052 = vmatprep.subr.mxu0 0.0
    %4053 = vmatpush1.msra.mxu0 0.0
    %4054 = vmatprep.subr.mxu0 0.0
    %4055 = vmatpush1.msra.mxu0 0.0
    %4056 = vmatprep.subr.mxu0 0.0
    %4057 = vmatpush1.msra.mxu0 0.0
    %4058 = vmatprep.subr.mxu0 0.0
    %4059 = vmatpush1.msra.mxu0 0.0
    %4060 = vmatprep.subr.mxu0 0.0
    %4061 = vmatpush1.msra.mxu0 0.0
    %4062 = vmatprep.subr.mxu0 0.0
    %4063 = vmatpush1.msra.mxu0 0.0
    %4064 = vmatprep.subr.mxu0 0.0
    %4065 = vmatpush1.msra.mxu0 0.0
    %4066 = vmatprep.subr.mxu0 0.0
    %4067 = vmatpush1.msra.mxu0 0.0
    %4068 = vmatprep.subr.mxu0 0.0
    %4069 = vmatpush1.msra.mxu0 0.0
    %4070 = vmatprep.subr.mxu0 0.0
    %4071 = vmatpush1.msra.mxu0 0.0
    %4072 = vmatprep.subr.mxu0 0.0
    %4073 = vmatpush1.msra.mxu0 0.0
    %4074 = vmatprep.subr.mxu0 0.0
    %4075 = vmatpush1.msra.mxu0 0.0
    %4076 = vmatprep.subr.mxu0 0.0
    %4077 = vmatpush1.msra.mxu0 0.0
    %4078 = vmatprep.subr.mxu0 0.0
    %4079 = vmatpush1.msra.mxu0 0.0
    %4080 = vmatprep.subr.mxu0 0.0
    %4081 = vmatpush1.msra.mxu0 0.0
    %4082 = vmatprep.subr.mxu0 0.0
    %4083 = vmatpush1.msra.mxu0 0.0
    %4084 = vmatprep.subr.mxu0 0.0
    %4085 = vmatpush1.msra.mxu0 0.0
    %4086 = vmatprep.subr.mxu0 0.0
    %4087 = vmatpush1.msra.mxu0 0.0
    %4088 = vmatprep.subr.mxu0 0.0
    %4089 = vmatpush1.msra.mxu0 0.0
    %4090 = vmatprep.subr.mxu0 0.0
    %4091 = vmatpush1.msra.mxu0 0.0
    %4092 = vmatprep.subr.mxu0 0.0
    %4093 = vmatpush1.msra.mxu0 0.0
    %4094 = vmatprep.subr.mxu0 0.0
    %4095 = vmatpush1.msra.mxu0 0.0
    %4096 = vmatprep.subr.mxu0 0.0
    %4097 = vmatpush1.msra.mxu0 0.0
    %4098 = vmatprep.subr.mxu0 0.0
    %4099 = vmatpush1.msra.mxu0 0.0
    %4100 = vmatprep.subr.mxu0 0.0
    %4101 = vmatpush1.msra.mxu0 0.0
    %4102 = vmatprep.subr.mxu0 0.0
    %4103 = vmatpush1.msra.mxu0 0.0
    %4104 = vmatprep.subr.mxu0 0.0
    %4105 = vmatpush1.msra.mxu0 0.0
    %4106 = vmatprep.subr.mxu0 0.0
    %4107 = vmatpush1.msra.mxu0 0.0
    %4108 = vmatprep.subr.mxu0 0.0
    %4109 = vmatpush1.msra.mxu0 0.0
    %4110 = vmatprep.subr.mxu0 0.0
    %4111 = vmatpush1.msra.mxu0 0.0
    %4112 = vmatprep.subr.mxu0 0.0
    %4113 = vmatpush1.msra.mxu0 0.0
    %4114 = vmatprep.mubr.f32.mxu0 0.0
    %4115 = vmatmul.mubr.f32.gmra.mrb[0].mxu0 %v4048
    %v4116 = vpop.f32.mrb[0].mxu0
    %v4117 = vadd.f32 0.0, %v4116
    %v4118 = vpop.f32.mrb[0].mxu0
    %4119 = vdwg.mxu0
    %v4122 = vrot.slane %v4117, 7
    %v4123 = vsel %vm2665, %v4122, %v4037
    %v4124 = vsel %vm792, %v4123, 0
    %4126 = vmatprep.subr.mxu0 0.0
    %4127 = vmatpush1.msra.mxu0 %v2499
    %4128 = vmatprep.subr.mxu0 0.0
    %4129 = vmatpush1.msra.mxu0 %v2500
    %4130 = vmatprep.subr.mxu0 0.0
    %4131 = vmatpush1.msra.mxu0 %v2501
    %4132 = vmatprep.subr.mxu0 0.0
    %4133 = vmatpush1.msra.mxu0 %v2502
    %4134 = vmatprep.subr.mxu0 0.0
    %4135 = vmatpush1.msra.mxu0 %v2503
    %4136 = vmatprep.subr.mxu0 0.0
    %4137 = vmatpush1.msra.mxu0 %v2504
    %4138 = vmatprep.subr.mxu0 0.0
    %4139 = vmatpush1.msra.mxu0 %v2505
    %4140 = vmatprep.subr.mxu0 0.0
    %4141 = vmatpush1.msra.mxu0 %v2506
    %4142 = vmatprep.subr.mxu0 0.0
    %4143 = vmatpush1.msra.mxu0 0.0
    %4144 = vmatprep.subr.mxu0 0.0
    %4145 = vmatpush1.msra.mxu0 0.0
    %4146 = vmatprep.subr.mxu0 0.0
    %4147 = vmatpush1.msra.mxu0 0.0
    %4148 = vmatprep.subr.mxu0 0.0
    %4149 = vmatpush1.msra.mxu0 0.0
    %4150 = vmatprep.subr.mxu0 0.0
    %4151 = vmatpush1.msra.mxu0 0.0
    %4152 = vmatprep.subr.mxu0 0.0
    %4153 = vmatpush1.msra.mxu0 0.0
    %4154 = vmatprep.subr.mxu0 0.0
    %4155 = vmatpush1.msra.mxu0 0.0
    %4156 = vmatprep.subr.mxu0 0.0
    %4157 = vmatpush1.msra.mxu0 0.0
    %4158 = vmatprep.subr.mxu0 0.0
    %4159 = vmatpush1.msra.mxu0 0.0
    %4160 = vmatprep.subr.mxu0 0.0
    %4161 = vmatpush1.msra.mxu0 0.0
    %4162 = vmatprep.subr.mxu0 0.0
    %4163 = vmatpush1.msra.mxu0 0.0
    %4164 = vmatprep.subr.mxu0 0.0
    %4165 = vmatpush1.msra.mxu0 0.0
    %4166 = vmatprep.subr.mxu0 0.0
    %4167 = vmatpush1.msra.mxu0 0.0
    %4168 = vmatprep.subr.mxu0 0.0
    %4169 = vmatpush1.msra.mxu0 0.0
    %4170 = vmatprep.subr.mxu0 0.0
    %4171 = vmatpush1.msra.mxu0 0.0
    %4172 = vmatprep.subr.mxu0 0.0
    %4173 = vmatpush1.msra.mxu0 0.0
    %4174 = vmatprep.subr.mxu0 0.0
    %4175 = vmatpush1.msra.mxu0 0.0
    %4176 = vmatprep.subr.mxu0 0.0
    %4177 = vmatpush1.msra.mxu0 0.0
    %4178 = vmatprep.subr.mxu0 0.0
    %4179 = vmatpush1.msra.mxu0 0.0
    %4180 = vmatprep.subr.mxu0 0.0
    %4181 = vmatpush1.msra.mxu0 0.0
    %4182 = vmatprep.subr.mxu0 0.0
    %4183 = vmatpush1.msra.mxu0 0.0
    %4184 = vmatprep.subr.mxu0 0.0
    %4185 = vmatpush1.msra.mxu0 0.0
    %4186 = vmatprep.subr.mxu0 0.0
    %4187 = vmatpush1.msra.mxu0 0.0
    %4188 = vmatprep.subr.mxu0 0.0
    %4189 = vmatpush1.msra.mxu0 0.0
    %4190 = vmatprep.mubr.f32.mxu0 0.0
    %4191 = vmatmul.mubr.f32.gmra.mrb[0].mxu0 %v4124
    %v4192 = vpop.f32.mrb[0].mxu0
    %v4193 = vadd.f32 0.0, %v4192
    %v4194 = vpop.f32.mrb[0].mxu0
    %4195 = vdwg.mxu0
    %v4196 = vadd.f32 %v2376, %v4193
    %v4198 = vunpack.c.l.s4 1983009808
    %v4199 = vunpack.c.0.s8 %v4198
    %v4200 = vlaneseq
    %v4201 = vshrl.u32 %v4200, 7
    %v4202 = vsub.s32 %v4199, %v4201
    %v4203 = vrot.slane %v3844, %v4202
    %4204 = vrot.lane.b32.xlu0 %v4203, 96
    %v4205 = vpop.permute.xlu0 %4204
    %v4207 = vadd.f32 %v4196, %v4205
    %v4208 = vxor.u32 %v4207, 2147483648
    %v4209 = vmul.f32 %v4208, 1.442695
    %v4210 = vpow.pop %v4209
    %v4211 = vadd.f32 %v4210, 1.0
    %v4212 = vrcp.pop %v4211
    %v4213 = vmul.f32 1.0, %v4212
    %4214 = vrot.lane.b32.xlu0 %v4203, 32
    %v4215 = vpop.permute.xlu0 %4214
    %v4217 = vmul.f32 %v4213, %v4215
    %4219 = vrot.lane.b32.xlu0 %v4217, 64
    %v4220 = vpop.permute.xlu0 %4219
    %v4222 = vadd.f32 %v4196, %v4220
    %v4223 = vtanh.pop %v4222
    %v4224 = vsub.f32 1.0, %v4213
    %4226 = vrot.lane.b32.xlu0 %v4223, 96
    %v4227 = vpop.permute.xlu0 %4226
    %v4229 = vmul.f32 %v4224, %v4227
    %v4230 = vmul.f32 %v4213, %v3622
    %v4231 = vadd.f32 %v4229, %v4230
    %4232 = vmatprep.subr.mxu0 0.0
    %4233 = vmatpush1.msra.mxu0 %v2516
    %4234 = vmatprep.subr.mxu0 0.0
    %4235 = vmatpush1.msra.mxu0 %v2517
    %4236 = vmatprep.subr.mxu0 0.0
    %4237 = vmatpush1.msra.mxu0 %v2518
    %4238 = vmatprep.subr.mxu0 0.0
    %4239 = vmatpush1.msra.mxu0 %v2519
    %4240 = vmatprep.subr.mxu0 0.0
    %4241 = vmatpush1.msra.mxu0 %v2520
    %4242 = vmatprep.subr.mxu0 0.0
    %4243 = vmatpush1.msra.mxu0 %v2521
    %4244 = vmatprep.subr.mxu0 0.0
    %4245 = vmatpush1.msra.mxu0 %v2522
    %4246 = vmatprep.subr.mxu0 0.0
    %4247 = vmatpush1.msra.mxu0 %v2523
    %4248 = vmatprep.subr.mxu0 0.0
    %4249 = vmatpush1.msra.mxu0 0.0
    %4250 = vmatprep.subr.mxu0 0.0
    %4251 = vmatpush1.msra.mxu0 0.0
    %4252 = vmatprep.subr.mxu0 0.0
    %4253 = vmatpush1.msra.mxu0 0.0
    %4254 = vmatprep.subr.mxu0 0.0
    %4255 = vmatpush1.msra.mxu0 0.0
    %4256 = vmatprep.subr.mxu0 0.0
    %4257 = vmatpush1.msra.mxu0 0.0
    %4258 = vmatprep.subr.mxu0 0.0
    %4259 = vmatpush1.msra.mxu0 0.0
    %4260 = vmatprep.subr.mxu0 0.0
    %4261 = vmatpush1.msra.mxu0 0.0
    %4262 = vmatprep.subr.mxu0 0.0
    %4263 = vmatpush1.msra.mxu0 0.0
    %4264 = vmatprep.subr.mxu0 0.0
    %4265 = vmatpush1.msra.mxu0 0.0
    %4266 = vmatprep.subr.mxu0 0.0
    %4267 = vmatpush1.msra.mxu0 0.0
    %4268 = vmatprep.subr.mxu0 0.0
    %4269 = vmatpush1.msra.mxu0 0.0
    %4270 = vmatprep.subr.mxu0 0.0
    %4271 = vmatpush1.msra.mxu0 0.0
    %4272 = vmatprep.subr.mxu0 0.0
    %4273 = vmatpush1.msra.mxu0 0.0
    %4274 = vmatprep.subr.mxu0 0.0
    %4275 = vmatpush1.msra.mxu0 0.0
    %4276 = vmatprep.subr.mxu0 0.0
    %4277 = vmatpush1.msra.mxu0 0.0
    %4278 = vmatprep.subr.mxu0 0.0
    %4279 = vmatpush1.msra.mxu0 0.0
    %4280 = vmatprep.subr.mxu0 0.0
    %4281 = vmatpush1.msra.mxu0 0.0
    %4282 = vmatprep.subr.mxu0 0.0
    %4283 = vmatpush1.msra.mxu0 0.0
    %4284 = vmatprep.subr.mxu0 0.0
    %4285 = vmatpush1.msra.mxu0 0.0
    %4286 = vmatprep.subr.mxu0 0.0
    %4287 = vmatpush1.msra.mxu0 0.0
    %4288 = vmatprep.subr.mxu0 0.0
    %4289 = vmatpush1.msra.mxu0 0.0
    %4290 = vmatprep.subr.mxu0 0.0
    %4291 = vmatpush1.msra.mxu0 0.0
    %4292 = vmatprep.subr.mxu0 0.0
    %4293 = vmatpush1.msra.mxu0 0.0
    %4294 = vmatprep.subr.mxu0 0.0
    %4295 = vmatpush1.msra.mxu0 0.0
    %4296 = vmatprep.mubr.f32.mxu0 0.0
    %4297 = vmatmul.mubr.f32.gmra.mrb[0].mxu0 %v4124
    %v4298 = vpop.f32.mrb[0].mxu0
    %v4299 = vadd.f32 0.0, %v4298
    %v4300 = vpop.f32.mrb[0].mxu0
    %4301 = vdwg.mxu0
    %v4304 = vunpack.c.l.s4 1983009808
    %v4305 = vunpack.c.0.s8 %v4304
    %v4306 = vlaneseq
    %v4307 = vshrl.u32 %v4306, 7
    %v4308 = vsub.s32 %v4305, %v4307
    %v4309 = vrot.slane %v4231, %v4308
    %4310 = vrot.lane.b32.xlu0 %v4309, 96
    %v4311 = vpop.permute.xlu0 %4310
    %v4312 = vsel %vm235, %v4311, 0
    %4314 = vmatprep.subr.mxu0 0.0
    %4315 = vmatpush1.msra.mxu0 %v2512
    %4316 = vmatprep.subr.mxu0 0.0
    %4317 = vmatpush1.msra.mxu0 %v2513
    %4318 = vmatprep.subr.mxu0 0.0
    %4319 = vmatpush1.msra.mxu0 %v2514
    %4320 = vmatprep.subr.mxu0 0.0
    %4321 = vmatpush1.msra.mxu0 %v2515
    %4322 = vmatprep.subr.mxu0 0.0
    %4323 = vmatpush1.msra.mxu0 0.0
    %4324 = vmatprep.subr.mxu0 0.0
    %4325 = vmatpush1.msra.mxu0 0.0
    %4326 = vmatprep.subr.mxu0 0.0
    %4327 = vmatpush1.msra.mxu0 0.0
    %4328 = vmatprep.subr.mxu0 0.0
    %4329 = vmatpush1.msra.mxu0 0.0
    %4330 = vmatprep.subr.mxu0 0.0
    %4331 = vmatpush1.msra.mxu0 0.0
    %4332 = vmatprep.subr.mxu0 0.0
    %4333 = vmatpush1.msra.mxu0 0.0
    %4334 = vmatprep.subr.mxu0 0.0
    %4335 = vmatpush1.msra.mxu0 0.0
    %4336 = vmatprep.subr.mxu0 0.0
    %4337 = vmatpush1.msra.mxu0 0.0
    %4338 = vmatprep.subr.mxu0 0.0
    %4339 = vmatpush1.msra.mxu0 0.0
    %4340 = vmatprep.subr.mxu0 0.0
    %4341 = vmatpush1.msra.mxu0 0.0
    %4342 = vmatprep.subr.mxu0 0.0
    %4343 = vmatpush1.msra.mxu0 0.0
    %4344 = vmatprep.subr.mxu0 0.0
    %4345 = vmatpush1.msra.mxu0 0.0
    %4346 = vmatprep.subr.mxu0 0.0
    %4347 = vmatpush1.msra.mxu0 0.0
    %4348 = vmatprep.subr.mxu0 0.0
    %4349 = vmatpush1.msra.mxu0 0.0
    %4350 = vmatprep.subr.mxu0 0.0
    %4351 = vmatpush1.msra.mxu0 0.0
    %4352 = vmatprep.subr.mxu0 0.0
    %4353 = vmatpush1.msra.mxu0 0.0
    %4354 = vmatprep.subr.mxu0 0.0
    %4355 = vmatpush1.msra.mxu0 0.0
    %4356 = vmatprep.subr.mxu0 0.0
    %4357 = vmatpush1.msra.mxu0 0.0
    %4358 = vmatprep.subr.mxu0 0.0
    %4359 = vmatpush1.msra.mxu0 0.0
    %4360 = vmatprep.subr.mxu0 0.0
    %4361 = vmatpush1.msra.mxu0 0.0
    %4362 = vmatprep.subr.mxu0 0.0
    %4363 = vmatpush1.msra.mxu0 0.0
    %4364 = vmatprep.subr.mxu0 0.0
    %4365 = vmatpush1.msra.mxu0 0.0
    %4366 = vmatprep.subr.mxu0 0.0
    %4367 = vmatpush1.msra.mxu0 0.0
    %4368 = vmatprep.subr.mxu0 0.0
    %4369 = vmatpush1.msra.mxu0 0.0
    %4370 = vmatprep.subr.mxu0 0.0
    %4371 = vmatpush1.msra.mxu0 0.0
    %4372 = vmatprep.subr.mxu0 0.0
    %4373 = vmatpush1.msra.mxu0 0.0
    %4374 = vmatprep.subr.mxu0 0.0
    %4375 = vmatpush1.msra.mxu0 0.0
    %4376 = vmatprep.subr.mxu0 0.0
    %4377 = vmatpush1.msra.mxu0 0.0
    %4378 = vmatprep.mubr.f32.mxu0 0.0
    %4379 = vmatmul.mubr.f32.gmra.mrb[0].mxu0 %v4312
    %v4380 = vpop.f32.mrb[0].mxu0
    %v4381 = vadd.f32 %v4299, %v4380
    %v4382 = vpop.f32.mrb[0].mxu0
    %4383 = vdwg.mxu0
    %v4384 = vadd.f32 %v4381, %v2484
    %v4385 = vadd.f32 %v4384, %v3165
    %4386 = vmatprep.subr.mxu0 0.0
    %4387 = vmatpush1.msra.mxu0 %v2507
    %4388 = vmatprep.subr.mxu0 0.0
    %4389 = vmatpush1.msra.mxu0 %v2508
    %4390 = vmatprep.subr.mxu0 0.0
    %4391 = vmatpush1.msra.mxu0 %v2509
    %4392 = vmatprep.subr.mxu0 0.0
    %4393 = vmatpush1.msra.mxu0 %v2510
    %4394 = vmatprep.subr.mxu0 0.0
    %4395 = vmatpush1.msra.mxu0 0.0
    %4396 = vmatprep.subr.mxu0 0.0
    %4397 = vmatpush1.msra.mxu0 0.0
    %4398 = vmatprep.subr.mxu0 0.0
    %4399 = vmatpush1.msra.mxu0 0.0
    %4400 = vmatprep.subr.mxu0 0.0
    %4401 = vmatpush1.msra.mxu0 0.0
    %4402 = vmatprep.subr.mxu0 0.0
    %4403 = vmatpush1.msra.mxu0 0.0
    %4404 = vmatprep.subr.mxu0 0.0
    %4405 = vmatpush1.msra.mxu0 0.0
    %4406 = vmatprep.subr.mxu0 0.0
    %4407 = vmatpush1.msra.mxu0 0.0
    %4408 = vmatprep.subr.mxu0 0.0
    %4409 = vmatpush1.msra.mxu0 0.0
    %4410 = vmatprep.subr.mxu0 0.0
    %4411 = vmatpush1.msra.mxu0 0.0
    %4412 = vmatprep.subr.mxu0 0.0
    %4413 = vmatpush1.msra.mxu0 0.0
    %4414 = vmatprep.subr.mxu0 0.0
    %4415 = vmatpush1.msra.mxu0 0.0
    %4416 = vmatprep.subr.mxu0 0.0
    %4417 = vmatpush1.msra.mxu0 0.0
    %4418 = vmatprep.subr.mxu0 0.0
    %4419 = vmatpush1.msra.mxu0 0.0
    %4420 = vmatprep.subr.mxu0 0.0
    %4421 = vmatpush1.msra.mxu0 0.0
    %4422 = vmatprep.subr.mxu0 0.0
    %4423 = vmatpush1.msra.mxu0 0.0
    %4424 = vmatprep.subr.mxu0 0.0
    %4425 = vmatpush1.msra.mxu0 0.0
    %4426 = vmatprep.subr.mxu0 0.0
    %4427 = vmatpush1.msra.mxu0 0.0
    %4428 = vmatprep.subr.mxu0 0.0
    %4429 = vmatpush1.msra.mxu0 0.0
    %4430 = vmatprep.subr.mxu0 0.0
    %4431 = vmatpush1.msra.mxu0 0.0
    %4432 = vmatprep.subr.mxu0 0.0
    %4433 = vmatpush1.msra.mxu0 0.0
    %4434 = vmatprep.subr.mxu0 0.0
    %4435 = vmatpush1.msra.mxu0 0.0
    %4436 = vmatprep.subr.mxu0 0.0
    %4437 = vmatpush1.msra.mxu0 0.0
    %4438 = vmatprep.subr.mxu0 0.0
    %4439 = vmatpush1.msra.mxu0 0.0
    %4440 = vmatprep.subr.mxu0 0.0
    %4441 = vmatpush1.msra.mxu0 0.0
    %4442 = vmatprep.subr.mxu0 0.0
    %4443 = vmatpush1.msra.mxu0 0.0
    %4444 = vmatprep.subr.mxu0 0.0
    %4445 = vmatpush1.msra.mxu0 0.0
    %4446 = vmatprep.subr.mxu0 0.0
    %4447 = vmatpush1.msra.mxu0 0.0
    %4448 = vmatprep.subr.mxu0 0.0
    %4449 = vmatpush1.msra.mxu0 0.0
    %4450 = vmatprep.mubr.f32.mxu0 0.0
    %4451 = vmatmul.mubr.f32.gmra.mrb[0].mxu0 %v4312
    %v4452 = vpop.f32.mrb[0].mxu0
    %v4453 = vadd.f32 %v2529, %v4452
    %v4454 = vpop.f32.mrb[0].mxu0
    %4455 = vdwg.mxu0
    %v4458 = vunpack.c.l.s4 1966171168
    %v4459 = vunpack.c.0.s8 %v4458
    %v4460 = vlaneseq
    %v4461 = vshrl.u32 %v4460, 7
    %v4462 = vsub.s32 %v4459, %v4461
    %v4463 = vrot.slane %v4453, %v4462
    %v4464 = vcombine.high %v4463, %v4463
    %v4466 = vunpack.c.l.s4 1966171168
    %v4467 = vunpack.c.0.s8 %v4466
    %v4468 = vlaneseq
    %v4469 = vshrl.u32 %v4468, 7
    %v4470 = vsub.s32 %v4467, %v4469
    %v4471 = vrot.slane %v4463, %v4470
    %v4473 = vunpack.c.l.s4 1966171168
    %v4474 = vunpack.c.0.s8 %v4473
    %v4475 = vlaneseq
    %v4476 = vshrl.u32 %v4475, 7
    %v4477 = vsub.s32 %v4474, %v4476
    %v4478 = vrot.slane %v4464, %v4477
    %v4479 = vlaneseq
    %v4480 = vshrl.u32 %v4479, 7
    %v4481 = vsub.s32 0, %v4480
    %v4482 = vrot.slane %v4471, %v4481
    %v4483 = vlaneseq
    %v4484 = vshrl.u32 %v4483, 7
    %v4485 = vsub.s32 0, %v4484
    %v4486 = vrot.slane %v4478, %v4485
    %v4489 = vadd.f32 %v2261, %v4482
    %v4490 = vadd.f32 %v2266, %v4486
    %v4491 = vtanh.pop %v4489
    %v4492 = vtanh.pop %v4490
    %v4493 = vmul.f32 %v4491, %v2645
    %v4494 = vmul.f32 %v4492, %v2645
    %v4495 = vsel %vm235, %v4493, 0.0
    %4496 = vadd.xlane.f32.xlu0 %v4495
    %v4497 = vpop.xlane.xlu0 %4496
    %v4498 = vsel %vm235, %v4494, 0.0
    %4499 = vadd.xlane.f32.xlu0 %v4498
    %v4500 = vpop.xlane.xlu0 %4499
    %v4503 = vlaneseq
    %v4504 = vshrl.u32 %v4503, 7
    %v4505 = vsub.s32 %v168, %v4504
    %v4506 = vrot.slane %v4497, %v4505
    %v4507 = vlaneseq
    %v4508 = vshrl.u32 %v4507, 7
    %v4509 = vsub.s32 %v168, %v4508
    %v4510 = vrot.slane %v4500, %v4509
    %v4511 = vsel %vm2665, %v4510, %v4506
    %v4513 = vsel %vm2668, %v4511, -inf
    %4514 = vmax.xlane.f32.xlu0 %v4513
    %v4515 = vpop.xlane.xlu0 %4514
    %v4517 = vlaneseq
    %v4518 = vshrl.u32 %v4517, 7
    %v4519 = vsub.s32 0, %v4518
    %v4520 = vrot.slane %v4515, %v4519
    %v4521 = vlaneseq
    %v4522 = vshrl.u32 %v4521, 7
    %v4523 = vsub.s32 1, %v4522
    %v4524 = vrot.slane %v4515, %v4523
    %v4527 = vsub.f32 %v4497, %v4520
    %v4528 = vsub.f32 %v4500, %v4524
    %v4529 = vmul.f32 %v4527, 1.442695
    %v4530 = vpow.pop %v4529
    %v4531 = vmul.f32 %v4528, 1.442695
    %v4532 = vpow.pop %v4531
    %4535 = vset.pattern.permute.xlu0 0
    %4536 = vperm.xlu0 %4535, %v4530
    %v4537 = vpop.permute.xlu0 %4536
    %4538 = vset.pattern.permute.xlu0 0
    %4539 = vperm.xlu0 %4538, %v4532
    %v4540 = vpop.permute.xlu0 %4539
    %v4541 = vlaneseq
    %v4542 = vshrl.u32 %v4541, 7
    %v4543 = vsub.s32 %v168, %v4542
    %v4544 = vrot.slane %v4537, %v4543
    %v4545 = vlaneseq
    %v4546 = vshrl.u32 %v4545, 7
    %v4547 = vsub.s32 %v168, %v4546
    %v4548 = vrot.slane %v4540, %v4547
    %v4549 = vsel %vm2665, %v4548, %v4544
    %v4551 = vsel %vm2668, %v4549, 0.0
    %4552 = vadd.xlane.f32.xlu0 %v4551
    %v4553 = vpop.xlane.xlu0 %4552
    %v4555 = vlaneseq
    %v4556 = vshrl.u32 %v4555, 7
    %v4557 = vsub.s32 0, %v4556
    %v4558 = vrot.slane %v4553, %v4557
    %v4559 = vlaneseq
    %v4560 = vshrl.u32 %v4559, 7
    %v4561 = vsub.s32 1, %v4560
    %v4562 = vrot.slane %v4553, %v4561
    %v4565 = vrcp.pop %v4558
    %v4566 = vmul.f32 %v4530, %v4565
    %v4567 = vrcp.pop %v4562
    %v4568 = vmul.f32 %v4532, %v4567
    %4570 = vset.pattern.permute.xlu0 0
    %4571 = vperm.xlu0 %4570, %v4566
    %v4572 = vpop.permute.xlu0 %4571
    %v4573 = vlaneseq
    %v4574 = vshrl.u32 %v4573, 7
    %v4575 = vsub.s32 %v168, %v4574
    %v4576 = vrot.slane %v4572, %v4575
    %v4577 = vsel %vm2733, %v4576, 0
    %4579 = vmatprep.subr.mxu0 0.0
    %4580 = vmatpush1.msra.mxu0 %v2083
    %4581 = vmatprep.subr.mxu0 0.0
    %4582 = vmatpush1.msra.mxu0 0.0
    %4583 = vmatprep.subr.mxu0 0.0
    %4584 = vmatpush1.msra.mxu0 0.0
    %4585 = vmatprep.subr.mxu0 0.0
    %4586 = vmatpush1.msra.mxu0 0.0
    %4587 = vmatprep.subr.mxu0 0.0
    %4588 = vmatpush1.msra.mxu0 0.0
    %4589 = vmatprep.subr.mxu0 0.0
    %4590 = vmatpush1.msra.mxu0 0.0
    %4591 = vmatprep.subr.mxu0 0.0
    %4592 = vmatpush1.msra.mxu0 0.0
    %4593 = vmatprep.subr.mxu0 0.0
    %4594 = vmatpush1.msra.mxu0 0.0
    %4595 = vmatprep.subr.mxu0 0.0
    %4596 = vmatpush1.msra.mxu0 0.0
    %4597 = vmatprep.subr.mxu0 0.0
    %4598 = vmatpush1.msra.mxu0 0.0
    %4599 = vmatprep.subr.mxu0 0.0
    %4600 = vmatpush1.msra.mxu0 0.0
    %4601 = vmatprep.subr.mxu0 0.0
    %4602 = vmatpush1.msra.mxu0 0.0
    %4603 = vmatprep.subr.mxu0 0.0
    %4604 = vmatpush1.msra.mxu0 0.0
    %4605 = vmatprep.subr.mxu0 0.0
    %4606 = vmatpush1.msra.mxu0 0.0
    %4607 = vmatprep.subr.mxu0 0.0
    %4608 = vmatpush1.msra.mxu0 0.0
    %4609 = vmatprep.subr.mxu0 0.0
    %4610 = vmatpush1.msra.mxu0 0.0
    %4611 = vmatprep.subr.mxu0 0.0
    %4612 = vmatpush1.msra.mxu0 0.0
    %4613 = vmatprep.subr.mxu0 0.0
    %4614 = vmatpush1.msra.mxu0 0.0
    %4615 = vmatprep.subr.mxu0 0.0
    %4616 = vmatpush1.msra.mxu0 0.0
    %4617 = vmatprep.subr.mxu0 0.0
    %4618 = vmatpush1.msra.mxu0 0.0
    %4619 = vmatprep.subr.mxu0 0.0
    %4620 = vmatpush1.msra.mxu0 0.0
    %4621 = vmatprep.subr.mxu0 0.0
    %4622 = vmatpush1.msra.mxu0 0.0
    %4623 = vmatprep.subr.mxu0 0.0
    %4624 = vmatpush1.msra.mxu0 0.0
    %4625 = vmatprep.subr.mxu0 0.0
    %4626 = vmatpush1.msra.mxu0 0.0
    %4627 = vmatprep.subr.mxu0 0.0
    %4628 = vmatpush1.msra.mxu0 0.0
    %4629 = vmatprep.subr.mxu0 0.0
    %4630 = vmatpush1.msra.mxu0 0.0
    %4631 = vmatprep.subr.mxu0 0.0
    %4632 = vmatpush1.msra.mxu0 0.0
    %4633 = vmatprep.subr.mxu0 0.0
    %4634 = vmatpush1.msra.mxu0 0.0
    %4635 = vmatprep.subr.mxu0 0.0
    %4636 = vmatpush1.msra.mxu0 0.0
    %4637 = vmatprep.subr.mxu0 0.0
    %4638 = vmatpush1.msra.mxu0 0.0
    %4639 = vmatprep.subr.mxu0 0.0
    %4640 = vmatpush1.msra.mxu0 0.0
    %4641 = vmatprep.subr.mxu0 0.0
    %4642 = vmatpush1.msra.mxu0 0.0
    %4643 = vmatprep.mubr.f32.mxu0 0.0
    %4644 = vmatmul.mubr.f32.gmra.mrb[0].mxu0 %v4577
    %v4645 = vpop.f32.mrb[0].mxu0
    %v4646 = vadd.f32 0.0, %v4645
    %v4647 = vpop.f32.mrb[0].mxu0
    %4648 = vdwg.mxu0
    %4650 = vset.pattern.permute.xlu0 0
    %4651 = vperm.xlu0 %4650, %v4568
    %v4652 = vpop.permute.xlu0 %4651
    %v4653 = vlaneseq
    %v4654 = vshrl.u32 %v4653, 7
    %v4655 = vsub.s32 %v168, %v4654
    %v4656 = vrot.slane %v4652, %v4655
    %v4657 = vsel %vm2733, %v4656, 0
    %4659 = vmatprep.subr.mxu0 0.0
    %4660 = vmatpush1.msra.mxu0 %v2084
    %4661 = vmatprep.subr.mxu0 0.0
    %4662 = vmatpush1.msra.mxu0 0.0
    %4663 = vmatprep.subr.mxu0 0.0
    %4664 = vmatpush1.msra.mxu0 0.0
    %4665 = vmatprep.subr.mxu0 0.0
    %4666 = vmatpush1.msra.mxu0 0.0
    %4667 = vmatprep.subr.mxu0 0.0
    %4668 = vmatpush1.msra.mxu0 0.0
    %4669 = vmatprep.subr.mxu0 0.0
    %4670 = vmatpush1.msra.mxu0 0.0
    %4671 = vmatprep.subr.mxu0 0.0
    %4672 = vmatpush1.msra.mxu0 0.0
    %4673 = vmatprep.subr.mxu0 0.0
    %4674 = vmatpush1.msra.mxu0 0.0
    %4675 = vmatprep.subr.mxu0 0.0
    %4676 = vmatpush1.msra.mxu0 0.0
    %4677 = vmatprep.subr.mxu0 0.0
    %4678 = vmatpush1.msra.mxu0 0.0
    %4679 = vmatprep.subr.mxu0 0.0
    %4680 = vmatpush1.msra.mxu0 0.0
    %4681 = vmatprep.subr.mxu0 0.0
    %4682 = vmatpush1.msra.mxu0 0.0
    %4683 = vmatprep.subr.mxu0 0.0
    %4684 = vmatpush1.msra.mxu0 0.0
    %4685 = vmatprep.subr.mxu0 0.0
    %4686 = vmatpush1.msra.mxu0 0.0
    %4687 = vmatprep.subr.mxu0 0.0
    %4688 = vmatpush1.msra.mxu0 0.0
    %4689 = vmatprep.subr.mxu0 0.0
    %4690 = vmatpush1.msra.mxu0 0.0
    %4691 = vmatprep.subr.mxu0 0.0
    %4692 = vmatpush1.msra.mxu0 0.0
    %4693 = vmatprep.subr.mxu0 0.0
    %4694 = vmatpush1.msra.mxu0 0.0
    %4695 = vmatprep.subr.mxu0 0.0
    %4696 = vmatpush1.msra.mxu0 0.0
    %4697 = vmatprep.subr.mxu0 0.0
    %4698 = vmatpush1.msra.mxu0 0.0
    %4699 = vmatprep.subr.mxu0 0.0
    %4700 = vmatpush1.msra.mxu0 0.0
    %4701 = vmatprep.subr.mxu0 0.0
    %4702 = vmatpush1.msra.mxu0 0.0
    %4703 = vmatprep.subr.mxu0 0.0
    %4704 = vmatpush1.msra.mxu0 0.0
    %4705 = vmatprep.subr.mxu0 0.0
    %4706 = vmatpush1.msra.mxu0 0.0
    %4707 = vmatprep.subr.mxu0 0.0
    %4708 = vmatpush1.msra.mxu0 0.0
    %4709 = vmatprep.subr.mxu0 0.0
    %4710 = vmatpush1.msra.mxu0 0.0
    %4711 = vmatprep.subr.mxu0 0.0
    %4712 = vmatpush1.msra.mxu0 0.0
    %4713 = vmatprep.subr.mxu0 0.0
    %4714 = vmatpush1.msra.mxu0 0.0
    %4715 = vmatprep.subr.mxu0 0.0
    %4716 = vmatpush1.msra.mxu0 0.0
    %4717 = vmatprep.subr.mxu0 0.0
    %4718 = vmatpush1.msra.mxu0 0.0
    %4719 = vmatprep.subr.mxu0 0.0
    %4720 = vmatpush1.msra.mxu0 0.0
    %4721 = vmatprep.subr.mxu0 0.0
    %4722 = vmatpush1.msra.mxu0 0.0
    %4723 = vmatprep.mubr.f32.mxu0 0.0
    %4724 = vmatmul.mubr.f32.gmra.mrb[0].mxu0 %v4657
    %v4725 = vpop.f32.mrb[0].mxu0
    %v4726 = vadd.f32 0.0, %v4725
    %v4727 = vpop.f32.mrb[0].mxu0
    %4728 = vdwg.mxu0
    %v4731 = vrot.slane %v4726, 7
    %v4732 = vsel %vm2665, %v4731, %v4646
    %v4733 = vsel %vm792, %v4732, 0
    %4735 = vmatprep.subr.mxu0 0.0
    %4736 = vmatpush1.msra.mxu0 %v2499
    %4737 = vmatprep.subr.mxu0 0.0
    %4738 = vmatpush1.msra.mxu0 %v2500
    %4739 = vmatprep.subr.mxu0 0.0
    %4740 = vmatpush1.msra.mxu0 %v2501
    %4741 = vmatprep.subr.mxu0 0.0
    %4742 = vmatpush1.msra.mxu0 %v2502
    %4743 = vmatprep.subr.mxu0 0.0
    %4744 = vmatpush1.msra.mxu0 %v2503
    %4745 = vmatprep.subr.mxu0 0.0
    %4746 = vmatpush1.msra.mxu0 %v2504
    %4747 = vmatprep.subr.mxu0 0.0
    %4748 = vmatpush1.msra.mxu0 %v2505
    %4749 = vmatprep.subr.mxu0 0.0
    %4750 = vmatpush1.msra.mxu0 %v2506
    %4751 = vmatprep.subr.mxu0 0.0
    %4752 = vmatpush1.msra.mxu0 0.0
    %4753 = vmatprep.subr.mxu0 0.0
    %4754 = vmatpush1.msra.mxu0 0.0
    %4755 = vmatprep.subr.mxu0 0.0
    %4756 = vmatpush1.msra.mxu0 0.0
    %4757 = vmatprep.subr.mxu0 0.0
    %4758 = vmatpush1.msra.mxu0 0.0
    %4759 = vmatprep.subr.mxu0 0.0
    %4760 = vmatpush1.msra.mxu0 0.0
    %4761 = vmatprep.subr.mxu0 0.0
    %4762 = vmatpush1.msra.mxu0 0.0
    %4763 = vmatprep.subr.mxu0 0.0
    %4764 = vmatpush1.msra.mxu0 0.0
    %4765 = vmatprep.subr.mxu0 0.0
    %4766 = vmatpush1.msra.mxu0 0.0
    %4767 = vmatprep.subr.mxu0 0.0
    %4768 = vmatpush1.msra.mxu0 0.0
    %4769 = vmatprep.subr.mxu0 0.0
    %4770 = vmatpush1.msra.mxu0 0.0
    %4771 = vmatprep.subr.mxu0 0.0
    %4772 = vmatpush1.msra.mxu0 0.0
    %4773 = vmatprep.subr.mxu0 0.0
    %4774 = vmatpush1.msra.mxu0 0.0
    %4775 = vmatprep.subr.mxu0 0.0
    %4776 = vmatpush1.msra.mxu0 0.0
    %4777 = vmatprep.subr.mxu0 0.0
    %4778 = vmatpush1.msra.mxu0 0.0
    %4779 = vmatprep.subr.mxu0 0.0
    %4780 = vmatpush1.msra.mxu0 0.0
    %4781 = vmatprep.subr.mxu0 0.0
    %4782 = vmatpush1.msra.mxu0 0.0
    %4783 = vmatprep.subr.mxu0 0.0
    %4784 = vmatpush1.msra.mxu0 0.0
    %4785 = vmatprep.subr.mxu0 0.0
    %4786 = vmatpush1.msra.mxu0 0.0
    %4787 = vmatprep.subr.mxu0 0.0
    %4788 = vmatpush1.msra.mxu0 0.0
    %4789 = vmatprep.subr.mxu0 0.0
    %4790 = vmatpush1.msra.mxu0 0.0
    %4791 = vmatprep.subr.mxu0 0.0
    %4792 = vmatpush1.msra.mxu0 0.0
    %4793 = vmatprep.subr.mxu0 0.0
    %4794 = vmatpush1.msra.mxu0 0.0
    %4795 = vmatprep.subr.mxu0 0.0
    %4796 = vmatpush1.msra.mxu0 0.0
    %4797 = vmatprep.subr.mxu0 0.0
    %4798 = vmatpush1.msra.mxu0 0.0
    %4799 = vmatprep.mubr.f32.mxu0 0.0
    %4800 = vmatmul.mubr.f32.gmra.mrb[0].mxu0 %v4733
    %v4801 = vpop.f32.mrb[0].mxu0
    %v4802 = vadd.f32 0.0, %v4801
    %v4803 = vpop.f32.mrb[0].mxu0
    %4804 = vdwg.mxu0
    %v4805 = vadd.f32 %v2378, %v4802
    %v4807 = vunpack.c.l.s4 1983009808
    %v4808 = vunpack.c.0.s8 %v4807
    %v4809 = vlaneseq
    %v4810 = vshrl.u32 %v4809, 7
    %v4811 = vsub.s32 %v4808, %v4810
    %v4812 = vrot.slane %v4453, %v4811
    %4813 = vrot.lane.b32.xlu0 %v4812, 96
    %v4814 = vpop.permute.xlu0 %4813
    %v4816 = vadd.f32 %v4805, %v4814
    %v4817 = vxor.u32 %v4816, 2147483648
    %v4818 = vmul.f32 %v4817, 1.442695
    %v4819 = vpow.pop %v4818
    %v4820 = vadd.f32 %v4819, 1.0
    %v4821 = vrcp.pop %v4820
    %v4822 = vmul.f32 1.0, %v4821
    %4823 = vrot.lane.b32.xlu0 %v4812, 32
    %v4824 = vpop.permute.xlu0 %4823
    %v4826 = vmul.f32 %v4822, %v4824
    %4828 = vrot.lane.b32.xlu0 %v4826, 64
    %v4829 = vpop.permute.xlu0 %4828
    %v4831 = vadd.f32 %v4805, %v4829
    %v4832 = vtanh.pop %v4831
    %v4833 = vsub.f32 1.0, %v4822
    %4835 = vrot.lane.b32.xlu0 %v4832, 96
    %v4836 = vpop.permute.xlu0 %4835
    %v4838 = vmul.f32 %v4833, %v4836
    %v4839 = vmul.f32 %v4822, %v4231
    %v4840 = vadd.f32 %v4838, %v4839
    %4841 = vmatprep.subr.mxu0 0.0
    %4842 = vmatpush1.msra.mxu0 %v2516
    %4843 = vmatprep.subr.mxu0 0.0
    %4844 = vmatpush1.msra.mxu0 %v2517
    %4845 = vmatprep.subr.mxu0 0.0
    %4846 = vmatpush1.msra.mxu0 %v2518
    %4847 = vmatprep.subr.mxu0 0.0
    %4848 = vmatpush1.msra.mxu0 %v2519
    %4849 = vmatprep.subr.mxu0 0.0
    %4850 = vmatpush1.msra.mxu0 %v2520
    %4851 = vmatprep.subr.mxu0 0.0
    %4852 = vmatpush1.msra.mxu0 %v2521
    %4853 = vmatprep.subr.mxu0 0.0
    %4854 = vmatpush1.msra.mxu0 %v2522
    %4855 = vmatprep.subr.mxu0 0.0
    %4856 = vmatpush1.msra.mxu0 %v2523
    %4857 = vmatprep.subr.mxu0 0.0
    %4858 = vmatpush1.msra.mxu0 0.0
    %4859 = vmatprep.subr.mxu0 0.0
    %4860 = vmatpush1.msra.mxu0 0.0
    %4861 = vmatprep.subr.mxu0 0.0
    %4862 = vmatpush1.msra.mxu0 0.0
    %4863 = vmatprep.subr.mxu0 0.0
    %4864 = vmatpush1.msra.mxu0 0.0
    %4865 = vmatprep.subr.mxu0 0.0
    %4866 = vmatpush1.msra.mxu0 0.0
    %4867 = vmatprep.subr.mxu0 0.0
    %4868 = vmatpush1.msra.mxu0 0.0
    %4869 = vmatprep.subr.mxu0 0.0
    %4870 = vmatpush1.msra.mxu0 0.0
    %4871 = vmatprep.subr.mxu0 0.0
    %4872 = vmatpush1.msra.mxu0 0.0
    %4873 = vmatprep.subr.mxu0 0.0
    %4874 = vmatpush1.msra.mxu0 0.0
    %4875 = vmatprep.subr.mxu0 0.0
    %4876 = vmatpush1.msra.mxu0 0.0
    %4877 = vmatprep.subr.mxu0 0.0
    %4878 = vmatpush1.msra.mxu0 0.0
    %4879 = vmatprep.subr.mxu0 0.0
    %4880 = vmatpush1.msra.mxu0 0.0
    %4881 = vmatprep.subr.mxu0 0.0
    %4882 = vmatpush1.msra.mxu0 0.0
    %4883 = vmatprep.subr.mxu0 0.0
    %4884 = vmatpush1.msra.mxu0 0.0
    %4885 = vmatprep.subr.mxu0 0.0
    %4886 = vmatpush1.msra.mxu0 0.0
    %4887 = vmatprep.subr.mxu0 0.0
    %4888 = vmatpush1.msra.mxu0 0.0
    %4889 = vmatprep.subr.mxu0 0.0
    %4890 = vmatpush1.msra.mxu0 0.0
    %4891 = vmatprep.subr.mxu0 0.0
    %4892 = vmatpush1.msra.mxu0 0.0
    %4893 = vmatprep.subr.mxu0 0.0
    %4894 = vmatpush1.msra.mxu0 0.0
    %4895 = vmatprep.subr.mxu0 0.0
    %4896 = vmatpush1.msra.mxu0 0.0
    %4897 = vmatprep.subr.mxu0 0.0
    %4898 = vmatpush1.msra.mxu0 0.0
    %4899 = vmatprep.subr.mxu0 0.0
    %4900 = vmatpush1.msra.mxu0 0.0
    %4901 = vmatprep.subr.mxu0 0.0
    %4902 = vmatpush1.msra.mxu0 0.0
    %4903 = vmatprep.subr.mxu0 0.0
    %4904 = vmatpush1.msra.mxu0 0.0
    %4905 = vmatprep.mubr.f32.mxu0 0.0
    %4906 = vmatmul.mubr.f32.gmra.mrb[0].mxu0 %v4733
    %v4907 = vpop.f32.mrb[0].mxu0
    %v4908 = vadd.f32 0.0, %v4907
    %v4909 = vpop.f32.mrb[0].mxu0
    %4910 = vdwg.mxu0
    %v4913 = vunpack.c.l.s4 1983009808
    %v4914 = vunpack.c.0.s8 %v4913
    %v4915 = vlaneseq
    %v4916 = vshrl.u32 %v4915, 7
    %v4917 = vsub.s32 %v4914, %v4916
    %v4918 = vrot.slane %v4840, %v4917
    %4919 = vrot.lane.b32.xlu0 %v4918, 96
    %v4920 = vpop.permute.xlu0 %4919
    %v4921 = vsel %vm235, %v4920, 0
    %4923 = vmatprep.subr.mxu0 0.0
    %4924 = vmatpush1.msra.mxu0 %v2512
    %4925 = vmatprep.subr.mxu0 0.0
    %4926 = vmatpush1.msra.mxu0 %v2513
    %4927 = vmatprep.subr.mxu0 0.0
    %4928 = vmatpush1.msra.mxu0 %v2514
    %4929 = vmatprep.subr.mxu0 0.0
    %4930 = vmatpush1.msra.mxu0 %v2515
    %4931 = vmatprep.subr.mxu0 0.0
    %4932 = vmatpush1.msra.mxu0 0.0
    %4933 = vmatprep.subr.mxu0 0.0
    %4934 = vmatpush1.msra.mxu0 0.0
    %4935 = vmatprep.subr.mxu0 0.0
    %4936 = vmatpush1.msra.mxu0 0.0
    %4937 = vmatprep.subr.mxu0 0.0
    %4938 = vmatpush1.msra.mxu0 0.0
    %4939 = vmatprep.subr.mxu0 0.0
    %4940 = vmatpush1.msra.mxu0 0.0
    %4941 = vmatprep.subr.mxu0 0.0
    %4942 = vmatpush1.msra.mxu0 0.0
    %4943 = vmatprep.subr.mxu0 0.0
    %4944 = vmatpush1.msra.mxu0 0.0
    %4945 = vmatprep.subr.mxu0 0.0
    %4946 = vmatpush1.msra.mxu0 0.0
    %4947 = vmatprep.subr.mxu0 0.0
    %4948 = vmatpush1.msra.mxu0 0.0
    %4949 = vmatprep.subr.mxu0 0.0
    %4950 = vmatpush1.msra.mxu0 0.0
    %4951 = vmatprep.subr.mxu0 0.0
    %4952 = vmatpush1.msra.mxu0 0.0
    %4953 = vmatprep.subr.mxu0 0.0
    %4954 = vmatpush1.msra.mxu0 0.0
    %4955 = vmatprep.subr.mxu0 0.0
    %4956 = vmatpush1.msra.mxu0 0.0
    %4957 = vmatprep.subr.mxu0 0.0
    %4958 = vmatpush1.msra.mxu0 0.0
    %4959 = vmatprep.subr.mxu0 0.0
    %4960 = vmatpush1.msra.mxu0 0.0
    %4961 = vmatprep.subr.mxu0 0.0
    %4962 = vmatpush1.msra.mxu0 0.0
    %4963 = vmatprep.subr.mxu0 0.0
    %4964 = vmatpush1.msra.mxu0 0.0
    %4965 = vmatprep.subr.mxu0 0.0
    %4966 = vmatpush1.msra.mxu0 0.0
    %4967 = vmatprep.subr.mxu0 0.0
    %4968 = vmatpush1.msra.mxu0 0.0
    %4969 = vmatprep.subr.mxu0 0.0
    %4970 = vmatpush1.msra.mxu0 0.0
    %4971 = vmatprep.subr.mxu0 0.0
    %4972 = vmatpush1.msra.mxu0 0.0
    %4973 = vmatprep.subr.mxu0 0.0
    %4974 = vmatpush1.msra.mxu0 0.0
    %4975 = vmatprep.subr.mxu0 0.0
    %4976 = vmatpush1.msra.mxu0 0.0
    %4977 = vmatprep.subr.mxu0 0.0
    %4978 = vmatpush1.msra.mxu0 0.0
    %4979 = vmatprep.subr.mxu0 0.0
    %4980 = vmatpush1.msra.mxu0 0.0
    %4981 = vmatprep.subr.mxu0 0.0
    %4982 = vmatpush1.msra.mxu0 0.0
    %4983 = vmatprep.subr.mxu0 0.0
    %4984 = vmatpush1.msra.mxu0 0.0
    %4985 = vmatprep.subr.mxu0 0.0
    %4986 = vmatpush1.msra.mxu0 0.0
    %4987 = vmatprep.mubr.f32.mxu0 0.0
    %4988 = vmatmul.mubr.f32.gmra.mrb[0].mxu0 %v4921
    %v4989 = vpop.f32.mrb[0].mxu0
    %v4990 = vadd.f32 %v4908, %v4989
    %v4991 = vpop.f32.mrb[0].mxu0
    %4992 = vdwg.mxu0
    %v4993 = vadd.f32 %v4990, %v2486
    %v4994 = vadd.f32 %v4993, %v3165
    %4995 = vmatprep.subr.mxu0 0.0
    %4996 = vmatpush1.msra.mxu0 %v2507
    %4997 = vmatprep.subr.mxu0 0.0
    %4998 = vmatpush1.msra.mxu0 %v2508
    %4999 = vmatprep.subr.mxu0 0.0
    %5000 = vmatpush1.msra.mxu0 %v2509
    %5001 = vmatprep.subr.mxu0 0.0
    %5002 = vmatpush1.msra.mxu0 %v2510
    %5003 = vmatprep.subr.mxu0 0.0
    %5004 = vmatpush1.msra.mxu0 0.0
    %5005 = vmatprep.subr.mxu0 0.0
    %5006 = vmatpush1.msra.mxu0 0.0
    %5007 = vmatprep.subr.mxu0 0.0
    %5008 = vmatpush1.msra.mxu0 0.0
    %5009 = vmatprep.subr.mxu0 0.0
    %5010 = vmatpush1.msra.mxu0 0.0
    %5011 = vmatprep.subr.mxu0 0.0
    %5012 = vmatpush1.msra.mxu0 0.0
    %5013 = vmatprep.subr.mxu0 0.0
    %5014 = vmatpush1.msra.mxu0 0.0
    %5015 = vmatprep.subr.mxu0 0.0
    %5016 = vmatpush1.msra.mxu0 0.0
    %5017 = vmatprep.subr.mxu0 0.0
    %5018 = vmatpush1.msra.mxu0 0.0
    %5019 = vmatprep.subr.mxu0 0.0
    %5020 = vmatpush1.msra.mxu0 0.0
    %5021 = vmatprep.subr.mxu0 0.0
    %5022 = vmatpush1.msra.mxu0 0.0
    %5023 = vmatprep.subr.mxu0 0.0
    %5024 = vmatpush1.msra.mxu0 0.0
    %5025 = vmatprep.subr.mxu0 0.0
    %5026 = vmatpush1.msra.mxu0 0.0
    %5027 = vmatprep.subr.mxu0 0.0
    %5028 = vmatpush1.msra.mxu0 0.0
    %5029 = vmatprep.subr.mxu0 0.0
    %5030 = vmatpush1.msra.mxu0 0.0
    %5031 = vmatprep.subr.mxu0 0.0
    %5032 = vmatpush1.msra.mxu0 0.0
    %5033 = vmatprep.subr.mxu0 0.0
    %5034 = vmatpush1.msra.mxu0 0.0
    %5035 = vmatprep.subr.mxu0 0.0
    %5036 = vmatpush1.msra.mxu0 0.0
    %5037 = vmatprep.subr.mxu0 0.0
    %5038 = vmatpush1.msra.mxu0 0.0
    %5039 = vmatprep.subr.mxu0 0.0
    %5040 = vmatpush1.msra.mxu0 0.0
    %5041 = vmatprep.subr.mxu0 0.0
    %5042 = vmatpush1.msra.mxu0 0.0
    %5043 = vmatprep.subr.mxu0 0.0
    %5044 = vmatpush1.msra.mxu0 0.0
    %5045 = vmatprep.subr.mxu0 0.0
    %5046 = vmatpush1.msra.mxu0 0.0
    %5047 = vmatprep.subr.mxu0 0.0
    %5048 = vmatpush1.msra.mxu0 0.0
    %5049 = vmatprep.subr.mxu0 0.0
    %5050 = vmatpush1.msra.mxu0 0.0
    %5051 = vmatprep.subr.mxu0 0.0
    %5052 = vmatpush1.msra.mxu0 0.0
    %5053 = vmatprep.subr.mxu0 0.0
    %5054 = vmatpush1.msra.mxu0 0.0
    %5055 = vmatprep.subr.mxu0 0.0
    %5056 = vmatpush1.msra.mxu0 0.0
    %5057 = vmatprep.subr.mxu0 0.0
    %5058 = vmatpush1.msra.mxu0 0.0
    %5059 = vmatprep.mubr.f32.mxu0 0.0
    %5060 = vmatmul.mubr.f32.gmra.mrb[0].mxu0 %v4921
    %v5061 = vpop.f32.mrb[0].mxu0
    %v5062 = vadd.f32 %v2529, %v5061
    %v5063 = vpop.f32.mrb[0].mxu0
    %5064 = vdwg.mxu0
    %v5067 = vunpack.c.l.s4 1966171168
    %v5068 = vunpack.c.0.s8 %v5067
    %v5069 = vlaneseq
    %v5070 = vshrl.u32 %v5069, 7
    %v5071 = vsub.s32 %v5068, %v5070
    %v5072 = vrot.slane %v5062, %v5071
    %v5073 = vcombine.high %v5072, %v5072
    %v5075 = vunpack.c.l.s4 1966171168
    %v5076 = vunpack.c.0.s8 %v5075
    %v5077 = vlaneseq
    %v5078 = vshrl.u32 %v5077, 7
    %v5079 = vsub.s32 %v5076, %v5078
    %v5080 = vrot.slane %v5072, %v5079
    %v5082 = vunpack.c.l.s4 1966171168
    %v5083 = vunpack.c.0.s8 %v5082
    %v5084 = vlaneseq
    %v5085 = vshrl.u32 %v5084, 7
    %v5086 = vsub.s32 %v5083, %v5085
    %v5087 = vrot.slane %v5073, %v5086
    %v5088 = vlaneseq
    %v5089 = vshrl.u32 %v5088, 7
    %v5090 = vsub.s32 0, %v5089
    %v5091 = vrot.slane %v5080, %v5090
    %v5092 = vlaneseq
    %v5093 = vshrl.u32 %v5092, 7
    %v5094 = vsub.s32 0, %v5093
    %v5095 = vrot.slane %v5087, %v5094
    %v5098 = vadd.f32 %v2261, %v5091
    %v5099 = vadd.f32 %v2266, %v5095
    %v5100 = vtanh.pop %v5098
    %v5101 = vtanh.pop %v5099
    %v5102 = vmul.f32 %v5100, %v2645
    %v5103 = vmul.f32 %v5101, %v2645
    %v5104 = vsel %vm235, %v5102, 0.0
    %5105 = vadd.xlane.f32.xlu0 %v5104
    %v5106 = vpop.xlane.xlu0 %5105
    %v5107 = vsel %vm235, %v5103, 0.0
    %5108 = vadd.xlane.f32.xlu0 %v5107
    %v5109 = vpop.xlane.xlu0 %5108
    %v5112 = vlaneseq
    %v5113 = vshrl.u32 %v5112, 7
    %v5114 = vsub.s32 %v168, %v5113
    %v5115 = vrot.slane %v5106, %v5114
    %v5116 = vlaneseq
    %v5117 = vshrl.u32 %v5116, 7
    %v5118 = vsub.s32 %v168, %v5117
    %v5119 = vrot.slane %v5109, %v5118
    %v5120 = vsel %vm2665, %v5119, %v5115
    %v5122 = vsel %vm2668, %v5120, -inf
    %5123 = vmax.xlane.f32.xlu0 %v5122
    %v5124 = vpop.xlane.xlu0 %5123
    %v5126 = vlaneseq
    %v5127 = vshrl.u32 %v5126, 7
    %v5128 = vsub.s32 0, %v5127
    %v5129 = vrot.slane %v5124, %v5128
    %v5130 = vlaneseq
    %v5131 = vshrl.u32 %v5130, 7
    %v5132 = vsub.s32 1, %v5131
    %v5133 = vrot.slane %v5124, %v5132
    %v5136 = vsub.f32 %v5106, %v5129
    %v5137 = vsub.f32 %v5109, %v5133
    %v5138 = vmul.f32 %v5136, 1.442695
    %v5139 = vpow.pop %v5138
    %v5140 = vmul.f32 %v5137, 1.442695
    %v5141 = vpow.pop %v5140
    %5144 = vset.pattern.permute.xlu0 0
    %5145 = vperm.xlu0 %5144, %v5139
    %v5146 = vpop.permute.xlu0 %5145
    %5147 = vset.pattern.permute.xlu0 0
    %5148 = vperm.xlu0 %5147, %v5141
    %v5149 = vpop.permute.xlu0 %5148
    %v5150 = vlaneseq
    %v5151 = vshrl.u32 %v5150, 7
    %v5152 = vsub.s32 %v168, %v5151
    %v5153 = vrot.slane %v5146, %v5152
    %v5154 = vlaneseq
    %v5155 = vshrl.u32 %v5154, 7
    %v5156 = vsub.s32 %v168, %v5155
    %v5157 = vrot.slane %v5149, %v5156
    %v5158 = vsel %vm2665, %v5157, %v5153
    %v5160 = vsel %vm2668, %v5158, 0.0
    %5161 = vadd.xlane.f32.xlu0 %v5160
    %v5162 = vpop.xlane.xlu0 %5161
    %v5164 = vlaneseq
    %v5165 = vshrl.u32 %v5164, 7
    %v5166 = vsub.s32 0, %v5165
    %v5167 = vrot.slane %v5162, %v5166
    %v5168 = vlaneseq
    %v5169 = vshrl.u32 %v5168, 7
    %v5170 = vsub.s32 1, %v5169
    %v5171 = vrot.slane %v5162, %v5170
    %v5174 = vrcp.pop %v5167
    %v5175 = vmul.f32 %v5139, %v5174
    %v5176 = vrcp.pop %v5171
    %v5177 = vmul.f32 %v5141, %v5176
    %5179 = vset.pattern.permute.xlu0 0
    %5180 = vperm.xlu0 %5179, %v5175
    %v5181 = vpop.permute.xlu0 %5180
    %v5182 = vlaneseq
    %v5183 = vshrl.u32 %v5182, 7
    %v5184 = vsub.s32 %v168, %v5183
    %v5185 = vrot.slane %v5181, %v5184
    %v5186 = vsel %vm2733, %v5185, 0
    %5188 = vmatprep.subr.mxu0 0.0
    %5189 = vmatpush1.msra.mxu0 %v2083
    %5190 = vmatprep.subr.mxu0 0.0
    %5191 = vmatpush1.msra.mxu0 0.0
    %5192 = vmatprep.subr.mxu0 0.0
    %5193 = vmatpush1.msra.mxu0 0.0
    %5194 = vmatprep.subr.mxu0 0.0
    %5195 = vmatpush1.msra.mxu0 0.0
    %5196 = vmatprep.subr.mxu0 0.0
    %5197 = vmatpush1.msra.mxu0 0.0
    %5198 = vmatprep.subr.mxu0 0.0
    %5199 = vmatpush1.msra.mxu0 0.0
    %5200 = vmatprep.subr.mxu0 0.0
    %5201 = vmatpush1.msra.mxu0 0.0
    %5202 = vmatprep.subr.mxu0 0.0
    %5203 = vmatpush1.msra.mxu0 0.0
    %5204 = vmatprep.subr.mxu0 0.0
    %5205 = vmatpush1.msra.mxu0 0.0
    %5206 = vmatprep.subr.mxu0 0.0
    %5207 = vmatpush1.msra.mxu0 0.0
    %5208 = vmatprep.subr.mxu0 0.0
    %5209 = vmatpush1.msra.mxu0 0.0
    %5210 = vmatprep.subr.mxu0 0.0
    %5211 = vmatpush1.msra.mxu0 0.0
    %5212 = vmatprep.subr.mxu0 0.0
    %5213 = vmatpush1.msra.mxu0 0.0
    %5214 = vmatprep.subr.mxu0 0.0
    %5215 = vmatpush1.msra.mxu0 0.0
    %5216 = vmatprep.subr.mxu0 0.0
    %5217 = vmatpush1.msra.mxu0 0.0
    %5218 = vmatprep.subr.mxu0 0.0
    %5219 = vmatpush1.msra.mxu0 0.0
    %5220 = vmatprep.subr.mxu0 0.0
    %5221 = vmatpush1.msra.mxu0 0.0
    %5222 = vmatprep.subr.mxu0 0.0
    %5223 = vmatpush1.msra.mxu0 0.0
    %5224 = vmatprep.subr.mxu0 0.0
    %5225 = vmatpush1.msra.mxu0 0.0
    %5226 = vmatprep.subr.mxu0 0.0
    %5227 = vmatpush1.msra.mxu0 0.0
    %5228 = vmatprep.subr.mxu0 0.0
    %5229 = vmatpush1.msra.mxu0 0.0
    %5230 = vmatprep.subr.mxu0 0.0
    %5231 = vmatpush1.msra.mxu0 0.0
    %5232 = vmatprep.subr.mxu0 0.0
    %5233 = vmatpush1.msra.mxu0 0.0
    %5234 = vmatprep.subr.mxu0 0.0
    %5235 = vmatpush1.msra.mxu0 0.0
    %5236 = vmatprep.subr.mxu0 0.0
    %5237 = vmatpush1.msra.mxu0 0.0
    %5238 = vmatprep.subr.mxu0 0.0
    %5239 = vmatpush1.msra.mxu0 0.0
    %5240 = vmatprep.subr.mxu0 0.0
    %5241 = vmatpush1.msra.mxu0 0.0
    %5242 = vmatprep.subr.mxu0 0.0
    %5243 = vmatpush1.msra.mxu0 0.0
    %5244 = vmatprep.subr.mxu0 0.0
    %5245 = vmatpush1.msra.mxu0 0.0
    %5246 = vmatprep.subr.mxu0 0.0
    %5247 = vmatpush1.msra.mxu0 0.0
    %5248 = vmatprep.subr.mxu0 0.0
    %5249 = vmatpush1.msra.mxu0 0.0
    %5250 = vmatprep.subr.mxu0 0.0
    %5251 = vmatpush1.msra.mxu0 0.0
    %5252 = vmatprep.mubr.f32.mxu0 0.0
    %5253 = vmatmul.mubr.f32.gmra.mrb[0].mxu0 %v5186
    %v5254 = vpop.f32.mrb[0].mxu0
    %v5255 = vadd.f32 0.0, %v5254
    %v5256 = vpop.f32.mrb[0].mxu0
    %5257 = vdwg.mxu0
    %5259 = vset.pattern.permute.xlu0 0
    %5260 = vperm.xlu0 %5259, %v5177
    %v5261 = vpop.permute.xlu0 %5260
    %v5262 = vlaneseq
    %v5263 = vshrl.u32 %v5262, 7
    %v5264 = vsub.s32 %v168, %v5263
    %v5265 = vrot.slane %v5261, %v5264
    %v5266 = vsel %vm2733, %v5265, 0
    %5268 = vmatprep.subr.mxu0 0.0
    %5269 = vmatpush1.msra.mxu0 %v2084
    %5270 = vmatprep.subr.mxu0 0.0
    %5271 = vmatpush1.msra.mxu0 0.0
    %5272 = vmatprep.subr.mxu0 0.0
    %5273 = vmatpush1.msra.mxu0 0.0
    %5274 = vmatprep.subr.mxu0 0.0
    %5275 = vmatpush1.msra.mxu0 0.0
    %5276 = vmatprep.subr.mxu0 0.0
    %5277 = vmatpush1.msra.mxu0 0.0
    %5278 = vmatprep.subr.mxu0 0.0
    %5279 = vmatpush1.msra.mxu0 0.0
    %5280 = vmatprep.subr.mxu0 0.0
    %5281 = vmatpush1.msra.mxu0 0.0
    %5282 = vmatprep.subr.mxu0 0.0
    %5283 = vmatpush1.msra.mxu0 0.0
    %5284 = vmatprep.subr.mxu0 0.0
    %5285 = vmatpush1.msra.mxu0 0.0
    %5286 = vmatprep.subr.mxu0 0.0
    %5287 = vmatpush1.msra.mxu0 0.0
    %5288 = vmatprep.subr.mxu0 0.0
    %5289 = vmatpush1.msra.mxu0 0.0
    %5290 = vmatprep.subr.mxu0 0.0
    %5291 = vmatpush1.msra.mxu0 0.0
    %5292 = vmatprep.subr.mxu0 0.0
    %5293 = vmatpush1.msra.mxu0 0.0
    %5294 = vmatprep.subr.mxu0 0.0
    %5295 = vmatpush1.msra.mxu0 0.0
    %5296 = vmatprep.subr.mxu0 0.0
    %5297 = vmatpush1.msra.mxu0 0.0
    %5298 = vmatprep.subr.mxu0 0.0
    %5299 = vmatpush1.msra.mxu0 0.0
    %5300 = vmatprep.subr.mxu0 0.0
    %5301 = vmatpush1.msra.mxu0 0.0
    %5302 = vmatprep.subr.mxu0 0.0
    %5303 = vmatpush1.msra.mxu0 0.0
    %5304 = vmatprep.subr.mxu0 0.0
    %5305 = vmatpush1.msra.mxu0 0.0
    %5306 = vmatprep.subr.mxu0 0.0
    %5307 = vmatpush1.msra.mxu0 0.0
    %5308 = vmatprep.subr.mxu0 0.0
    %5309 = vmatpush1.msra.mxu0 0.0
    %5310 = vmatprep.subr.mxu0 0.0
    %5311 = vmatpush1.msra.mxu0 0.0
    %5312 = vmatprep.subr.mxu0 0.0
    %5313 = vmatpush1.msra.mxu0 0.0
    %5314 = vmatprep.subr.mxu0 0.0
    %5315 = vmatpush1.msra.mxu0 0.0
    %5316 = vmatprep.subr.mxu0 0.0
    %5317 = vmatpush1.msra.mxu0 0.0
    %5318 = vmatprep.subr.mxu0 0.0
    %5319 = vmatpush1.msra.mxu0 0.0
    %5320 = vmatprep.subr.mxu0 0.0
    %5321 = vmatpush1.msra.mxu0 0.0
    %5322 = vmatprep.subr.mxu0 0.0
    %5323 = vmatpush1.msra.mxu0 0.0
    %5324 = vmatprep.subr.mxu0 0.0
    %5325 = vmatpush1.msra.mxu0 0.0
    %5326 = vmatprep.subr.mxu0 0.0
    %5327 = vmatpush1.msra.mxu0 0.0
    %5328 = vmatprep.subr.mxu0 0.0
    %5329 = vmatpush1.msra.mxu0 0.0
    %5330 = vmatprep.subr.mxu0 0.0
    %5331 = vmatpush1.msra.mxu0 0.0
    %5332 = vmatprep.mubr.f32.mxu0 0.0
    %5333 = vmatmul.mubr.f32.gmra.mrb[0].mxu0 %v5266
    %v5334 = vpop.f32.mrb[0].mxu0
    %v5335 = vadd.f32 0.0, %v5334
    %v5336 = vpop.f32.mrb[0].mxu0
    %5337 = vdwg.mxu0
    %v5340 = vrot.slane %v5335, 7
    %v5341 = vsel %vm2665, %v5340, %v5255
    %v5342 = vsel %vm792, %v5341, 0
    %5344 = vmatprep.subr.mxu0 0.0
    %5345 = vmatpush1.msra.mxu0 %v2499
    %5346 = vmatprep.subr.mxu0 0.0
    %5347 = vmatpush1.msra.mxu0 %v2500
    %5348 = vmatprep.subr.mxu0 0.0
    %5349 = vmatpush1.msra.mxu0 %v2501
    %5350 = vmatprep.subr.mxu0 0.0
    %5351 = vmatpush1.msra.mxu0 %v2502
    %5352 = vmatprep.subr.mxu0 0.0
    %5353 = vmatpush1.msra.mxu0 %v2503
    %5354 = vmatprep.subr.mxu0 0.0
    %5355 = vmatpush1.msra.mxu0 %v2504
    %5356 = vmatprep.subr.mxu0 0.0
    %5357 = vmatpush1.msra.mxu0 %v2505
    %5358 = vmatprep.subr.mxu0 0.0
    %5359 = vmatpush1.msra.mxu0 %v2506
    %5360 = vmatprep.subr.mxu0 0.0
    %5361 = vmatpush1.msra.mxu0 0.0
    %5362 = vmatprep.subr.mxu0 0.0
    %5363 = vmatpush1.msra.mxu0 0.0
    %5364 = vmatprep.subr.mxu0 0.0
    %5365 = vmatpush1.msra.mxu0 0.0
    %5366 = vmatprep.subr.mxu0 0.0
    %5367 = vmatpush1.msra.mxu0 0.0
    %5368 = vmatprep.subr.mxu0 0.0
    %5369 = vmatpush1.msra.mxu0 0.0
    %5370 = vmatprep.subr.mxu0 0.0
    %5371 = vmatpush1.msra.mxu0 0.0
    %5372 = vmatprep.subr.mxu0 0.0
    %5373 = vmatpush1.msra.mxu0 0.0
    %5374 = vmatprep.subr.mxu0 0.0
    %5375 = vmatpush1.msra.mxu0 0.0
    %5376 = vmatprep.subr.mxu0 0.0
    %5377 = vmatpush1.msra.mxu0 0.0
    %5378 = vmatprep.subr.mxu0 0.0
    %5379 = vmatpush1.msra.mxu0 0.0
    %5380 = vmatprep.subr.mxu0 0.0
    %5381 = vmatpush1.msra.mxu0 0.0
    %5382 = vmatprep.subr.mxu0 0.0
    %5383 = vmatpush1.msra.mxu0 0.0
    %5384 = vmatprep.subr.mxu0 0.0
    %5385 = vmatpush1.msra.mxu0 0.0
    %5386 = vmatprep.subr.mxu0 0.0
    %5387 = vmatpush1.msra.mxu0 0.0
    %5388 = vmatprep.subr.mxu0 0.0
    %5389 = vmatpush1.msra.mxu0 0.0
    %5390 = vmatprep.subr.mxu0 0.0
    %5391 = vmatpush1.msra.mxu0 0.0
    %5392 = vmatprep.subr.mxu0 0.0
    %5393 = vmatpush1.msra.mxu0 0.0
    %5394 = vmatprep.subr.mxu0 0.0
    %5395 = vmatpush1.msra.mxu0 0.0
    %5396 = vmatprep.subr.mxu0 0.0
    %5397 = vmatpush1.msra.mxu0 0.0
    %5398 = vmatprep.subr.mxu0 0.0
    %5399 = vmatpush1.msra.mxu0 0.0
    %5400 = vmatprep.subr.mxu0 0.0
    %5401 = vmatpush1.msra.mxu0 0.0
    %5402 = vmatprep.subr.mxu0 0.0
    %5403 = vmatpush1.msra.mxu0 0.0
    %5404 = vmatprep.subr.mxu0 0.0
    %5405 = vmatpush1.msra.mxu0 0.0
    %5406 = vmatprep.subr.mxu0 0.0
    %5407 = vmatpush1.msra.mxu0 0.0
    %5408 = vmatprep.mubr.f32.mxu0 0.0
    %5409 = vmatmul.mubr.f32.gmra.mrb[0].mxu0 %v5342
    %v5410 = vpop.f32.mrb[0].mxu0
    %v5411 = vadd.f32 0.0, %v5410
    %v5412 = vpop.f32.mrb[0].mxu0
    %5413 = vdwg.mxu0
    %v5414 = vadd.f32 %v2385, %v5411
    %v5416 = vunpack.c.l.s4 1983009808
    %v5417 = vunpack.c.0.s8 %v5416
    %v5418 = vlaneseq
    %v5419 = vshrl.u32 %v5418, 7
    %v5420 = vsub.s32 %v5417, %v5419
    %v5421 = vrot.slane %v5062, %v5420
    %5422 = vrot.lane.b32.xlu0 %v5421, 96
    %v5423 = vpop.permute.xlu0 %5422
    %v5425 = vadd.f32 %v5414, %v5423
    %v5426 = vxor.u32 %v5425, 2147483648
    %v5427 = vmul.f32 %v5426, 1.442695
    %v5428 = vpow.pop %v5427
    %v5429 = vadd.f32 %v5428, 1.0
    %v5430 = vrcp.pop %v5429
    %v5431 = vmul.f32 1.0, %v5430
    %5432 = vrot.lane.b32.xlu0 %v5421, 32
    %v5433 = vpop.permute.xlu0 %5432
    %v5435 = vmul.f32 %v5431, %v5433
    %5437 = vrot.lane.b32.xlu0 %v5435, 64
    %v5438 = vpop.permute.xlu0 %5437
    %v5440 = vadd.f32 %v5414, %v5438
    %v5441 = vtanh.pop %v5440
    %v5442 = vsub.f32 1.0, %v5431
    %5444 = vrot.lane.b32.xlu0 %v5441, 96
    %v5445 = vpop.permute.xlu0 %5444
    %v5447 = vmul.f32 %v5442, %v5445
    %v5448 = vmul.f32 %v5431, %v4840
    %v5449 = vadd.f32 %v5447, %v5448
    %5450 = vmatprep.subr.mxu0 0.0
    %5451 = vmatpush1.msra.mxu0 %v2516
    %5452 = vmatprep.subr.mxu0 0.0
    %5453 = vmatpush1.msra.mxu0 %v2517
    %5454 = vmatprep.subr.mxu0 0.0
    %5455 = vmatpush1.msra.mxu0 %v2518
    %5456 = vmatprep.subr.mxu0 0.0
    %5457 = vmatpush1.msra.mxu0 %v2519
    %5458 = vmatprep.subr.mxu0 0.0
    %5459 = vmatpush1.msra.mxu0 %v2520
    %5460 = vmatprep.subr.mxu0 0.0
    %5461 = vmatpush1.msra.mxu0 %v2521
    %5462 = vmatprep.subr.mxu0 0.0
    %5463 = vmatpush1.msra.mxu0 %v2522
    %5464 = vmatprep.subr.mxu0 0.0
    %5465 = vmatpush1.msra.mxu0 %v2523
    %5466 = vmatprep.subr.mxu0 0.0
    %5467 = vmatpush1.msra.mxu0 0.0
    %5468 = vmatprep.subr.mxu0 0.0
    %5469 = vmatpush1.msra.mxu0 0.0
    %5470 = vmatprep.subr.mxu0 0.0
    %5471 = vmatpush1.msra.mxu0 0.0
    %5472 = vmatprep.subr.mxu0 0.0
    %5473 = vmatpush1.msra.mxu0 0.0
    %5474 = vmatprep.subr.mxu0 0.0
    %5475 = vmatpush1.msra.mxu0 0.0
    %5476 = vmatprep.subr.mxu0 0.0
    %5477 = vmatpush1.msra.mxu0 0.0
    %5478 = vmatprep.subr.mxu0 0.0
    %5479 = vmatpush1.msra.mxu0 0.0
    %5480 = vmatprep.subr.mxu0 0.0
    %5481 = vmatpush1.msra.mxu0 0.0
    %5482 = vmatprep.subr.mxu0 0.0
    %5483 = vmatpush1.msra.mxu0 0.0
    %5484 = vmatprep.subr.mxu0 0.0
    %5485 = vmatpush1.msra.mxu0 0.0
    %5486 = vmatprep.subr.mxu0 0.0
    %5487 = vmatpush1.msra.mxu0 0.0
    %5488 = vmatprep.subr.mxu0 0.0
    %5489 = vmatpush1.msra.mxu0 0.0
    %5490 = vmatprep.subr.mxu0 0.0
    %5491 = vmatpush1.msra.mxu0 0.0
    %5492 = vmatprep.subr.mxu0 0.0
    %5493 = vmatpush1.msra.mxu0 0.0
    %5494 = vmatprep.subr.mxu0 0.0
    %5495 = vmatpush1.msra.mxu0 0.0
    %5496 = vmatprep.subr.mxu0 0.0
    %5497 = vmatpush1.msra.mxu0 0.0
    %5498 = vmatprep.subr.mxu0 0.0
    %5499 = vmatpush1.msra.mxu0 0.0
    %5500 = vmatprep.subr.mxu0 0.0
    %5501 = vmatpush1.msra.mxu0 0.0
    %5502 = vmatprep.subr.mxu0 0.0
    %5503 = vmatpush1.msra.mxu0 0.0
    %5504 = vmatprep.subr.mxu0 0.0
    %5505 = vmatpush1.msra.mxu0 0.0
    %5506 = vmatprep.subr.mxu0 0.0
    %5507 = vmatpush1.msra.mxu0 0.0
    %5508 = vmatprep.subr.mxu0 0.0
    %5509 = vmatpush1.msra.mxu0 0.0
    %5510 = vmatprep.subr.mxu0 0.0
    %5511 = vmatpush1.msra.mxu0 0.0
    %5512 = vmatprep.subr.mxu0 0.0
    %5513 = vmatpush1.msra.mxu0 0.0
    %5514 = vmatprep.mubr.f32.mxu0 0.0
    %5515 = vmatmul.mubr.f32.gmra.mrb[0].mxu0 %v5342
    %v5516 = vpop.f32.mrb[0].mxu0
    %v5517 = vadd.f32 0.0, %v5516
    %v5518 = vpop.f32.mrb[0].mxu0
    %5519 = vdwg.mxu0
    %v5522 = vunpack.c.l.s4 1983009808
    %v5523 = vunpack.c.0.s8 %v5522
    %v5524 = vlaneseq
    %v5525 = vshrl.u32 %v5524, 7
    %v5526 = vsub.s32 %v5523, %v5525
    %v5527 = vrot.slane %v5449, %v5526
    %5528 = vrot.lane.b32.xlu0 %v5527, 96
    %v5529 = vpop.permute.xlu0 %5528
    %v5530 = vsel %vm235, %v5529, 0
    %5532 = vmatprep.subr.mxu0 0.0
    %5533 = vmatpush1.msra.mxu0 %v2512
    %5534 = vmatprep.subr.mxu0 0.0
    %5535 = vmatpush1.msra.mxu0 %v2513
    %5536 = vmatprep.subr.mxu0 0.0
    %5537 = vmatpush1.msra.mxu0 %v2514
    %5538 = vmatprep.subr.mxu0 0.0
    %5539 = vmatpush1.msra.mxu0 %v2515
    %5540 = vmatprep.subr.mxu0 0.0
    %5541 = vmatpush1.msra.mxu0 0.0
    %5542 = vmatprep.subr.mxu0 0.0
    %5543 = vmatpush1.msra.mxu0 0.0
    %5544 = vmatprep.subr.mxu0 0.0
    %5545 = vmatpush1.msra.mxu0 0.0
    %5546 = vmatprep.subr.mxu0 0.0
    %5547 = vmatpush1.msra.mxu0 0.0
    %5548 = vmatprep.subr.mxu0 0.0
    %5549 = vmatpush1.msra.mxu0 0.0
    %5550 = vmatprep.subr.mxu0 0.0
    %5551 = vmatpush1.msra.mxu0 0.0
    %5552 = vmatprep.subr.mxu0 0.0
    %5553 = vmatpush1.msra.mxu0 0.0
    %5554 = vmatprep.subr.mxu0 0.0
    %5555 = vmatpush1.msra.mxu0 0.0
    %5556 = vmatprep.subr.mxu0 0.0
    %5557 = vmatpush1.msra.mxu0 0.0
    %5558 = vmatprep.subr.mxu0 0.0
    %5559 = vmatpush1.msra.mxu0 0.0
    %5560 = vmatprep.subr.mxu0 0.0
    %5561 = vmatpush1.msra.mxu0 0.0
    %5562 = vmatprep.subr.mxu0 0.0
    %5563 = vmatpush1.msra.mxu0 0.0
    %5564 = vmatprep.subr.mxu0 0.0
    %5565 = vmatpush1.msra.mxu0 0.0
    %5566 = vmatprep.subr.mxu0 0.0
    %5567 = vmatpush1.msra.mxu0 0.0
    %5568 = vmatprep.subr.mxu0 0.0
    %5569 = vmatpush1.msra.mxu0 0.0
    %5570 = vmatprep.subr.mxu0 0.0
    %5571 = vmatpush1.msra.mxu0 0.0
    %5572 = vmatprep.subr.mxu0 0.0
    %5573 = vmatpush1.msra.mxu0 0.0
    %5574 = vmatprep.subr.mxu0 0.0
    %5575 = vmatpush1.msra.mxu0 0.0
    %5576 = vmatprep.subr.mxu0 0.0
    %5577 = vmatpush1.msra.mxu0 0.0
    %5578 = vmatprep.subr.mxu0 0.0
    %5579 = vmatpush1.msra.mxu0 0.0
    %5580 = vmatprep.subr.mxu0 0.0
    %5581 = vmatpush1.msra.mxu0 0.0
    %5582 = vmatprep.subr.mxu0 0.0
    %5583 = vmatpush1.msra.mxu0 0.0
    %5584 = vmatprep.subr.mxu0 0.0
    %5585 = vmatpush1.msra.mxu0 0.0
    %5586 = vmatprep.subr.mxu0 0.0
    %5587 = vmatpush1.msra.mxu0 0.0
    %5588 = vmatprep.subr.mxu0 0.0
    %5589 = vmatpush1.msra.mxu0 0.0
    %5590 = vmatprep.subr.mxu0 0.0
    %5591 = vmatpush1.msra.mxu0 0.0
    %5592 = vmatprep.subr.mxu0 0.0
    %5593 = vmatpush1.msra.mxu0 0.0
    %5594 = vmatprep.subr.mxu0 0.0
    %5595 = vmatpush1.msra.mxu0 0.0
    %5596 = vmatprep.mubr.f32.mxu0 0.0
    %5597 = vmatmul.mubr.f32.gmra.mrb[0].mxu0 %v5530
    %v5598 = vpop.f32.mrb[0].mxu0
    %v5599 = vadd.f32 %v5517, %v5598
    %v5600 = vpop.f32.mrb[0].mxu0
    %5601 = vdwg.mxu0
    %v5602 = vadd.f32 %v5599, %v2493
    %v5603 = vadd.f32 %v5602, %v3165
    %vm5604 = vcmask 254976
    %5605 = vst.msk [vmem:[#allocation7] sm:$0x3] %vm5604, 0.0
    %5606 = vst.msk [vmem:[#allocation7 + $0x2] sm:$0x3] %vm5604, %v3167
    %5607 = vst.msk [vmem:[#allocation7 + $0x4] sm:$0x3] %vm5604, %v3776
    %5608 = vst.msk [vmem:[#allocation7 + $0x6] sm:$0x3] %vm5604, %v4385
    %5609 = vst.msk [vmem:[#allocation7 + $0x8] sm:$0x3] %vm5604, %v4994
    %5610 = vst.msk [vmem:[#allocation7 + $0xa] sm:$0x3] %vm5604, %v5603
    // Predicated region
    $region106: #{seq2seq_forward.1} parent=1 // pred_check
      _
    $region107: #{seq2seq_forward.1} parent=1 // pred_check_branch
      %5612 = sbr.rel (0) target = $region109
    $region108: #{seq2seq_forward.1} parent=1 // pred_region
      %s5614 = ssub.s32 192, 192
      %5615 = vsyncadd [#allocation4], %s5614
      %s5616 = sshll.u32 [#allocation7], 4
      %s5617 = int_to_ptr.vmem [resolvable:$true] %s5616
      %5622 = dma.vmem_to_hbm [thread:$0]  %s5617, 192, %s24, [#allocation4], 32, 32, 2
    $region109: #{seq2seq_forward.1} parent=1 // pred_fallthru
      _
    // Predicated region
    $region110: #{seq2seq_forward.1} parent=1 // pred_check
      _
    $region111: #{seq2seq_forward.1} parent=1 // pred_check_branch
      %5624 = sbr.rel (0) target = $region113
    $region112: #{seq2seq_forward.1} parent=1 // pred_region
      %5625 = dma.done [#allocation4], 192
    $region113: #{seq2seq_forward.1} parent=1 // pred_fallthru
      _
    %5626 = vsyncpa [#allocation3], 1
    %5627 = vsyncpa [#allocation6], 1
    %5628 = vsyncpa [#allocation4], 1

</llo_original>
